<compile_context>
chip_gen: v6e
topology: v6e:2x2x1
jax: 0.10.0
libtpu: 0.0.40
codegen_flags: <defaults>
</compile_context>

<pallas_src>
import functools

import jax
import jax.numpy as jnp
from jax.experimental import pallas as pl
from jax.experimental.pallas import tpu as pltpu

_SQRT1_2 = 0.7071067811865476
_VMEM_LIMIT = 48 * 1024 * 1024   # fits v7x's 64 MiB physical VMEM with headroom


def _gelu(x):
    # exact (erf) GELU, matching torch.nn.GELU(approximate='none')
    return 0.5 * x * (1.0 + jax.lax.erf(x * _SQRT1_2))


# --------------------------- fused conv stem ---------------------------------
#
# conv1(3x3, pad=1)+BN+GELU + conv2(3x3, pad=1)+BN+GELU for one image, fully in
# VMEM.  The image is flattened to (rows * padded_width, C); a 3x3 conv is then
# 9 accumulated matmuls over row-shifted contiguous slices.  Garbage produced
# at the padding columns is masked to zero before it is re-used as conv2's
# zero padding.

def _stem_kernel(x_ref, mask_ref, w1_ref, s1_ref, b1_ref,
                 w2_ref, s2_ref, b2_ref, o_ref, zf_ref, *, H, W):
    Wp = W + 2                 # padded width
    L = H * Wp                 # number of flat output positions per conv

    def conv3x3(flat_f32, w_ref, scale, shift):
        cout = w_ref.shape[-1]
        acc = jnp.zeros((L, cout), jnp.float32)
        for t in range(9):
            off = (t // 3) * Wp + (t % 3)
            lhs = flat_f32[off:off + L, :].astype(jnp.bfloat16)
            acc += jnp.dot(lhs, w_ref[t], preferred_element_type=jnp.float32)
        # folded eval-mode BN + exact GELU, in f32 on the VPU/EUP
        return _gelu(acc * scale + shift)

    # ---- conv1 + BN + GELU ----
    y1 = conv3x3(x_ref[0], w1_ref, s1_ref[...], b1_ref[...])        # (L, 64) f32

    # ---- rebuild a zero-padded flat image for conv2; the mask zeroes the
    #      garbage that sits exactly where conv2's zero padding must be ----
    zf_ref[...] = jnp.zeros_like(zf_ref)
    zf_ref[Wp + 1:Wp + 1 + L, :] = y1 * mask_ref[...]

    # ---- conv2 + BN + GELU ----
    y2 = conv3x3(zf_ref[...], w2_ref, s2_ref[...], b2_ref[...])     # (L, 64) f32

    # ---- drop the padding columns, emit (H*W, 64) ----
    for h in range(H):
        o_ref[0, h * W:(h + 1) * W, :] = (
            y2[h * Wp:h * Wp + W, :].astype(o_ref.dtype))


def conv_stem(x_nhwc, p):
    """x_nhwc: (B, H, W, Cin) f32 -> (B, H*W, 64) bf16 (conv2+BN+GELU output)."""
    B, H, W, Cin = x_nhwc.shape
    Wp = W + 2
    Lin = (H + 3) * Wp          # 1 top + 2 bottom + 1 left + 1 right padding
    L = H * Wp

    # zero-pad and flatten rows in the wrapper (1x traffic of a tiny input)
    xp = jnp.pad(x_nhwc, ((0, 0), (1, 2), (1, 1), (0, 0)))
    xp = xp.reshape(B, Lin, Cin)

    # validity mask of the flattened layout (0 at padding columns)
    col = jnp.arange(L, dtype=jnp.int32) % Wp
    mask = (col < W).astype(jnp.float32).reshape(L, 1)

    kern = functools.partial(_stem_kernel, H=H, W=W)
    return pl.pallas_call(
        kern,
        out_shape=jax.ShapeDtypeStruct((B, H * W, 64), jnp.bfloat16),
        grid=(B,),
        in_specs=[
            pl.BlockSpec((1, Lin, Cin), lambda b: (b, 0, 0)),
            pl.BlockSpec((L, 1), lambda b: (0, 0)),
            pl.BlockSpec((9, Cin, 64), lambda b: (0, 0, 0)),
            pl.BlockSpec((1, 64), lambda b: (0, 0)),
            pl.BlockSpec((1, 64), lambda b: (0, 0)),
            pl.BlockSpec((9, 64, 64), lambda b: (0, 0, 0)),
            pl.BlockSpec((1, 64), lambda b: (0, 0)),
            pl.BlockSpec((1, 64), lambda b: (0, 0)),
        ],
        out_specs=pl.BlockSpec((1, H * W, 64), lambda b: (b, 0, 0)),
        scratch_shapes=[pltpu.VMEM((Lin, 64), jnp.float32)],
        compiler_params=pltpu.CompilerParams(
            dimension_semantics=("parallel",),
            vmem_limit_bytes=_VMEM_LIMIT),
    )(xp, mask, p["w_c1"], p["s_c1"], p["sh_c1"],
      p["w_c2"], p["s_c2"], p["sh_c2"])


# --------------------------- patchify matmul ---------------------------------

def _patch_kernel(x_ref, w_ref, b_ref, o_ref):
    acc = jnp.dot(x_ref[...], w_ref[...], preferred_element_type=jnp.float32)
    o_ref[...] = acc + b_ref[...]


def patch_embed(x_patches, w, b, *, tm=256):
    """(M, p*p*64) bf16 @ (p*p*64, dim) bf16 + bias -> (M, dim) f32, M-tiled."""
    M, K = x_patches.shape
    N = w.shape[1]
    TM = min(tm, M)
    return pl.pallas_call(
        _patch_kernel,
        out_shape=jax.ShapeDtypeStruct((M, N), jnp.float32),
        grid=(pl.cdiv(M, TM),),
        in_specs=[
            pl.BlockSpec((TM, K), lambda i: (i, 0)),
            pl.BlockSpec((K, N), lambda i: (0, 0)),
            pl.BlockSpec((1, N), lambda i: (0, 0)),
        ],
        out_specs=pl.BlockSpec((TM, N), lambda i: (i, 0)),
        compiler_params=pltpu.CompilerParams(
            dimension_semantics=("parallel",),
            vmem_limit_bytes=_VMEM_LIMIT),
    )(x_patches, w, b)


# ----------------------- depth-fused MLP blocks ------------------------------

def _mlp_depth_kernel(x_ref, a1_ref, be1_ref, wtok_ref, toksh_ref, g1_ref,
                      a2_ref, be2_ref, w1_ref, b1_ref, w2_ref, b2_ref, g2_ref,
                      affa_ref, affb_ref, o_ref, *, tb, n):
    d = pl.program_id(1)
    depth = pl.num_programs(1)

    @pl.when(d == 0)
    def _():
        o_ref[...] = x_ref[...]           # initialise the resident carry

    x = o_ref[...]                        # (tb*n, D) f32 carry, VMEM-resident
    a1, be1 = a1_ref[0], be1_ref[0]
    g1, toksh = g1_ref[0], toksh_ref[0]
    wtok = wtok_ref[0]                    # (n, n) bf16

    x1 = x * a1 + be1                                      # pre_affine
    parts = []
    for s in range(tb):                                    # token mix, per sample
        xs = x1[s * n:(s + 1) * n, :]
        t = jnp.dot(wtok, xs.astype(jnp.bfloat16),
                    preferred_element_type=jnp.float32)
        # xs + gamma_1 * (W_tok @ xs + b_tok)   (toksh = gamma_1 * b_tok)
        parts.append(xs + g1 * t + toksh)
    x2 = jnp.concatenate(parts, axis=0) if tb > 1 else parts[0]

    x3 = x2 * a2_ref[0] + be2_ref[0]                       # post_affine
    h = _gelu(jnp.dot(x3.astype(jnp.bfloat16), w1_ref[0],
                      preferred_element_type=jnp.float32) + b1_ref[0])
    f = jnp.dot(h.astype(jnp.bfloat16), w2_ref[0],
                preferred_element_type=jnp.float32) + b2_ref[0]
    x4 = x3 + g2_ref[0] * f                                # residual w/ gamma_2

    @pl.when(d < depth - 1)
    def _():
        o_ref[...] = x4.astype(o_ref.dtype)

    @pl.when(d == depth - 1)
    def _():
        # final Aff folded into the last block iteration
        o_ref[...] = (x4 * affa_ref[...] + affb_ref[...]).astype(o_ref.dtype)


def _pick_tb(B, n, target):
    # smallest divisor of B giving >= `target` rows per block (or all of B)
    # while keeping the block sublane-aligned.
    want = min(target, B * n)
    for tb in range(1, B + 1):
        if B % tb:
            continue
        if tb * n >= want and (tb == B or (tb * n) % 8 == 0):
            return tb
    return B


def mlp_blocks(x, p, *, target_rows=256):
    """All MLP blocks + final Aff.  x: (B*num_patch, D) f32 -> same shape."""
    M, D = x.shape
    depth, n, _ = p["w_tok"].shape
    Hd = p["w1"].shape[-1]
    B = M // n
    tb = _pick_tb(B, n, target_rows)
    grid = (B // tb, depth)

    weight_bytes = 2 * (n * n + 2 * D * Hd) + 4 * (n * D + 8 * D + Hd)
    cost = pl.CostEstimate(
        flops=2 * M * depth * (n * D + 2 * D * Hd),
        transcendentals=M * depth * Hd,
        bytes_accessed=8 * M * D + (B // tb) * depth * weight_bytes)

    row_spec = pl.BlockSpec((tb * n, D), lambda b, d: (b, 0))

    def dspec(shape):
        return pl.BlockSpec((1,) + shape[1:],
                            lambda b, d: (d,) + (0,) * (len(shape) - 1))

    kern = functools.partial(_mlp_depth_kernel, tb=tb, n=n)
    return pl.pallas_call(
        kern,
        out_shape=jax.ShapeDtypeStruct((M, D), jnp.float32),
        grid=grid,
        in_specs=[
            row_spec,
            dspec(p["alpha1"].shape), dspec(p["beta1"].shape),
            dspec(p["w_tok"].shape), dspec(p["tok_shift"].shape),
            dspec(p["gamma1"].shape),
            dspec(p["alpha2"].shape), dspec(p["beta2"].shape),
            dspec(p["w1"].shape), dspec(p["b1"].shape),
            dspec(p["w2"].shape), dspec(p["b2"].shape),
            dspec(p["gamma2"].shape),
            pl.BlockSpec((1, D), lambda b, d: (0, 0)),
            pl.BlockSpec((1, D), lambda b, d: (0, 0)),
        ],
        out_specs=row_spec,
        compiler_params=pltpu.CompilerParams(
            dimension_semantics=("parallel", "arbitrary"),
            vmem_limit_bytes=_VMEM_LIMIT),
        cost_estimate=cost,
    )(x, p["alpha1"], p["beta1"], p["w_tok"], p["tok_shift"], p["gamma1"],
      p["alpha2"], p["beta2"], p["w1"], p["b1"], p["w2"], p["b2"], p["gamma2"],
      p["aff_alpha"], p["aff_beta"])


# ------------------------------- params --------------------------------------

def init_params(key, *, in_channels, dim, patch_size, image_size, depth, mlp_dim):
    num_patch = (image_size // patch_size) ** 2
    keys = iter(jax.random.split(key, 64))

    def randn(shape, scale=0.05):
        return (scale * jax.random.normal(next(keys), shape)).astype(jnp.float32)

    def bn_fold(conv_b, cout):
        # eval-mode BatchNorm2d, default running stats (gamma=1, beta=0, mean=0, var=1)
        eps = 1e-5
        s = jnp.ones((cout,), jnp.float32) / jnp.sqrt(1.0 + eps)
        shift = conv_b * s
        return s.reshape(1, cout), shift.reshape(1, cout)

    p = {}
    # conv1 / conv2: one (Cin, Cout) matrix per 3x3 tap, stored bf16 (MXU operand)
    p["w_c1"] = randn((9, in_channels, 64)).astype(jnp.bfloat16)
    p["s_c1"], p["sh_c1"] = bn_fold(randn((64,)), 64)
    p["w_c2"] = randn((9, 64, 64)).astype(jnp.bfloat16)
    p["s_c2"], p["sh_c2"] = bn_fold(randn((64,)), 64)
    # patchify conv (kernel = stride = patch_size): matmul weight + bias
    p["w_patch"] = randn((patch_size * patch_size * 64, dim)).astype(jnp.bfloat16)
    p["b_patch"] = randn((1, dim))

    # MLP blocks: parameters stacked along a leading depth axis so one
    # pallas_call can index them with the depth grid axis.
    g1 = jnp.full((depth, 1, dim), 1e-4, jnp.float32)
    b_tok = randn((depth, num_patch, 1))
    p["alpha1"] = jnp.ones((depth, 1, dim), jnp.float32)
    p["beta1"] = jnp.zeros((depth, 1, dim), jnp.float32)
    p["w_tok"] = randn((depth, num_patch, num_patch)).astype(jnp.bfloat16)
    p["tok_shift"] = (g1 * b_tok).astype(jnp.float32)   # gamma_1 * token-mix bias
    p["gamma1"] = g1
    p["alpha2"] = jnp.ones((depth, 1, dim), jnp.float32)
    p["beta2"] = jnp.zeros((depth, 1, dim), jnp.float32)
    p["w1"] = randn((depth, dim, mlp_dim)).astype(jnp.bfloat16)
    p["b1"] = randn((depth, 1, mlp_dim))
    p["w2"] = randn((depth, mlp_dim, dim)).astype(jnp.bfloat16)
    p["b2"] = randn((depth, 1, dim))
    p["gamma2"] = jnp.full((depth, 1, dim), 1e-4, jnp.float32)
    p["aff_alpha"] = jnp.ones((1, dim), jnp.float32)
    p["aff_beta"] = jnp.zeros((1, dim), jnp.float32)
    return p


# ------------------------------- forward --------------------------------------

def conv_resmlp2_forward(x_nchw, params, patch_size):
    # NCHW (PyTorch) -> NHWC (kernel layout)
    x = jnp.transpose(x_nchw, (0, 2, 3, 1)).astype(jnp.float32)
    B, H, W, _ = x.shape
    pz = patch_size
    Hp, Wp = H // pz, W // pz
    dim = params["w_patch"].shape[1]

    # fused conv stem -> (B, H*W, 64) bf16, 64-channel intermediate stays in VMEM
    x = conv_stem(x, params)

    # patch rearrangement (cheap XLA relayout, 1x traffic) + patchify matmul;
    # the 'b c h w -> b (h w) c' rearrange falls out of the NHWC layout.
    x = x.reshape(B, Hp, pz, Wp, pz, 64).transpose(0, 1, 3, 2, 4, 5)
    x = x.reshape(B * Hp * Wp, pz * pz * 64)
    x = patch_embed(x, params["w_patch"], params["b_patch"])     # (B*N, dim) f32

    # all MLP blocks + final Aff in one kernel, activation VMEM-resident
    x = mlp_blocks(x, params)
    return x.reshape(B, Hp * Wp, dim)


if __name__ == "__main__":
    B, C, IMG, P, DIM, DEPTH, MLP = 2, 3, 16, 4, 128, 2, 256
    key = jax.random.PRNGKey(0)
    kx, kp = jax.random.split(key)
    x = jax.random.normal(kx, (B, C, IMG, IMG), dtype=jnp.float32)
    params = init_params(kp, in_channels=C, dim=DIM, patch_size=P,
                         image_size=IMG, depth=DEPTH, mlp_dim=MLP)
    fwd = jax.jit(functools.partial(conv_resmlp2_forward, patch_size=P))
    out = fwd(x, params)
    jax.block_until_ready(out)
    assert out.shape == (B, (IMG // P) ** 2, DIM), out.shape
    assert bool(jnp.all(jnp.isfinite(out)))
    print("KERNEL_OK")
</pallas_src>

<mosaic_0001>
module attributes {stable_mosaic.version = 11 : i64} {
  func.func @_stem_kernel(%arg0: i32, %arg1: memref<1x342x3xf32, #tpu.memory_space<vmem>>, %arg2: memref<288x1xf32, #tpu.memory_space<vmem>>, %arg3: memref<9x3x64xbf16, #tpu.memory_space<vmem>>, %arg4: memref<1x64xf32, #tpu.memory_space<vmem>>, %arg5: memref<1x64xf32, #tpu.memory_space<vmem>>, %arg6: memref<9x64x64xbf16, #tpu.memory_space<vmem>>, %arg7: memref<1x64xf32, #tpu.memory_space<vmem>>, %arg8: memref<1x64xf32, #tpu.memory_space<vmem>>, %arg9: memref<1x256x64xbf16, #tpu.memory_space<vmem>>, %arg10: memref<342x64xf32, #tpu.memory_space<vmem>>) attributes {dimension_semantics = [#tpu.dimension_semantics<parallel>], iteration_bounds = array<i64: 2>, scalar_prefetch = 0 : i64, scratch_operands = 1 : i64, tpu.core_type = #tpu.core_type<tc>, window_params = [{transform_indices = @transform_0, window_bounds = array<i64: 1, 342, 3>}, {pipeline_mode = #tpu.pipeline_mode<synchronous>, transform_indices = @transform_1, window_bounds = array<i64: 288, 1>}, {pipeline_mode = #tpu.pipeline_mode<synchronous>, transform_indices = @transform_2, window_bounds = array<i64: 9, 3, 64>}, {pipeline_mode = #tpu.pipeline_mode<synchronous>, transform_indices = @transform_3, window_bounds = array<i64: 1, 64>}, {pipeline_mode = #tpu.pipeline_mode<synchronous>, transform_indices = @transform_4, window_bounds = array<i64: 1, 64>}, {pipeline_mode = #tpu.pipeline_mode<synchronous>, transform_indices = @transform_5, window_bounds = array<i64: 9, 64, 64>}, {pipeline_mode = #tpu.pipeline_mode<synchronous>, transform_indices = @transform_6, window_bounds = array<i64: 1, 64>}, {pipeline_mode = #tpu.pipeline_mode<synchronous>, transform_indices = @transform_7, window_bounds = array<i64: 1, 64>}, {transform_indices = @transform_8, window_bounds = array<i64: 1, 256, 64>}]} {
    %c0 = arith.constant 0 : index
    %c0_0 = arith.constant 0 : index
    %c0_1 = arith.constant 0 : index
    %0 = vector.load %arg1[%c0, %c0_0, %c0_1] : memref<1x342x3xf32, #tpu.memory_space<vmem>>, vector<1x342x3xf32>
    %1 = vector.shape_cast %0 : vector<1x342x3xf32> to vector<342x3xf32>
    %c0_2 = arith.constant 0 : index
    %c0_3 = arith.constant 0 : index
    %2 = vector.load %arg4[%c0_2, %c0_3] : memref<1x64xf32, #tpu.memory_space<vmem>>, vector<1x64xf32>
    %c0_4 = arith.constant 0 : index
    %c0_5 = arith.constant 0 : index
    %3 = vector.load %arg5[%c0_4, %c0_5] : memref<1x64xf32, #tpu.memory_space<vmem>>, vector<1x64xf32>
    %cst = arith.constant 0.000000e+00 : f32
    %4 = vector.broadcast %cst : f32 to vector<288x64xf32>
    %5 = vector.extract_strided_slice %1 {offsets = [0, 0], sizes = [288, 3], strides = [1, 1]} : vector<342x3xf32> to vector<288x3xf32>
    %6 = arith.truncf %5 : vector<288x3xf32> to vector<288x3xbf16>
    %c0_6 = arith.constant 0 : index
    %c0_7 = arith.constant 0 : index
    %c0_8 = arith.constant 0 : index
    %7 = vector.load %arg3[%c0_6, %c0_7, %c0_8] : memref<9x3x64xbf16, #tpu.memory_space<vmem>>, vector<1x3x64xbf16>
    %8 = vector.shape_cast %7 : vector<1x3x64xbf16> to vector<3x64xbf16>
    %cst_9 = arith.constant dense<0.000000e+00> : vector<288x64xf32>
    %9 = tpu.matmul %6, %8, %cst_9 {dimension_numbers = #tpu.dot_dimension_numbers<[1], [0], [0], [1], [0, 0, 1, 1], [], []>} : vector<288x3xbf16>, vector<3x64xbf16>, vector<288x64xf32> -> vector<288x64xf32>
    %10 = arith.addf %4, %9 : vector<288x64xf32>
    %11 = vector.extract_strided_slice %1 {offsets = [1, 0], sizes = [288, 3], strides = [1, 1]} : vector<342x3xf32> to vector<288x3xf32>
    %12 = arith.truncf %11 : vector<288x3xf32> to vector<288x3xbf16>
    %c1 = arith.constant 1 : index
    %c0_10 = arith.constant 0 : index
    %c0_11 = arith.constant 0 : index
    %13 = vector.load %arg3[%c1, %c0_10, %c0_11] : memref<9x3x64xbf16, #tpu.memory_space<vmem>>, vector<1x3x64xbf16>
    %14 = vector.shape_cast %13 : vector<1x3x64xbf16> to vector<3x64xbf16>
    %cst_12 = arith.constant dense<0.000000e+00> : vector<288x64xf32>
    %15 = tpu.matmul %12, %14, %cst_12 {dimension_numbers = #tpu.dot_dimension_numbers<[1], [0], [0], [1], [0, 0, 1, 1], [], []>} : vector<288x3xbf16>, vector<3x64xbf16>, vector<288x64xf32> -> vector<288x64xf32>
    %16 = arith.addf %10, %15 : vector<288x64xf32>
    %17 = vector.extract_strided_slice %1 {offsets = [2, 0], sizes = [288, 3], strides = [1, 1]} : vector<342x3xf32> to vector<288x3xf32>
    %18 = arith.truncf %17 : vector<288x3xf32> to vector<288x3xbf16>
    %c2 = arith.constant 2 : index
    %c0_13 = arith.constant 0 : index
    %c0_14 = arith.constant 0 : index
    %19 = vector.load %arg3[%c2, %c0_13, %c0_14] : memref<9x3x64xbf16, #tpu.memory_space<vmem>>, vector<1x3x64xbf16>
    %20 = vector.shape_cast %19 : vector<1x3x64xbf16> to vector<3x64xbf16>
    %cst_15 = arith.constant dense<0.000000e+00> : vector<288x64xf32>
    %21 = tpu.matmul %18, %20, %cst_15 {dimension_numbers = #tpu.dot_dimension_numbers<[1], [0], [0], [1], [0, 0, 1, 1], [], []>} : vector<288x3xbf16>, vector<3x64xbf16>, vector<288x64xf32> -> vector<288x64xf32>
    %22 = arith.addf %16, %21 : vector<288x64xf32>
    %23 = vector.extract_strided_slice %1 {offsets = [18, 0], sizes = [288, 3], strides = [1, 1]} : vector<342x3xf32> to vector<288x3xf32>
    %24 = arith.truncf %23 : vector<288x3xf32> to vector<288x3xbf16>
    %c3 = arith.constant 3 : index
    %c0_16 = arith.constant 0 : index
    %c0_17 = arith.constant 0 : index
    %25 = vector.load %arg3[%c3, %c0_16, %c0_17] : memref<9x3x64xbf16, #tpu.memory_space<vmem>>, vector<1x3x64xbf16>
    %26 = vector.shape_cast %25 : vector<1x3x64xbf16> to vector<3x64xbf16>
    %cst_18 = arith.constant dense<0.000000e+00> : vector<288x64xf32>
    %27 = tpu.matmul %24, %26, %cst_18 {dimension_numbers = #tpu.dot_dimension_numbers<[1], [0], [0], [1], [0, 0, 1, 1], [], []>} : vector<288x3xbf16>, vector<3x64xbf16>, vector<288x64xf32> -> vector<288x64xf32>
    %28 = arith.addf %22, %27 : vector<288x64xf32>
    %29 = vector.extract_strided_slice %1 {offsets = [19, 0], sizes = [288, 3], strides = [1, 1]} : vector<342x3xf32> to vector<288x3xf32>
    %30 = arith.truncf %29 : vector<288x3xf32> to vector<288x3xbf16>
    %c4 = arith.constant 4 : index
    %c0_19 = arith.constant 0 : index
    %c0_20 = arith.constant 0 : index
    %31 = vector.load %arg3[%c4, %c0_19, %c0_20] : memref<9x3x64xbf16, #tpu.memory_space<vmem>>, vector<1x3x64xbf16>
    %32 = vector.shape_cast %31 : vector<1x3x64xbf16> to vector<3x64xbf16>
    %cst_21 = arith.constant dense<0.000000e+00> : vector<288x64xf32>
    %33 = tpu.matmul %30, %32, %cst_21 {dimension_numbers = #tpu.dot_dimension_numbers<[1], [0], [0], [1], [0, 0, 1, 1], [], []>} : vector<288x3xbf16>, vector<3x64xbf16>, vector<288x64xf32> -> vector<288x64xf32>
    %34 = arith.addf %28, %33 : vector<288x64xf32>
    %35 = vector.extract_strided_slice %1 {offsets = [20, 0], sizes = [288, 3], strides = [1, 1]} : vector<342x3xf32> to vector<288x3xf32>
    %36 = arith.truncf %35 : vector<288x3xf32> to vector<288x3xbf16>
    %c5 = arith.constant 5 : index
    %c0_22 = arith.constant 0 : index
    %c0_23 = arith.constant 0 : index
    %37 = vector.load %arg3[%c5, %c0_22, %c0_23] : memref<9x3x64xbf16, #tpu.memory_space<vmem>>, vector<1x3x64xbf16>
    %38 = vector.shape_cast %37 : vector<1x3x64xbf16> to vector<3x64xbf16>
    %cst_24 = arith.constant dense<0.000000e+00> : vector<288x64xf32>
    %39 = tpu.matmul %36, %38, %cst_24 {dimension_numbers = #tpu.dot_dimension_numbers<[1], [0], [0], [1], [0, 0, 1, 1], [], []>} : vector<288x3xbf16>, vector<3x64xbf16>, vector<288x64xf32> -> vector<288x64xf32>
    %40 = arith.addf %34, %39 : vector<288x64xf32>
    %41 = vector.extract_strided_slice %1 {offsets = [36, 0], sizes = [288, 3], strides = [1, 1]} : vector<342x3xf32> to vector<288x3xf32>
    %42 = arith.truncf %41 : vector<288x3xf32> to vector<288x3xbf16>
    %c6 = arith.constant 6 : index
    %c0_25 = arith.constant 0 : index
    %c0_26 = arith.constant 0 : index
    %43 = vector.load %arg3[%c6, %c0_25, %c0_26] : memref<9x3x64xbf16, #tpu.memory_space<vmem>>, vector<1x3x64xbf16>
    %44 = vector.shape_cast %43 : vector<1x3x64xbf16> to vector<3x64xbf16>
    %cst_27 = arith.constant dense<0.000000e+00> : vector<288x64xf32>
    %45 = tpu.matmul %42, %44, %cst_27 {dimension_numbers = #tpu.dot_dimension_numbers<[1], [0], [0], [1], [0, 0, 1, 1], [], []>} : vector<288x3xbf16>, vector<3x64xbf16>, vector<288x64xf32> -> vector<288x64xf32>
    %46 = arith.addf %40, %45 : vector<288x64xf32>
    %47 = vector.extract_strided_slice %1 {offsets = [37, 0], sizes = [288, 3], strides = [1, 1]} : vector<342x3xf32> to vector<288x3xf32>
    %48 = arith.truncf %47 : vector<288x3xf32> to vector<288x3xbf16>
    %c7 = arith.constant 7 : index
    %c0_28 = arith.constant 0 : index
    %c0_29 = arith.constant 0 : index
    %49 = vector.load %arg3[%c7, %c0_28, %c0_29] : memref<9x3x64xbf16, #tpu.memory_space<vmem>>, vector<1x3x64xbf16>
    %50 = vector.shape_cast %49 : vector<1x3x64xbf16> to vector<3x64xbf16>
    %cst_30 = arith.constant dense<0.000000e+00> : vector<288x64xf32>
    %51 = tpu.matmul %48, %50, %cst_30 {dimension_numbers = #tpu.dot_dimension_numbers<[1], [0], [0], [1], [0, 0, 1, 1], [], []>} : vector<288x3xbf16>, vector<3x64xbf16>, vector<288x64xf32> -> vector<288x64xf32>
    %52 = arith.addf %46, %51 : vector<288x64xf32>
    %53 = vector.extract_strided_slice %1 {offsets = [38, 0], sizes = [288, 3], strides = [1, 1]} : vector<342x3xf32> to vector<288x3xf32>
    %54 = arith.truncf %53 : vector<288x3xf32> to vector<288x3xbf16>
    %c8 = arith.constant 8 : index
    %c0_31 = arith.constant 0 : index
    %c0_32 = arith.constant 0 : index
    %55 = vector.load %arg3[%c8, %c0_31, %c0_32] : memref<9x3x64xbf16, #tpu.memory_space<vmem>>, vector<1x3x64xbf16>
    %56 = vector.shape_cast %55 : vector<1x3x64xbf16> to vector<3x64xbf16>
    %cst_33 = arith.constant dense<0.000000e+00> : vector<288x64xf32>
    %57 = tpu.matmul %54, %56, %cst_33 {dimension_numbers = #tpu.dot_dimension_numbers<[1], [0], [0], [1], [0, 0, 1, 1], [], []>} : vector<288x3xbf16>, vector<3x64xbf16>, vector<288x64xf32> -> vector<288x64xf32>
    %58 = arith.addf %52, %57 : vector<288x64xf32>
    %59 = vector.broadcast %2 : vector<1x64xf32> to vector<288x64xf32>
    %60 = arith.mulf %58, %59 : vector<288x64xf32>
    %61 = vector.broadcast %3 : vector<1x64xf32> to vector<288x64xf32>
    %62 = arith.addf %60, %61 : vector<288x64xf32>
    %cst_34 = arith.constant 5.000000e-01 : f32
    %63 = vector.broadcast %cst_34 : f32 to vector<288x64xf32>
    %64 = arith.mulf %63, %62 : vector<288x64xf32>
    %cst_35 = arith.constant 0.707106769 : f32
    %65 = vector.broadcast %cst_35 : f32 to vector<288x64xf32>
    %66 = arith.mulf %62, %65 : vector<288x64xf32>
    %67 = math.erf %66 : vector<288x64xf32>
    %cst_36 = arith.constant 1.000000e+00 : f32
    %68 = vector.broadcast %cst_36 : f32 to vector<288x64xf32>
    %69 = arith.addf %68, %67 : vector<288x64xf32>
    %70 = arith.mulf %64, %69 : vector<288x64xf32>
    %cst_37 = arith.constant 0.000000e+00 : f32
    %71 = vector.broadcast %cst_37 : f32 to vector<342x64xf32>
    %c0_38 = arith.constant 0 : index
    %c0_39 = arith.constant 0 : index
    %72 = vector.load %arg10[%c0_38, %c0_39] : memref<342x64xf32, #tpu.memory_space<vmem>>, vector<342x64xf32>
    tpu.vector_store %arg10[%c0_38, %c0_39], %71 {strides = array<i32>} : memref<342x64xf32, #tpu.memory_space<vmem>>, vector<342x64xf32>,
    %c0_40 = arith.constant 0 : index
    %c0_41 = arith.constant 0 : index
    %73 = vector.load %arg2[%c0_40, %c0_41] : memref<288x1xf32, #tpu.memory_space<vmem>>, vector<288x1xf32>
    %74 = vector.broadcast %73 : vector<288x1xf32> to vector<288x64xf32>
    %75 = arith.mulf %70, %74 : vector<288x64xf32>
    %c19 = arith.constant 19 : index
    %c0_42 = arith.constant 0 : index
    %76 = vector.load %arg10[%c19, %c0_42] : memref<342x64xf32, #tpu.memory_space<vmem>>, vector<288x64xf32>
    tpu.vector_store %arg10[%c19, %c0_42], %75 {strides = array<i32>} : memref<342x64xf32, #tpu.memory_space<vmem>>, vector<288x64xf32>,
    %c0_43 = arith.constant 0 : index
    %c0_44 = arith.constant 0 : index
    %77 = vector.load %arg10[%c0_43, %c0_44] : memref<342x64xf32, #tpu.memory_space<vmem>>, vector<342x64xf32>
    %c0_45 = arith.constant 0 : index
    %c0_46 = arith.constant 0 : index
    %78 = vector.load %arg7[%c0_45, %c0_46] : memref<1x64xf32, #tpu.memory_space<vmem>>, vector<1x64xf32>
    %c0_47 = arith.constant 0 : index
    %c0_48 = arith.constant 0 : index
    %79 = vector.load %arg8[%c0_47, %c0_48] : memref<1x64xf32, #tpu.memory_space<vmem>>, vector<1x64xf32>
    %cst_49 = arith.constant 0.000000e+00 : f32
    %80 = vector.broadcast %cst_49 : f32 to vector<288x64xf32>
    %81 = vector.extract_strided_slice %77 {offsets = [0, 0], sizes = [288, 64], strides = [1, 1]} : vector<342x64xf32> to vector<288x64xf32>
    %82 = arith.truncf %81 : vector<288x64xf32> to vector<288x64xbf16>
    %c0_50 = arith.constant 0 : index
    %c0_51 = arith.constant 0 : index
    %c0_52 = arith.constant 0 : index
    %83 = vector.load %arg6[%c0_50, %c0_51, %c0_52] : memref<9x64x64xbf16, #tpu.memory_space<vmem>>, vector<1x64x64xbf16>
    %84 = vector.shape_cast %83 : vector<1x64x64xbf16> to vector<64x64xbf16>
    %cst_53 = arith.constant dense<0.000000e+00> : vector<288x64xf32>
    %85 = tpu.matmul %82, %84, %cst_53 {dimension_numbers = #tpu.dot_dimension_numbers<[1], [0], [0], [1], [0, 0, 1, 1], [], []>} : vector<288x64xbf16>, vector<64x64xbf16>, vector<288x64xf32> -> vector<288x64xf32>
    %86 = arith.addf %80, %85 : vector<288x64xf32>
    %87 = vector.extract_strided_slice %77 {offsets = [1, 0], sizes = [288, 64], strides = [1, 1]} : vector<342x64xf32> to vector<288x64xf32>
    %88 = arith.truncf %87 : vector<288x64xf32> to vector<288x64xbf16>
    %c1_54 = arith.constant 1 : index
    %c0_55 = arith.constant 0 : index
    %c0_56 = arith.constant 0 : index
    %89 = vector.load %arg6[%c1_54, %c0_55, %c0_56] : memref<9x64x64xbf16, #tpu.memory_space<vmem>>, vector<1x64x64xbf16>
    %90 = vector.shape_cast %89 : vector<1x64x64xbf16> to vector<64x64xbf16>
    %cst_57 = arith.constant dense<0.000000e+00> : vector<288x64xf32>
    %91 = tpu.matmul %88, %90, %cst_57 {dimension_numbers = #tpu.dot_dimension_numbers<[1], [0], [0], [1], [0, 0, 1, 1], [], []>} : vector<288x64xbf16>, vector<64x64xbf16>, vector<288x64xf32> -> vector<288x64xf32>
    %92 = arith.addf %86, %91 : vector<288x64xf32>
    %93 = vector.extract_strided_slice %77 {offsets = [2, 0], sizes = [288, 64], strides = [1, 1]} : vector<342x64xf32> to vector<288x64xf32>
    %94 = arith.truncf %93 : vector<288x64xf32> to vector<288x64xbf16>
    %c2_58 = arith.constant 2 : index
    %c0_59 = arith.constant 0 : index
    %c0_60 = arith.constant 0 : index
    %95 = vector.load %arg6[%c2_58, %c0_59, %c0_60] : memref<9x64x64xbf16, #tpu.memory_space<vmem>>, vector<1x64x64xbf16>
    %96 = vector.shape_cast %95 : vector<1x64x64xbf16> to vector<64x64xbf16>
    %cst_61 = arith.constant dense<0.000000e+00> : vector<288x64xf32>
    %97 = tpu.matmul %94, %96, %cst_61 {dimension_numbers = #tpu.dot_dimension_numbers<[1], [0], [0], [1], [0, 0, 1, 1], [], []>} : vector<288x64xbf16>, vector<64x64xbf16>, vector<288x64xf32> -> vector<288x64xf32>
    %98 = arith.addf %92, %97 : vector<288x64xf32>
    %99 = vector.extract_strided_slice %77 {offsets = [18, 0], sizes = [288, 64], strides = [1, 1]} : vector<342x64xf32> to vector<288x64xf32>
    %100 = arith.truncf %99 : vector<288x64xf32> to vector<288x64xbf16>
    %c3_62 = arith.constant 3 : index
    %c0_63 = arith.constant 0 : index
    %c0_64 = arith.constant 0 : index
    %101 = vector.load %arg6[%c3_62, %c0_63, %c0_64] : memref<9x64x64xbf16, #tpu.memory_space<vmem>>, vector<1x64x64xbf16>
    %102 = vector.shape_cast %101 : vector<1x64x64xbf16> to vector<64x64xbf16>
    %cst_65 = arith.constant dense<0.000000e+00> : vector<288x64xf32>
    %103 = tpu.matmul %100, %102, %cst_65 {dimension_numbers = #tpu.dot_dimension_numbers<[1], [0], [0], [1], [0, 0, 1, 1], [], []>} : vector<288x64xbf16>, vector<64x64xbf16>, vector<288x64xf32> -> vector<288x64xf32>
    %104 = arith.addf %98, %103 : vector<288x64xf32>
    %105 = vector.extract_strided_slice %77 {offsets = [19, 0], sizes = [288, 64], strides = [1, 1]} : vector<342x64xf32> to vector<288x64xf32>
    %106 = arith.truncf %105 : vector<288x64xf32> to vector<288x64xbf16>
    %c4_66 = arith.constant 4 : index
    %c0_67 = arith.constant 0 : index
    %c0_68 = arith.constant 0 : index
    %107 = vector.load %arg6[%c4_66, %c0_67, %c0_68] : memref<9x64x64xbf16, #tpu.memory_space<vmem>>, vector<1x64x64xbf16>
    %108 = vector.shape_cast %107 : vector<1x64x64xbf16> to vector<64x64xbf16>
    %cst_69 = arith.constant dense<0.000000e+00> : vector<288x64xf32>
    %109 = tpu.matmul %106, %108, %cst_69 {dimension_numbers = #tpu.dot_dimension_numbers<[1], [0], [0], [1], [0, 0, 1, 1], [], []>} : vector<288x64xbf16>, vector<64x64xbf16>, vector<288x64xf32> -> vector<288x64xf32>
    %110 = arith.addf %104, %109 : vector<288x64xf32>
    %111 = vector.extract_strided_slice %77 {offsets = [20, 0], sizes = [288, 64], strides = [1, 1]} : vector<342x64xf32> to vector<288x64xf32>
    %112 = arith.truncf %111 : vector<288x64xf32> to vector<288x64xbf16>
    %c5_70 = arith.constant 5 : index
    %c0_71 = arith.constant 0 : index
    %c0_72 = arith.constant 0 : index
    %113 = vector.load %arg6[%c5_70, %c0_71, %c0_72] : memref<9x64x64xbf16, #tpu.memory_space<vmem>>, vector<1x64x64xbf16>
    %114 = vector.shape_cast %113 : vector<1x64x64xbf16> to vector<64x64xbf16>
    %cst_73 = arith.constant dense<0.000000e+00> : vector<288x64xf32>
    %115 = tpu.matmul %112, %114, %cst_73 {dimension_numbers = #tpu.dot_dimension_numbers<[1], [0], [0], [1], [0, 0, 1, 1], [], []>} : vector<288x64xbf16>, vector<64x64xbf16>, vector<288x64xf32> -> vector<288x64xf32>
    %116 = arith.addf %110, %115 : vector<288x64xf32>
    %117 = vector.extract_strided_slice %77 {offsets = [36, 0], sizes = [288, 64], strides = [1, 1]} : vector<342x64xf32> to vector<288x64xf32>
    %118 = arith.truncf %117 : vector<288x64xf32> to vector<288x64xbf16>
    %c6_74 = arith.constant 6 : index
    %c0_75 = arith.constant 0 : index
    %c0_76 = arith.constant 0 : index
    %119 = vector.load %arg6[%c6_74, %c0_75, %c0_76] : memref<9x64x64xbf16, #tpu.memory_space<vmem>>, vector<1x64x64xbf16>
    %120 = vector.shape_cast %119 : vector<1x64x64xbf16> to vector<64x64xbf16>
    %cst_77 = arith.constant dense<0.000000e+00> : vector<288x64xf32>
    %121 = tpu.matmul %118, %120, %cst_77 {dimension_numbers = #tpu.dot_dimension_numbers<[1], [0], [0], [1], [0, 0, 1, 1], [], []>} : vector<288x64xbf16>, vector<64x64xbf16>, vector<288x64xf32> -> vector<288x64xf32>
    %122 = arith.addf %116, %121 : vector<288x64xf32>
    %123 = vector.extract_strided_slice %77 {offsets = [37, 0], sizes = [288, 64], strides = [1, 1]} : vector<342x64xf32> to vector<288x64xf32>
    %124 = arith.truncf %123 : vector<288x64xf32> to vector<288x64xbf16>
    %c7_78 = arith.constant 7 : index
    %c0_79 = arith.constant 0 : index
    %c0_80 = arith.constant 0 : index
    %125 = vector.load %arg6[%c7_78, %c0_79, %c0_80] : memref<9x64x64xbf16, #tpu.memory_space<vmem>>, vector<1x64x64xbf16>
    %126 = vector.shape_cast %125 : vector<1x64x64xbf16> to vector<64x64xbf16>
    %cst_81 = arith.constant dense<0.000000e+00> : vector<288x64xf32>
    %127 = tpu.matmul %124, %126, %cst_81 {dimension_numbers = #tpu.dot_dimension_numbers<[1], [0], [0], [1], [0, 0, 1, 1], [], []>} : vector<288x64xbf16>, vector<64x64xbf16>, vector<288x64xf32> -> vector<288x64xf32>
    %128 = arith.addf %122, %127 : vector<288x64xf32>
    %129 = vector.extract_strided_slice %77 {offsets = [38, 0], sizes = [288, 64], strides = [1, 1]} : vector<342x64xf32> to vector<288x64xf32>
    %130 = arith.truncf %129 : vector<288x64xf32> to vector<288x64xbf16>
    %c8_82 = arith.constant 8 : index
    %c0_83 = arith.constant 0 : index
    %c0_84 = arith.constant 0 : index
    %131 = vector.load %arg6[%c8_82, %c0_83, %c0_84] : memref<9x64x64xbf16, #tpu.memory_space<vmem>>, vector<1x64x64xbf16>
    %132 = vector.shape_cast %131 : vector<1x64x64xbf16> to vector<64x64xbf16>
    %cst_85 = arith.constant dense<0.000000e+00> : vector<288x64xf32>
    %133 = tpu.matmul %130, %132, %cst_85 {dimension_numbers = #tpu.dot_dimension_numbers<[1], [0], [0], [1], [0, 0, 1, 1], [], []>} : vector<288x64xbf16>, vector<64x64xbf16>, vector<288x64xf32> -> vector<288x64xf32>
    %134 = arith.addf %128, %133 : vector<288x64xf32>
    %135 = vector.broadcast %78 : vector<1x64xf32> to vector<288x64xf32>
    %136 = arith.mulf %134, %135 : vector<288x64xf32>
    %137 = vector.broadcast %79 : vector<1x64xf32> to vector<288x64xf32>
    %138 = arith.addf %136, %137 : vector<288x64xf32>
    %cst_86 = arith.constant 5.000000e-01 : f32
    %139 = vector.broadcast %cst_86 : f32 to vector<288x64xf32>
    %140 = arith.mulf %139, %138 : vector<288x64xf32>
    %cst_87 = arith.constant 0.707106769 : f32
    %141 = vector.broadcast %cst_87 : f32 to vector<288x64xf32>
    %142 = arith.mulf %138, %141 : vector<288x64xf32>
    %143 = math.erf %142 : vector<288x64xf32>
    %cst_88 = arith.constant 1.000000e+00 : f32
    %144 = vector.broadcast %cst_88 : f32 to vector<288x64xf32>
    %145 = arith.addf %144, %143 : vector<288x64xf32>
    %146 = arith.mulf %140, %145 : vector<288x64xf32>
    %147 = vector.extract_strided_slice %146 {offsets = [0, 0], sizes = [16, 64], strides = [1, 1]} : vector<288x64xf32> to vector<16x64xf32>
    %148 = arith.truncf %147 : vector<16x64xf32> to vector<16x64xbf16>
    %c0_89 = arith.constant 0 : index
    %c0_90 = arith.constant 0 : index
    %c0_91 = arith.constant 0 : index
    %149 = vector.load %arg9[%c0_89, %c0_90, %c0_91] : memref<1x256x64xbf16, #tpu.memory_space<vmem>>, vector<1x16x64xbf16>
    %150 = vector.shape_cast %149 : vector<1x16x64xbf16> to vector<16x64xbf16>
    %151 = vector.shape_cast %148 : vector<16x64xbf16> to vector<1x16x64xbf16>
    tpu.vector_store %arg9[%c0_89, %c0_90, %c0_91], %151 {strides = array<i32>} : memref<1x256x64xbf16, #tpu.memory_space<vmem>>, vector<1x16x64xbf16>,
    %152 = vector.extract_strided_slice %146 {offsets = [18, 0], sizes = [16, 64], strides = [1, 1]} : vector<288x64xf32> to vector<16x64xf32>
    %153 = arith.truncf %152 : vector<16x64xf32> to vector<16x64xbf16>
    %c0_92 = arith.constant 0 : index
    %c16 = arith.constant 16 : index
    %c0_93 = arith.constant 0 : index
    %154 = vector.load %arg9[%c0_92, %c16, %c0_93] : memref<1x256x64xbf16, #tpu.memory_space<vmem>>, vector<1x16x64xbf16>
    %155 = vector.shape_cast %154 : vector<1x16x64xbf16> to vector<16x64xbf16>
    %156 = vector.shape_cast %153 : vector<16x64xbf16> to vector<1x16x64xbf16>
    tpu.vector_store %arg9[%c0_92, %c16, %c0_93], %156 {strides = array<i32>} : memref<1x256x64xbf16, #tpu.memory_space<vmem>>, vector<1x16x64xbf16>,
    %157 = vector.extract_strided_slice %146 {offsets = [36, 0], sizes = [16, 64], strides = [1, 1]} : vector<288x64xf32> to vector<16x64xf32>
    %158 = arith.truncf %157 : vector<16x64xf32> to vector<16x64xbf16>
    %c0_94 = arith.constant 0 : index
    %c32 = arith.constant 32 : index
    %c0_95 = arith.constant 0 : index
    %159 = vector.load %arg9[%c0_94, %c32, %c0_95] : memref<1x256x64xbf16, #tpu.memory_space<vmem>>, vector<1x16x64xbf16>
    %160 = vector.shape_cast %159 : vector<1x16x64xbf16> to vector<16x64xbf16>
    %161 = vector.shape_cast %158 : vector<16x64xbf16> to vector<1x16x64xbf16>
    tpu.vector_store %arg9[%c0_94, %c32, %c0_95], %161 {strides = array<i32>} : memref<1x256x64xbf16, #tpu.memory_space<vmem>>, vector<1x16x64xbf16>,
    %162 = vector.extract_strided_slice %146 {offsets = [54, 0], sizes = [16, 64], strides = [1, 1]} : vector<288x64xf32> to vector<16x64xf32>
    %163 = arith.truncf %162 : vector<16x64xf32> to vector<16x64xbf16>
    %c0_96 = arith.constant 0 : index
    %c48 = arith.constant 48 : index
    %c0_97 = arith.constant 0 : index
    %164 = vector.load %arg9[%c0_96, %c48, %c0_97] : memref<1x256x64xbf16, #tpu.memory_space<vmem>>, vector<1x16x64xbf16>
    %165 = vector.shape_cast %164 : vector<1x16x64xbf16> to vector<16x64xbf16>
    %166 = vector.shape_cast %163 : vector<16x64xbf16> to vector<1x16x64xbf16>
    tpu.vector_store %arg9[%c0_96, %c48, %c0_97], %166 {strides = array<i32>} : memref<1x256x64xbf16, #tpu.memory_space<vmem>>, vector<1x16x64xbf16>,
    %167 = vector.extract_strided_slice %146 {offsets = [72, 0], sizes = [16, 64], strides = [1, 1]} : vector<288x64xf32> to vector<16x64xf32>
    %168 = arith.truncf %167 : vector<16x64xf32> to vector<16x64xbf16>
    %c0_98 = arith.constant 0 : index
    %c64 = arith.constant 64 : index
    %c0_99 = arith.constant 0 : index
    %169 = vector.load %arg9[%c0_98, %c64, %c0_99] : memref<1x256x64xbf16, #tpu.memory_space<vmem>>, vector<1x16x64xbf16>
    %170 = vector.shape_cast %169 : vector<1x16x64xbf16> to vector<16x64xbf16>
    %171 = vector.shape_cast %168 : vector<16x64xbf16> to vector<1x16x64xbf16>
    tpu.vector_store %arg9[%c0_98, %c64, %c0_99], %171 {strides = array<i32>} : memref<1x256x64xbf16, #tpu.memory_space<vmem>>, vector<1x16x64xbf16>,
    %172 = vector.extract_strided_slice %146 {offsets = [90, 0], sizes = [16, 64], strides = [1, 1]} : vector<288x64xf32> to vector<16x64xf32>
    %173 = arith.truncf %172 : vector<16x64xf32> to vector<16x64xbf16>
    %c0_100 = arith.constant 0 : index
    %c80 = arith.constant 80 : index
    %c0_101 = arith.constant 0 : index
    %174 = vector.load %arg9[%c0_100, %c80, %c0_101] : memref<1x256x64xbf16, #tpu.memory_space<vmem>>, vector<1x16x64xbf16>
    %175 = vector.shape_cast %174 : vector<1x16x64xbf16> to vector<16x64xbf16>
    %176 = vector.shape_cast %173 : vector<16x64xbf16> to vector<1x16x64xbf16>
    tpu.vector_store %arg9[%c0_100, %c80, %c0_101], %176 {strides = array<i32>} : memref<1x256x64xbf16, #tpu.memory_space<vmem>>, vector<1x16x64xbf16>,
    %177 = vector.extract_strided_slice %146 {offsets = [108, 0], sizes = [16, 64], strides = [1, 1]} : vector<288x64xf32> to vector<16x64xf32>
    %178 = arith.truncf %177 : vector<16x64xf32> to vector<16x64xbf16>
    %c0_102 = arith.constant 0 : index
    %c96 = arith.constant 96 : index
    %c0_103 = arith.constant 0 : index
    %179 = vector.load %arg9[%c0_102, %c96, %c0_103] : memref<1x256x64xbf16, #tpu.memory_space<vmem>>, vector<1x16x64xbf16>
    %180 = vector.shape_cast %179 : vector<1x16x64xbf16> to vector<16x64xbf16>
    %181 = vector.shape_cast %178 : vector<16x64xbf16> to vector<1x16x64xbf16>
    tpu.vector_store %arg9[%c0_102, %c96, %c0_103], %181 {strides = array<i32>} : memref<1x256x64xbf16, #tpu.memory_space<vmem>>, vector<1x16x64xbf16>,
    %182 = vector.extract_strided_slice %146 {offsets = [126, 0], sizes = [16, 64], strides = [1, 1]} : vector<288x64xf32> to vector<16x64xf32>
    %183 = arith.truncf %182 : vector<16x64xf32> to vector<16x64xbf16>
    %c0_104 = arith.constant 0 : index
    %c112 = arith.constant 112 : index
    %c0_105 = arith.constant 0 : index
    %184 = vector.load %arg9[%c0_104, %c112, %c0_105] : memref<1x256x64xbf16, #tpu.memory_space<vmem>>, vector<1x16x64xbf16>
    %185 = vector.shape_cast %184 : vector<1x16x64xbf16> to vector<16x64xbf16>
    %186 = vector.shape_cast %183 : vector<16x64xbf16> to vector<1x16x64xbf16>
    tpu.vector_store %arg9[%c0_104, %c112, %c0_105], %186 {strides = array<i32>} : memref<1x256x64xbf16, #tpu.memory_space<vmem>>, vector<1x16x64xbf16>,
    %187 = vector.extract_strided_slice %146 {offsets = [144, 0], sizes = [16, 64], strides = [1, 1]} : vector<288x64xf32> to vector<16x64xf32>
    %188 = arith.truncf %187 : vector<16x64xf32> to vector<16x64xbf16>
    %c0_106 = arith.constant 0 : index
    %c128 = arith.constant 128 : index
    %c0_107 = arith.constant 0 : index
    %189 = vector.load %arg9[%c0_106, %c128, %c0_107] : memref<1x256x64xbf16, #tpu.memory_space<vmem>>, vector<1x16x64xbf16>
    %190 = vector.shape_cast %189 : vector<1x16x64xbf16> to vector<16x64xbf16>
    %191 = vector.shape_cast %188 : vector<16x64xbf16> to vector<1x16x64xbf16>
    tpu.vector_store %arg9[%c0_106, %c128, %c0_107], %191 {strides = array<i32>} : memref<1x256x64xbf16, #tpu.memory_space<vmem>>, vector<1x16x64xbf16>,
    %192 = vector.extract_strided_slice %146 {offsets = [162, 0], sizes = [16, 64], strides = [1, 1]} : vector<288x64xf32> to vector<16x64xf32>
    %193 = arith.truncf %192 : vector<16x64xf32> to vector<16x64xbf16>
    %c0_108 = arith.constant 0 : index
    %c144 = arith.constant 144 : index
    %c0_109 = arith.constant 0 : index
    %194 = vector.load %arg9[%c0_108, %c144, %c0_109] : memref<1x256x64xbf16, #tpu.memory_space<vmem>>, vector<1x16x64xbf16>
    %195 = vector.shape_cast %194 : vector<1x16x64xbf16> to vector<16x64xbf16>
    %196 = vector.shape_cast %193 : vector<16x64xbf16> to vector<1x16x64xbf16>
    tpu.vector_store %arg9[%c0_108, %c144, %c0_109], %196 {strides = array<i32>} : memref<1x256x64xbf16, #tpu.memory_space<vmem>>, vector<1x16x64xbf16>,
    %197 = vector.extract_strided_slice %146 {offsets = [180, 0], sizes = [16, 64], strides = [1, 1]} : vector<288x64xf32> to vector<16x64xf32>
    %198 = arith.truncf %197 : vector<16x64xf32> to vector<16x64xbf16>
    %c0_110 = arith.constant 0 : index
    %c160 = arith.constant 160 : index
    %c0_111 = arith.constant 0 : index
    %199 = vector.load %arg9[%c0_110, %c160, %c0_111] : memref<1x256x64xbf16, #tpu.memory_space<vmem>>, vector<1x16x64xbf16>
    %200 = vector.shape_cast %199 : vector<1x16x64xbf16> to vector<16x64xbf16>
    %201 = vector.shape_cast %198 : vector<16x64xbf16> to vector<1x16x64xbf16>
    tpu.vector_store %arg9[%c0_110, %c160, %c0_111], %201 {strides = array<i32>} : memref<1x256x64xbf16, #tpu.memory_space<vmem>>, vector<1x16x64xbf16>,
    %202 = vector.extract_strided_slice %146 {offsets = [198, 0], sizes = [16, 64], strides = [1, 1]} : vector<288x64xf32> to vector<16x64xf32>
    %203 = arith.truncf %202 : vector<16x64xf32> to vector<16x64xbf16>
    %c0_112 = arith.constant 0 : index
    %c176 = arith.constant 176 : index
    %c0_113 = arith.constant 0 : index
    %204 = vector.load %arg9[%c0_112, %c176, %c0_113] : memref<1x256x64xbf16, #tpu.memory_space<vmem>>, vector<1x16x64xbf16>
    %205 = vector.shape_cast %204 : vector<1x16x64xbf16> to vector<16x64xbf16>
    %206 = vector.shape_cast %203 : vector<16x64xbf16> to vector<1x16x64xbf16>
    tpu.vector_store %arg9[%c0_112, %c176, %c0_113], %206 {strides = array<i32>} : memref<1x256x64xbf16, #tpu.memory_space<vmem>>, vector<1x16x64xbf16>,
    %207 = vector.extract_strided_slice %146 {offsets = [216, 0], sizes = [16, 64], strides = [1, 1]} : vector<288x64xf32> to vector<16x64xf32>
    %208 = arith.truncf %207 : vector<16x64xf32> to vector<16x64xbf16>
    %c0_114 = arith.constant 0 : index
    %c192 = arith.constant 192 : index
    %c0_115 = arith.constant 0 : index
    %209 = vector.load %arg9[%c0_114, %c192, %c0_115] : memref<1x256x64xbf16, #tpu.memory_space<vmem>>, vector<1x16x64xbf16>
    %210 = vector.shape_cast %209 : vector<1x16x64xbf16> to vector<16x64xbf16>
    %211 = vector.shape_cast %208 : vector<16x64xbf16> to vector<1x16x64xbf16>
    tpu.vector_store %arg9[%c0_114, %c192, %c0_115], %211 {strides = array<i32>} : memref<1x256x64xbf16, #tpu.memory_space<vmem>>, vector<1x16x64xbf16>,
    %212 = vector.extract_strided_slice %146 {offsets = [234, 0], sizes = [16, 64], strides = [1, 1]} : vector<288x64xf32> to vector<16x64xf32>
    %213 = arith.truncf %212 : vector<16x64xf32> to vector<16x64xbf16>
    %c0_116 = arith.constant 0 : index
    %c208 = arith.constant 208 : index
    %c0_117 = arith.constant 0 : index
    %214 = vector.load %arg9[%c0_116, %c208, %c0_117] : memref<1x256x64xbf16, #tpu.memory_space<vmem>>, vector<1x16x64xbf16>
    %215 = vector.shape_cast %214 : vector<1x16x64xbf16> to vector<16x64xbf16>
    %216 = vector.shape_cast %213 : vector<16x64xbf16> to vector<1x16x64xbf16>
    tpu.vector_store %arg9[%c0_116, %c208, %c0_117], %216 {strides = array<i32>} : memref<1x256x64xbf16, #tpu.memory_space<vmem>>, vector<1x16x64xbf16>,
    %217 = vector.extract_strided_slice %146 {offsets = [252, 0], sizes = [16, 64], strides = [1, 1]} : vector<288x64xf32> to vector<16x64xf32>
    %218 = arith.truncf %217 : vector<16x64xf32> to vector<16x64xbf16>
    %c0_118 = arith.constant 0 : index
    %c224 = arith.constant 224 : index
    %c0_119 = arith.constant 0 : index
    %219 = vector.load %arg9[%c0_118, %c224, %c0_119] : memref<1x256x64xbf16, #tpu.memory_space<vmem>>, vector<1x16x64xbf16>
    %220 = vector.shape_cast %219 : vector<1x16x64xbf16> to vector<16x64xbf16>
    %221 = vector.shape_cast %218 : vector<16x64xbf16> to vector<1x16x64xbf16>
    tpu.vector_store %arg9[%c0_118, %c224, %c0_119], %221 {strides = array<i32>} : memref<1x256x64xbf16, #tpu.memory_space<vmem>>, vector<1x16x64xbf16>,
    %222 = vector.extract_strided_slice %146 {offsets = [270, 0], sizes = [16, 64], strides = [1, 1]} : vector<288x64xf32> to vector<16x64xf32>
    %223 = arith.truncf %222 : vector<16x64xf32> to vector<16x64xbf16>
    %c0_120 = arith.constant 0 : index
    %c240 = arith.constant 240 : index
    %c0_121 = arith.constant 0 : index
    %224 = vector.load %arg9[%c0_120, %c240, %c0_121] : memref<1x256x64xbf16, #tpu.memory_space<vmem>>, vector<1x16x64xbf16>
    %225 = vector.shape_cast %224 : vector<1x16x64xbf16> to vector<16x64xbf16>
    %226 = vector.shape_cast %223 : vector<16x64xbf16> to vector<1x16x64xbf16>
    tpu.vector_store %arg9[%c0_120, %c240, %c0_121], %226 {strides = array<i32>} : memref<1x256x64xbf16, #tpu.memory_space<vmem>>, vector<1x16x64xbf16>,
    return
  }
  func.func @transform_0(%arg0: i32) -> (i32, i32, i32) {
    %c0_i32 = arith.constant 0 : i32
    %c0_i32_0 = arith.constant 0 : i32
    %c0_i32_1 = arith.constant 0 : i32
    return %arg0, %c0_i32, %c0_i32_0 : i32, i32, i32
  }
  func.func @transform_1(%arg0: i32) -> (i32, i32) {
    %c0_i32 = arith.constant 0 : i32
    %c0_i32_0 = arith.constant 0 : i32
    %c0_i32_1 = arith.constant 0 : i32
    return %c0_i32, %c0_i32_0 : i32, i32
  }
  func.func @transform_2(%arg0: i32) -> (i32, i32, i32) {
    %c0_i32 = arith.constant 0 : i32
    %c0_i32_0 = arith.constant 0 : i32
    %c0_i32_1 = arith.constant 0 : i32
    %c0_i32_2 = arith.constant 0 : i32
    return %c0_i32, %c0_i32_0, %c0_i32_1 : i32, i32, i32
  }
  func.func @transform_3(%arg0: i32) -> (i32, i32) {
    %c0_i32 = arith.constant 0 : i32
    %c0_i32_0 = arith.constant 0 : i32
    %c0_i32_1 = arith.constant 0 : i32
    return %c0_i32, %c0_i32_0 : i32, i32
  }
  func.func @transform_4(%arg0: i32) -> (i32, i32) {
    %c0_i32 = arith.constant 0 : i32
    %c0_i32_0 = arith.constant 0 : i32
    %c0_i32_1 = arith.constant 0 : i32
    return %c0_i32, %c0_i32_0 : i32, i32
  }
  func.func @transform_5(%arg0: i32) -> (i32, i32, i32) {
    %c0_i32 = arith.constant 0 : i32
    %c0_i32_0 = arith.constant 0 : i32
    %c0_i32_1 = arith.constant 0 : i32
    %c0_i32_2 = arith.constant 0 : i32
    return %c0_i32, %c0_i32_0, %c0_i32_1 : i32, i32, i32
  }
  func.func @transform_6(%arg0: i32) -> (i32, i32) {
    %c0_i32 = arith.constant 0 : i32
    %c0_i32_0 = arith.constant 0 : i32
    %c0_i32_1 = arith.constant 0 : i32
    return %c0_i32, %c0_i32_0 : i32, i32
  }
  func.func @transform_7(%arg0: i32) -> (i32, i32) {
    %c0_i32 = arith.constant 0 : i32
    %c0_i32_0 = arith.constant 0 : i32
    %c0_i32_1 = arith.constant 0 : i32
    return %c0_i32, %c0_i32_0 : i32, i32
  }
  func.func @transform_8(%arg0: i32) -> (i32, i32, i32) {
    %c0_i32 = arith.constant 0 : i32
    %c0_i32_0 = arith.constant 0 : i32
    %c0_i32_1 = arith.constant 0 : i32
    return %arg0, %c0_i32, %c0_i32_0 : i32, i32, i32
  }
}

module attributes {stable_mosaic.version = 11 : i64} {
  func.func @_patch_kernel(%arg0: i32, %arg1: memref<32x1024xbf16, #tpu.memory_space<vmem>>, %arg2: memref<1024x128xbf16, #tpu.memory_space<vmem>>, %arg3: memref<1x128xf32, #tpu.memory_space<vmem>>, %arg4: memref<32x128xf32, #tpu.memory_space<vmem>>) attributes {dimension_semantics = [#tpu.dimension_semantics<parallel>], iteration_bounds = array<i64: 1>, scalar_prefetch = 0 : i64, scratch_operands = 0 : i64, tpu.core_type = #tpu.core_type<tc>, window_params = [{transform_indices = @transform_0, window_bounds = array<i64: 32, 1024>}, {pipeline_mode = #tpu.pipeline_mode<synchronous>, transform_indices = @transform_1, window_bounds = array<i64: 1024, 128>}, {pipeline_mode = #tpu.pipeline_mode<synchronous>, transform_indices = @transform_2, window_bounds = array<i64: 1, 128>}, {transform_indices = @transform_3, window_bounds = array<i64: 32, 128>}]} {
    %c0 = arith.constant 0 : index
    %c0_0 = arith.constant 0 : index
    %0 = vector.load %arg1[%c0, %c0_0] : memref<32x1024xbf16, #tpu.memory_space<vmem>>, vector<32x1024xbf16>
    %c0_1 = arith.constant 0 : index
    %c0_2 = arith.constant 0 : index
    %1 = vector.load %arg2[%c0_1, %c0_2] : memref<1024x128xbf16, #tpu.memory_space<vmem>>, vector<1024x128xbf16>
    %cst = arith.constant dense<0.000000e+00> : vector<32x128xf32>
    %2 = tpu.matmul %0, %1, %cst {dimension_numbers = #tpu.dot_dimension_numbers<[1], [0], [0], [1], [0, 0, 1, 1], [], []>} : vector<32x1024xbf16>, vector<1024x128xbf16>, vector<32x128xf32> -> vector<32x128xf32>
    %c0_3 = arith.constant 0 : index
    %c0_4 = arith.constant 0 : index
    %3 = vector.load %arg3[%c0_3, %c0_4] : memref<1x128xf32, #tpu.memory_space<vmem>>, vector<1x128xf32>
    %4 = vector.broadcast %3 : vector<1x128xf32> to vector<32x128xf32>
    %5 = arith.addf %2, %4 : vector<32x128xf32>
    %c0_5 = arith.constant 0 : index
    %c0_6 = arith.constant 0 : index
    %6 = vector.load %arg4[%c0_5, %c0_6] : memref<32x128xf32, #tpu.memory_space<vmem>>, vector<32x128xf32>
    tpu.vector_store %arg4[%c0_5, %c0_6], %5 {strides = array<i32>} : memref<32x128xf32, #tpu.memory_space<vmem>>, vector<32x128xf32>,
    return
  }
  func.func @transform_0(%arg0: i32) -> (i32, i32) {
    %c0_i32 = arith.constant 0 : i32
    %c0_i32_0 = arith.constant 0 : i32
    return %arg0, %c0_i32 : i32, i32
  }
  func.func @transform_1(%arg0: i32) -> (i32, i32) {
    %c0_i32 = arith.constant 0 : i32
    %c0_i32_0 = arith.constant 0 : i32
    %c0_i32_1 = arith.constant 0 : i32
    return %c0_i32, %c0_i32_0 : i32, i32
  }
  func.func @transform_2(%arg0: i32) -> (i32, i32) {
    %c0_i32 = arith.constant 0 : i32
    %c0_i32_0 = arith.constant 0 : i32
    %c0_i32_1 = arith.constant 0 : i32
    return %c0_i32, %c0_i32_0 : i32, i32
  }
  func.func @transform_3(%arg0: i32) -> (i32, i32) {
    %c0_i32 = arith.constant 0 : i32
    %c0_i32_0 = arith.constant 0 : i32
    return %arg0, %c0_i32 : i32, i32
  }
}

module attributes {stable_mosaic.version = 11 : i64} {
  func.func @_mlp_depth_kernel(%arg0: i32, %arg1: i32, %arg2: memref<32x128xf32, #tpu.memory_space<vmem>>, %arg3: memref<1x1x128xf32, #tpu.memory_space<vmem>>, %arg4: memref<1x1x128xf32, #tpu.memory_space<vmem>>, %arg5: memref<1x16x16xbf16, #tpu.memory_space<vmem>>, %arg6: memref<1x16x128xf32, #tpu.memory_space<vmem>>, %arg7: memref<1x1x128xf32, #tpu.memory_space<vmem>>, %arg8: memref<1x1x128xf32, #tpu.memory_space<vmem>>, %arg9: memref<1x1x128xf32, #tpu.memory_space<vmem>>, %arg10: memref<1x128x256xbf16, #tpu.memory_space<vmem>>, %arg11: memref<1x1x256xf32, #tpu.memory_space<vmem>>, %arg12: memref<1x256x128xbf16, #tpu.memory_space<vmem>>, %arg13: memref<1x1x128xf32, #tpu.memory_space<vmem>>, %arg14: memref<1x1x128xf32, #tpu.memory_space<vmem>>, %arg15: memref<1x128xf32, #tpu.memory_space<vmem>>, %arg16: memref<1x128xf32, #tpu.memory_space<vmem>>, %arg17: memref<32x128xf32, #tpu.memory_space<vmem>>) attributes {dimension_semantics = [#tpu.dimension_semantics<parallel>, #tpu.dimension_semantics<arbitrary>], iteration_bounds = array<i64: 1, 2>, scalar_prefetch = 0 : i64, scratch_operands = 0 : i64, tpu.core_type = #tpu.core_type<tc>, window_params = [{transform_indices = @transform_0, window_bounds = array<i64: 32, 128>}, {transform_indices = @transform_1, window_bounds = array<i64: 1, 1, 128>}, {transform_indices = @transform_2, window_bounds = array<i64: 1, 1, 128>}, {transform_indices = @transform_3, window_bounds = array<i64: 1, 16, 16>}, {transform_indices = @transform_4, window_bounds = array<i64: 1, 16, 128>}, {transform_indices = @transform_5, window_bounds = array<i64: 1, 1, 128>}, {transform_indices = @transform_6, window_bounds = array<i64: 1, 1, 128>}, {transform_indices = @transform_7, window_bounds = array<i64: 1, 1, 128>}, {transform_indices = @transform_8, window_bounds = array<i64: 1, 128, 256>}, {transform_indices = @transform_9, window_bounds = array<i64: 1, 1, 256>}, {transform_indices = @transform_10, window_bounds = array<i64: 1, 256, 128>}, {transform_indices = @transform_11, window_bounds = array<i64: 1, 1, 128>}, {transform_indices = @transform_12, window_bounds = array<i64: 1, 1, 128>}, {pipeline_mode = #tpu.pipeline_mode<synchronous>, transform_indices = @transform_13, window_bounds = array<i64: 1, 128>}, {pipeline_mode = #tpu.pipeline_mode<synchronous>, transform_indices = @transform_14, window_bounds = array<i64: 1, 128>}, {transform_indices = @transform_15, window_bounds = array<i64: 32, 128>}]} {
    %c0_i32 = arith.constant 0 : i32
    %0 = arith.cmpi eq, %arg1, %c0_i32 : i32
    %1 = arith.extui %0 : i1 to i32
    %c0_i32_0 = arith.constant 0 : i32
    %2 = arith.cmpi ne, %1, %c0_i32_0 : i32
    scf.if %2 {
      %c0_47 = arith.constant 0 : index
      %c0_48 = arith.constant 0 : index
      %76 = vector.load %arg2[%c0_47, %c0_48] : memref<32x128xf32, #tpu.memory_space<vmem>>, vector<32x128xf32>
      %c0_49 = arith.constant 0 : index
      %c0_50 = arith.constant 0 : index
      %77 = vector.load %arg17[%c0_49, %c0_50] : memref<32x128xf32, #tpu.memory_space<vmem>>, vector<32x128xf32>
      tpu.vector_store %arg17[%c0_49, %c0_50], %76 {strides = array<i32>} : memref<32x128xf32, #tpu.memory_space<vmem>>, vector<32x128xf32>,
    } else {
    }
    %c0 = arith.constant 0 : index
    %c0_1 = arith.constant 0 : index
    %3 = vector.load %arg17[%c0, %c0_1] : memref<32x128xf32, #tpu.memory_space<vmem>>, vector<32x128xf32>
    %c0_2 = arith.constant 0 : index
    %c0_3 = arith.constant 0 : index
    %c0_4 = arith.constant 0 : index
    %4 = vector.load %arg3[%c0_2, %c0_3, %c0_4] : memref<1x1x128xf32, #tpu.memory_space<vmem>>, vector<1x1x128xf32>
    %5 = vector.shape_cast %4 : vector<1x1x128xf32> to vector<1x128xf32>
    %c0_5 = arith.constant 0 : index
    %c0_6 = arith.constant 0 : index
    %c0_7 = arith.constant 0 : index
    %6 = vector.load %arg4[%c0_5, %c0_6, %c0_7] : memref<1x1x128xf32, #tpu.memory_space<vmem>>, vector<1x1x128xf32>
    %7 = vector.shape_cast %6 : vector<1x1x128xf32> to vector<1x128xf32>
    %c0_8 = arith.constant 0 : index
    %c0_9 = arith.constant 0 : index
    %c0_10 = arith.constant 0 : index
    %8 = vector.load %arg7[%c0_8, %c0_9, %c0_10] : memref<1x1x128xf32, #tpu.memory_space<vmem>>, vector<1x1x128xf32>
    %9 = vector.shape_cast %8 : vector<1x1x128xf32> to vector<1x128xf32>
    %c0_11 = arith.constant 0 : index
    %c0_12 = arith.constant 0 : index
    %c0_13 = arith.constant 0 : index
    %10 = vector.load %arg6[%c0_11, %c0_12, %c0_13] : memref<1x16x128xf32, #tpu.memory_space<vmem>>, vector<1x16x128xf32>
    %11 = vector.shape_cast %10 : vector<1x16x128xf32> to vector<16x128xf32>
    %c0_14 = arith.constant 0 : index
    %c0_15 = arith.constant 0 : index
    %c0_16 = arith.constant 0 : index
    %12 = vector.load %arg5[%c0_14, %c0_15, %c0_16] : memref<1x16x16xbf16, #tpu.memory_space<vmem>>, vector<1x16x16xbf16>
    %13 = vector.shape_cast %12 : vector<1x16x16xbf16> to vector<16x16xbf16>
    %14 = vector.broadcast %5 : vector<1x128xf32> to vector<32x128xf32>
    %15 = arith.mulf %3, %14 : vector<32x128xf32>
    %16 = vector.broadcast %7 : vector<1x128xf32> to vector<32x128xf32>
    %17 = arith.addf %15, %16 : vector<32x128xf32>
    %18 = vector.extract_strided_slice %17 {offsets = [0, 0], sizes = [16, 128], strides = [1, 1]} : vector<32x128xf32> to vector<16x128xf32>
    %19 = arith.truncf %18 : vector<16x128xf32> to vector<16x128xbf16>
    %cst = arith.constant dense<0.000000e+00> : vector<16x128xf32>
    %20 = tpu.matmul %13, %19, %cst {dimension_numbers = #tpu.dot_dimension_numbers<[1], [0], [0], [1], [0, 0, 1, 1], [], []>} : vector<16x16xbf16>, vector<16x128xbf16>, vector<16x128xf32> -> vector<16x128xf32>
    %21 = vector.broadcast %9 : vector<1x128xf32> to vector<16x128xf32>
    %22 = arith.mulf %21, %20 : vector<16x128xf32>
    %23 = arith.addf %18, %22 : vector<16x128xf32>
    %24 = arith.addf %23, %11 : vector<16x128xf32>
    %25 = vector.extract_strided_slice %17 {offsets = [16, 0], sizes = [16, 128], strides = [1, 1]} : vector<32x128xf32> to vector<16x128xf32>
    %26 = arith.truncf %25 : vector<16x128xf32> to vector<16x128xbf16>
    %cst_17 = arith.constant dense<0.000000e+00> : vector<16x128xf32>
    %27 = tpu.matmul %13, %26, %cst_17 {dimension_numbers = #tpu.dot_dimension_numbers<[1], [0], [0], [1], [0, 0, 1, 1], [], []>} : vector<16x16xbf16>, vector<16x128xbf16>, vector<16x128xf32> -> vector<16x128xf32>
    %28 = vector.broadcast %9 : vector<1x128xf32> to vector<16x128xf32>
    %29 = arith.mulf %28, %27 : vector<16x128xf32>
    %30 = arith.addf %25, %29 : vector<16x128xf32>
    %31 = arith.addf %30, %11 : vector<16x128xf32>
    %32 = tpu.concatenate %24, %31 in 0 : vector<16x128xf32>, vector<16x128xf32> -> vector<32x128xf32>
    %c0_18 = arith.constant 0 : index
    %c0_19 = arith.constant 0 : index
    %c0_20 = arith.constant 0 : index
    %33 = vector.load %arg8[%c0_18, %c0_19, %c0_20] : memref<1x1x128xf32, #tpu.memory_space<vmem>>, vector<1x1x128xf32>
    %34 = vector.shape_cast %33 : vector<1x1x128xf32> to vector<1x128xf32>
    %35 = vector.broadcast %34 : vector<1x128xf32> to vector<32x128xf32>
    %36 = arith.mulf %32, %35 : vector<32x128xf32>
    %c0_21 = arith.constant 0 : index
    %c0_22 = arith.constant 0 : index
    %c0_23 = arith.constant 0 : index
    %37 = vector.load %arg9[%c0_21, %c0_22, %c0_23] : memref<1x1x128xf32, #tpu.memory_space<vmem>>, vector<1x1x128xf32>
    %38 = vector.shape_cast %37 : vector<1x1x128xf32> to vector<1x128xf32>
    %39 = vector.broadcast %38 : vector<1x128xf32> to vector<32x128xf32>
    %40 = arith.addf %36, %39 : vector<32x128xf32>
    %41 = arith.truncf %40 : vector<32x128xf32> to vector<32x128xbf16>
    %c0_24 = arith.constant 0 : index
    %c0_25 = arith.constant 0 : index
    %c0_26 = arith.constant 0 : index
    %42 = vector.load %arg10[%c0_24, %c0_25, %c0_26] : memref<1x128x256xbf16, #tpu.memory_space<vmem>>, vector<1x128x256xbf16>
    %43 = vector.shape_cast %42 : vector<1x128x256xbf16> to vector<128x256xbf16>
    %cst_27 = arith.constant dense<0.000000e+00> : vector<32x256xf32>
    %44 = tpu.matmul %41, %43, %cst_27 {dimension_numbers = #tpu.dot_dimension_numbers<[1], [0], [0], [1], [0, 0, 1, 1], [], []>} : vector<32x128xbf16>, vector<128x256xbf16>, vector<32x256xf32> -> vector<32x256xf32>
    %c0_28 = arith.constant 0 : index
    %c0_29 = arith.constant 0 : index
    %c0_30 = arith.constant 0 : index
    %45 = vector.load %arg11[%c0_28, %c0_29, %c0_30] : memref<1x1x256xf32, #tpu.memory_space<vmem>>, vector<1x1x256xf32>
    %46 = vector.shape_cast %45 : vector<1x1x256xf32> to vector<1x256xf32>
    %47 = vector.broadcast %46 : vector<1x256xf32> to vector<32x256xf32>
    %48 = arith.addf %44, %47 : vector<32x256xf32>
    %cst_31 = arith.constant 5.000000e-01 : f32
    %49 = vector.broadcast %cst_31 : f32 to vector<32x256xf32>
    %50 = arith.mulf %49, %48 : vector<32x256xf32>
    %cst_32 = arith.constant 0.707106769 : f32
    %51 = vector.broadcast %cst_32 : f32 to vector<32x256xf32>
    %52 = arith.mulf %48, %51 : vector<32x256xf32>
    %53 = math.erf %52 : vector<32x256xf32>
    %cst_33 = arith.constant 1.000000e+00 : f32
    %54 = vector.broadcast %cst_33 : f32 to vector<32x256xf32>
    %55 = arith.addf %54, %53 : vector<32x256xf32>
    %56 = arith.mulf %50, %55 : vector<32x256xf32>
    %57 = arith.truncf %56 : vector<32x256xf32> to vector<32x256xbf16>
    %c0_34 = arith.constant 0 : index
    %c0_35 = arith.constant 0 : index
    %c0_36 = arith.constant 0 : index
    %58 = vector.load %arg12[%c0_34, %c0_35, %c0_36] : memref<1x256x128xbf16, #tpu.memory_space<vmem>>, vector<1x256x128xbf16>
    %59 = vector.shape_cast %58 : vector<1x256x128xbf16> to vector<256x128xbf16>
    %cst_37 = arith.constant dense<0.000000e+00> : vector<32x128xf32>
    %60 = tpu.matmul %57, %59, %cst_37 {dimension_numbers = #tpu.dot_dimension_numbers<[1], [0], [0], [1], [0, 0, 1, 1], [], []>} : vector<32x256xbf16>, vector<256x128xbf16>, vector<32x128xf32> -> vector<32x128xf32>
    %c0_38 = arith.constant 0 : index
    %c0_39 = arith.constant 0 : index
    %c0_40 = arith.constant 0 : index
    %61 = vector.load %arg13[%c0_38, %c0_39, %c0_40] : memref<1x1x128xf32, #tpu.memory_space<vmem>>, vector<1x1x128xf32>
    %62 = vector.shape_cast %61 : vector<1x1x128xf32> to vector<1x128xf32>
    %63 = vector.broadcast %62 : vector<1x128xf32> to vector<32x128xf32>
    %64 = arith.addf %60, %63 : vector<32x128xf32>
    %c0_41 = arith.constant 0 : index
    %c0_42 = arith.constant 0 : index
    %c0_43 = arith.constant 0 : index
    %65 = vector.load %arg14[%c0_41, %c0_42, %c0_43] : memref<1x1x128xf32, #tpu.memory_space<vmem>>, vector<1x1x128xf32>
    %66 = vector.shape_cast %65 : vector<1x1x128xf32> to vector<1x128xf32>
    %67 = vector.broadcast %66 : vector<1x128xf32> to vector<32x128xf32>
    %68 = arith.mulf %67, %64 : vector<32x128xf32>
    %69 = arith.addf %40, %68 : vector<32x128xf32>
    %c1_i32 = arith.constant 1 : i32
    %70 = arith.cmpi slt, %arg1, %c1_i32 : i32
    %71 = arith.extui %70 : i1 to i32
    %c0_i32_44 = arith.constant 0 : i32
    %72 = arith.cmpi ne, %71, %c0_i32_44 : i32
    scf.if %72 {
      %c0_47 = arith.constant 0 : index
      %c0_48 = arith.constant 0 : index
      %76 = vector.load %arg17[%c0_47, %c0_48] : memref<32x128xf32, #tpu.memory_space<vmem>>, vector<32x128xf32>
      tpu.vector_store %arg17[%c0_47, %c0_48], %69 {strides = array<i32>} : memref<32x128xf32, #tpu.memory_space<vmem>>, vector<32x128xf32>,
    } else {
    }
    %c1_i32_45 = arith.constant 1 : i32
    %73 = arith.cmpi eq, %arg1, %c1_i32_45 : i32
    %74 = arith.extui %73 : i1 to i32
    %c0_i32_46 = arith.constant 0 : i32
    %75 = arith.cmpi ne, %74, %c0_i32_46 : i32
    scf.if %75 {
      %c0_47 = arith.constant 0 : index
      %c0_48 = arith.constant 0 : index
      %76 = vector.load %arg15[%c0_47, %c0_48] : memref<1x128xf32, #tpu.memory_space<vmem>>, vector<1x128xf32>
      %77 = vector.broadcast %76 : vector<1x128xf32> to vector<32x128xf32>
      %78 = arith.mulf %69, %77 : vector<32x128xf32>
      %c0_49 = arith.constant 0 : index
      %c0_50 = arith.constant 0 : index
      %79 = vector.load %arg16[%c0_49, %c0_50] : memref<1x128xf32, #tpu.memory_space<vmem>>, vector<1x128xf32>
      %80 = vector.broadcast %79 : vector<1x128xf32> to vector<32x128xf32>
      %81 = arith.addf %78, %80 : vector<32x128xf32>
      %c0_51 = arith.constant 0 : index
      %c0_52 = arith.constant 0 : index
      %82 = vector.load %arg17[%c0_51, %c0_52] : memref<32x128xf32, #tpu.memory_space<vmem>>, vector<32x128xf32>
      tpu.vector_store %arg17[%c0_51, %c0_52], %81 {strides = array<i32>} : memref<32x128xf32, #tpu.memory_space<vmem>>, vector<32x128xf32>,
    } else {
    }
    return
  }
  func.func @transform_0(%arg0: i32, %arg1: i32) -> (i32, i32) {
    %c0_i32 = arith.constant 0 : i32
    %c0_i32_0 = arith.constant 0 : i32
    return %arg0, %c0_i32 : i32, i32
  }
  func.func @transform_1(%arg0: i32, %arg1: i32) -> (i32, i32, i32) {
    %c0_i32 = arith.constant 0 : i32
    %c0_i32_0 = arith.constant 0 : i32
    %c0_i32_1 = arith.constant 0 : i32
    return %arg1, %c0_i32, %c0_i32_0 : i32, i32, i32
  }
  func.func @transform_2(%arg0: i32, %arg1: i32) -> (i32, i32, i32) {
    %c0_i32 = arith.constant 0 : i32
    %c0_i32_0 = arith.constant 0 : i32
    %c0_i32_1 = arith.constant 0 : i32
    return %arg1, %c0_i32, %c0_i32_0 : i32, i32, i32
  }
  func.func @transform_3(%arg0: i32, %arg1: i32) -> (i32, i32, i32) {
    %c0_i32 = arith.constant 0 : i32
    %c0_i32_0 = arith.constant 0 : i32
    %c0_i32_1 = arith.constant 0 : i32
    return %arg1, %c0_i32, %c0_i32_0 : i32, i32, i32
  }
  func.func @transform_4(%arg0: i32, %arg1: i32) -> (i32, i32, i32) {
    %c0_i32 = arith.constant 0 : i32
    %c0_i32_0 = arith.constant 0 : i32
    %c0_i32_1 = arith.constant 0 : i32
    return %arg1, %c0_i32, %c0_i32_0 : i32, i32, i32
  }
  func.func @transform_5(%arg0: i32, %arg1: i32) -> (i32, i32, i32) {
    %c0_i32 = arith.constant 0 : i32
    %c0_i32_0 = arith.constant 0 : i32
    %c0_i32_1 = arith.constant 0 : i32
    return %arg1, %c0_i32, %c0_i32_0 : i32, i32, i32
  }
  func.func @transform_6(%arg0: i32, %arg1: i32) -> (i32, i32, i32) {
    %c0_i32 = arith.constant 0 : i32
    %c0_i32_0 = arith.constant 0 : i32
    %c0_i32_1 = arith.constant 0 : i32
    return %arg1, %c0_i32, %c0_i32_0 : i32, i32, i32
  }
  func.func @transform_7(%arg0: i32, %arg1: i32) -> (i32, i32, i32) {
    %c0_i32 = arith.constant 0 : i32
    %c0_i32_0 = arith.constant 0 : i32
    %c0_i32_1 = arith.constant 0 : i32
    return %arg1, %c0_i32, %c0_i32_0 : i32, i32, i32
  }
  func.func @transform_8(%arg0: i32, %arg1: i32) -> (i32, i32, i32) {
    %c0_i32 = arith.constant 0 : i32
    %c0_i32_0 = arith.constant 0 : i32
    %c0_i32_1 = arith.constant 0 : i32
    return %arg1, %c0_i32, %c0_i32_0 : i32, i32, i32
  }
  func.func @transform_9(%arg0: i32, %arg1: i32) -> (i32, i32, i32) {
    %c0_i32 = arith.constant 0 : i32
    %c0_i32_0 = arith.constant 0 : i32
    %c0_i32_1 = arith.constant 0 : i32
    return %arg1, %c0_i32, %c0_i32_0 : i32, i32, i32
  }
  func.func @transform_10(%arg0: i32, %arg1: i32) -> (i32, i32, i32) {
    %c0_i32 = arith.constant 0 : i32
    %c0_i32_0 = arith.constant 0 : i32
    %c0_i32_1 = arith.constant 0 : i32
    return %arg1, %c0_i32, %c0_i32_0 : i32, i32, i32
  }
  func.func @transform_11(%arg0: i32, %arg1: i32) -> (i32, i32, i32) {
    %c0_i32 = arith.constant 0 : i32
    %c0_i32_0 = arith.constant 0 : i32
    %c0_i32_1 = arith.constant 0 : i32
    return %arg1, %c0_i32, %c0_i32_0 : i32, i32, i32
  }
  func.func @transform_12(%arg0: i32, %arg1: i32) -> (i32, i32, i32) {
    %c0_i32 = arith.constant 0 : i32
    %c0_i32_0 = arith.constant 0 : i32
    %c0_i32_1 = arith.constant 0 : i32
    return %arg1, %c0_i32, %c0_i32_0 : i32, i32, i32
  }
  func.func @transform_13(%arg0: i32, %arg1: i32) -> (i32, i32) {
    %c0_i32 = arith.constant 0 : i32
    %c0_i32_0 = arith.constant 0 : i32
    %c0_i32_1 = arith.constant 0 : i32
    return %c0_i32, %c0_i32_0 : i32, i32
  }
  func.func @transform_14(%arg0: i32, %arg1: i32) -> (i32, i32) {
    %c0_i32 = arith.constant 0 : i32
    %c0_i32_0 = arith.constant 0 : i32
    %c0_i32_1 = arith.constant 0 : i32
    return %c0_i32, %c0_i32_0 : i32, i32
  }
  func.func @transform_15(%arg0: i32, %arg1: i32) -> (i32, i32) {
    %c0_i32 = arith.constant 0 : i32
    %c0_i32_0 = arith.constant 0 : i32
    return %arg0, %c0_i32 : i32, i32
  }
}

</mosaic_0001>

<llo_original>
// kernel: conv_resmlp2_forward.5
$region0: #{conv_resmlp2_forward.5}
  #allocation0 [shape = 'u32[]', space=smem, size = 0x4, offset = 0x4, fixed_abs, tag = 'smem constant byte address 0x4 - core index']
  #allocation1 [shape = 'u32[144,128]{1,0:T(1,128)}', space=vmem, size = 0x12000, scoped, tag = 'internal scratch']
  %s0 = inlined_call_operand.vmem [shape: f32[32,128], index: 0, kind: input, shape index: {}]
  %s1 = inlined_call_operand.vmem [shape: f32[2,1,128], index: 1, kind: input, shape index: {}]
  %s2 = inlined_call_operand.vmem [shape: f32[2,1,128], index: 2, kind: input, shape index: {}]
  %s3 = inlined_call_operand.vmem [shape: bf16[2,16,16], index: 3, kind: input, shape index: {}]
  %s4 = inlined_call_operand.vmem [shape: f32[2,16,128], index: 4, kind: input, shape index: {}]
  %s5 = inlined_call_operand.vmem [shape: f32[2,1,128], index: 5, kind: input, shape index: {}]
  %s6 = inlined_call_operand.vmem [shape: f32[2,1,128], index: 6, kind: input, shape index: {}]
  %s7 = inlined_call_operand.vmem [shape: f32[2,1,128], index: 7, kind: input, shape index: {}]
  %s8 = inlined_call_operand.vmem [shape: bf16[2,128,256], index: 8, kind: input, shape index: {}]
  %s9 = inlined_call_operand.vmem [shape: f32[2,1,256], index: 9, kind: input, shape index: {}]
  %s10 = inlined_call_operand.vmem [shape: bf16[2,256,128], index: 10, kind: input, shape index: {}]
  %s11 = inlined_call_operand.vmem [shape: f32[2,1,128], index: 11, kind: input, shape index: {}]
  %s12 = inlined_call_operand.vmem [shape: f32[2,1,128], index: 12, kind: input, shape index: {}]
  %s13 = inlined_call_operand.vmem [shape: f32[1,128], index: 13, kind: input, shape index: {}]
  %s14 = inlined_call_operand.vmem [shape: f32[1,128], index: 14, kind: input, shape index: {}]
  %s15 = inlined_call_operand.hbm [shape: f32[32,128], index: 15, kind: output, shape index: {}]
  %s16 = sld [smem:[#allocation0]]
  $region105: #{conv_resmlp2_forward.5} parent=0
    _
  %s18 = ssub.s32 1, %s16
  %s19 = scalar_select 0, %s18, %s16
  $region1: #{conv_resmlp2_forward.5} parent=0
    #allocation2 [shape = 'u8[16384]{0}', space=vmem, size = 0x4000, scoped, tag = 'output window, operand 0, single buffered']
    #allocation3 [shape = 's32[2]{0}', space=sflag, size = 0x8, scoped, tag = 'scoped memory for conv_resmlp2_forward.5']
    %20 = vsyncpa [#allocation3], 0
    loop: start=0, step=1, limit=4
    $region2: #{conv_resmlp2_forward.5} parent=1 // loop_pre_header
      _
    $region3: #{conv_resmlp2_forward.5} parent=1 // loop_header
      %s22 = sphi 0, %s26
      %p23 = scmp.ge.s32.totalorder %s22, 4
      %s29 = sphi 0, %s41
      %s30 = sphi 0, %s37
      %s31 = sphi 0, %s29
      %s32 = sphi 0, %s30
      %s33 = sphi 0, %s31
      %s34 = sphi 0, %s32
      %s44 = sphi 0, %s46
      %s47 = sphi 0, %s44
      %s48 = sphi 0, %s47
      %s64 = sphi 0, %s48
      %s70 = sphi 0, %s72
      %s73 = sphi 0, %s70
      %s74 = sphi 0, %s73
      %s90 = sphi 0, %s74
      %s96 = sphi 0, %s98
      %s99 = sphi 0, %s96
      %s100 = sphi 0, %s99
      %s116 = sphi 0, %s100
      %s122 = sphi 0, %s124
      %s125 = sphi 0, %s122
      %s126 = sphi 0, %s125
      %s142 = sphi 0, %s126
      %s148 = sphi 0, %s150
      %s151 = sphi 0, %s148
      %s152 = sphi 0, %s151
      %s168 = sphi 0, %s152
      %s174 = sphi 0, %s176
      %s177 = sphi 0, %s174
      %s178 = sphi 0, %s177
      %s194 = sphi 0, %s178
      %s200 = sphi 0, %s202
      %s203 = sphi 0, %s200
      %s204 = sphi 0, %s203
      %s220 = sphi 0, %s204
      %s226 = sphi 0, %s228
      %s229 = sphi 0, %s226
      %s230 = sphi 0, %s229
      %s246 = sphi 0, %s230
      %s252 = sphi 0, %s254
      %s255 = sphi 0, %s252
      %s256 = sphi 0, %s255
      %s272 = sphi 0, %s256
      %s278 = sphi 0, %s280
      %s281 = sphi 0, %s278
      %s282 = sphi 0, %s281
      %s298 = sphi 0, %s282
      %s304 = sphi 0, %s306
      %s307 = sphi 0, %s304
      %s308 = sphi 0, %s307
      %s324 = sphi 0, %s308
      %s330 = sphi 0, %s332
      %s333 = sphi 0, %s330
      %s334 = sphi 0, %s333
      %s350 = sphi 0, %s334
      %s356 = sphi 0, %s358
      %s359 = sphi 0, %s356
      %s360 = sphi 0, %s359
      %s376 = sphi 0, %s360
      %s380 = sphi 0, %s380
      %s382 = sphi 0, %s380
      %s383 = sphi 0, %s382
      %s397 = sphi 0, %s383
      %s401 = sphi 0, %s401
      %s403 = sphi 0, %s401
      %s404 = sphi 0, %s403
      %s418 = sphi 0, %s404
      %s424 = sphi 0, %s426
      %s427 = sphi 0, %s424
      %s428 = sphi 0, %s427
      %s444 = sphi 0, %s428
    $region4: #{conv_resmlp2_forward.5} parent=1 // loop_header_branch
      %25 = sbr.rel (%p23) target = $region8
    $region5: #{conv_resmlp2_forward.5} parent=1 // loop_body
      %s27 = ssub.s32 %s22, 1
      %s28 = ssub.s32 %s22, 2
      %s35 = sadd.s32 1, %s30
      %p36 = scmp.ge.s32.totalorder %s35, 2
      %s37 = scalar_select %p36, 0, %s35
      %s38 = sadd.s32 1, %s29
      %s39 = scalar_select %p36, %s38, %s29
      %p40 = scmp.ge.s32.totalorder %s39, 1
      %s41 = scalar_select %p40, 0, %s39
      %s42 = ssub.s32 %s29, %s41
      %p43 = scmp.eq.s32.totalorder %s42, 0
      %s45 = sadd.s32 %s44, 1
      %s46 = scalar_select %p43, %s44, %s45
      %p49 = pneg %p43
      %p50 = scmp.eq.s32.totalorder %s22, 1
      %p51 = por %p49, %p50
      %p52 = scmp.ne.s32.totalorder %s44, %s47
      %p53 = scmp.eq.s32.totalorder %s22, 0
      %p54 = por %p52, %p53
      %p55 = scmp.ne.s32.totalorder %s44, %s47
      %p56 = scmp.eq.s32.totalorder %s27, 1
      %p57 = por %p55, %p56
      %p58 = scmp.ne.s32.totalorder %s47, %s48
      %p59 = scmp.eq.s32.totalorder %s27, 0
      %p60 = por %p58, %p59
      %p61 = scmp.ne.s32.totalorder %s47, %s48
      %p62 = scmp.eq.s32.totalorder %s28, 1
      %p63 = por %p61, %p62
      %p65 = scmp.ne.s32.totalorder %s48, %s64
      %p66 = scmp.eq.s32.totalorder %s28, 0
      %p67 = por %p65, %p66
      %s68 = ssub.s32 %s30, %s37
      %p69 = scmp.eq.s32.totalorder %s68, 0
      %s71 = sadd.s32 %s70, 1
      %s72 = scalar_select %p69, %s70, %s71
      %p75 = pneg %p69
      %p76 = scmp.eq.s32.totalorder %s22, 1
      %p77 = por %p75, %p76
      %p78 = scmp.ne.s32.totalorder %s70, %s73
      %p79 = scmp.eq.s32.totalorder %s22, 0
      %p80 = por %p78, %p79
      %p81 = scmp.ne.s32.totalorder %s70, %s73
      %p82 = scmp.eq.s32.totalorder %s27, 1
      %p83 = por %p81, %p82
      %p84 = scmp.ne.s32.totalorder %s73, %s74
      %p85 = scmp.eq.s32.totalorder %s27, 0
      %p86 = por %p84, %p85
      %p87 = scmp.ne.s32.totalorder %s73, %s74
      %p88 = scmp.eq.s32.totalorder %s28, 1
      %p89 = por %p87, %p88
      %p91 = scmp.ne.s32.totalorder %s74, %s90
      %p92 = scmp.eq.s32.totalorder %s28, 0
      %p93 = por %p91, %p92
      %s94 = ssub.s32 %s30, %s37
      %p95 = scmp.eq.s32.totalorder %s94, 0
      %s97 = sadd.s32 %s96, 1
      %s98 = scalar_select %p95, %s96, %s97
      %p101 = pneg %p95
      %p102 = scmp.eq.s32.totalorder %s22, 1
      %p103 = por %p101, %p102
      %p104 = scmp.ne.s32.totalorder %s96, %s99
      %p105 = scmp.eq.s32.totalorder %s22, 0
      %p106 = por %p104, %p105
      %p107 = scmp.ne.s32.totalorder %s96, %s99
      %p108 = scmp.eq.s32.totalorder %s27, 1
      %p109 = por %p107, %p108
      %p110 = scmp.ne.s32.totalorder %s99, %s100
      %p111 = scmp.eq.s32.totalorder %s27, 0
      %p112 = por %p110, %p111
      %p113 = scmp.ne.s32.totalorder %s99, %s100
      %p114 = scmp.eq.s32.totalorder %s28, 1
      %p115 = por %p113, %p114
      %p117 = scmp.ne.s32.totalorder %s100, %s116
      %p118 = scmp.eq.s32.totalorder %s28, 0
      %p119 = por %p117, %p118
      %s120 = ssub.s32 %s30, %s37
      %p121 = scmp.eq.s32.totalorder %s120, 0
      %s123 = sadd.s32 %s122, 1
      %s124 = scalar_select %p121, %s122, %s123
      %p127 = pneg %p121
      %p128 = scmp.eq.s32.totalorder %s22, 1
      %p129 = por %p127, %p128
      %p130 = scmp.ne.s32.totalorder %s122, %s125
      %p131 = scmp.eq.s32.totalorder %s22, 0
      %p132 = por %p130, %p131
      %p133 = scmp.ne.s32.totalorder %s122, %s125
      %p134 = scmp.eq.s32.totalorder %s27, 1
      %p135 = por %p133, %p134
      %p136 = scmp.ne.s32.totalorder %s125, %s126
      %p137 = scmp.eq.s32.totalorder %s27, 0
      %p138 = por %p136, %p137
      %p139 = scmp.ne.s32.totalorder %s125, %s126
      %p140 = scmp.eq.s32.totalorder %s28, 1
      %p141 = por %p139, %p140
      %p143 = scmp.ne.s32.totalorder %s126, %s142
      %p144 = scmp.eq.s32.totalorder %s28, 0
      %p145 = por %p143, %p144
      %s146 = ssub.s32 %s30, %s37
      %p147 = scmp.eq.s32.totalorder %s146, 0
      %s149 = sadd.s32 %s148, 1
      %s150 = scalar_select %p147, %s148, %s149
      %p153 = pneg %p147
      %p154 = scmp.eq.s32.totalorder %s22, 1
      %p155 = por %p153, %p154
      %p156 = scmp.ne.s32.totalorder %s148, %s151
      %p157 = scmp.eq.s32.totalorder %s22, 0
      %p158 = por %p156, %p157
      %p159 = scmp.ne.s32.totalorder %s148, %s151
      %p160 = scmp.eq.s32.totalorder %s27, 1
      %p161 = por %p159, %p160
      %p162 = scmp.ne.s32.totalorder %s151, %s152
      %p163 = scmp.eq.s32.totalorder %s27, 0
      %p164 = por %p162, %p163
      %p165 = scmp.ne.s32.totalorder %s151, %s152
      %p166 = scmp.eq.s32.totalorder %s28, 1
      %p167 = por %p165, %p166
      %p169 = scmp.ne.s32.totalorder %s152, %s168
      %p170 = scmp.eq.s32.totalorder %s28, 0
      %p171 = por %p169, %p170
      %s172 = ssub.s32 %s30, %s37
      %p173 = scmp.eq.s32.totalorder %s172, 0
      %s175 = sadd.s32 %s174, 1
      %s176 = scalar_select %p173, %s174, %s175
      %p179 = pneg %p173
      %p180 = scmp.eq.s32.totalorder %s22, 1
      %p181 = por %p179, %p180
      %p182 = scmp.ne.s32.totalorder %s174, %s177
      %p183 = scmp.eq.s32.totalorder %s22, 0
      %p184 = por %p182, %p183
      %p185 = scmp.ne.s32.totalorder %s174, %s177
      %p186 = scmp.eq.s32.totalorder %s27, 1
      %p187 = por %p185, %p186
      %p188 = scmp.ne.s32.totalorder %s177, %s178
      %p189 = scmp.eq.s32.totalorder %s27, 0
      %p190 = por %p188, %p189
      %p191 = scmp.ne.s32.totalorder %s177, %s178
      %p192 = scmp.eq.s32.totalorder %s28, 1
      %p193 = por %p191, %p192
      %p195 = scmp.ne.s32.totalorder %s178, %s194
      %p196 = scmp.eq.s32.totalorder %s28, 0
      %p197 = por %p195, %p196
      %s198 = ssub.s32 %s30, %s37
      %p199 = scmp.eq.s32.totalorder %s198, 0
      %s201 = sadd.s32 %s200, 1
      %s202 = scalar_select %p199, %s200, %s201
      %p205 = pneg %p199
      %p206 = scmp.eq.s32.totalorder %s22, 1
      %p207 = por %p205, %p206
      %p208 = scmp.ne.s32.totalorder %s200, %s203
      %p209 = scmp.eq.s32.totalorder %s22, 0
      %p210 = por %p208, %p209
      %p211 = scmp.ne.s32.totalorder %s200, %s203
      %p212 = scmp.eq.s32.totalorder %s27, 1
      %p213 = por %p211, %p212
      %p214 = scmp.ne.s32.totalorder %s203, %s204
      %p215 = scmp.eq.s32.totalorder %s27, 0
      %p216 = por %p214, %p215
      %p217 = scmp.ne.s32.totalorder %s203, %s204
      %p218 = scmp.eq.s32.totalorder %s28, 1
      %p219 = por %p217, %p218
      %p221 = scmp.ne.s32.totalorder %s204, %s220
      %p222 = scmp.eq.s32.totalorder %s28, 0
      %p223 = por %p221, %p222
      %s224 = ssub.s32 %s30, %s37
      %p225 = scmp.eq.s32.totalorder %s224, 0
      %s227 = sadd.s32 %s226, 1
      %s228 = scalar_select %p225, %s226, %s227
      %p231 = pneg %p225
      %p232 = scmp.eq.s32.totalorder %s22, 1
      %p233 = por %p231, %p232
      %p234 = scmp.ne.s32.totalorder %s226, %s229
      %p235 = scmp.eq.s32.totalorder %s22, 0
      %p236 = por %p234, %p235
      %p237 = scmp.ne.s32.totalorder %s226, %s229
      %p238 = scmp.eq.s32.totalorder %s27, 1
      %p239 = por %p237, %p238
      %p240 = scmp.ne.s32.totalorder %s229, %s230
      %p241 = scmp.eq.s32.totalorder %s27, 0
      %p242 = por %p240, %p241
      %p243 = scmp.ne.s32.totalorder %s229, %s230
      %p244 = scmp.eq.s32.totalorder %s28, 1
      %p245 = por %p243, %p244
      %p247 = scmp.ne.s32.totalorder %s230, %s246
      %p248 = scmp.eq.s32.totalorder %s28, 0
      %p249 = por %p247, %p248
      %s250 = ssub.s32 %s30, %s37
      %p251 = scmp.eq.s32.totalorder %s250, 0
      %s253 = sadd.s32 %s252, 1
      %s254 = scalar_select %p251, %s252, %s253
      %p257 = pneg %p251
      %p258 = scmp.eq.s32.totalorder %s22, 1
      %p259 = por %p257, %p258
      %p260 = scmp.ne.s32.totalorder %s252, %s255
      %p261 = scmp.eq.s32.totalorder %s22, 0
      %p262 = por %p260, %p261
      %p263 = scmp.ne.s32.totalorder %s252, %s255
      %p264 = scmp.eq.s32.totalorder %s27, 1
      %p265 = por %p263, %p264
      %p266 = scmp.ne.s32.totalorder %s255, %s256
      %p267 = scmp.eq.s32.totalorder %s27, 0
      %p268 = por %p266, %p267
      %p269 = scmp.ne.s32.totalorder %s255, %s256
      %p270 = scmp.eq.s32.totalorder %s28, 1
      %p271 = por %p269, %p270
      %p273 = scmp.ne.s32.totalorder %s256, %s272
      %p274 = scmp.eq.s32.totalorder %s28, 0
      %p275 = por %p273, %p274
      %s276 = ssub.s32 %s30, %s37
      %p277 = scmp.eq.s32.totalorder %s276, 0
      %s279 = sadd.s32 %s278, 1
      %s280 = scalar_select %p277, %s278, %s279
      %p283 = pneg %p277
      %p284 = scmp.eq.s32.totalorder %s22, 1
      %p285 = por %p283, %p284
      %p286 = scmp.ne.s32.totalorder %s278, %s281
      %p287 = scmp.eq.s32.totalorder %s22, 0
      %p288 = por %p286, %p287
      %p289 = scmp.ne.s32.totalorder %s278, %s281
      %p290 = scmp.eq.s32.totalorder %s27, 1
      %p291 = por %p289, %p290
      %p292 = scmp.ne.s32.totalorder %s281, %s282
      %p293 = scmp.eq.s32.totalorder %s27, 0
      %p294 = por %p292, %p293
      %p295 = scmp.ne.s32.totalorder %s281, %s282
      %p296 = scmp.eq.s32.totalorder %s28, 1
      %p297 = por %p295, %p296
      %p299 = scmp.ne.s32.totalorder %s282, %s298
      %p300 = scmp.eq.s32.totalorder %s28, 0
      %p301 = por %p299, %p300
      %s302 = ssub.s32 %s30, %s37
      %p303 = scmp.eq.s32.totalorder %s302, 0
      %s305 = sadd.s32 %s304, 1
      %s306 = scalar_select %p303, %s304, %s305
      %p309 = pneg %p303
      %p310 = scmp.eq.s32.totalorder %s22, 1
      %p311 = por %p309, %p310
      %p312 = scmp.ne.s32.totalorder %s304, %s307
      %p313 = scmp.eq.s32.totalorder %s22, 0
      %p314 = por %p312, %p313
      %p315 = scmp.ne.s32.totalorder %s304, %s307
      %p316 = scmp.eq.s32.totalorder %s27, 1
      %p317 = por %p315, %p316
      %p318 = scmp.ne.s32.totalorder %s307, %s308
      %p319 = scmp.eq.s32.totalorder %s27, 0
      %p320 = por %p318, %p319
      %p321 = scmp.ne.s32.totalorder %s307, %s308
      %p322 = scmp.eq.s32.totalorder %s28, 1
      %p323 = por %p321, %p322
      %p325 = scmp.ne.s32.totalorder %s308, %s324
      %p326 = scmp.eq.s32.totalorder %s28, 0
      %p327 = por %p325, %p326
      %s328 = ssub.s32 %s30, %s37
      %p329 = scmp.eq.s32.totalorder %s328, 0
      %s331 = sadd.s32 %s330, 1
      %s332 = scalar_select %p329, %s330, %s331
      %p335 = pneg %p329
      %p336 = scmp.eq.s32.totalorder %s22, 1
      %p337 = por %p335, %p336
      %p338 = scmp.ne.s32.totalorder %s330, %s333
      %p339 = scmp.eq.s32.totalorder %s22, 0
      %p340 = por %p338, %p339
      %p341 = scmp.ne.s32.totalorder %s330, %s333
      %p342 = scmp.eq.s32.totalorder %s27, 1
      %p343 = por %p341, %p342
      %p344 = scmp.ne.s32.totalorder %s333, %s334
      %p345 = scmp.eq.s32.totalorder %s27, 0
      %p346 = por %p344, %p345
      %p347 = scmp.ne.s32.totalorder %s333, %s334
      %p348 = scmp.eq.s32.totalorder %s28, 1
      %p349 = por %p347, %p348
      %p351 = scmp.ne.s32.totalorder %s334, %s350
      %p352 = scmp.eq.s32.totalorder %s28, 0
      %p353 = por %p351, %p352
      %s354 = ssub.s32 %s30, %s37
      %p355 = scmp.eq.s32.totalorder %s354, 0
      %s357 = sadd.s32 %s356, 1
      %s358 = scalar_select %p355, %s356, %s357
      %p361 = pneg %p355
      %p362 = scmp.eq.s32.totalorder %s22, 1
      %p363 = por %p361, %p362
      %p364 = scmp.ne.s32.totalorder %s356, %s359
      %p365 = scmp.eq.s32.totalorder %s22, 0
      %p366 = por %p364, %p365
      %p367 = scmp.ne.s32.totalorder %s356, %s359
      %p368 = scmp.eq.s32.totalorder %s27, 1
      %p369 = por %p367, %p368
      %p370 = scmp.ne.s32.totalorder %s359, %s360
      %p371 = scmp.eq.s32.totalorder %s27, 0
      %p372 = por %p370, %p371
      %p373 = scmp.ne.s32.totalorder %s359, %s360
      %p374 = scmp.eq.s32.totalorder %s28, 1
      %p375 = por %p373, %p374
      %p377 = scmp.ne.s32.totalorder %s360, %s376
      %p378 = scmp.eq.s32.totalorder %s28, 0
      %p379 = por %p377, %p378
      %s381 = sadd.s32 %s380, 1
      %p384 = scmp.eq.s32.totalorder %s22, 1
      %p385 = scmp.ne.s32.totalorder %s380, %s382
      %p386 = scmp.eq.s32.totalorder %s22, 0
      %p387 = por %p385, %p386
      %p388 = scmp.ne.s32.totalorder %s380, %s382
      %p389 = scmp.eq.s32.totalorder %s27, 1
      %p390 = por %p388, %p389
      %p391 = scmp.ne.s32.totalorder %s382, %s383
      %p392 = scmp.eq.s32.totalorder %s27, 0
      %p393 = por %p391, %p392
      %p394 = scmp.ne.s32.totalorder %s382, %s383
      %p395 = scmp.eq.s32.totalorder %s28, 1
      %p396 = por %p394, %p395
      %p398 = scmp.ne.s32.totalorder %s383, %s397
      %p399 = scmp.eq.s32.totalorder %s28, 0
      %p400 = por %p398, %p399
      %s402 = sadd.s32 %s401, 1
      %p405 = scmp.eq.s32.totalorder %s22, 1
      %p406 = scmp.ne.s32.totalorder %s401, %s403
      %p407 = scmp.eq.s32.totalorder %s22, 0
      %p408 = por %p406, %p407
      %p409 = scmp.ne.s32.totalorder %s401, %s403
      %p410 = scmp.eq.s32.totalorder %s27, 1
      %p411 = por %p409, %p410
      %p412 = scmp.ne.s32.totalorder %s403, %s404
      %p413 = scmp.eq.s32.totalorder %s27, 0
      %p414 = por %p412, %p413
      %p415 = scmp.ne.s32.totalorder %s403, %s404
      %p416 = scmp.eq.s32.totalorder %s28, 1
      %p417 = por %p415, %p416
      %p419 = scmp.ne.s32.totalorder %s404, %s418
      %p420 = scmp.eq.s32.totalorder %s28, 0
      %p421 = por %p419, %p420
      %s422 = ssub.s32 %s29, %s41
      %p423 = scmp.eq.s32.totalorder %s422, 0
      %s425 = sadd.s32 %s424, 1
      %s426 = scalar_select %p423, %s424, %s425
      %p429 = pneg %p423
      %p430 = scmp.eq.s32.totalorder %s22, 1
      %p431 = por %p429, %p430
      %p432 = scmp.ne.s32.totalorder %s424, %s427
      %p433 = scmp.eq.s32.totalorder %s22, 0
      %p434 = por %p432, %p433
      %p435 = scmp.ne.s32.totalorder %s424, %s427
      %p436 = scmp.eq.s32.totalorder %s27, 1
      %p437 = por %p435, %p436
      %p438 = scmp.ne.s32.totalorder %s427, %s428
      %p439 = scmp.eq.s32.totalorder %s27, 0
      %p440 = por %p438, %p439
      %p441 = scmp.ne.s32.totalorder %s427, %s428
      %p442 = scmp.eq.s32.totalorder %s28, 1
      %p443 = por %p441, %p442
      %p445 = scmp.ne.s32.totalorder %s428, %s444
      %p446 = scmp.eq.s32.totalorder %s28, 0
      %p447 = por %p445, %p446
      %p448 = scmp.le.s32.totalorder 1, %s22
      %p449 = scmp.lt.s32.totalorder %s22, 3
      %p450 = pnand %p448, %p449
      %p451 = pneg %p450
      // Predicated region
      $region9: #{conv_resmlp2_forward.5} parent=5 // pred_check
        _
      $region10: #{conv_resmlp2_forward.5} parent=5 // pred_check_branch
        %453 = sbr.rel (%p450) target = $region12
      $region11: #{conv_resmlp2_forward.5} parent=5 // pred_region
        %s454 = ssub.s32 %s22, 1
        // Predicated region
        $region13: #{conv_resmlp2_forward.5} parent=11 // pred_check
          %p455 = pneg %p60
        $region14: #{conv_resmlp2_forward.5} parent=11 // pred_check_branch
          %457 = sbr.rel (%p455) target = $region16
        $region15: #{conv_resmlp2_forward.5} parent=11 // pred_region
          %s458 = smul.u32 4, %s31
          %p459 = scmp.lt.s32.totalorder %s458, 3
          %s460 = scalar_select %p459, %s458, 3
          %s461 = smul.addr %s460, 8
          %s462 = scalar_lea.vmem %s0, %s461
          %s463 = smul.u32 4, %s31
        $region16: #{conv_resmlp2_forward.5} parent=11 // pred_fallthru
          _
        // Predicated region
        $region17: #{conv_resmlp2_forward.5} parent=11 // pred_check
          %p464 = pneg %p393
        $region18: #{conv_resmlp2_forward.5} parent=11 // pred_check_branch
          %466 = sbr.rel (%p464) target = $region20
        $region19: #{conv_resmlp2_forward.5} parent=11 // pred_region
          _
        $region20: #{conv_resmlp2_forward.5} parent=11 // pred_fallthru
          _
        // Predicated region
        $region21: #{conv_resmlp2_forward.5} parent=11 // pred_check
          %p467 = pneg %p414
        $region22: #{conv_resmlp2_forward.5} parent=11 // pred_check_branch
          %469 = sbr.rel (%p467) target = $region24
        $region23: #{conv_resmlp2_forward.5} parent=11 // pred_region
          _
        $region24: #{conv_resmlp2_forward.5} parent=11 // pred_fallthru
          _
      $region12: #{conv_resmlp2_forward.5} parent=5 // pred_fallthru
        _
      %p470 = scmp.lt.s32.totalorder %s22, 2
      // Predicated region
      $region25: #{conv_resmlp2_forward.5} parent=5 // pred_check
        %p471 = pneg %p470
      $region26: #{conv_resmlp2_forward.5} parent=5 // pred_check_branch
        %473 = sbr.rel (%p471) target = $region28
      $region27: #{conv_resmlp2_forward.5} parent=5 // pred_region
        // Predicated region
        $region29: #{conv_resmlp2_forward.5} parent=27 // pred_check
          %p474 = pneg %p80
        $region30: #{conv_resmlp2_forward.5} parent=27 // pred_check_branch
          %476 = sbr.rel (%p474) target = $region32
        $region31: #{conv_resmlp2_forward.5} parent=27 // pred_region
          %p477 = scmp.lt.s32.totalorder %s30, 1
          %s478 = scalar_select %p477, %s30, 1
          %s479 = scalar_lea.vmem %s1, %s478
        $region32: #{conv_resmlp2_forward.5} parent=27 // pred_fallthru
          _
        // Predicated region
        $region33: #{conv_resmlp2_forward.5} parent=27 // pred_check
          %p480 = pneg %p106
        $region34: #{conv_resmlp2_forward.5} parent=27 // pred_check_branch
          %482 = sbr.rel (%p480) target = $region36
        $region35: #{conv_resmlp2_forward.5} parent=27 // pred_region
          %p483 = scmp.lt.s32.totalorder %s30, 1
          %s484 = scalar_select %p483, %s30, 1
          %s485 = scalar_lea.vmem %s2, %s484
        $region36: #{conv_resmlp2_forward.5} parent=27 // pred_fallthru
          _
        // Predicated region
        $region37: #{conv_resmlp2_forward.5} parent=27 // pred_check
          %p486 = pneg %p132
        $region38: #{conv_resmlp2_forward.5} parent=27 // pred_check_branch
          %488 = sbr.rel (%p486) target = $region40
        $region39: #{conv_resmlp2_forward.5} parent=27 // pred_region
          %p489 = scmp.lt.s32.totalorder %s30, 1
          %s490 = scalar_select %p489, %s30, 1
          %s491 = smul.addr %s490, 2
          %s492 = smul.addr %s491, 4
          %s493 = scalar_lea.vmem %s3, %s492
        $region40: #{conv_resmlp2_forward.5} parent=27 // pred_fallthru
          _
        // Predicated region
        $region41: #{conv_resmlp2_forward.5} parent=27 // pred_check
          %p494 = pneg %p158
        $region42: #{conv_resmlp2_forward.5} parent=27 // pred_check_branch
          %496 = sbr.rel (%p494) target = $region44
        $region43: #{conv_resmlp2_forward.5} parent=27 // pred_region
          %p497 = scmp.lt.s32.totalorder %s30, 1
          %s498 = scalar_select %p497, %s30, 1
          %s499 = smul.addr %s498, 2
          %s500 = smul.addr %s499, 8
          %s501 = scalar_lea.vmem %s4, %s500
        $region44: #{conv_resmlp2_forward.5} parent=27 // pred_fallthru
          _
        // Predicated region
        $region45: #{conv_resmlp2_forward.5} parent=27 // pred_check
          %p502 = pneg %p184
        $region46: #{conv_resmlp2_forward.5} parent=27 // pred_check_branch
          %504 = sbr.rel (%p502) target = $region48
        $region47: #{conv_resmlp2_forward.5} parent=27 // pred_region
          %p505 = scmp.lt.s32.totalorder %s30, 1
          %s506 = scalar_select %p505, %s30, 1
          %s507 = scalar_lea.vmem %s5, %s506
        $region48: #{conv_resmlp2_forward.5} parent=27 // pred_fallthru
          _
        // Predicated region
        $region49: #{conv_resmlp2_forward.5} parent=27 // pred_check
          %p508 = pneg %p210
        $region50: #{conv_resmlp2_forward.5} parent=27 // pred_check_branch
          %510 = sbr.rel (%p508) target = $region52
        $region51: #{conv_resmlp2_forward.5} parent=27 // pred_region
          %p511 = scmp.lt.s32.totalorder %s30, 1
          %s512 = scalar_select %p511, %s30, 1
          %s513 = scalar_lea.vmem %s6, %s512
        $region52: #{conv_resmlp2_forward.5} parent=27 // pred_fallthru
          _
        // Predicated region
        $region53: #{conv_resmlp2_forward.5} parent=27 // pred_check
          %p514 = pneg %p236
        $region54: #{conv_resmlp2_forward.5} parent=27 // pred_check_branch
          %516 = sbr.rel (%p514) target = $region56
        $region55: #{conv_resmlp2_forward.5} parent=27 // pred_region
          %p517 = scmp.lt.s32.totalorder %s30, 1
          %s518 = scalar_select %p517, %s30, 1
          %s519 = scalar_lea.vmem %s7, %s518
        $region56: #{conv_resmlp2_forward.5} parent=27 // pred_fallthru
          _
        // Predicated region
        $region57: #{conv_resmlp2_forward.5} parent=27 // pred_check
          %p520 = pneg %p262
        $region58: #{conv_resmlp2_forward.5} parent=27 // pred_check_branch
          %522 = sbr.rel (%p520) target = $region60
        $region59: #{conv_resmlp2_forward.5} parent=27 // pred_region
          %p523 = scmp.lt.s32.totalorder %s30, 1
          %s524 = scalar_select %p523, %s30, 1
          %s525 = smul.addr %s524, 32
          %s526 = smul.addr %s525, 4
          %s527 = scalar_lea.vmem %s8, %s526
        $region60: #{conv_resmlp2_forward.5} parent=27 // pred_fallthru
          _
        // Predicated region
        $region61: #{conv_resmlp2_forward.5} parent=27 // pred_check
          %p528 = pneg %p288
        $region62: #{conv_resmlp2_forward.5} parent=27 // pred_check_branch
          %530 = sbr.rel (%p528) target = $region64
        $region63: #{conv_resmlp2_forward.5} parent=27 // pred_region
          %p531 = scmp.lt.s32.totalorder %s30, 1
          %s532 = scalar_select %p531, %s30, 1
          %s533 = smul.addr %s532, 2
          %s534 = scalar_lea.vmem %s9, %s533
        $region64: #{conv_resmlp2_forward.5} parent=27 // pred_fallthru
          _
        // Predicated region
        $region65: #{conv_resmlp2_forward.5} parent=27 // pred_check
          %p535 = pneg %p314
        $region66: #{conv_resmlp2_forward.5} parent=27 // pred_check_branch
          %537 = sbr.rel (%p535) target = $region68
        $region67: #{conv_resmlp2_forward.5} parent=27 // pred_region
          %p538 = scmp.lt.s32.totalorder %s30, 1
          %s539 = scalar_select %p538, %s30, 1
          %s540 = smul.addr %s539, 32
          %s541 = smul.addr %s540, 4
          %s542 = scalar_lea.vmem %s10, %s541
        $region68: #{conv_resmlp2_forward.5} parent=27 // pred_fallthru
          _
        // Predicated region
        $region69: #{conv_resmlp2_forward.5} parent=27 // pred_check
          %p543 = pneg %p340
        $region70: #{conv_resmlp2_forward.5} parent=27 // pred_check_branch
          %545 = sbr.rel (%p543) target = $region72
        $region71: #{conv_resmlp2_forward.5} parent=27 // pred_region
          %p546 = scmp.lt.s32.totalorder %s30, 1
          %s547 = scalar_select %p546, %s30, 1
          %s548 = scalar_lea.vmem %s11, %s547
        $region72: #{conv_resmlp2_forward.5} parent=27 // pred_fallthru
          _
        // Predicated region
        $region73: #{conv_resmlp2_forward.5} parent=27 // pred_check
          %p549 = pneg %p366
        $region74: #{conv_resmlp2_forward.5} parent=27 // pred_check_branch
          %551 = sbr.rel (%p549) target = $region76
        $region75: #{conv_resmlp2_forward.5} parent=27 // pred_region
          %p552 = scmp.lt.s32.totalorder %s30, 1
          %s553 = scalar_select %p552, %s30, 1
          %s554 = scalar_lea.vmem %s12, %s553
        $region76: #{conv_resmlp2_forward.5} parent=27 // pred_fallthru
          _
      $region28: #{conv_resmlp2_forward.5} parent=5 // pred_fallthru
        _
      %p555 = scmp.le.s32.totalorder 1, %s22
      %p556 = scmp.lt.s32.totalorder %s22, 3
      %p557 = pnand %p555, %p556
      %p558 = pneg %p557
      // Predicated region
      $region77: #{conv_resmlp2_forward.5} parent=5 // pred_check
        _
      $region78: #{conv_resmlp2_forward.5} parent=5 // pred_check_branch
        %560 = sbr.rel (%p557) target = $region80
      $region79: #{conv_resmlp2_forward.5} parent=5 // pred_region
        %s561 = ssub.s32 %s22, 1
        %s562 = smul.u32 4, %s31
        %p563 = scmp.lt.s32.totalorder %s562, 3
        %s564 = scalar_select %p563, %s562, 3
        %s565 = smul.addr %s564, 8
        %s566 = scalar_lea.vmem %s0, %s565
        %p567 = pneg %p60
        %p568 = pneg %p57
        %p569 = scmp.lt.s32.totalorder %s32, 1
        %s570 = scalar_select %p569, %s32, 1
        %s571 = scalar_lea.vmem %s1, %s570
        %p572 = pneg %p86
        %p573 = pneg %p83
        %p574 = scmp.lt.s32.totalorder %s32, 1
        %s575 = scalar_select %p574, %s32, 1
        %s576 = scalar_lea.vmem %s2, %s575
        %p577 = pneg %p112
        %p578 = pneg %p109
        %p579 = scmp.lt.s32.totalorder %s32, 1
        %s580 = scalar_select %p579, %s32, 1
        %s581 = smul.addr %s580, 2
        %s582 = smul.addr %s581, 4
        %s583 = scalar_lea.vmem %s3, %s582
        %p584 = pneg %p138
        %p585 = pneg %p135
        %p586 = scmp.lt.s32.totalorder %s32, 1
        %s587 = scalar_select %p586, %s32, 1
        %s588 = smul.addr %s587, 2
        %s589 = smul.addr %s588, 8
        %s590 = scalar_lea.vmem %s4, %s589
        %p591 = pneg %p164
        %p592 = pneg %p161
        %p593 = scmp.lt.s32.totalorder %s32, 1
        %s594 = scalar_select %p593, %s32, 1
        %s595 = scalar_lea.vmem %s5, %s594
        %p596 = pneg %p190
        %p597 = pneg %p187
        %p598 = scmp.lt.s32.totalorder %s32, 1
        %s599 = scalar_select %p598, %s32, 1
        %s600 = scalar_lea.vmem %s6, %s599
        %p601 = pneg %p216
        %p602 = pneg %p213
        %p603 = scmp.lt.s32.totalorder %s32, 1
        %s604 = scalar_select %p603, %s32, 1
        %s605 = scalar_lea.vmem %s7, %s604
        %p606 = pneg %p242
        %p607 = pneg %p239
        %p608 = scmp.lt.s32.totalorder %s32, 1
        %s609 = scalar_select %p608, %s32, 1
        %s610 = smul.addr %s609, 32
        %s611 = smul.addr %s610, 4
        %s612 = scalar_lea.vmem %s8, %s611
        %p613 = pneg %p268
        %p614 = pneg %p265
        %p615 = scmp.lt.s32.totalorder %s32, 1
        %s616 = scalar_select %p615, %s32, 1
        %s617 = smul.addr %s616, 2
        %s618 = scalar_lea.vmem %s9, %s617
        %p619 = pneg %p294
        %p620 = pneg %p291
        %p621 = scmp.lt.s32.totalorder %s32, 1
        %s622 = scalar_select %p621, %s32, 1
        %s623 = smul.addr %s622, 32
        %s624 = smul.addr %s623, 4
        %s625 = scalar_lea.vmem %s10, %s624
        %p626 = pneg %p320
        %p627 = pneg %p317
        %p628 = scmp.lt.s32.totalorder %s32, 1
        %s629 = scalar_select %p628, %s32, 1
        %s630 = scalar_lea.vmem %s11, %s629
        %p631 = pneg %p346
        %p632 = pneg %p343
        %p633 = scmp.lt.s32.totalorder %s32, 1
        %s634 = scalar_select %p633, %s32, 1
        %s635 = scalar_lea.vmem %s12, %s634
        %p636 = pneg %p372
        %p637 = pneg %p369
        %p638 = pneg %p393
        %p639 = pneg %p390
        %p640 = pneg %p414
        %p641 = pneg %p411
        %p642 = pneg %p440
        %p643 = pneg %p437
        %s644 = smul.u32 4, %s31
        %p645 = scmp.lt.s32.totalorder %s644, 3
        %s646 = scalar_select %p645, %s644, 3
        %s647 = smul.addr %s646, 8
        %s648 = scalar_lea.vmem %s0, %s647
        %s649 = smul.u32 4, %s31
        %p650 = scmp.lt.s32.totalorder %s32, 1
        %s651 = scalar_select %p650, %s32, 1
        %s652 = scalar_lea.vmem %s1, %s651
        %p653 = scmp.lt.s32.totalorder %s32, 1
        %s654 = scalar_select %p653, %s32, 1
        %s655 = scalar_lea.vmem %s2, %s654
        %p656 = scmp.lt.s32.totalorder %s32, 1
        %s657 = scalar_select %p656, %s32, 1
        %s658 = smul.addr %s657, 2
        %s659 = smul.addr %s658, 4
        %s660 = scalar_lea.vmem %s3, %s659
        %p661 = scmp.lt.s32.totalorder %s32, 1
        %s662 = scalar_select %p661, %s32, 1
        %s663 = smul.addr %s662, 2
        %s664 = smul.addr %s663, 8
        %s665 = scalar_lea.vmem %s4, %s664
        %p666 = scmp.lt.s32.totalorder %s32, 1
        %s667 = scalar_select %p666, %s32, 1
        %s668 = scalar_lea.vmem %s5, %s667
        %p669 = scmp.lt.s32.totalorder %s32, 1
        %s670 = scalar_select %p669, %s32, 1
        %s671 = scalar_lea.vmem %s6, %s670
        %p672 = scmp.lt.s32.totalorder %s32, 1
        %s673 = scalar_select %p672, %s32, 1
        %s674 = scalar_lea.vmem %s7, %s673
        %p675 = scmp.lt.s32.totalorder %s32, 1
        %s676 = scalar_select %p675, %s32, 1
        %s677 = smul.addr %s676, 32
        %s678 = smul.addr %s677, 4
        %s679 = scalar_lea.vmem %s8, %s678
        %p680 = scmp.lt.s32.totalorder %s32, 1
        %s681 = scalar_select %p680, %s32, 1
        %s682 = smul.addr %s681, 2
        %s683 = scalar_lea.vmem %s9, %s682
        %p684 = scmp.lt.s32.totalorder %s32, 1
        %s685 = scalar_select %p684, %s32, 1
        %s686 = smul.addr %s685, 32
        %s687 = smul.addr %s686, 4
        %s688 = scalar_lea.vmem %s10, %s687
        %p689 = scmp.lt.s32.totalorder %s32, 1
        %s690 = scalar_select %p689, %s32, 1
        %s691 = scalar_lea.vmem %s11, %s690
        %p692 = scmp.lt.s32.totalorder %s32, 1
        %s693 = scalar_select %p692, %s32, 1
        %s694 = scalar_lea.vmem %s12, %s693
        %s695 = smul.u32 4, %s31
        %p697 = scmp.eq.s32.totalorder %s32, 0
        // Predicated region
        $region81: #{conv_resmlp2_forward.5} parent=79 // pred_check
          %p698 = pneg %p697
        $region82: #{conv_resmlp2_forward.5} parent=79 // pred_check_branch
          %700 = sbr.rel (%p698) target = $region84
        $region83: #{conv_resmlp2_forward.5} parent=79 // pred_region
          %v701 = vld [vmem:[%s648] sm:$0xff]
          %v702 = vld [vmem:[%s648 + $0x8] sm:$0xff]
          %v703 = vld [vmem:[%s648 + $0x10] sm:$0xff]
          %v704 = vld [vmem:[%s648 + $0x18] sm:$0xff]
          %705 = vst [vmem:[#allocation2] sm:$0xff] %v701
          %706 = vst [vmem:[#allocation2 + $0x8] sm:$0xff] %v702
          %707 = vst [vmem:[#allocation2 + $0x10] sm:$0xff] %v703
          %708 = vst [vmem:[#allocation2 + $0x18] sm:$0xff] %v704
        $region84: #{conv_resmlp2_forward.5} parent=79 // pred_fallthru
          _
        %v709 = vld [vmem:[#allocation2] sm:$0xff]
        %v710 = vld [vmem:[#allocation2 + $0x8] sm:$0xff]
        %v711 = vld [vmem:[#allocation2 + $0x10] sm:$0xff]
        %v712 = vld [vmem:[#allocation2 + $0x18] sm:$0xff]
        %v713 = vld [vmem:[%s652] sm:$0x1]
        %v714 = vld [vmem:[%s655] sm:$0x1]
        %v715 = vld [vmem:[%s668] sm:$0x1]
        %v716 = vld [vmem:[%s665] sm:$0xff]
        %v717 = vld [vmem:[%s665 + $0x8] sm:$0xff]
        %v718 = vld [vmem:[%s660] sm:$0xf]
        %v719 = vld [vmem:[%s660 + $0x4] sm:$0xf]
        %v721 = vlaneseq
        %v722 = vshrl.u32 %v721, 7
        %v723 = vsub.s32 0, %v722
        %v724 = vrot.slane %v713, %v723
        %v726 = vmul.f32 %v709, %v724
        %v727 = vmul.f32 %v710, %v724
        %v728 = vmul.f32 %v711, %v724
        %v729 = vmul.f32 %v712, %v724
        %v731 = vlaneseq
        %v732 = vshrl.u32 %v731, 7
        %v733 = vsub.s32 0, %v732
        %v734 = vrot.slane %v714, %v733
        %v736 = vadd.f32 %v726, %v734
        %v737 = vadd.f32 %v727, %v734
        %v738 = vadd.f32 %v728, %v734
        %v739 = vadd.f32 %v729, %v734
        %v740 = vpack.c.bf16 %v737, %v736
        %v743 = vunpack.c.l.b16 %v718
        %v744 = vunpack.c.l.b16 %v719
        %v745 = vpack.c.b16 %v744, %v743
        %vm746 = vcmask 130048
        %v748 = vsel %vm746, %v745, 0
        %750 = vmatprep.subr.bf16.mxu0 0
        %751 = vmatpush1.bf16.msra.mxu0 0
        %752 = vmatprep.subr.bf16.mxu0 0
        %753 = vmatpush1.bf16.msra.mxu0 0
        %754 = vmatprep.subr.bf16.mxu0 0
        %755 = vmatpush1.bf16.msra.mxu0 0
        %756 = vmatprep.subr.bf16.mxu0 0
        %757 = vmatpush1.bf16.msra.mxu0 0
        %758 = vmatprep.subr.bf16.mxu0 0
        %759 = vmatpush1.bf16.msra.mxu0 0
        %760 = vmatprep.subr.bf16.mxu0 0
        %761 = vmatpush1.bf16.msra.mxu0 0
        %762 = vmatprep.subr.bf16.mxu0 0
        %763 = vmatpush1.bf16.msra.mxu0 0
        %764 = vmatprep.subr.bf16.mxu0 0
        %765 = vmatpush1.bf16.msra.mxu0 %v740
        %766 = vmatprep.subr.bf16.mxu0 0
        %767 = vmatpush2.bf16.msra.mxu0 0
        %768 = vmatprep.subr.bf16.mxu0 0
        %769 = vmatpush2.bf16.msra.mxu0 0
        %770 = vmatprep.subr.bf16.mxu0 0
        %771 = vmatpush2.bf16.msra.mxu0 0
        %772 = vmatprep.subr.bf16.mxu0 0
        %773 = vmatpush2.bf16.msra.mxu0 0
        %774 = vmatprep.subr.bf16.mxu0 0
        %775 = vmatpush2.bf16.msra.mxu0 0
        %776 = vmatprep.subr.bf16.mxu0 0
        %777 = vmatpush2.bf16.msra.mxu0 0
        %778 = vmatprep.subr.bf16.mxu0 0
        %779 = vmatpush2.bf16.msra.mxu0 0
        %780 = vmatprep.subr.bf16.mxu0 0
        %781 = vmatpush2.bf16.msra.mxu0 0
        %782 = vmatprep.mubr.bf16.mxu0 0
        %783 = vmatmul.mubr.bf16.gmra.mxu0 %v748
        %v784 = vpop.f32.mrf.mxu0
        %v785 = vadd.f32 0.0, %v784
        %v786 = vpop.f32.mrf.mxu0
        %v787 = vpop.f32.mrf.mxu0
        %v788 = vadd.f32 0.0, %v787
        %v789 = vpop.f32.mrf.mxu0
        %790 = vdwg.mxu0
        %v792 = vlaneseq
        %v793 = vshrl.u32 %v792, 7
        %v794 = vsub.s32 0, %v793
        %v795 = vrot.slane %v715, %v794
        %v797 = vmul.f32 %v795, %v785
        %v798 = vmul.f32 %v795, %v788
        %v799 = vadd.f32 %v736, %v797
        %v800 = vadd.f32 %v737, %v798
        %v801 = vadd.f32 %v799, %v716
        %v802 = vadd.f32 %v800, %v717
        %v803 = vpack.c.bf16 %v739, %v738
        %804 = vmatprep.subr.bf16.mxu0 0
        %805 = vmatpush1.bf16.msra.mxu0 0
        %806 = vmatprep.subr.bf16.mxu0 0
        %807 = vmatpush1.bf16.msra.mxu0 0
        %808 = vmatprep.subr.bf16.mxu0 0
        %809 = vmatpush1.bf16.msra.mxu0 0
        %810 = vmatprep.subr.bf16.mxu0 0
        %811 = vmatpush1.bf16.msra.mxu0 0
        %812 = vmatprep.subr.bf16.mxu0 0
        %813 = vmatpush1.bf16.msra.mxu0 0
        %814 = vmatprep.subr.bf16.mxu0 0
        %815 = vmatpush1.bf16.msra.mxu0 0
        %816 = vmatprep.subr.bf16.mxu0 0
        %817 = vmatpush1.bf16.msra.mxu0 0
        %818 = vmatprep.subr.bf16.mxu0 0
        %819 = vmatpush1.bf16.msra.mxu0 %v803
        %820 = vmatprep.subr.bf16.mxu0 0
        %821 = vmatpush2.bf16.msra.mxu0 0
        %822 = vmatprep.subr.bf16.mxu0 0
        %823 = vmatpush2.bf16.msra.mxu0 0
        %824 = vmatprep.subr.bf16.mxu0 0
        %825 = vmatpush2.bf16.msra.mxu0 0
        %826 = vmatprep.subr.bf16.mxu0 0
        %827 = vmatpush2.bf16.msra.mxu0 0
        %828 = vmatprep.subr.bf16.mxu0 0
        %829 = vmatpush2.bf16.msra.mxu0 0
        %830 = vmatprep.subr.bf16.mxu0 0
        %831 = vmatpush2.bf16.msra.mxu0 0
        %832 = vmatprep.subr.bf16.mxu0 0
        %833 = vmatpush2.bf16.msra.mxu0 0
        %834 = vmatprep.subr.bf16.mxu0 0
        %835 = vmatpush2.bf16.msra.mxu0 0
        %836 = vmatprep.mubr.bf16.mxu0 0
        %837 = vmatmul.mubr.bf16.gmra.mxu0 %v748
        %v838 = vpop.f32.mrf.mxu0
        %v839 = vadd.f32 0.0, %v838
        %v840 = vpop.f32.mrf.mxu0
        %v841 = vpop.f32.mrf.mxu0
        %v842 = vadd.f32 0.0, %v841
        %v843 = vpop.f32.mrf.mxu0
        %844 = vdwg.mxu0
        %v845 = vmul.f32 %v795, %v839
        %v846 = vmul.f32 %v795, %v842
        %v847 = vadd.f32 %v738, %v845
        %v848 = vadd.f32 %v739, %v846
        %v849 = vadd.f32 %v847, %v716
        %v850 = vadd.f32 %v848, %v717
        %v851 = vld [vmem:[%s671] sm:$0x1]
        %v853 = vlaneseq
        %v854 = vshrl.u32 %v853, 7
        %v855 = vsub.s32 0, %v854
        %v856 = vrot.slane %v851, %v855
        %v858 = vmul.f32 %v801, %v856
        %v859 = vmul.f32 %v802, %v856
        %v860 = vmul.f32 %v849, %v856
        %v861 = vmul.f32 %v850, %v856
        %v862 = vld [vmem:[%s674] sm:$0x1]
        %v864 = vlaneseq
        %v865 = vshrl.u32 %v864, 7
        %v866 = vsub.s32 0, %v865
        %v867 = vrot.slane %v862, %v866
        %v869 = vadd.f32 %v858, %v867
        %v870 = vadd.f32 %v859, %v867
        %v871 = vadd.f32 %v860, %v867
        %v872 = vadd.f32 %v861, %v867
        %v873 = vpack.c.bf16 %v870, %v869
        %v874 = vpack.c.bf16 %v872, %v871
        %v875 = vld [vmem:[%s679] sm:$0xff]
        %v876 = vld [vmem:[%s679 + $0x8] sm:$0xff]
        %v877 = vld [vmem:[%s679 + $0x10] sm:$0xff]
        %v878 = vld [vmem:[%s679 + $0x18] sm:$0xff]
        %v879 = vld [vmem:[%s679 + $0x20] sm:$0xff]
        %v880 = vld [vmem:[%s679 + $0x28] sm:$0xff]
        %v881 = vld [vmem:[%s679 + $0x30] sm:$0xff]
        %v882 = vld [vmem:[%s679 + $0x38] sm:$0xff]
        %v883 = vld [vmem:[%s679 + $0x40] sm:$0xff]
        %v884 = vld [vmem:[%s679 + $0x48] sm:$0xff]
        %v885 = vld [vmem:[%s679 + $0x50] sm:$0xff]
        %v886 = vld [vmem:[%s679 + $0x58] sm:$0xff]
        %v887 = vld [vmem:[%s679 + $0x60] sm:$0xff]
        %v888 = vld [vmem:[%s679 + $0x68] sm:$0xff]
        %v889 = vld [vmem:[%s679 + $0x70] sm:$0xff]
        %v890 = vld [vmem:[%s679 + $0x78] sm:$0xff]
        %v891 = vld [vmem:[%s683] sm:$0x3]
        %v893 = vlaneseq
        %v894 = vshrl.u32 %v893, 7
        %v895 = vsub.s32 0, %v894
        %v896 = vrot.slane %v891, %v895
        %v897 = vlaneseq
        %v898 = vshrl.u32 %v897, 7
        %v899 = vsub.s32 1, %v898
        %v900 = vrot.slane %v891, %v899
        %v919 = vunpack.c.l.b16 %v875
        %v920 = vunpack.c.h.b16 %v875
        %v921 = vunpack.c.l.b16 %v876
        %v922 = vunpack.c.h.b16 %v876
        %v923 = vunpack.c.l.b16 %v877
        %v924 = vunpack.c.h.b16 %v877
        %v925 = vunpack.c.l.b16 %v878
        %v926 = vunpack.c.h.b16 %v878
        %v927 = vunpack.c.l.b16 %v879
        %v928 = vunpack.c.h.b16 %v879
        %v929 = vunpack.c.l.b16 %v880
        %v930 = vunpack.c.h.b16 %v880
        %v931 = vunpack.c.l.b16 %v881
        %v932 = vunpack.c.h.b16 %v881
        %v933 = vunpack.c.l.b16 %v882
        %v934 = vunpack.c.h.b16 %v882
        %v935 = vunpack.c.l.b16 %v883
        %v936 = vunpack.c.h.b16 %v883
        %v937 = vunpack.c.l.b16 %v884
        %v938 = vunpack.c.h.b16 %v884
        %v939 = vunpack.c.l.b16 %v885
        %v940 = vunpack.c.h.b16 %v885
        %v941 = vunpack.c.l.b16 %v886
        %v942 = vunpack.c.h.b16 %v886
        %v943 = vunpack.c.l.b16 %v887
        %v944 = vunpack.c.h.b16 %v887
        %v945 = vunpack.c.l.b16 %v888
        %v946 = vunpack.c.h.b16 %v888
        %v947 = vunpack.c.l.b16 %v889
        %v948 = vunpack.c.h.b16 %v889
        %v949 = vunpack.c.l.b16 %v890
        %v950 = vunpack.c.h.b16 %v890
        %v951 = vpack.c.b16 %v921, %v919
        %v952 = vpack.c.b16 %v922, %v920
        %v953 = vpack.c.b16 %v925, %v923
        %v954 = vpack.c.b16 %v926, %v924
        %v955 = vpack.c.b16 %v929, %v927
        %v956 = vpack.c.b16 %v930, %v928
        %v957 = vpack.c.b16 %v933, %v931
        %v958 = vpack.c.b16 %v934, %v932
        %v959 = vpack.c.b16 %v937, %v935
        %v960 = vpack.c.b16 %v938, %v936
        %v961 = vpack.c.b16 %v941, %v939
        %v962 = vpack.c.b16 %v942, %v940
        %v963 = vpack.c.b16 %v945, %v943
        %v964 = vpack.c.b16 %v946, %v944
        %v965 = vpack.c.b16 %v949, %v947
        %v966 = vpack.c.b16 %v950, %v948
        %983 = vmatprep.subr.bf16.mxu0 %v966
        %984 = vmatpush1.bf16.msra.mxu0 %v965
        %985 = vmatprep.subr.bf16.mxu0 %v964
        %986 = vmatpush1.bf16.msra.mxu0 %v963
        %987 = vmatprep.subr.bf16.mxu0 %v962
        %988 = vmatpush1.bf16.msra.mxu0 %v961
        %989 = vmatprep.subr.bf16.mxu0 %v960
        %990 = vmatpush1.bf16.msra.mxu0 %v959
        %991 = vmatprep.subr.bf16.mxu0 %v958
        %992 = vmatpush1.bf16.msra.mxu0 %v957
        %993 = vmatprep.subr.bf16.mxu0 %v956
        %994 = vmatpush1.bf16.msra.mxu0 %v955
        %995 = vmatprep.subr.bf16.mxu0 %v954
        %996 = vmatpush1.bf16.msra.mxu0 %v953
        %997 = vmatprep.subr.bf16.mxu0 %v952
        %998 = vmatpush1.bf16.msra.mxu0 %v951
        %999 = vmatprep.subr.bf16.mxu0 0
        %1000 = vmatpush2.bf16.msra.mxu0 0
        %1001 = vmatprep.subr.bf16.mxu0 0
        %1002 = vmatpush2.bf16.msra.mxu0 0
        %1003 = vmatprep.subr.bf16.mxu0 0
        %1004 = vmatpush2.bf16.msra.mxu0 0
        %1005 = vmatprep.subr.bf16.mxu0 0
        %1006 = vmatpush2.bf16.msra.mxu0 0
        %1007 = vmatprep.subr.bf16.mxu0 0
        %1008 = vmatpush2.bf16.msra.mxu0 0
        %1009 = vmatprep.subr.bf16.mxu0 0
        %1010 = vmatpush2.bf16.msra.mxu0 0
        %1011 = vmatprep.subr.bf16.mxu0 0
        %1012 = vmatpush2.bf16.msra.mxu0 0
        %1013 = vmatprep.subr.bf16.mxu0 0
        %1014 = vmatpush2.bf16.msra.mxu0 0
        %1015 = vmatprep.mubr.bf16.mxu0 0
        %1016 = vmatmul.mubr.bf16.gmra.mxu0 %v873
        %v1017 = vpop.f32.mrf.mxu0
        %v1018 = vadd.f32 %v896, %v1017
        %v1019 = vpop.f32.mrf.mxu0
        %v1020 = vadd.f32 %v900, %v1019
        %v1021 = vpop.f32.mrf.mxu0
        %v1022 = vadd.f32 %v896, %v1021
        %v1023 = vpop.f32.mrf.mxu0
        %v1024 = vadd.f32 %v900, %v1023
        %1025 = vmatprep.mubr.bf16.mxu0 0
        %1026 = vmatmul.mubr.bf16.gmra.mxu0 %v874
        %v1027 = vpop.f32.mrf.mxu0
        %v1028 = vadd.f32 %v896, %v1027
        %v1029 = vpop.f32.mrf.mxu0
        %v1030 = vadd.f32 %v900, %v1029
        %v1031 = vpop.f32.mrf.mxu0
        %v1032 = vadd.f32 %v896, %v1031
        %v1033 = vpop.f32.mrf.mxu0
        %v1034 = vadd.f32 %v900, %v1033
        %1035 = vdwg.mxu0
        %v1036 = vmul.f32 %v1018, 0.5
        %v1037 = vmul.f32 %v1020, 0.5
        %v1038 = vmul.f32 %v1022, 0.5
        %v1039 = vmul.f32 %v1024, 0.5
        %v1040 = vmul.f32 %v1028, 0.5
        %v1041 = vmul.f32 %v1030, 0.5
        %v1042 = vmul.f32 %v1032, 0.5
        %v1043 = vmul.f32 %v1034, 0.5
        %v1044 = vmul.f32 %v1018, 0.70710677
        %v1045 = vmul.f32 %v1020, 0.70710677
        %v1046 = vmul.f32 %v1022, 0.70710677
        %v1047 = vmul.f32 %v1024, 0.70710677
        %v1048 = vmul.f32 %v1028, 0.70710677
        %v1049 = vmul.f32 %v1030, 0.70710677
        %v1050 = vmul.f32 %v1032, 0.70710677
        %v1051 = vmul.f32 %v1034, 0.70710677
        %v1052 = verf.f32.pop %v1044
        %v1053 = verf.f32.pop %v1045
        %v1054 = verf.f32.pop %v1046
        %v1055 = verf.f32.pop %v1047
        %v1056 = verf.f32.pop %v1048
        %v1057 = verf.f32.pop %v1049
        %v1058 = verf.f32.pop %v1050
        %v1059 = verf.f32.pop %v1051
        %v1060 = vadd.f32 %v1052, 1.0
        %v1061 = vadd.f32 %v1053, 1.0
        %v1062 = vadd.f32 %v1054, 1.0
        %v1063 = vadd.f32 %v1055, 1.0
        %v1064 = vadd.f32 %v1056, 1.0
        %v1065 = vadd.f32 %v1057, 1.0
        %v1066 = vadd.f32 %v1058, 1.0
        %v1067 = vadd.f32 %v1059, 1.0
        %v1068 = vmul.f32 %v1036, %v1060
        %v1069 = vmul.f32 %v1037, %v1061
        %v1070 = vmul.f32 %v1038, %v1062
        %v1071 = vmul.f32 %v1039, %v1063
        %v1072 = vmul.f32 %v1040, %v1064
        %v1073 = vmul.f32 %v1041, %v1065
        %v1074 = vmul.f32 %v1042, %v1066
        %v1075 = vmul.f32 %v1043, %v1067
        %v1076 = vpack.c.bf16 %v1070, %v1068
        %v1077 = vpack.c.bf16 %v1071, %v1069
        %v1078 = vpack.c.bf16 %v1074, %v1072
        %v1079 = vpack.c.bf16 %v1075, %v1073
        %v1080 = vld [vmem:[%s688] sm:$0xf]
        %v1081 = vld [vmem:[%s688 + $0x4] sm:$0xf]
        %v1082 = vld [vmem:[%s688 + $0x8] sm:$0xf]
        %v1083 = vld [vmem:[%s688 + $0xc] sm:$0xf]
        %v1084 = vld [vmem:[%s688 + $0x10] sm:$0xf]
        %v1085 = vld [vmem:[%s688 + $0x14] sm:$0xf]
        %v1086 = vld [vmem:[%s688 + $0x18] sm:$0xf]
        %v1087 = vld [vmem:[%s688 + $0x1c] sm:$0xf]
        %v1088 = vld [vmem:[%s688 + $0x20] sm:$0xf]
        %v1089 = vld [vmem:[%s688 + $0x24] sm:$0xf]
        %v1090 = vld [vmem:[%s688 + $0x28] sm:$0xf]
        %v1091 = vld [vmem:[%s688 + $0x2c] sm:$0xf]
        %v1092 = vld [vmem:[%s688 + $0x30] sm:$0xf]
        %v1093 = vld [vmem:[%s688 + $0x34] sm:$0xf]
        %v1094 = vld [vmem:[%s688 + $0x38] sm:$0xf]
        %v1095 = vld [vmem:[%s688 + $0x3c] sm:$0xf]
        %v1096 = vld [vmem:[%s688 + $0x40] sm:$0xf]
        %v1097 = vld [vmem:[%s688 + $0x44] sm:$0xf]
        %v1098 = vld [vmem:[%s688 + $0x48] sm:$0xf]
        %v1099 = vld [vmem:[%s688 + $0x4c] sm:$0xf]
        %v1100 = vld [vmem:[%s688 + $0x50] sm:$0xf]
        %v1101 = vld [vmem:[%s688 + $0x54] sm:$0xf]
        %v1102 = vld [vmem:[%s688 + $0x58] sm:$0xf]
        %v1103 = vld [vmem:[%s688 + $0x5c] sm:$0xf]
        %v1104 = vld [vmem:[%s688 + $0x60] sm:$0xf]
        %v1105 = vld [vmem:[%s688 + $0x64] sm:$0xf]
        %v1106 = vld [vmem:[%s688 + $0x68] sm:$0xf]
        %v1107 = vld [vmem:[%s688 + $0x6c] sm:$0xf]
        %v1108 = vld [vmem:[%s688 + $0x70] sm:$0xf]
        %v1109 = vld [vmem:[%s688 + $0x74] sm:$0xf]
        %v1110 = vld [vmem:[%s688 + $0x78] sm:$0xf]
        %v1111 = vld [vmem:[%s688 + $0x7c] sm:$0xf]
        %v1112 = vld [vmem:[%s691] sm:$0x1]
        %v1114 = vlaneseq
        %v1115 = vshrl.u32 %v1114, 7
        %v1116 = vsub.s32 0, %v1115
        %v1117 = vrot.slane %v1112, %v1116
        %v1151 = vunpack.c.l.b16 %v1080
        %v1152 = vunpack.c.l.b16 %v1081
        %v1153 = vunpack.c.l.b16 %v1082
        %v1154 = vunpack.c.l.b16 %v1083
        %v1155 = vunpack.c.l.b16 %v1084
        %v1156 = vunpack.c.l.b16 %v1085
        %v1157 = vunpack.c.l.b16 %v1086
        %v1158 = vunpack.c.l.b16 %v1087
        %v1159 = vunpack.c.l.b16 %v1088
        %v1160 = vunpack.c.l.b16 %v1089
        %v1161 = vunpack.c.l.b16 %v1090
        %v1162 = vunpack.c.l.b16 %v1091
        %v1163 = vunpack.c.l.b16 %v1092
        %v1164 = vunpack.c.l.b16 %v1093
        %v1165 = vunpack.c.l.b16 %v1094
        %v1166 = vunpack.c.l.b16 %v1095
        %v1167 = vunpack.c.l.b16 %v1096
        %v1168 = vunpack.c.l.b16 %v1097
        %v1169 = vunpack.c.l.b16 %v1098
        %v1170 = vunpack.c.l.b16 %v1099
        %v1171 = vunpack.c.l.b16 %v1100
        %v1172 = vunpack.c.l.b16 %v1101
        %v1173 = vunpack.c.l.b16 %v1102
        %v1174 = vunpack.c.l.b16 %v1103
        %v1175 = vunpack.c.l.b16 %v1104
        %v1176 = vunpack.c.l.b16 %v1105
        %v1177 = vunpack.c.l.b16 %v1106
        %v1178 = vunpack.c.l.b16 %v1107
        %v1179 = vunpack.c.l.b16 %v1108
        %v1180 = vunpack.c.l.b16 %v1109
        %v1181 = vunpack.c.l.b16 %v1110
        %v1182 = vunpack.c.l.b16 %v1111
        %v1183 = vpack.c.b16 %v1152, %v1151
        %v1184 = vpack.c.b16 %v1154, %v1153
        %v1185 = vpack.c.b16 %v1156, %v1155
        %v1186 = vpack.c.b16 %v1158, %v1157
        %v1187 = vpack.c.b16 %v1160, %v1159
        %v1188 = vpack.c.b16 %v1162, %v1161
        %v1189 = vpack.c.b16 %v1164, %v1163
        %v1190 = vpack.c.b16 %v1166, %v1165
        %v1191 = vpack.c.b16 %v1168, %v1167
        %v1192 = vpack.c.b16 %v1170, %v1169
        %v1193 = vpack.c.b16 %v1172, %v1171
        %v1194 = vpack.c.b16 %v1174, %v1173
        %v1195 = vpack.c.b16 %v1176, %v1175
        %v1196 = vpack.c.b16 %v1178, %v1177
        %v1197 = vpack.c.b16 %v1180, %v1179
        %v1198 = vpack.c.b16 %v1182, %v1181
        %1215 = vmatprep.subr.bf16.mxu0 0
        %1216 = vmatpush1.bf16.msra.mxu0 %v1190
        %1217 = vmatprep.subr.bf16.mxu0 0
        %1218 = vmatpush1.bf16.msra.mxu0 %v1189
        %1219 = vmatprep.subr.bf16.mxu0 0
        %1220 = vmatpush1.bf16.msra.mxu0 %v1188
        %1221 = vmatprep.subr.bf16.mxu0 0
        %1222 = vmatpush1.bf16.msra.mxu0 %v1187
        %1223 = vmatprep.subr.bf16.mxu0 0
        %1224 = vmatpush1.bf16.msra.mxu0 %v1186
        %1225 = vmatprep.subr.bf16.mxu0 0
        %1226 = vmatpush1.bf16.msra.mxu0 %v1185
        %1227 = vmatprep.subr.bf16.mxu0 0
        %1228 = vmatpush1.bf16.msra.mxu0 %v1184
        %1229 = vmatprep.subr.bf16.mxu0 0
        %1230 = vmatpush1.bf16.msra.mxu0 %v1183
        %1231 = vmatprep.subr.bf16.mxu0 0
        %1232 = vmatpush2.bf16.msra.mxu0 %v1198
        %1233 = vmatprep.subr.bf16.mxu0 0
        %1234 = vmatpush2.bf16.msra.mxu0 %v1197
        %1235 = vmatprep.subr.bf16.mxu0 0
        %1236 = vmatpush2.bf16.msra.mxu0 %v1196
        %1237 = vmatprep.subr.bf16.mxu0 0
        %1238 = vmatpush2.bf16.msra.mxu0 %v1195
        %1239 = vmatprep.subr.bf16.mxu0 0
        %1240 = vmatpush2.bf16.msra.mxu0 %v1194
        %1241 = vmatprep.subr.bf16.mxu0 0
        %1242 = vmatpush2.bf16.msra.mxu0 %v1193
        %1243 = vmatprep.subr.bf16.mxu0 0
        %1244 = vmatpush2.bf16.msra.mxu0 %v1192
        %1245 = vmatprep.subr.bf16.mxu0 0
        %1246 = vmatpush2.bf16.msra.mxu0 %v1191
        %1247 = vmatprep.mubr.bf16.mxu0 %v1077
        %1248 = vmatmul.mubr.bf16.gmra.mxu0 %v1076
        %v1249 = vpop.f32.mrf.mxu0
        %v1250 = vadd.f32 %v1117, %v1249
        %v1251 = vpop.f32.mrf.mxu0
        %v1252 = vpop.f32.mrf.mxu0
        %v1253 = vadd.f32 %v1117, %v1252
        %v1254 = vpop.f32.mrf.mxu0
        %1255 = vmatprep.mubr.bf16.mxu0 %v1079
        %1256 = vmatmul.mubr.bf16.gmra.mxu0 %v1078
        %v1257 = vpop.f32.mrf.mxu0
        %v1258 = vadd.f32 %v1117, %v1257
        %v1259 = vpop.f32.mrf.mxu0
        %v1260 = vpop.f32.mrf.mxu0
        %v1261 = vadd.f32 %v1117, %v1260
        %v1262 = vpop.f32.mrf.mxu0
        %1263 = vdwg.mxu0
        %v1264 = vld [vmem:[%s694] sm:$0x1]
        %v1266 = vlaneseq
        %v1267 = vshrl.u32 %v1266, 7
        %v1268 = vsub.s32 0, %v1267
        %v1269 = vrot.slane %v1264, %v1268
        %v1271 = vmul.f32 %v1269, %v1250
        %v1272 = vmul.f32 %v1269, %v1253
        %v1273 = vmul.f32 %v1269, %v1258
        %v1274 = vmul.f32 %v1269, %v1261
        %v1275 = vadd.f32 %v869, %v1271
        %v1276 = vadd.f32 %v870, %v1272
        %v1277 = vadd.f32 %v871, %v1273
        %v1278 = vadd.f32 %v872, %v1274
        %p1279 = scmp.lt.s32.totalorder %s32, 1
        // Predicated region
        $region85: #{conv_resmlp2_forward.5} parent=79 // pred_check
          %p1280 = pneg %p1279
        $region86: #{conv_resmlp2_forward.5} parent=79 // pred_check_branch
          %1282 = sbr.rel (%p1280) target = $region88
        $region87: #{conv_resmlp2_forward.5} parent=79 // pred_region
          %1283 = vst [vmem:[#allocation2] sm:$0xff] %v1275
          %1284 = vst [vmem:[#allocation2 + $0x8] sm:$0xff] %v1276
          %1285 = vst [vmem:[#allocation2 + $0x10] sm:$0xff] %v1277
          %1286 = vst [vmem:[#allocation2 + $0x18] sm:$0xff] %v1278
        $region88: #{conv_resmlp2_forward.5} parent=79 // pred_fallthru
          _
        %p1287 = scmp.eq.s32.totalorder %s32, 1
        // Predicated region
        $region89: #{conv_resmlp2_forward.5} parent=79 // pred_check
          %p1288 = pneg %p1287
        $region90: #{conv_resmlp2_forward.5} parent=79 // pred_check_branch
          %1290 = sbr.rel (%p1288) target = $region92
        $region91: #{conv_resmlp2_forward.5} parent=79 // pred_region
          %v1291 = vld [vmem:[%s13] sm:$0x1]
          %v1293 = vlaneseq
          %v1294 = vshrl.u32 %v1293, 7
          %v1295 = vsub.s32 0, %v1294
          %v1296 = vrot.slane %v1291, %v1295
          %v1298 = vmul.f32 %v1275, %v1296
          %v1299 = vmul.f32 %v1276, %v1296
          %v1300 = vmul.f32 %v1277, %v1296
          %v1301 = vmul.f32 %v1278, %v1296
          %v1302 = vld [vmem:[%s14] sm:$0x1]
          %v1304 = vlaneseq
          %v1305 = vshrl.u32 %v1304, 7
          %v1306 = vsub.s32 0, %v1305
          %v1307 = vrot.slane %v1302, %v1306
          %v1309 = vadd.f32 %v1298, %v1307
          %v1310 = vadd.f32 %v1299, %v1307
          %v1311 = vadd.f32 %v1300, %v1307
          %v1312 = vadd.f32 %v1301, %v1307
          %1313 = vst [vmem:[#allocation2] sm:$0xff] %v1309
          %1314 = vst [vmem:[#allocation2 + $0x8] sm:$0xff] %v1310
          %1315 = vst [vmem:[#allocation2 + $0x10] sm:$0xff] %v1311
          %1316 = vst [vmem:[#allocation2 + $0x18] sm:$0xff] %v1312
        $region92: #{conv_resmlp2_forward.5} parent=79 // pred_fallthru
          _
        // Predicated region
        $region93: #{conv_resmlp2_forward.5} parent=79 // pred_check
          %p1317 = pneg %p437
        $region94: #{conv_resmlp2_forward.5} parent=79 // pred_check_branch
          %1319 = sbr.rel (%p1317) target = $region96
        $region95: #{conv_resmlp2_forward.5} parent=79 // pred_region
          %s1320 = smul.u32 4, %s31
          %s1322 = ssub.s32 512, 512
          %1323 = vsyncadd [#allocation3], %s1322
          %s1324 = smul.addr %s1320, 128
          %s1325 = scalar_lea.hbm %s15, %s1324
          %s1326 = sshll.u32 [#allocation2], 4
          %s1327 = int_to_ptr.vmem [resolvable:$true] %s1326
          %1332 = dma.vmem_to_hbm [thread:$0]  %s1327, 512, %s1325, [#allocation3], 128, 128, 8
        $region96: #{conv_resmlp2_forward.5} parent=79 // pred_fallthru
          _
        // Predicated region
        $region97: #{conv_resmlp2_forward.5} parent=79 // pred_check
          %p1333 = pneg %p437
        $region98: #{conv_resmlp2_forward.5} parent=79 // pred_check_branch
          %1335 = sbr.rel (%p1333) target = $region100
        $region99: #{conv_resmlp2_forward.5} parent=79 // pred_region
          %1336 = dma.done [#allocation3], 512
        $region100: #{conv_resmlp2_forward.5} parent=79 // pred_fallthru
          _
      $region80: #{conv_resmlp2_forward.5} parent=5 // pred_fallthru
        _
      %p1337 = scmp.le.s32.totalorder 2, %s22
      // Predicated region
      $region101: #{conv_resmlp2_forward.5} parent=5 // pred_check
        %p1338 = pneg %p1337
      $region102: #{conv_resmlp2_forward.5} parent=5 // pred_check_branch
        %1340 = sbr.rel (%p1338) target = $region104
      $region103: #{conv_resmlp2_forward.5} parent=5 // pred_region
        %s1341 = ssub.s32 %s22, 2
      $region104: #{conv_resmlp2_forward.5} parent=5 // pred_fallthru
        _
    $region6: #{conv_resmlp2_forward.5} parent=1 // loop_footer
      %s26 = sadd.s32 1, %s22
    $region7: #{conv_resmlp2_forward.5} parent=1 // loop_footer_branch
      %21 = sbr.rel target = $region3
    $region8: #{conv_resmlp2_forward.5} parent=1 // loop_exit
      _
    %1342 = vsyncpa [#allocation3], 1
    %s1343 = scalar_lea.sflag [#allocation3], 1
    %1344 = vsyncpa %s1343, 1

// kernel: conv_resmlp2_forward.4
$region0: #{conv_resmlp2_forward.4}
  #allocation0 [shape = 'u32[]', space=smem, size = 0x4, offset = 0x4, fixed_abs, tag = 'smem constant byte address 0x4 - core index']
  #allocation1 [shape = 'u32[144,128]{1,0:T(1,128)}', space=vmem, size = 0x12000, scoped, tag = 'internal scratch']
  %s0 = inlined_call_operand.vmem [shape: bf16[32,1024], index: 0, kind: input, shape index: {}]
  %s1 = inlined_call_operand.vmem [shape: bf16[1024,128], index: 1, kind: input, shape index: {}]
  %s2 = inlined_call_operand.vmem [shape: f32[1,128], index: 2, kind: input, shape index: {}]
  %s3 = inlined_call_operand.vmem [shape: f32[32,128], index: 3, kind: output, shape index: {}]
  %s4 = sld [smem:[#allocation0]]
  $region22: #{conv_resmlp2_forward.4} parent=0
    _
  %s6 = ssub.s32 1, %s4
  %s7 = scalar_select 0, %s6, %s4
  // Predicated region
  $region2: #{conv_resmlp2_forward.4} parent=0 // pred_check
    _
  $region3: #{conv_resmlp2_forward.4} parent=0 // pred_check_branch
    %9 = sbr.rel (0) target = $region5
  $region4: #{conv_resmlp2_forward.4} parent=0 // pred_region
    _
  $region5: #{conv_resmlp2_forward.4} parent=0 // pred_fallthru
    _
  // Predicated region
  $region6: #{conv_resmlp2_forward.4} parent=0 // pred_check
    _
  $region7: #{conv_resmlp2_forward.4} parent=0 // pred_check_branch
    %11 = sbr.rel (0) target = $region9
  $region8: #{conv_resmlp2_forward.4} parent=0 // pred_region
    _
  $region9: #{conv_resmlp2_forward.4} parent=0 // pred_fallthru
    _
  // Predicated region
  $region10: #{conv_resmlp2_forward.4} parent=0 // pred_check
    _
  $region11: #{conv_resmlp2_forward.4} parent=0 // pred_check_branch
    %13 = sbr.rel (0) target = $region13
  $region12: #{conv_resmlp2_forward.4} parent=0 // pred_region
    _
  $region13: #{conv_resmlp2_forward.4} parent=0 // pred_fallthru
    _
  %v15 = vld [vmem:[%s0] sm:$0xff]
  %v16 = vld [vmem:[%s0 + $0x8] sm:$0xff]
  %v17 = vld [vmem:[%s0 + $0x10] sm:$0xff]
  %v18 = vld [vmem:[%s0 + $0x18] sm:$0xff]
  %v19 = vld [vmem:[%s0 + $0x20] sm:$0xff]
  %v20 = vld [vmem:[%s0 + $0x28] sm:$0xff]
  %v21 = vld [vmem:[%s0 + $0x30] sm:$0xff]
  %v22 = vld [vmem:[%s0 + $0x38] sm:$0xff]
  %v23 = vld [vmem:[%s0 + $0x40] sm:$0xff]
  %v24 = vld [vmem:[%s0 + $0x48] sm:$0xff]
  %v25 = vld [vmem:[%s0 + $0x50] sm:$0xff]
  %v26 = vld [vmem:[%s0 + $0x58] sm:$0xff]
  %v27 = vld [vmem:[%s0 + $0x60] sm:$0xff]
  %v28 = vld [vmem:[%s0 + $0x68] sm:$0xff]
  %v29 = vld [vmem:[%s0 + $0x70] sm:$0xff]
  %v30 = vld [vmem:[%s0 + $0x78] sm:$0xff]
  %v31 = vld [vmem:[%s1] sm:$0xf]
  %v32 = vld [vmem:[%s1 + $0x4] sm:$0xf]
  %v33 = vld [vmem:[%s1 + $0x8] sm:$0xf]
  %v34 = vld [vmem:[%s1 + $0xc] sm:$0xf]
  %v35 = vld [vmem:[%s1 + $0x10] sm:$0xf]
  %v36 = vld [vmem:[%s1 + $0x14] sm:$0xf]
  %v37 = vld [vmem:[%s1 + $0x18] sm:$0xf]
  %v38 = vld [vmem:[%s1 + $0x1c] sm:$0xf]
  %v39 = vld [vmem:[%s1 + $0x20] sm:$0xf]
  %v40 = vld [vmem:[%s1 + $0x24] sm:$0xf]
  %v41 = vld [vmem:[%s1 + $0x28] sm:$0xf]
  %v42 = vld [vmem:[%s1 + $0x2c] sm:$0xf]
  %v43 = vld [vmem:[%s1 + $0x30] sm:$0xf]
  %v44 = vld [vmem:[%s1 + $0x34] sm:$0xf]
  %v45 = vld [vmem:[%s1 + $0x38] sm:$0xf]
  %v46 = vld [vmem:[%s1 + $0x3c] sm:$0xf]
  %v47 = vld [vmem:[%s1 + $0x40] sm:$0xf]
  %v48 = vld [vmem:[%s1 + $0x44] sm:$0xf]
  %v49 = vld [vmem:[%s1 + $0x48] sm:$0xf]
  %v50 = vld [vmem:[%s1 + $0x4c] sm:$0xf]
  %v51 = vld [vmem:[%s1 + $0x50] sm:$0xf]
  %v52 = vld [vmem:[%s1 + $0x54] sm:$0xf]
  %v53 = vld [vmem:[%s1 + $0x58] sm:$0xf]
  %v54 = vld [vmem:[%s1 + $0x5c] sm:$0xf]
  %v55 = vld [vmem:[%s1 + $0x60] sm:$0xf]
  %v56 = vld [vmem:[%s1 + $0x64] sm:$0xf]
  %v57 = vld [vmem:[%s1 + $0x68] sm:$0xf]
  %v58 = vld [vmem:[%s1 + $0x6c] sm:$0xf]
  %v59 = vld [vmem:[%s1 + $0x70] sm:$0xf]
  %v60 = vld [vmem:[%s1 + $0x74] sm:$0xf]
  %v61 = vld [vmem:[%s1 + $0x78] sm:$0xf]
  %v62 = vld [vmem:[%s1 + $0x7c] sm:$0xf]
  %v63 = vld [vmem:[%s1 + $0x80] sm:$0xf]
  %v64 = vld [vmem:[%s1 + $0x84] sm:$0xf]
  %v65 = vld [vmem:[%s1 + $0x88] sm:$0xf]
  %v66 = vld [vmem:[%s1 + $0x8c] sm:$0xf]
  %v67 = vld [vmem:[%s1 + $0x90] sm:$0xf]
  %v68 = vld [vmem:[%s1 + $0x94] sm:$0xf]
  %v69 = vld [vmem:[%s1 + $0x98] sm:$0xf]
  %v70 = vld [vmem:[%s1 + $0x9c] sm:$0xf]
  %v71 = vld [vmem:[%s1 + $0xa0] sm:$0xf]
  %v72 = vld [vmem:[%s1 + $0xa4] sm:$0xf]
  %v73 = vld [vmem:[%s1 + $0xa8] sm:$0xf]
  %v74 = vld [vmem:[%s1 + $0xac] sm:$0xf]
  %v75 = vld [vmem:[%s1 + $0xb0] sm:$0xf]
  %v76 = vld [vmem:[%s1 + $0xb4] sm:$0xf]
  %v77 = vld [vmem:[%s1 + $0xb8] sm:$0xf]
  %v78 = vld [vmem:[%s1 + $0xbc] sm:$0xf]
  %v79 = vld [vmem:[%s1 + $0xc0] sm:$0xf]
  %v80 = vld [vmem:[%s1 + $0xc4] sm:$0xf]
  %v81 = vld [vmem:[%s1 + $0xc8] sm:$0xf]
  %v82 = vld [vmem:[%s1 + $0xcc] sm:$0xf]
  %v83 = vld [vmem:[%s1 + $0xd0] sm:$0xf]
  %v84 = vld [vmem:[%s1 + $0xd4] sm:$0xf]
  %v85 = vld [vmem:[%s1 + $0xd8] sm:$0xf]
  %v86 = vld [vmem:[%s1 + $0xdc] sm:$0xf]
  %v87 = vld [vmem:[%s1 + $0xe0] sm:$0xf]
  %v88 = vld [vmem:[%s1 + $0xe4] sm:$0xf]
  %v89 = vld [vmem:[%s1 + $0xe8] sm:$0xf]
  %v90 = vld [vmem:[%s1 + $0xec] sm:$0xf]
  %v91 = vld [vmem:[%s1 + $0xf0] sm:$0xf]
  %v92 = vld [vmem:[%s1 + $0xf4] sm:$0xf]
  %v93 = vld [vmem:[%s1 + $0xf8] sm:$0xf]
  %v94 = vld [vmem:[%s1 + $0xfc] sm:$0xf]
  %v95 = vld [vmem:[%s1 + $0x100] sm:$0xf]
  %v96 = vld [vmem:[%s1 + $0x104] sm:$0xf]
  %v97 = vld [vmem:[%s1 + $0x108] sm:$0xf]
  %v98 = vld [vmem:[%s1 + $0x10c] sm:$0xf]
  %v99 = vld [vmem:[%s1 + $0x110] sm:$0xf]
  %v100 = vld [vmem:[%s1 + $0x114] sm:$0xf]
  %v101 = vld [vmem:[%s1 + $0x118] sm:$0xf]
  %v102 = vld [vmem:[%s1 + $0x11c] sm:$0xf]
  %v103 = vld [vmem:[%s1 + $0x120] sm:$0xf]
  %v104 = vld [vmem:[%s1 + $0x124] sm:$0xf]
  %v105 = vld [vmem:[%s1 + $0x128] sm:$0xf]
  %v106 = vld [vmem:[%s1 + $0x12c] sm:$0xf]
  %v107 = vld [vmem:[%s1 + $0x130] sm:$0xf]
  %v108 = vld [vmem:[%s1 + $0x134] sm:$0xf]
  %v109 = vld [vmem:[%s1 + $0x138] sm:$0xf]
  %v110 = vld [vmem:[%s1 + $0x13c] sm:$0xf]
  %v111 = vld [vmem:[%s1 + $0x140] sm:$0xf]
  %v112 = vld [vmem:[%s1 + $0x144] sm:$0xf]
  %v113 = vld [vmem:[%s1 + $0x148] sm:$0xf]
  %v114 = vld [vmem:[%s1 + $0x14c] sm:$0xf]
  %v115 = vld [vmem:[%s1 + $0x150] sm:$0xf]
  %v116 = vld [vmem:[%s1 + $0x154] sm:$0xf]
  %v117 = vld [vmem:[%s1 + $0x158] sm:$0xf]
  %v118 = vld [vmem:[%s1 + $0x15c] sm:$0xf]
  %v119 = vld [vmem:[%s1 + $0x160] sm:$0xf]
  %v120 = vld [vmem:[%s1 + $0x164] sm:$0xf]
  %v121 = vld [vmem:[%s1 + $0x168] sm:$0xf]
  %v122 = vld [vmem:[%s1 + $0x16c] sm:$0xf]
  %v123 = vld [vmem:[%s1 + $0x170] sm:$0xf]
  %v124 = vld [vmem:[%s1 + $0x174] sm:$0xf]
  %v125 = vld [vmem:[%s1 + $0x178] sm:$0xf]
  %v126 = vld [vmem:[%s1 + $0x17c] sm:$0xf]
  %v127 = vld [vmem:[%s1 + $0x180] sm:$0xf]
  %v128 = vld [vmem:[%s1 + $0x184] sm:$0xf]
  %v129 = vld [vmem:[%s1 + $0x188] sm:$0xf]
  %v130 = vld [vmem:[%s1 + $0x18c] sm:$0xf]
  %v131 = vld [vmem:[%s1 + $0x190] sm:$0xf]
  %v132 = vld [vmem:[%s1 + $0x194] sm:$0xf]
  %v133 = vld [vmem:[%s1 + $0x198] sm:$0xf]
  %v134 = vld [vmem:[%s1 + $0x19c] sm:$0xf]
  %v135 = vld [vmem:[%s1 + $0x1a0] sm:$0xf]
  %v136 = vld [vmem:[%s1 + $0x1a4] sm:$0xf]
  %v137 = vld [vmem:[%s1 + $0x1a8] sm:$0xf]
  %v138 = vld [vmem:[%s1 + $0x1ac] sm:$0xf]
  %v139 = vld [vmem:[%s1 + $0x1b0] sm:$0xf]
  %v140 = vld [vmem:[%s1 + $0x1b4] sm:$0xf]
  %v141 = vld [vmem:[%s1 + $0x1b8] sm:$0xf]
  %v142 = vld [vmem:[%s1 + $0x1bc] sm:$0xf]
  %v143 = vld [vmem:[%s1 + $0x1c0] sm:$0xf]
  %v144 = vld [vmem:[%s1 + $0x1c4] sm:$0xf]
  %v145 = vld [vmem:[%s1 + $0x1c8] sm:$0xf]
  %v146 = vld [vmem:[%s1 + $0x1cc] sm:$0xf]
  %v147 = vld [vmem:[%s1 + $0x1d0] sm:$0xf]
  %v148 = vld [vmem:[%s1 + $0x1d4] sm:$0xf]
  %v149 = vld [vmem:[%s1 + $0x1d8] sm:$0xf]
  %v150 = vld [vmem:[%s1 + $0x1dc] sm:$0xf]
  %v151 = vld [vmem:[%s1 + $0x1e0] sm:$0xf]
  %v152 = vld [vmem:[%s1 + $0x1e4] sm:$0xf]
  %v153 = vld [vmem:[%s1 + $0x1e8] sm:$0xf]
  %v154 = vld [vmem:[%s1 + $0x1ec] sm:$0xf]
  %v155 = vld [vmem:[%s1 + $0x1f0] sm:$0xf]
  %v156 = vld [vmem:[%s1 + $0x1f4] sm:$0xf]
  %v157 = vld [vmem:[%s1 + $0x1f8] sm:$0xf]
  %v158 = vld [vmem:[%s1 + $0x1fc] sm:$0xf]
  %v159 = vld [vmem:[%s2] sm:$0x1]
  %v161 = vlaneseq
  %v162 = vshrl.u32 %v161, 7
  %v163 = vsub.s32 0, %v162
  %v164 = vrot.slane %v159, %v163
  %v182 = vunpack.c.l.b16 %v15
  %v183 = vunpack.c.h.b16 %v15
  %v184 = vunpack.c.l.b16 %v16
  %v185 = vunpack.c.h.b16 %v16
  %v186 = vunpack.c.l.b16 %v17
  %v187 = vunpack.c.h.b16 %v17
  %v188 = vunpack.c.l.b16 %v18
  %v189 = vunpack.c.h.b16 %v18
  %v190 = vunpack.c.l.b16 %v19
  %v191 = vunpack.c.h.b16 %v19
  %v192 = vunpack.c.l.b16 %v20
  %v193 = vunpack.c.h.b16 %v20
  %v194 = vunpack.c.l.b16 %v21
  %v195 = vunpack.c.h.b16 %v21
  %v196 = vunpack.c.l.b16 %v22
  %v197 = vunpack.c.h.b16 %v22
  %v198 = vunpack.c.l.b16 %v23
  %v199 = vunpack.c.h.b16 %v23
  %v200 = vunpack.c.l.b16 %v24
  %v201 = vunpack.c.h.b16 %v24
  %v202 = vunpack.c.l.b16 %v25
  %v203 = vunpack.c.h.b16 %v25
  %v204 = vunpack.c.l.b16 %v26
  %v205 = vunpack.c.h.b16 %v26
  %v206 = vunpack.c.l.b16 %v27
  %v207 = vunpack.c.h.b16 %v27
  %v208 = vunpack.c.l.b16 %v28
  %v209 = vunpack.c.h.b16 %v28
  %v210 = vunpack.c.l.b16 %v29
  %v211 = vunpack.c.h.b16 %v29
  %v212 = vunpack.c.l.b16 %v30
  %v213 = vunpack.c.h.b16 %v30
  %v214 = vpack.c.b16 %v190, %v182
  %v215 = vpack.c.b16 %v191, %v183
  %v216 = vpack.c.b16 %v192, %v184
  %v217 = vpack.c.b16 %v193, %v185
  %v218 = vpack.c.b16 %v194, %v186
  %v219 = vpack.c.b16 %v195, %v187
  %v220 = vpack.c.b16 %v196, %v188
  %v221 = vpack.c.b16 %v197, %v189
  %v222 = vpack.c.b16 %v206, %v198
  %v223 = vpack.c.b16 %v207, %v199
  %v224 = vpack.c.b16 %v208, %v200
  %v225 = vpack.c.b16 %v209, %v201
  %v226 = vpack.c.b16 %v210, %v202
  %v227 = vpack.c.b16 %v211, %v203
  %v228 = vpack.c.b16 %v212, %v204
  %v229 = vpack.c.b16 %v213, %v205
  %v374 = vunpack.c.l.b16 %v31
  %v375 = vunpack.c.l.b16 %v32
  %v376 = vunpack.c.l.b16 %v33
  %v377 = vunpack.c.l.b16 %v34
  %v378 = vunpack.c.l.b16 %v35
  %v379 = vunpack.c.l.b16 %v36
  %v380 = vunpack.c.l.b16 %v37
  %v381 = vunpack.c.l.b16 %v38
  %v382 = vunpack.c.l.b16 %v39
  %v383 = vunpack.c.l.b16 %v40
  %v384 = vunpack.c.l.b16 %v41
  %v385 = vunpack.c.l.b16 %v42
  %v386 = vunpack.c.l.b16 %v43
  %v387 = vunpack.c.l.b16 %v44
  %v388 = vunpack.c.l.b16 %v45
  %v389 = vunpack.c.l.b16 %v46
  %v390 = vunpack.c.l.b16 %v47
  %v391 = vunpack.c.l.b16 %v48
  %v392 = vunpack.c.l.b16 %v49
  %v393 = vunpack.c.l.b16 %v50
  %v394 = vunpack.c.l.b16 %v51
  %v395 = vunpack.c.l.b16 %v52
  %v396 = vunpack.c.l.b16 %v53
  %v397 = vunpack.c.l.b16 %v54
  %v398 = vunpack.c.l.b16 %v55
  %v399 = vunpack.c.l.b16 %v56
  %v400 = vunpack.c.l.b16 %v57
  %v401 = vunpack.c.l.b16 %v58
  %v402 = vunpack.c.l.b16 %v59
  %v403 = vunpack.c.l.b16 %v60
  %v404 = vunpack.c.l.b16 %v61
  %v405 = vunpack.c.l.b16 %v62
  %v406 = vunpack.c.l.b16 %v63
  %v407 = vunpack.c.l.b16 %v64
  %v408 = vunpack.c.l.b16 %v65
  %v409 = vunpack.c.l.b16 %v66
  %v410 = vunpack.c.l.b16 %v67
  %v411 = vunpack.c.l.b16 %v68
  %v412 = vunpack.c.l.b16 %v69
  %v413 = vunpack.c.l.b16 %v70
  %v414 = vunpack.c.l.b16 %v71
  %v415 = vunpack.c.l.b16 %v72
  %v416 = vunpack.c.l.b16 %v73
  %v417 = vunpack.c.l.b16 %v74
  %v418 = vunpack.c.l.b16 %v75
  %v419 = vunpack.c.l.b16 %v76
  %v420 = vunpack.c.l.b16 %v77
  %v421 = vunpack.c.l.b16 %v78
  %v422 = vunpack.c.l.b16 %v79
  %v423 = vunpack.c.l.b16 %v80
  %v424 = vunpack.c.l.b16 %v81
  %v425 = vunpack.c.l.b16 %v82
  %v426 = vunpack.c.l.b16 %v83
  %v427 = vunpack.c.l.b16 %v84
  %v428 = vunpack.c.l.b16 %v85
  %v429 = vunpack.c.l.b16 %v86
  %v430 = vunpack.c.l.b16 %v87
  %v431 = vunpack.c.l.b16 %v88
  %v432 = vunpack.c.l.b16 %v89
  %v433 = vunpack.c.l.b16 %v90
  %v434 = vunpack.c.l.b16 %v91
  %v435 = vunpack.c.l.b16 %v92
  %v436 = vunpack.c.l.b16 %v93
  %v437 = vunpack.c.l.b16 %v94
  %v438 = vunpack.c.l.b16 %v95
  %v439 = vunpack.c.l.b16 %v96
  %v440 = vunpack.c.l.b16 %v97
  %v441 = vunpack.c.l.b16 %v98
  %v442 = vunpack.c.l.b16 %v99
  %v443 = vunpack.c.l.b16 %v100
  %v444 = vunpack.c.l.b16 %v101
  %v445 = vunpack.c.l.b16 %v102
  %v446 = vunpack.c.l.b16 %v103
  %v447 = vunpack.c.l.b16 %v104
  %v448 = vunpack.c.l.b16 %v105
  %v449 = vunpack.c.l.b16 %v106
  %v450 = vunpack.c.l.b16 %v107
  %v451 = vunpack.c.l.b16 %v108
  %v452 = vunpack.c.l.b16 %v109
  %v453 = vunpack.c.l.b16 %v110
  %v454 = vunpack.c.l.b16 %v111
  %v455 = vunpack.c.l.b16 %v112
  %v456 = vunpack.c.l.b16 %v113
  %v457 = vunpack.c.l.b16 %v114
  %v458 = vunpack.c.l.b16 %v115
  %v459 = vunpack.c.l.b16 %v116
  %v460 = vunpack.c.l.b16 %v117
  %v461 = vunpack.c.l.b16 %v118
  %v462 = vunpack.c.l.b16 %v119
  %v463 = vunpack.c.l.b16 %v120
  %v464 = vunpack.c.l.b16 %v121
  %v465 = vunpack.c.l.b16 %v122
  %v466 = vunpack.c.l.b16 %v123
  %v467 = vunpack.c.l.b16 %v124
  %v468 = vunpack.c.l.b16 %v125
  %v469 = vunpack.c.l.b16 %v126
  %v470 = vunpack.c.l.b16 %v127
  %v471 = vunpack.c.l.b16 %v128
  %v472 = vunpack.c.l.b16 %v129
  %v473 = vunpack.c.l.b16 %v130
  %v474 = vunpack.c.l.b16 %v131
  %v475 = vunpack.c.l.b16 %v132
  %v476 = vunpack.c.l.b16 %v133
  %v477 = vunpack.c.l.b16 %v134
  %v478 = vunpack.c.l.b16 %v135
  %v479 = vunpack.c.l.b16 %v136
  %v480 = vunpack.c.l.b16 %v137
  %v481 = vunpack.c.l.b16 %v138
  %v482 = vunpack.c.l.b16 %v139
  %v483 = vunpack.c.l.b16 %v140
  %v484 = vunpack.c.l.b16 %v141
  %v485 = vunpack.c.l.b16 %v142
  %v486 = vunpack.c.l.b16 %v143
  %v487 = vunpack.c.l.b16 %v144
  %v488 = vunpack.c.l.b16 %v145
  %v489 = vunpack.c.l.b16 %v146
  %v490 = vunpack.c.l.b16 %v147
  %v491 = vunpack.c.l.b16 %v148
  %v492 = vunpack.c.l.b16 %v149
  %v493 = vunpack.c.l.b16 %v150
  %v494 = vunpack.c.l.b16 %v151
  %v495 = vunpack.c.l.b16 %v152
  %v496 = vunpack.c.l.b16 %v153
  %v497 = vunpack.c.l.b16 %v154
  %v498 = vunpack.c.l.b16 %v155
  %v499 = vunpack.c.l.b16 %v156
  %v500 = vunpack.c.l.b16 %v157
  %v501 = vunpack.c.l.b16 %v158
  %v502 = vpack.c.b16 %v375, %v374
  %v503 = vpack.c.b16 %v377, %v376
  %v504 = vpack.c.b16 %v379, %v378
  %v505 = vpack.c.b16 %v381, %v380
  %v506 = vpack.c.b16 %v383, %v382
  %v507 = vpack.c.b16 %v385, %v384
  %v508 = vpack.c.b16 %v387, %v386
  %v509 = vpack.c.b16 %v389, %v388
  %v510 = vpack.c.b16 %v391, %v390
  %v511 = vpack.c.b16 %v393, %v392
  %v512 = vpack.c.b16 %v395, %v394
  %v513 = vpack.c.b16 %v397, %v396
  %v514 = vpack.c.b16 %v399, %v398
  %v515 = vpack.c.b16 %v401, %v400
  %v516 = vpack.c.b16 %v403, %v402
  %v517 = vpack.c.b16 %v405, %v404
  %v518 = vpack.c.b16 %v407, %v406
  %v519 = vpack.c.b16 %v409, %v408
  %v520 = vpack.c.b16 %v411, %v410
  %v521 = vpack.c.b16 %v413, %v412
  %v522 = vpack.c.b16 %v415, %v414
  %v523 = vpack.c.b16 %v417, %v416
  %v524 = vpack.c.b16 %v419, %v418
  %v525 = vpack.c.b16 %v421, %v420
  %v526 = vpack.c.b16 %v423, %v422
  %v527 = vpack.c.b16 %v425, %v424
  %v528 = vpack.c.b16 %v427, %v426
  %v529 = vpack.c.b16 %v429, %v428
  %v530 = vpack.c.b16 %v431, %v430
  %v531 = vpack.c.b16 %v433, %v432
  %v532 = vpack.c.b16 %v435, %v434
  %v533 = vpack.c.b16 %v437, %v436
  %v534 = vpack.c.b16 %v439, %v438
  %v535 = vpack.c.b16 %v441, %v440
  %v536 = vpack.c.b16 %v443, %v442
  %v537 = vpack.c.b16 %v445, %v444
  %v538 = vpack.c.b16 %v447, %v446
  %v539 = vpack.c.b16 %v449, %v448
  %v540 = vpack.c.b16 %v451, %v450
  %v541 = vpack.c.b16 %v453, %v452
  %v542 = vpack.c.b16 %v455, %v454
  %v543 = vpack.c.b16 %v457, %v456
  %v544 = vpack.c.b16 %v459, %v458
  %v545 = vpack.c.b16 %v461, %v460
  %v546 = vpack.c.b16 %v463, %v462
  %v547 = vpack.c.b16 %v465, %v464
  %v548 = vpack.c.b16 %v467, %v466
  %v549 = vpack.c.b16 %v469, %v468
  %v550 = vpack.c.b16 %v471, %v470
  %v551 = vpack.c.b16 %v473, %v472
  %v552 = vpack.c.b16 %v475, %v474
  %v553 = vpack.c.b16 %v477, %v476
  %v554 = vpack.c.b16 %v479, %v478
  %v555 = vpack.c.b16 %v481, %v480
  %v556 = vpack.c.b16 %v483, %v482
  %v557 = vpack.c.b16 %v485, %v484
  %v558 = vpack.c.b16 %v487, %v486
  %v559 = vpack.c.b16 %v489, %v488
  %v560 = vpack.c.b16 %v491, %v490
  %v561 = vpack.c.b16 %v493, %v492
  %v562 = vpack.c.b16 %v495, %v494
  %v563 = vpack.c.b16 %v497, %v496
  %v564 = vpack.c.b16 %v499, %v498
  %v565 = vpack.c.b16 %v501, %v500
  %630 = vmatprep.subr.bf16.mxu0 0
  %631 = vmatpush1.bf16.msra.mxu0 %v509
  %632 = vmatprep.subr.bf16.mxu0 0
  %633 = vmatpush1.bf16.msra.mxu0 %v508
  %634 = vmatprep.subr.bf16.mxu0 0
  %635 = vmatpush1.bf16.msra.mxu0 %v507
  %636 = vmatprep.subr.bf16.mxu0 0
  %637 = vmatpush1.bf16.msra.mxu0 %v506
  %638 = vmatprep.subr.bf16.mxu0 0
  %639 = vmatpush1.bf16.msra.mxu0 %v505
  %640 = vmatprep.subr.bf16.mxu0 0
  %641 = vmatpush1.bf16.msra.mxu0 %v504
  %642 = vmatprep.subr.bf16.mxu0 0
  %643 = vmatpush1.bf16.msra.mxu0 %v503
  %644 = vmatprep.subr.bf16.mxu0 0
  %645 = vmatpush1.bf16.msra.mxu0 %v502
  %646 = vmatprep.subr.bf16.mxu0 0
  %647 = vmatpush2.bf16.msra.mxu0 %v517
  %648 = vmatprep.subr.bf16.mxu0 0
  %649 = vmatpush2.bf16.msra.mxu0 %v516
  %650 = vmatprep.subr.bf16.mxu0 0
  %651 = vmatpush2.bf16.msra.mxu0 %v515
  %652 = vmatprep.subr.bf16.mxu0 0
  %653 = vmatpush2.bf16.msra.mxu0 %v514
  %654 = vmatprep.subr.bf16.mxu0 0
  %655 = vmatpush2.bf16.msra.mxu0 %v513
  %656 = vmatprep.subr.bf16.mxu0 0
  %657 = vmatpush2.bf16.msra.mxu0 %v512
  %658 = vmatprep.subr.bf16.mxu0 0
  %659 = vmatpush2.bf16.msra.mxu0 %v511
  %660 = vmatprep.subr.bf16.mxu0 0
  %661 = vmatpush2.bf16.msra.mxu0 %v510
  %662 = vmatprep.mubr.bf16.mxu0 %v215
  %663 = vmatmul.mubr.bf16.gmra.mxu0 %v214
  %v664 = vpop.f32.mrf.mxu0
  %v665 = vadd.f32 %v164, %v664
  %v666 = vpop.f32.mrf.mxu0
  %v667 = vpop.f32.mrf.mxu0
  %v668 = vadd.f32 %v164, %v667
  %v669 = vpop.f32.mrf.mxu0
  %670 = vmatprep.mubr.bf16.mxu0 %v223
  %671 = vmatmul.mubr.bf16.gmra.mxu0 %v222
  %v672 = vpop.f32.mrf.mxu0
  %v673 = vadd.f32 %v164, %v672
  %v674 = vpop.f32.mrf.mxu0
  %v675 = vpop.f32.mrf.mxu0
  %v676 = vadd.f32 %v164, %v675
  %v677 = vpop.f32.mrf.mxu0
  %678 = vdwg.mxu0
  %679 = vmatprep.subr.bf16.mxu0 0
  %680 = vmatpush1.bf16.msra.mxu0 %v525
  %681 = vmatprep.subr.bf16.mxu0 0
  %682 = vmatpush1.bf16.msra.mxu0 %v524
  %683 = vmatprep.subr.bf16.mxu0 0
  %684 = vmatpush1.bf16.msra.mxu0 %v523
  %685 = vmatprep.subr.bf16.mxu0 0
  %686 = vmatpush1.bf16.msra.mxu0 %v522
  %687 = vmatprep.subr.bf16.mxu0 0
  %688 = vmatpush1.bf16.msra.mxu0 %v521
  %689 = vmatprep.subr.bf16.mxu0 0
  %690 = vmatpush1.bf16.msra.mxu0 %v520
  %691 = vmatprep.subr.bf16.mxu0 0
  %692 = vmatpush1.bf16.msra.mxu0 %v519
  %693 = vmatprep.subr.bf16.mxu0 0
  %694 = vmatpush1.bf16.msra.mxu0 %v518
  %695 = vmatprep.subr.bf16.mxu0 0
  %696 = vmatpush2.bf16.msra.mxu0 %v533
  %697 = vmatprep.subr.bf16.mxu0 0
  %698 = vmatpush2.bf16.msra.mxu0 %v532
  %699 = vmatprep.subr.bf16.mxu0 0
  %700 = vmatpush2.bf16.msra.mxu0 %v531
  %701 = vmatprep.subr.bf16.mxu0 0
  %702 = vmatpush2.bf16.msra.mxu0 %v530
  %703 = vmatprep.subr.bf16.mxu0 0
  %704 = vmatpush2.bf16.msra.mxu0 %v529
  %705 = vmatprep.subr.bf16.mxu0 0
  %706 = vmatpush2.bf16.msra.mxu0 %v528
  %707 = vmatprep.subr.bf16.mxu0 0
  %708 = vmatpush2.bf16.msra.mxu0 %v527
  %709 = vmatprep.subr.bf16.mxu0 0
  %710 = vmatpush2.bf16.msra.mxu0 %v526
  %711 = vmatprep.mubr.bf16.mxu0 %v217
  %712 = vmatmul.mubr.bf16.gmra.mxu0 %v216
  %v713 = vpop.f32.mrf.mxu0
  %v714 = vadd.f32 %v665, %v713
  %v715 = vpop.f32.mrf.mxu0
  %v716 = vpop.f32.mrf.mxu0
  %v717 = vadd.f32 %v668, %v716
  %v718 = vpop.f32.mrf.mxu0
  %719 = vmatprep.mubr.bf16.mxu0 %v225
  %720 = vmatmul.mubr.bf16.gmra.mxu0 %v224
  %v721 = vpop.f32.mrf.mxu0
  %v722 = vadd.f32 %v673, %v721
  %v723 = vpop.f32.mrf.mxu0
  %v724 = vpop.f32.mrf.mxu0
  %v725 = vadd.f32 %v676, %v724
  %v726 = vpop.f32.mrf.mxu0
  %727 = vdwg.mxu0
  %728 = vmatprep.subr.bf16.mxu0 0
  %729 = vmatpush1.bf16.msra.mxu0 %v541
  %730 = vmatprep.subr.bf16.mxu0 0
  %731 = vmatpush1.bf16.msra.mxu0 %v540
  %732 = vmatprep.subr.bf16.mxu0 0
  %733 = vmatpush1.bf16.msra.mxu0 %v539
  %734 = vmatprep.subr.bf16.mxu0 0
  %735 = vmatpush1.bf16.msra.mxu0 %v538
  %736 = vmatprep.subr.bf16.mxu0 0
  %737 = vmatpush1.bf16.msra.mxu0 %v537
  %738 = vmatprep.subr.bf16.mxu0 0
  %739 = vmatpush1.bf16.msra.mxu0 %v536
  %740 = vmatprep.subr.bf16.mxu0 0
  %741 = vmatpush1.bf16.msra.mxu0 %v535
  %742 = vmatprep.subr.bf16.mxu0 0
  %743 = vmatpush1.bf16.msra.mxu0 %v534
  %744 = vmatprep.subr.bf16.mxu0 0
  %745 = vmatpush2.bf16.msra.mxu0 %v549
  %746 = vmatprep.subr.bf16.mxu0 0
  %747 = vmatpush2.bf16.msra.mxu0 %v548
  %748 = vmatprep.subr.bf16.mxu0 0
  %749 = vmatpush2.bf16.msra.mxu0 %v547
  %750 = vmatprep.subr.bf16.mxu0 0
  %751 = vmatpush2.bf16.msra.mxu0 %v546
  %752 = vmatprep.subr.bf16.mxu0 0
  %753 = vmatpush2.bf16.msra.mxu0 %v545
  %754 = vmatprep.subr.bf16.mxu0 0
  %755 = vmatpush2.bf16.msra.mxu0 %v544
  %756 = vmatprep.subr.bf16.mxu0 0
  %757 = vmatpush2.bf16.msra.mxu0 %v543
  %758 = vmatprep.subr.bf16.mxu0 0
  %759 = vmatpush2.bf16.msra.mxu0 %v542
  %760 = vmatprep.mubr.bf16.mxu0 %v219
  %761 = vmatmul.mubr.bf16.gmra.mxu0 %v218
  %v762 = vpop.f32.mrf.mxu0
  %v763 = vadd.f32 %v714, %v762
  %v764 = vpop.f32.mrf.mxu0
  %v765 = vpop.f32.mrf.mxu0
  %v766 = vadd.f32 %v717, %v765
  %v767 = vpop.f32.mrf.mxu0
  %768 = vmatprep.mubr.bf16.mxu0 %v227
  %769 = vmatmul.mubr.bf16.gmra.mxu0 %v226
  %v770 = vpop.f32.mrf.mxu0
  %v771 = vadd.f32 %v722, %v770
  %v772 = vpop.f32.mrf.mxu0
  %v773 = vpop.f32.mrf.mxu0
  %v774 = vadd.f32 %v725, %v773
  %v775 = vpop.f32.mrf.mxu0
  %776 = vdwg.mxu0
  %777 = vmatprep.subr.bf16.mxu0 0
  %778 = vmatpush1.bf16.msra.mxu0 %v557
  %779 = vmatprep.subr.bf16.mxu0 0
  %780 = vmatpush1.bf16.msra.mxu0 %v556
  %781 = vmatprep.subr.bf16.mxu0 0
  %782 = vmatpush1.bf16.msra.mxu0 %v555
  %783 = vmatprep.subr.bf16.mxu0 0
  %784 = vmatpush1.bf16.msra.mxu0 %v554
  %785 = vmatprep.subr.bf16.mxu0 0
  %786 = vmatpush1.bf16.msra.mxu0 %v553
  %787 = vmatprep.subr.bf16.mxu0 0
  %788 = vmatpush1.bf16.msra.mxu0 %v552
  %789 = vmatprep.subr.bf16.mxu0 0
  %790 = vmatpush1.bf16.msra.mxu0 %v551
  %791 = vmatprep.subr.bf16.mxu0 0
  %792 = vmatpush1.bf16.msra.mxu0 %v550
  %793 = vmatprep.subr.bf16.mxu0 0
  %794 = vmatpush2.bf16.msra.mxu0 %v565
  %795 = vmatprep.subr.bf16.mxu0 0
  %796 = vmatpush2.bf16.msra.mxu0 %v564
  %797 = vmatprep.subr.bf16.mxu0 0
  %798 = vmatpush2.bf16.msra.mxu0 %v563
  %799 = vmatprep.subr.bf16.mxu0 0
  %800 = vmatpush2.bf16.msra.mxu0 %v562
  %801 = vmatprep.subr.bf16.mxu0 0
  %802 = vmatpush2.bf16.msra.mxu0 %v561
  %803 = vmatprep.subr.bf16.mxu0 0
  %804 = vmatpush2.bf16.msra.mxu0 %v560
  %805 = vmatprep.subr.bf16.mxu0 0
  %806 = vmatpush2.bf16.msra.mxu0 %v559
  %807 = vmatprep.subr.bf16.mxu0 0
  %808 = vmatpush2.bf16.msra.mxu0 %v558
  %809 = vmatprep.mubr.bf16.mxu0 %v221
  %810 = vmatmul.mubr.bf16.gmra.mxu0 %v220
  %v811 = vpop.f32.mrf.mxu0
  %v812 = vadd.f32 %v763, %v811
  %v813 = vpop.f32.mrf.mxu0
  %v814 = vpop.f32.mrf.mxu0
  %v815 = vadd.f32 %v766, %v814
  %v816 = vpop.f32.mrf.mxu0
  %817 = vmatprep.mubr.bf16.mxu0 %v229
  %818 = vmatmul.mubr.bf16.gmra.mxu0 %v228
  %v819 = vpop.f32.mrf.mxu0
  %v820 = vadd.f32 %v771, %v819
  %v821 = vpop.f32.mrf.mxu0
  %v822 = vpop.f32.mrf.mxu0
  %v823 = vadd.f32 %v774, %v822
  %v824 = vpop.f32.mrf.mxu0
  %825 = vdwg.mxu0
  %826 = vst [vmem:[%s3] sm:$0xff] %v812
  %827 = vst [vmem:[%s3 + $0x8] sm:$0xff] %v815
  %828 = vst [vmem:[%s3 + $0x10] sm:$0xff] %v820
  %829 = vst [vmem:[%s3 + $0x18] sm:$0xff] %v823
  // Predicated region
  $region14: #{conv_resmlp2_forward.4} parent=0 // pred_check
    _
  $region15: #{conv_resmlp2_forward.4} parent=0 // pred_check_branch
    %831 = sbr.rel (0) target = $region17
  $region16: #{conv_resmlp2_forward.4} parent=0 // pred_region
    _
  $region17: #{conv_resmlp2_forward.4} parent=0 // pred_fallthru
    _
  // Predicated region
  $region18: #{conv_resmlp2_forward.4} parent=0 // pred_check
    _
  $region19: #{conv_resmlp2_forward.4} parent=0 // pred_check_branch
    %833 = sbr.rel (0) target = $region21
  $region20: #{conv_resmlp2_forward.4} parent=0 // pred_region
    _
  $region21: #{conv_resmlp2_forward.4} parent=0 // pred_fallthru
    _

// kernel: conv_resmlp2_forward.3
$region0: #{conv_resmlp2_forward.3}
  #allocation0 [shape = 'u32[]', space=smem, size = 0x4, offset = 0x4, fixed_abs, tag = 'smem constant byte address 0x4 - core index']
  #allocation1 [shape = 'u32[144,128]{1,0:T(1,128)}', space=vmem, size = 0x12000, scoped, tag = 'internal scratch']
  #allocation2 [shape = 'f32[342,64]{1,0:T(8,128)}', space=vmem, size = 0x2b000, scoped, tag = 'scratch operand']
  %s0 = inlined_call_operand.vmem [shape: f32[2,342,3], index: 0, kind: input, shape index: {}]
  %s1 = inlined_call_operand.vmem [shape: f32[288,1], index: 1, kind: input, shape index: {}]
  %s2 = inlined_call_operand.vmem [shape: bf16[9,3,64], index: 2, kind: input, shape index: {}]
  %s3 = inlined_call_operand.vmem [shape: f32[1,64], index: 3, kind: input, shape index: {}]
  %s4 = inlined_call_operand.vmem [shape: f32[1,64], index: 4, kind: input, shape index: {}]
  %s5 = inlined_call_operand.vmem [shape: bf16[9,64,64], index: 5, kind: input, shape index: {}]
  %s6 = inlined_call_operand.vmem [shape: f32[1,64], index: 6, kind: input, shape index: {}]
  %s7 = inlined_call_operand.vmem [shape: f32[1,64], index: 7, kind: input, shape index: {}]
  %s8 = inlined_call_operand.vmem [shape: bf16[2,256,64], index: 8, kind: output, shape index: {}]
  %s9 = sld [smem:[#allocation0]]
  $region65: #{conv_resmlp2_forward.3} parent=0
    _
  %s11 = ssub.s32 1, %s9
  %s12 = scalar_select 0, %s11, %s9
  loop: start=0, step=1, limit=4
  $region2: #{conv_resmlp2_forward.3} parent=0 // loop_pre_header
    _
  $region3: #{conv_resmlp2_forward.3} parent=0 // loop_header
    %s14 = sphi 0, %s18
    %p15 = scmp.ge.s32.totalorder %s14, 4
    %s24 = sphi 0, %s26
    %s27 = sphi 0, %s24
    %s28 = sphi 0, %s27
    %s44 = sphi 0, %s28
    %s48 = sphi 0, %s48
    %s50 = sphi 0, %s48
    %s51 = sphi 0, %s50
    %s65 = sphi 0, %s51
    %s69 = sphi 0, %s69
    %s71 = sphi 0, %s69
    %s72 = sphi 0, %s71
    %s86 = sphi 0, %s72
    %s90 = sphi 0, %s90
    %s92 = sphi 0, %s90
    %s93 = sphi 0, %s92
    %s107 = sphi 0, %s93
    %s111 = sphi 0, %s111
    %s113 = sphi 0, %s111
    %s114 = sphi 0, %s113
    %s128 = sphi 0, %s114
    %s132 = sphi 0, %s132
    %s134 = sphi 0, %s132
    %s135 = sphi 0, %s134
    %s149 = sphi 0, %s135
    %s153 = sphi 0, %s153
    %s155 = sphi 0, %s153
    %s156 = sphi 0, %s155
    %s170 = sphi 0, %s156
    %s174 = sphi 0, %s174
    %s176 = sphi 0, %s174
    %s177 = sphi 0, %s176
    %s191 = sphi 0, %s177
    %s197 = sphi 0, %s199
    %s200 = sphi 0, %s197
    %s201 = sphi 0, %s200
    %s217 = sphi 0, %s201
  $region4: #{conv_resmlp2_forward.3} parent=0 // loop_header_branch
    %17 = sbr.rel (%p15) target = $region8
  $region5: #{conv_resmlp2_forward.3} parent=0 // loop_body
    %s19 = ssub.s32 %s14, 1
    %s20 = ssub.s32 %s14, 2
    %s21 = sadd.s32 %s14, 1
    %s22 = ssub.s32 %s14, %s21
    %p23 = scmp.eq.s32.totalorder %s22, 0
    %s25 = sadd.s32 %s24, 1
    %s26 = scalar_select %p23, %s24, %s25
    %p29 = pneg %p23
    %p30 = scmp.eq.s32.totalorder %s14, 1
    %p31 = por %p29, %p30
    %p32 = scmp.ne.s32.totalorder %s24, %s27
    %p33 = scmp.eq.s32.totalorder %s14, 0
    %p34 = por %p32, %p33
    %p35 = scmp.ne.s32.totalorder %s24, %s27
    %p36 = scmp.eq.s32.totalorder %s19, 1
    %p37 = por %p35, %p36
    %p38 = scmp.ne.s32.totalorder %s27, %s28
    %p39 = scmp.eq.s32.totalorder %s19, 0
    %p40 = por %p38, %p39
    %p41 = scmp.ne.s32.totalorder %s27, %s28
    %p42 = scmp.eq.s32.totalorder %s20, 1
    %p43 = por %p41, %p42
    %p45 = scmp.ne.s32.totalorder %s28, %s44
    %p46 = scmp.eq.s32.totalorder %s20, 0
    %p47 = por %p45, %p46
    %s49 = sadd.s32 %s48, 1
    %p52 = scmp.eq.s32.totalorder %s14, 1
    %p53 = scmp.ne.s32.totalorder %s48, %s50
    %p54 = scmp.eq.s32.totalorder %s14, 0
    %p55 = por %p53, %p54
    %p56 = scmp.ne.s32.totalorder %s48, %s50
    %p57 = scmp.eq.s32.totalorder %s19, 1
    %p58 = por %p56, %p57
    %p59 = scmp.ne.s32.totalorder %s50, %s51
    %p60 = scmp.eq.s32.totalorder %s19, 0
    %p61 = por %p59, %p60
    %p62 = scmp.ne.s32.totalorder %s50, %s51
    %p63 = scmp.eq.s32.totalorder %s20, 1
    %p64 = por %p62, %p63
    %p66 = scmp.ne.s32.totalorder %s51, %s65
    %p67 = scmp.eq.s32.totalorder %s20, 0
    %p68 = por %p66, %p67
    %s70 = sadd.s32 %s69, 1
    %p73 = scmp.eq.s32.totalorder %s14, 1
    %p74 = scmp.ne.s32.totalorder %s69, %s71
    %p75 = scmp.eq.s32.totalorder %s14, 0
    %p76 = por %p74, %p75
    %p77 = scmp.ne.s32.totalorder %s69, %s71
    %p78 = scmp.eq.s32.totalorder %s19, 1
    %p79 = por %p77, %p78
    %p80 = scmp.ne.s32.totalorder %s71, %s72
    %p81 = scmp.eq.s32.totalorder %s19, 0
    %p82 = por %p80, %p81
    %p83 = scmp.ne.s32.totalorder %s71, %s72
    %p84 = scmp.eq.s32.totalorder %s20, 1
    %p85 = por %p83, %p84
    %p87 = scmp.ne.s32.totalorder %s72, %s86
    %p88 = scmp.eq.s32.totalorder %s20, 0
    %p89 = por %p87, %p88
    %s91 = sadd.s32 %s90, 1
    %p94 = scmp.eq.s32.totalorder %s14, 1
    %p95 = scmp.ne.s32.totalorder %s90, %s92
    %p96 = scmp.eq.s32.totalorder %s14, 0
    %p97 = por %p95, %p96
    %p98 = scmp.ne.s32.totalorder %s90, %s92
    %p99 = scmp.eq.s32.totalorder %s19, 1
    %p100 = por %p98, %p99
    %p101 = scmp.ne.s32.totalorder %s92, %s93
    %p102 = scmp.eq.s32.totalorder %s19, 0
    %p103 = por %p101, %p102
    %p104 = scmp.ne.s32.totalorder %s92, %s93
    %p105 = scmp.eq.s32.totalorder %s20, 1
    %p106 = por %p104, %p105
    %p108 = scmp.ne.s32.totalorder %s93, %s107
    %p109 = scmp.eq.s32.totalorder %s20, 0
    %p110 = por %p108, %p109
    %s112 = sadd.s32 %s111, 1
    %p115 = scmp.eq.s32.totalorder %s14, 1
    %p116 = scmp.ne.s32.totalorder %s111, %s113
    %p117 = scmp.eq.s32.totalorder %s14, 0
    %p118 = por %p116, %p117
    %p119 = scmp.ne.s32.totalorder %s111, %s113
    %p120 = scmp.eq.s32.totalorder %s19, 1
    %p121 = por %p119, %p120
    %p122 = scmp.ne.s32.totalorder %s113, %s114
    %p123 = scmp.eq.s32.totalorder %s19, 0
    %p124 = por %p122, %p123
    %p125 = scmp.ne.s32.totalorder %s113, %s114
    %p126 = scmp.eq.s32.totalorder %s20, 1
    %p127 = por %p125, %p126
    %p129 = scmp.ne.s32.totalorder %s114, %s128
    %p130 = scmp.eq.s32.totalorder %s20, 0
    %p131 = por %p129, %p130
    %s133 = sadd.s32 %s132, 1
    %p136 = scmp.eq.s32.totalorder %s14, 1
    %p137 = scmp.ne.s32.totalorder %s132, %s134
    %p138 = scmp.eq.s32.totalorder %s14, 0
    %p139 = por %p137, %p138
    %p140 = scmp.ne.s32.totalorder %s132, %s134
    %p141 = scmp.eq.s32.totalorder %s19, 1
    %p142 = por %p140, %p141
    %p143 = scmp.ne.s32.totalorder %s134, %s135
    %p144 = scmp.eq.s32.totalorder %s19, 0
    %p145 = por %p143, %p144
    %p146 = scmp.ne.s32.totalorder %s134, %s135
    %p147 = scmp.eq.s32.totalorder %s20, 1
    %p148 = por %p146, %p147
    %p150 = scmp.ne.s32.totalorder %s135, %s149
    %p151 = scmp.eq.s32.totalorder %s20, 0
    %p152 = por %p150, %p151
    %s154 = sadd.s32 %s153, 1
    %p157 = scmp.eq.s32.totalorder %s14, 1
    %p158 = scmp.ne.s32.totalorder %s153, %s155
    %p159 = scmp.eq.s32.totalorder %s14, 0
    %p160 = por %p158, %p159
    %p161 = scmp.ne.s32.totalorder %s153, %s155
    %p162 = scmp.eq.s32.totalorder %s19, 1
    %p163 = por %p161, %p162
    %p164 = scmp.ne.s32.totalorder %s155, %s156
    %p165 = scmp.eq.s32.totalorder %s19, 0
    %p166 = por %p164, %p165
    %p167 = scmp.ne.s32.totalorder %s155, %s156
    %p168 = scmp.eq.s32.totalorder %s20, 1
    %p169 = por %p167, %p168
    %p171 = scmp.ne.s32.totalorder %s156, %s170
    %p172 = scmp.eq.s32.totalorder %s20, 0
    %p173 = por %p171, %p172
    %s175 = sadd.s32 %s174, 1
    %p178 = scmp.eq.s32.totalorder %s14, 1
    %p179 = scmp.ne.s32.totalorder %s174, %s176
    %p180 = scmp.eq.s32.totalorder %s14, 0
    %p181 = por %p179, %p180
    %p182 = scmp.ne.s32.totalorder %s174, %s176
    %p183 = scmp.eq.s32.totalorder %s19, 1
    %p184 = por %p182, %p183
    %p185 = scmp.ne.s32.totalorder %s176, %s177
    %p186 = scmp.eq.s32.totalorder %s19, 0
    %p187 = por %p185, %p186
    %p188 = scmp.ne.s32.totalorder %s176, %s177
    %p189 = scmp.eq.s32.totalorder %s20, 1
    %p190 = por %p188, %p189
    %p192 = scmp.ne.s32.totalorder %s177, %s191
    %p193 = scmp.eq.s32.totalorder %s20, 0
    %p194 = por %p192, %p193
    %s195 = ssub.s32 %s14, %s21
    %p196 = scmp.eq.s32.totalorder %s195, 0
    %s198 = sadd.s32 %s197, 1
    %s199 = scalar_select %p196, %s197, %s198
    %p202 = pneg %p196
    %p203 = scmp.eq.s32.totalorder %s14, 1
    %p204 = por %p202, %p203
    %p205 = scmp.ne.s32.totalorder %s197, %s200
    %p206 = scmp.eq.s32.totalorder %s14, 0
    %p207 = por %p205, %p206
    %p208 = scmp.ne.s32.totalorder %s197, %s200
    %p209 = scmp.eq.s32.totalorder %s19, 1
    %p210 = por %p208, %p209
    %p211 = scmp.ne.s32.totalorder %s200, %s201
    %p212 = scmp.eq.s32.totalorder %s19, 0
    %p213 = por %p211, %p212
    %p214 = scmp.ne.s32.totalorder %s200, %s201
    %p215 = scmp.eq.s32.totalorder %s20, 1
    %p216 = por %p214, %p215
    %p218 = scmp.ne.s32.totalorder %s201, %s217
    %p219 = scmp.eq.s32.totalorder %s20, 0
    %p220 = por %p218, %p219
    %p221 = scmp.le.s32.totalorder 1, %s14
    %p222 = scmp.lt.s32.totalorder %s14, 3
    %p223 = pnand %p221, %p222
    %p224 = pneg %p223
    // Predicated region
    $region9: #{conv_resmlp2_forward.3} parent=5 // pred_check
      _
    $region10: #{conv_resmlp2_forward.3} parent=5 // pred_check_branch
      %226 = sbr.rel (%p223) target = $region12
    $region11: #{conv_resmlp2_forward.3} parent=5 // pred_region
      %s227 = ssub.s32 %s14, 1
      // Predicated region
      $region13: #{conv_resmlp2_forward.3} parent=11 // pred_check
        %p228 = pneg %p61
      $region14: #{conv_resmlp2_forward.3} parent=11 // pred_check_branch
        %230 = sbr.rel (%p228) target = $region16
      $region15: #{conv_resmlp2_forward.3} parent=11 // pred_region
        _
      $region16: #{conv_resmlp2_forward.3} parent=11 // pred_fallthru
        _
      // Predicated region
      $region17: #{conv_resmlp2_forward.3} parent=11 // pred_check
        %p231 = pneg %p82
      $region18: #{conv_resmlp2_forward.3} parent=11 // pred_check_branch
        %233 = sbr.rel (%p231) target = $region20
      $region19: #{conv_resmlp2_forward.3} parent=11 // pred_region
        _
      $region20: #{conv_resmlp2_forward.3} parent=11 // pred_fallthru
        _
      // Predicated region
      $region21: #{conv_resmlp2_forward.3} parent=11 // pred_check
        %p234 = pneg %p103
      $region22: #{conv_resmlp2_forward.3} parent=11 // pred_check_branch
        %236 = sbr.rel (%p234) target = $region24
      $region23: #{conv_resmlp2_forward.3} parent=11 // pred_region
        _
      $region24: #{conv_resmlp2_forward.3} parent=11 // pred_fallthru
        _
      // Predicated region
      $region25: #{conv_resmlp2_forward.3} parent=11 // pred_check
        %p237 = pneg %p124
      $region26: #{conv_resmlp2_forward.3} parent=11 // pred_check_branch
        %239 = sbr.rel (%p237) target = $region28
      $region27: #{conv_resmlp2_forward.3} parent=11 // pred_region
        _
      $region28: #{conv_resmlp2_forward.3} parent=11 // pred_fallthru
        _
      // Predicated region
      $region29: #{conv_resmlp2_forward.3} parent=11 // pred_check
        %p240 = pneg %p145
      $region30: #{conv_resmlp2_forward.3} parent=11 // pred_check_branch
        %242 = sbr.rel (%p240) target = $region32
      $region31: #{conv_resmlp2_forward.3} parent=11 // pred_region
        _
      $region32: #{conv_resmlp2_forward.3} parent=11 // pred_fallthru
        _
      // Predicated region
      $region33: #{conv_resmlp2_forward.3} parent=11 // pred_check
        %p243 = pneg %p166
      $region34: #{conv_resmlp2_forward.3} parent=11 // pred_check_branch
        %245 = sbr.rel (%p243) target = $region36
      $region35: #{conv_resmlp2_forward.3} parent=11 // pred_region
        _
      $region36: #{conv_resmlp2_forward.3} parent=11 // pred_fallthru
        _
      // Predicated region
      $region37: #{conv_resmlp2_forward.3} parent=11 // pred_check
        %p246 = pneg %p187
      $region38: #{conv_resmlp2_forward.3} parent=11 // pred_check_branch
        %248 = sbr.rel (%p246) target = $region40
      $region39: #{conv_resmlp2_forward.3} parent=11 // pred_region
        _
      $region40: #{conv_resmlp2_forward.3} parent=11 // pred_fallthru
        _
    $region12: #{conv_resmlp2_forward.3} parent=5 // pred_fallthru
      _
    %p249 = scmp.lt.s32.totalorder %s14, 2
    // Predicated region
    $region41: #{conv_resmlp2_forward.3} parent=5 // pred_check
      %p250 = pneg %p249
    $region42: #{conv_resmlp2_forward.3} parent=5 // pred_check_branch
      %252 = sbr.rel (%p250) target = $region44
    $region43: #{conv_resmlp2_forward.3} parent=5 // pred_region
      // Predicated region
      $region45: #{conv_resmlp2_forward.3} parent=43 // pred_check
        %p253 = pneg %p34
      $region46: #{conv_resmlp2_forward.3} parent=43 // pred_check_branch
        %255 = sbr.rel (%p253) target = $region48
      $region47: #{conv_resmlp2_forward.3} parent=43 // pred_region
        %p256 = scmp.lt.s32.totalorder %s14, 1
        %s257 = scalar_select %p256, %s14, 1
        %s258 = smul.addr %s257, 43
        %s259 = smul.addr %s258, 8
        %s260 = scalar_lea.vmem %s0, %s259
      $region48: #{conv_resmlp2_forward.3} parent=43 // pred_fallthru
        _
    $region44: #{conv_resmlp2_forward.3} parent=5 // pred_fallthru
      _
    %p261 = scmp.le.s32.totalorder 1, %s14
    %p262 = scmp.lt.s32.totalorder %s14, 3
    %p263 = pnand %p261, %p262
    %p264 = pneg %p263
    // Predicated region
    $region49: #{conv_resmlp2_forward.3} parent=5 // pred_check
      _
    $region50: #{conv_resmlp2_forward.3} parent=5 // pred_check_branch
      %266 = sbr.rel (%p263) target = $region52
    $region51: #{conv_resmlp2_forward.3} parent=5 // pred_region
      %s267 = ssub.s32 %s14, 1
      %p268 = scmp.lt.s32.totalorder %s19, 1
      %s269 = scalar_select %p268, %s19, 1
      %s270 = smul.addr %s269, 43
      %s271 = smul.addr %s270, 8
      %s272 = scalar_lea.vmem %s0, %s271
      %p273 = pneg %p40
      %p274 = pneg %p37
      %p275 = pneg %p61
      %p276 = pneg %p58
      %p277 = pneg %p82
      %p278 = pneg %p79
      %p279 = pneg %p103
      %p280 = pneg %p100
      %p281 = pneg %p124
      %p282 = pneg %p121
      %p283 = pneg %p145
      %p284 = pneg %p142
      %p285 = pneg %p166
      %p286 = pneg %p163
      %p287 = pneg %p187
      %p288 = pneg %p184
      %p289 = pneg %p213
      %p290 = pneg %p210
      %p291 = scmp.lt.s32.totalorder %s19, 1
      %s292 = scalar_select %p291, %s19, 1
      %s293 = smul.addr %s292, 32
      %s294 = smul.addr %s293, 4
      %s295 = scalar_lea.vmem %s8, %s294
      %p296 = scmp.lt.s32.totalorder %s19, 1
      %s297 = scalar_select %p296, %s19, 1
      %s298 = smul.addr %s297, 43
      %s299 = smul.addr %s298, 8
      %s300 = scalar_lea.vmem %s0, %s299
      %p301 = scmp.lt.s32.totalorder %s19, 1
      %s302 = scalar_select %p301, %s19, 1
      %s303 = smul.addr %s302, 32
      %s304 = smul.addr %s303, 4
      %s305 = scalar_lea.vmem %s8, %s304
      %v307 = vld [vmem:[%s300] sm:$0xff]
      %v308 = vld [vmem:[%s300 + $0x8] sm:$0xff]
      %v309 = vld [vmem:[%s300 + $0x10] sm:$0xff]
      %v310 = vld [vmem:[%s300 + $0x18] sm:$0xff]
      %v311 = vld [vmem:[%s300 + $0x20] sm:$0xff]
      %v312 = vld [vmem:[%s300 + $0x28] sm:$0xff]
      %v313 = vld [vmem:[%s300 + $0x30] sm:$0xff]
      %v314 = vld [vmem:[%s300 + $0x38] sm:$0xff]
      %v315 = vld [vmem:[%s300 + $0x40] sm:$0xff]
      %v316 = vld [vmem:[%s300 + $0x48] sm:$0xff]
      %v317 = vld [vmem:[%s300 + $0x50] sm:$0xff]
      %v318 = vld [vmem:[%s300 + $0x58] sm:$0xff]
      %v319 = vld [vmem:[%s300 + $0x60] sm:$0xff]
      %v320 = vld [vmem:[%s300 + $0x68] sm:$0xff]
      %v321 = vld [vmem:[%s300 + $0x70] sm:$0xff]
      %v322 = vld [vmem:[%s300 + $0x78] sm:$0xff]
      %v323 = vld [vmem:[%s300 + $0x80] sm:$0xff]
      %v324 = vld [vmem:[%s300 + $0x88] sm:$0xff]
      %v325 = vld [vmem:[%s300 + $0x90] sm:$0xff]
      %v326 = vld [vmem:[%s300 + $0x98] sm:$0xff]
      %v327 = vld [vmem:[%s300 + $0xa0] sm:$0xff]
      %v328 = vld [vmem:[%s300 + $0xa8] sm:$0xff]
      %v329 = vld [vmem:[%s300 + $0xb0] sm:$0xff]
      %v330 = vld [vmem:[%s300 + $0xb8] sm:$0xff]
      %v331 = vld [vmem:[%s300 + $0xc0] sm:$0xff]
      %v332 = vld [vmem:[%s300 + $0xc8] sm:$0xff]
      %v333 = vld [vmem:[%s300 + $0xd0] sm:$0xff]
      %v334 = vld [vmem:[%s300 + $0xd8] sm:$0xff]
      %v335 = vld [vmem:[%s300 + $0xe0] sm:$0xff]
      %v336 = vld [vmem:[%s300 + $0xe8] sm:$0xff]
      %v337 = vld [vmem:[%s300 + $0xf0] sm:$0xff]
      %v338 = vld [vmem:[%s300 + $0xf8] sm:$0xff]
      %v339 = vld [vmem:[%s300 + $0x100] sm:$0xff]
      %v340 = vld [vmem:[%s300 + $0x108] sm:$0xff]
      %v341 = vld [vmem:[%s300 + $0x110] sm:$0xff]
      %v342 = vld [vmem:[%s300 + $0x118] sm:$0xff]
      %v343 = vld [vmem:[%s300 + $0x120] sm:$0xff]
      %v344 = vld [vmem:[%s300 + $0x128] sm:$0xff]
      %v345 = vld [vmem:[%s300 + $0x130] sm:$0xff]
      %v346 = vld [vmem:[%s300 + $0x138] sm:$0xff]
      %v347 = vld [vmem:[%s300 + $0x140] sm:$0xff]
      %v348 = vld [vmem:[%s3] sm:$0x1]
      %v349 = vld [vmem:[%s4] sm:$0x1]
      %v350 = vpack.c.bf16 %v308, %v307
      %v351 = vpack.c.bf16 %v310, %v309
      %v352 = vpack.c.bf16 %v312, %v311
      %v353 = vpack.c.bf16 %v314, %v313
      %v354 = vpack.c.bf16 %v316, %v315
      %v355 = vpack.c.bf16 %v318, %v317
      %v356 = vpack.c.bf16 %v320, %v319
      %v357 = vpack.c.bf16 %v322, %v321
      %v358 = vpack.c.bf16 %v324, %v323
      %v359 = vpack.c.bf16 %v326, %v325
      %v360 = vpack.c.bf16 %v328, %v327
      %v361 = vpack.c.bf16 %v330, %v329
      %v362 = vpack.c.bf16 %v332, %v331
      %v363 = vpack.c.bf16 %v334, %v333
      %v364 = vpack.c.bf16 %v336, %v335
      %v365 = vpack.c.bf16 %v338, %v337
      %v366 = vpack.c.bf16 %v340, %v339
      %v367 = vpack.c.bf16 %v342, %v341
      %v368 = vld [vmem:[%s2] sm:$0x3]
      %v369 = vpack.c.bf16 %v343, %v343
      %s370 = scalar_lea.vmem %s2, 2
      %v371 = vld [vmem:[%s370] sm:$0x3]
      %vm372 = vsmask.f32 7424
      %v374 = vshrl.u32 %v350, 16
      %v376 = vshll.u32 %v350, 16
      %v378 = vrot.slane %v376, 1
      %v379 = vor.u32 %v374, %v378
      %v381 = vshll.u32 %v351, 16
      %v383 = vrot.slane %v381, 1
      %v384 = vsel %vm372, %v379, %v383
      %v385 = vshrl.u32 %v351, 16
      %v387 = vor.u32 %v385, %v383
      %v389 = vshll.u32 %v352, 16
      %v391 = vrot.slane %v389, 1
      %v392 = vsel %vm372, %v387, %v391
      %v393 = vshrl.u32 %v352, 16
      %v395 = vor.u32 %v393, %v391
      %v397 = vshll.u32 %v353, 16
      %v399 = vrot.slane %v397, 1
      %v400 = vsel %vm372, %v395, %v399
      %v401 = vshrl.u32 %v353, 16
      %v403 = vor.u32 %v401, %v399
      %v405 = vshll.u32 %v354, 16
      %v407 = vrot.slane %v405, 1
      %v408 = vsel %vm372, %v403, %v407
      %v409 = vshrl.u32 %v354, 16
      %v411 = vor.u32 %v409, %v407
      %v413 = vshll.u32 %v355, 16
      %v415 = vrot.slane %v413, 1
      %v416 = vsel %vm372, %v411, %v415
      %v417 = vshrl.u32 %v355, 16
      %v419 = vor.u32 %v417, %v415
      %v421 = vshll.u32 %v356, 16
      %v423 = vrot.slane %v421, 1
      %v424 = vsel %vm372, %v419, %v423
      %v425 = vshrl.u32 %v356, 16
      %v427 = vor.u32 %v425, %v423
      %v429 = vshll.u32 %v357, 16
      %v431 = vrot.slane %v429, 1
      %v432 = vsel %vm372, %v427, %v431
      %v433 = vshrl.u32 %v357, 16
      %v435 = vor.u32 %v433, %v431
      %v437 = vshll.u32 %v358, 16
      %v439 = vrot.slane %v437, 1
      %v440 = vsel %vm372, %v435, %v439
      %v441 = vshrl.u32 %v358, 16
      %v443 = vor.u32 %v441, %v439
      %v445 = vshll.u32 %v359, 16
      %v447 = vrot.slane %v445, 1
      %v448 = vsel %vm372, %v443, %v447
      %v449 = vshrl.u32 %v359, 16
      %v451 = vor.u32 %v449, %v447
      %v453 = vshll.u32 %v360, 16
      %v455 = vrot.slane %v453, 1
      %v456 = vsel %vm372, %v451, %v455
      %v457 = vshrl.u32 %v360, 16
      %v459 = vor.u32 %v457, %v455
      %v461 = vshll.u32 %v361, 16
      %v463 = vrot.slane %v461, 1
      %v464 = vsel %vm372, %v459, %v463
      %v465 = vshrl.u32 %v361, 16
      %v467 = vor.u32 %v465, %v463
      %v469 = vshll.u32 %v362, 16
      %v471 = vrot.slane %v469, 1
      %v472 = vsel %vm372, %v467, %v471
      %v473 = vshrl.u32 %v362, 16
      %v475 = vor.u32 %v473, %v471
      %v477 = vshll.u32 %v363, 16
      %v479 = vrot.slane %v477, 1
      %v480 = vsel %vm372, %v475, %v479
      %v481 = vshrl.u32 %v363, 16
      %v483 = vor.u32 %v481, %v479
      %v485 = vshll.u32 %v364, 16
      %v487 = vrot.slane %v485, 1
      %v488 = vsel %vm372, %v483, %v487
      %v489 = vshrl.u32 %v364, 16
      %v491 = vor.u32 %v489, %v487
      %v493 = vshll.u32 %v365, 16
      %v495 = vrot.slane %v493, 1
      %v496 = vsel %vm372, %v491, %v495
      %v497 = vshrl.u32 %v365, 16
      %v499 = vor.u32 %v497, %v495
      %v501 = vshll.u32 %v366, 16
      %v503 = vrot.slane %v501, 1
      %v504 = vsel %vm372, %v499, %v503
      %v505 = vshrl.u32 %v366, 16
      %v507 = vor.u32 %v505, %v503
      %v509 = vshll.u32 %v367, 16
      %v511 = vrot.slane %v509, 1
      %v512 = vsel %vm372, %v507, %v511
      %v513 = vshrl.u32 %v367, 16
      %v515 = vor.u32 %v513, %v511
      %v517 = vshll.u32 %v369, 16
      %v519 = vrot.slane %v517, 1
      %v520 = vsel %vm372, %v515, %v519
      %vm521 = vcmask 23552
      %v523 = vsel %vm521, %v384, 0
      %v526 = vsel %vm521, %v392, 0
      %v529 = vsel %vm521, %v400, 0
      %v532 = vsel %vm521, %v408, 0
      %v535 = vsel %vm521, %v416, 0
      %v538 = vsel %vm521, %v424, 0
      %v541 = vsel %vm521, %v432, 0
      %v544 = vsel %vm521, %v440, 0
      %v547 = vsel %vm521, %v448, 0
      %v550 = vsel %vm521, %v456, 0
      %v553 = vsel %vm521, %v464, 0
      %v556 = vsel %vm521, %v472, 0
      %v559 = vsel %vm521, %v480, 0
      %v562 = vsel %vm521, %v488, 0
      %v565 = vsel %vm521, %v496, 0
      %v568 = vsel %vm521, %v504, 0
      %v571 = vsel %vm521, %v512, 0
      %v574 = vsel %vm521, %v520, 0
      %vm576 = vcmask 1040384
      %vm577 = vcmask 1041408
      %v578 = vsel %vm576, 4294967295, 65535
      %v579 = vsel %vm577, %v578, 0
      %v581 = vand.u32 %v371, %v579
      %583 = vmatprep.subr.bf16.mxu0 0
      %584 = vmatpush1.bf16.msra.mxu0 0
      %585 = vmatprep.subr.bf16.mxu0 0
      %586 = vmatpush1.bf16.msra.mxu0 0
      %587 = vmatprep.subr.bf16.mxu0 0
      %588 = vmatpush1.bf16.msra.mxu0 0
      %589 = vmatprep.subr.bf16.mxu0 0
      %590 = vmatpush1.bf16.msra.mxu0 0
      %591 = vmatprep.subr.bf16.mxu0 0
      %592 = vmatpush1.bf16.msra.mxu0 0
      %593 = vmatprep.subr.bf16.mxu0 0
      %594 = vmatpush1.bf16.msra.mxu0 0
      %595 = vmatprep.subr.bf16.mxu0 0
      %596 = vmatpush1.bf16.msra.mxu0 0
      %597 = vmatprep.subr.bf16.mxu0 0
      %598 = vmatpush1.bf16.msra.mxu0 %v581
      %599 = vmatprep.subr.bf16.mxu0 0
      %600 = vmatpush2.bf16.msra.mxu0 0
      %601 = vmatprep.subr.bf16.mxu0 0
      %602 = vmatpush2.bf16.msra.mxu0 0
      %603 = vmatprep.subr.bf16.mxu0 0
      %604 = vmatpush2.bf16.msra.mxu0 0
      %605 = vmatprep.subr.bf16.mxu0 0
      %606 = vmatpush2.bf16.msra.mxu0 0
      %607 = vmatprep.subr.bf16.mxu0 0
      %608 = vmatpush2.bf16.msra.mxu0 0
      %609 = vmatprep.subr.bf16.mxu0 0
      %610 = vmatpush2.bf16.msra.mxu0 0
      %611 = vmatprep.subr.bf16.mxu0 0
      %612 = vmatpush2.bf16.msra.mxu0 0
      %613 = vmatprep.subr.bf16.mxu0 0
      %614 = vmatpush2.bf16.msra.mxu0 0
      %615 = vmatprep.mubr.bf16.mxu0 0
      %616 = vmatmul.mubr.bf16.gmra.mxu0 %v523
      %v617 = vpop.f32.mrf.mxu0
      %v618 = vadd.f32 0.0, %v617
      %v619 = vpop.f32.mrf.mxu0
      %v620 = vpop.f32.mrf.mxu0
      %v621 = vadd.f32 0.0, %v620
      %v622 = vpop.f32.mrf.mxu0
      %623 = vmatprep.mubr.bf16.mxu0 0
      %624 = vmatmul.mubr.bf16.gmra.mxu0 %v526
      %v625 = vpop.f32.mrf.mxu0
      %v626 = vadd.f32 0.0, %v625
      %v627 = vpop.f32.mrf.mxu0
      %v628 = vpop.f32.mrf.mxu0
      %v629 = vadd.f32 0.0, %v628
      %v630 = vpop.f32.mrf.mxu0
      %631 = vmatprep.mubr.bf16.mxu0 0
      %632 = vmatmul.mubr.bf16.gmra.mxu0 %v529
      %v633 = vpop.f32.mrf.mxu0
      %v634 = vadd.f32 0.0, %v633
      %v635 = vpop.f32.mrf.mxu0
      %v636 = vpop.f32.mrf.mxu0
      %v637 = vadd.f32 0.0, %v636
      %v638 = vpop.f32.mrf.mxu0
      %639 = vmatprep.mubr.bf16.mxu0 0
      %640 = vmatmul.mubr.bf16.gmra.mxu0 %v532
      %v641 = vpop.f32.mrf.mxu0
      %v642 = vadd.f32 0.0, %v641
      %v643 = vpop.f32.mrf.mxu0
      %v644 = vpop.f32.mrf.mxu0
      %v645 = vadd.f32 0.0, %v644
      %v646 = vpop.f32.mrf.mxu0
      %647 = vmatprep.mubr.bf16.mxu0 0
      %648 = vmatmul.mubr.bf16.gmra.mxu0 %v535
      %v649 = vpop.f32.mrf.mxu0
      %v650 = vadd.f32 0.0, %v649
      %v651 = vpop.f32.mrf.mxu0
      %v652 = vpop.f32.mrf.mxu0
      %v653 = vadd.f32 0.0, %v652
      %v654 = vpop.f32.mrf.mxu0
      %655 = vmatprep.mubr.bf16.mxu0 0
      %656 = vmatmul.mubr.bf16.gmra.mxu0 %v538
      %v657 = vpop.f32.mrf.mxu0
      %v658 = vadd.f32 0.0, %v657
      %v659 = vpop.f32.mrf.mxu0
      %v660 = vpop.f32.mrf.mxu0
      %v661 = vadd.f32 0.0, %v660
      %v662 = vpop.f32.mrf.mxu0
      %663 = vmatprep.mubr.bf16.mxu0 0
      %664 = vmatmul.mubr.bf16.gmra.mxu0 %v541
      %v665 = vpop.f32.mrf.mxu0
      %v666 = vadd.f32 0.0, %v665
      %v667 = vpop.f32.mrf.mxu0
      %v668 = vpop.f32.mrf.mxu0
      %v669 = vadd.f32 0.0, %v668
      %v670 = vpop.f32.mrf.mxu0
      %671 = vmatprep.mubr.bf16.mxu0 0
      %672 = vmatmul.mubr.bf16.gmra.mxu0 %v544
      %v673 = vpop.f32.mrf.mxu0
      %v674 = vadd.f32 0.0, %v673
      %v675 = vpop.f32.mrf.mxu0
      %v676 = vpop.f32.mrf.mxu0
      %v677 = vadd.f32 0.0, %v676
      %v678 = vpop.f32.mrf.mxu0
      %679 = vmatprep.mubr.bf16.mxu0 0
      %680 = vmatmul.mubr.bf16.gmra.mxu0 %v547
      %v681 = vpop.f32.mrf.mxu0
      %v682 = vadd.f32 0.0, %v681
      %v683 = vpop.f32.mrf.mxu0
      %v684 = vpop.f32.mrf.mxu0
      %v685 = vadd.f32 0.0, %v684
      %v686 = vpop.f32.mrf.mxu0
      %687 = vmatprep.mubr.bf16.mxu0 0
      %688 = vmatmul.mubr.bf16.gmra.mxu0 %v550
      %v689 = vpop.f32.mrf.mxu0
      %v690 = vadd.f32 0.0, %v689
      %v691 = vpop.f32.mrf.mxu0
      %v692 = vpop.f32.mrf.mxu0
      %v693 = vadd.f32 0.0, %v692
      %v694 = vpop.f32.mrf.mxu0
      %695 = vmatprep.mubr.bf16.mxu0 0
      %696 = vmatmul.mubr.bf16.gmra.mxu0 %v553
      %v697 = vpop.f32.mrf.mxu0
      %v698 = vadd.f32 0.0, %v697
      %v699 = vpop.f32.mrf.mxu0
      %v700 = vpop.f32.mrf.mxu0
      %v701 = vadd.f32 0.0, %v700
      %v702 = vpop.f32.mrf.mxu0
      %703 = vmatprep.mubr.bf16.mxu0 0
      %704 = vmatmul.mubr.bf16.gmra.mxu0 %v556
      %v705 = vpop.f32.mrf.mxu0
      %v706 = vadd.f32 0.0, %v705
      %v707 = vpop.f32.mrf.mxu0
      %v708 = vpop.f32.mrf.mxu0
      %v709 = vadd.f32 0.0, %v708
      %v710 = vpop.f32.mrf.mxu0
      %711 = vmatprep.mubr.bf16.mxu0 0
      %712 = vmatmul.mubr.bf16.gmra.mxu0 %v559
      %v713 = vpop.f32.mrf.mxu0
      %v714 = vadd.f32 0.0, %v713
      %v715 = vpop.f32.mrf.mxu0
      %v716 = vpop.f32.mrf.mxu0
      %v717 = vadd.f32 0.0, %v716
      %v718 = vpop.f32.mrf.mxu0
      %719 = vmatprep.mubr.bf16.mxu0 0
      %720 = vmatmul.mubr.bf16.gmra.mxu0 %v562
      %v721 = vpop.f32.mrf.mxu0
      %v722 = vadd.f32 0.0, %v721
      %v723 = vpop.f32.mrf.mxu0
      %v724 = vpop.f32.mrf.mxu0
      %v725 = vadd.f32 0.0, %v724
      %v726 = vpop.f32.mrf.mxu0
      %727 = vmatprep.mubr.bf16.mxu0 0
      %728 = vmatmul.mubr.bf16.gmra.mxu0 %v565
      %v729 = vpop.f32.mrf.mxu0
      %v730 = vadd.f32 0.0, %v729
      %v731 = vpop.f32.mrf.mxu0
      %v732 = vpop.f32.mrf.mxu0
      %v733 = vadd.f32 0.0, %v732
      %v734 = vpop.f32.mrf.mxu0
      %735 = vmatprep.mubr.bf16.mxu0 0
      %736 = vmatmul.mubr.bf16.gmra.mxu0 %v568
      %v737 = vpop.f32.mrf.mxu0
      %v738 = vadd.f32 0.0, %v737
      %v739 = vpop.f32.mrf.mxu0
      %v740 = vpop.f32.mrf.mxu0
      %v741 = vadd.f32 0.0, %v740
      %v742 = vpop.f32.mrf.mxu0
      %743 = vmatprep.mubr.bf16.mxu0 0
      %744 = vmatmul.mubr.bf16.gmra.mxu0 %v571
      %v745 = vpop.f32.mrf.mxu0
      %v746 = vadd.f32 0.0, %v745
      %v747 = vpop.f32.mrf.mxu0
      %v748 = vpop.f32.mrf.mxu0
      %v749 = vadd.f32 0.0, %v748
      %v750 = vpop.f32.mrf.mxu0
      %751 = vmatprep.mubr.bf16.mxu0 0
      %752 = vmatmul.mubr.bf16.gmra.mxu0 %v574
      %v753 = vpop.f32.mrf.mxu0
      %v754 = vadd.f32 0.0, %v753
      %v755 = vpop.f32.mrf.mxu0
      %v756 = vpop.f32.mrf.mxu0
      %v757 = vadd.f32 0.0, %v756
      %v758 = vpop.f32.mrf.mxu0
      %759 = vdwg.mxu0
      %v760 = vsel %vm521, %v350, 0
      %v762 = vsel %vm521, %v351, 0
      %v764 = vsel %vm521, %v352, 0
      %v766 = vsel %vm521, %v353, 0
      %v768 = vsel %vm521, %v354, 0
      %v770 = vsel %vm521, %v355, 0
      %v772 = vsel %vm521, %v356, 0
      %v774 = vsel %vm521, %v357, 0
      %v776 = vsel %vm521, %v358, 0
      %v778 = vsel %vm521, %v359, 0
      %v780 = vsel %vm521, %v360, 0
      %v782 = vsel %vm521, %v361, 0
      %v784 = vsel %vm521, %v362, 0
      %v786 = vsel %vm521, %v363, 0
      %v788 = vsel %vm521, %v364, 0
      %v790 = vsel %vm521, %v365, 0
      %v792 = vsel %vm521, %v366, 0
      %v794 = vsel %vm521, %v367, 0
      %v797 = vand.u32 %v368, %v579
      %799 = vmatprep.subr.bf16.mxu0 0
      %800 = vmatpush1.bf16.msra.mxu0 0
      %801 = vmatprep.subr.bf16.mxu0 0
      %802 = vmatpush1.bf16.msra.mxu0 0
      %803 = vmatprep.subr.bf16.mxu0 0
      %804 = vmatpush1.bf16.msra.mxu0 0
      %805 = vmatprep.subr.bf16.mxu0 0
      %806 = vmatpush1.bf16.msra.mxu0 0
      %807 = vmatprep.subr.bf16.mxu0 0
      %808 = vmatpush1.bf16.msra.mxu0 0
      %809 = vmatprep.subr.bf16.mxu0 0
      %810 = vmatpush1.bf16.msra.mxu0 0
      %811 = vmatprep.subr.bf16.mxu0 0
      %812 = vmatpush1.bf16.msra.mxu0 0
      %813 = vmatprep.subr.bf16.mxu0 0
      %814 = vmatpush1.bf16.msra.mxu0 %v797
      %815 = vmatprep.subr.bf16.mxu0 0
      %816 = vmatpush2.bf16.msra.mxu0 0
      %817 = vmatprep.subr.bf16.mxu0 0
      %818 = vmatpush2.bf16.msra.mxu0 0
      %819 = vmatprep.subr.bf16.mxu0 0
      %820 = vmatpush2.bf16.msra.mxu0 0
      %821 = vmatprep.subr.bf16.mxu0 0
      %822 = vmatpush2.bf16.msra.mxu0 0
      %823 = vmatprep.subr.bf16.mxu0 0
      %824 = vmatpush2.bf16.msra.mxu0 0
      %825 = vmatprep.subr.bf16.mxu0 0
      %826 = vmatpush2.bf16.msra.mxu0 0
      %827 = vmatprep.subr.bf16.mxu0 0
      %828 = vmatpush2.bf16.msra.mxu0 0
      %829 = vmatprep.subr.bf16.mxu0 0
      %830 = vmatpush2.bf16.msra.mxu0 0
      %831 = vmatprep.mubr.bf16.mxu0 0
      %832 = vmatmul.mubr.bf16.gmra.mxu0 %v760
      %v833 = vpop.f32.mrf.mxu0
      %v834 = vadd.f32 %v618, %v833
      %v835 = vpop.f32.mrf.mxu0
      %v836 = vpop.f32.mrf.mxu0
      %v837 = vadd.f32 %v621, %v836
      %v838 = vpop.f32.mrf.mxu0
      %839 = vmatprep.mubr.bf16.mxu0 0
      %840 = vmatmul.mubr.bf16.gmra.mxu0 %v762
      %v841 = vpop.f32.mrf.mxu0
      %v842 = vadd.f32 %v626, %v841
      %v843 = vpop.f32.mrf.mxu0
      %v844 = vpop.f32.mrf.mxu0
      %v845 = vadd.f32 %v629, %v844
      %v846 = vpop.f32.mrf.mxu0
      %847 = vmatprep.mubr.bf16.mxu0 0
      %848 = vmatmul.mubr.bf16.gmra.mxu0 %v764
      %v849 = vpop.f32.mrf.mxu0
      %v850 = vadd.f32 %v634, %v849
      %v851 = vpop.f32.mrf.mxu0
      %v852 = vpop.f32.mrf.mxu0
      %v853 = vadd.f32 %v637, %v852
      %v854 = vpop.f32.mrf.mxu0
      %855 = vmatprep.mubr.bf16.mxu0 0
      %856 = vmatmul.mubr.bf16.gmra.mxu0 %v766
      %v857 = vpop.f32.mrf.mxu0
      %v858 = vadd.f32 %v642, %v857
      %v859 = vpop.f32.mrf.mxu0
      %v860 = vpop.f32.mrf.mxu0
      %v861 = vadd.f32 %v645, %v860
      %v862 = vpop.f32.mrf.mxu0
      %863 = vmatprep.mubr.bf16.mxu0 0
      %864 = vmatmul.mubr.bf16.gmra.mxu0 %v768
      %v865 = vpop.f32.mrf.mxu0
      %v866 = vadd.f32 %v650, %v865
      %v867 = vpop.f32.mrf.mxu0
      %v868 = vpop.f32.mrf.mxu0
      %v869 = vadd.f32 %v653, %v868
      %v870 = vpop.f32.mrf.mxu0
      %871 = vmatprep.mubr.bf16.mxu0 0
      %872 = vmatmul.mubr.bf16.gmra.mxu0 %v770
      %v873 = vpop.f32.mrf.mxu0
      %v874 = vadd.f32 %v658, %v873
      %v875 = vpop.f32.mrf.mxu0
      %v876 = vpop.f32.mrf.mxu0
      %v877 = vadd.f32 %v661, %v876
      %v878 = vpop.f32.mrf.mxu0
      %879 = vmatprep.mubr.bf16.mxu0 0
      %880 = vmatmul.mubr.bf16.gmra.mxu0 %v772
      %v881 = vpop.f32.mrf.mxu0
      %v882 = vadd.f32 %v666, %v881
      %v883 = vpop.f32.mrf.mxu0
      %v884 = vpop.f32.mrf.mxu0
      %v885 = vadd.f32 %v669, %v884
      %v886 = vpop.f32.mrf.mxu0
      %887 = vmatprep.mubr.bf16.mxu0 0
      %888 = vmatmul.mubr.bf16.gmra.mxu0 %v774
      %v889 = vpop.f32.mrf.mxu0
      %v890 = vadd.f32 %v674, %v889
      %v891 = vpop.f32.mrf.mxu0
      %v892 = vpop.f32.mrf.mxu0
      %v893 = vadd.f32 %v677, %v892
      %v894 = vpop.f32.mrf.mxu0
      %895 = vmatprep.mubr.bf16.mxu0 0
      %896 = vmatmul.mubr.bf16.gmra.mxu0 %v776
      %v897 = vpop.f32.mrf.mxu0
      %v898 = vadd.f32 %v682, %v897
      %v899 = vpop.f32.mrf.mxu0
      %v900 = vpop.f32.mrf.mxu0
      %v901 = vadd.f32 %v685, %v900
      %v902 = vpop.f32.mrf.mxu0
      %903 = vmatprep.mubr.bf16.mxu0 0
      %904 = vmatmul.mubr.bf16.gmra.mxu0 %v778
      %v905 = vpop.f32.mrf.mxu0
      %v906 = vadd.f32 %v690, %v905
      %v907 = vpop.f32.mrf.mxu0
      %v908 = vpop.f32.mrf.mxu0
      %v909 = vadd.f32 %v693, %v908
      %v910 = vpop.f32.mrf.mxu0
      %911 = vmatprep.mubr.bf16.mxu0 0
      %912 = vmatmul.mubr.bf16.gmra.mxu0 %v780
      %v913 = vpop.f32.mrf.mxu0
      %v914 = vadd.f32 %v698, %v913
      %v915 = vpop.f32.mrf.mxu0
      %v916 = vpop.f32.mrf.mxu0
      %v917 = vadd.f32 %v701, %v916
      %v918 = vpop.f32.mrf.mxu0
      %919 = vmatprep.mubr.bf16.mxu0 0
      %920 = vmatmul.mubr.bf16.gmra.mxu0 %v782
      %v921 = vpop.f32.mrf.mxu0
      %v922 = vadd.f32 %v706, %v921
      %v923 = vpop.f32.mrf.mxu0
      %v924 = vpop.f32.mrf.mxu0
      %v925 = vadd.f32 %v709, %v924
      %v926 = vpop.f32.mrf.mxu0
      %927 = vmatprep.mubr.bf16.mxu0 0
      %928 = vmatmul.mubr.bf16.gmra.mxu0 %v784
      %v929 = vpop.f32.mrf.mxu0
      %v930 = vadd.f32 %v714, %v929
      %v931 = vpop.f32.mrf.mxu0
      %v932 = vpop.f32.mrf.mxu0
      %v933 = vadd.f32 %v717, %v932
      %v934 = vpop.f32.mrf.mxu0
      %935 = vmatprep.mubr.bf16.mxu0 0
      %936 = vmatmul.mubr.bf16.gmra.mxu0 %v786
      %v937 = vpop.f32.mrf.mxu0
      %v938 = vadd.f32 %v722, %v937
      %v939 = vpop.f32.mrf.mxu0
      %v940 = vpop.f32.mrf.mxu0
      %v941 = vadd.f32 %v725, %v940
      %v942 = vpop.f32.mrf.mxu0
      %943 = vmatprep.mubr.bf16.mxu0 0
      %944 = vmatmul.mubr.bf16.gmra.mxu0 %v788
      %v945 = vpop.f32.mrf.mxu0
      %v946 = vadd.f32 %v730, %v945
      %v947 = vpop.f32.mrf.mxu0
      %v948 = vpop.f32.mrf.mxu0
      %v949 = vadd.f32 %v733, %v948
      %v950 = vpop.f32.mrf.mxu0
      %951 = vmatprep.mubr.bf16.mxu0 0
      %952 = vmatmul.mubr.bf16.gmra.mxu0 %v790
      %v953 = vpop.f32.mrf.mxu0
      %v954 = vadd.f32 %v738, %v953
      %v955 = vpop.f32.mrf.mxu0
      %v956 = vpop.f32.mrf.mxu0
      %v957 = vadd.f32 %v741, %v956
      %v958 = vpop.f32.mrf.mxu0
      %959 = vmatprep.mubr.bf16.mxu0 0
      %960 = vmatmul.mubr.bf16.gmra.mxu0 %v792
      %v961 = vpop.f32.mrf.mxu0
      %v962 = vadd.f32 %v746, %v961
      %v963 = vpop.f32.mrf.mxu0
      %v964 = vpop.f32.mrf.mxu0
      %v965 = vadd.f32 %v749, %v964
      %v966 = vpop.f32.mrf.mxu0
      %967 = vmatprep.mubr.bf16.mxu0 0
      %968 = vmatmul.mubr.bf16.gmra.mxu0 %v794
      %v969 = vpop.f32.mrf.mxu0
      %v970 = vadd.f32 %v754, %v969
      %v971 = vpop.f32.mrf.mxu0
      %v972 = vpop.f32.mrf.mxu0
      %v973 = vadd.f32 %v757, %v972
      %v974 = vpop.f32.mrf.mxu0
      %975 = vdwg.mxu0
      %s976 = scalar_lea.vmem %s2, 4
      %v977 = vld [vmem:[%s976] sm:$0x3]
      %vm997 = vcmask 1046528
      %v998 = vrot.slane %v350, 1
      %v999 = vrot.slane %v351, 1
      %v1000 = vsel %vm997, %v998, %v999
      %v1001 = vrot.slane %v352, 1
      %v1002 = vsel %vm997, %v999, %v1001
      %v1003 = vrot.slane %v353, 1
      %v1004 = vsel %vm997, %v1001, %v1003
      %v1005 = vrot.slane %v354, 1
      %v1006 = vsel %vm997, %v1003, %v1005
      %v1007 = vrot.slane %v355, 1
      %v1008 = vsel %vm997, %v1005, %v1007
      %v1009 = vrot.slane %v356, 1
      %v1010 = vsel %vm997, %v1007, %v1009
      %v1011 = vrot.slane %v357, 1
      %v1012 = vsel %vm997, %v1009, %v1011
      %v1013 = vrot.slane %v358, 1
      %v1014 = vsel %vm997, %v1011, %v1013
      %v1015 = vrot.slane %v359, 1
      %v1016 = vsel %vm997, %v1013, %v1015
      %v1017 = vrot.slane %v360, 1
      %v1018 = vsel %vm997, %v1015, %v1017
      %v1019 = vrot.slane %v361, 1
      %v1020 = vsel %vm997, %v1017, %v1019
      %v1021 = vrot.slane %v362, 1
      %v1022 = vsel %vm997, %v1019, %v1021
      %v1023 = vrot.slane %v363, 1
      %v1024 = vsel %vm997, %v1021, %v1023
      %v1025 = vrot.slane %v364, 1
      %v1026 = vsel %vm997, %v1023, %v1025
      %v1027 = vrot.slane %v365, 1
      %v1028 = vsel %vm997, %v1025, %v1027
      %v1029 = vrot.slane %v366, 1
      %v1030 = vsel %vm997, %v1027, %v1029
      %v1031 = vrot.slane %v367, 1
      %v1032 = vsel %vm997, %v1029, %v1031
      %v1033 = vrot.slane %v369, 1
      %v1034 = vsel %vm997, %v1031, %v1033
      %v1036 = vsel %vm521, %v1000, 0
      %v1039 = vsel %vm521, %v1002, 0
      %v1042 = vsel %vm521, %v1004, 0
      %v1045 = vsel %vm521, %v1006, 0
      %v1048 = vsel %vm521, %v1008, 0
      %v1051 = vsel %vm521, %v1010, 0
      %v1054 = vsel %vm521, %v1012, 0
      %v1057 = vsel %vm521, %v1014, 0
      %v1060 = vsel %vm521, %v1016, 0
      %v1063 = vsel %vm521, %v1018, 0
      %v1066 = vsel %vm521, %v1020, 0
      %v1069 = vsel %vm521, %v1022, 0
      %v1072 = vsel %vm521, %v1024, 0
      %v1075 = vsel %vm521, %v1026, 0
      %v1078 = vsel %vm521, %v1028, 0
      %v1081 = vsel %vm521, %v1030, 0
      %v1084 = vsel %vm521, %v1032, 0
      %v1087 = vsel %vm521, %v1034, 0
      %v1090 = vand.u32 %v977, %v579
      %1092 = vmatprep.subr.bf16.mxu0 0
      %1093 = vmatpush1.bf16.msra.mxu0 0
      %1094 = vmatprep.subr.bf16.mxu0 0
      %1095 = vmatpush1.bf16.msra.mxu0 0
      %1096 = vmatprep.subr.bf16.mxu0 0
      %1097 = vmatpush1.bf16.msra.mxu0 0
      %1098 = vmatprep.subr.bf16.mxu0 0
      %1099 = vmatpush1.bf16.msra.mxu0 0
      %1100 = vmatprep.subr.bf16.mxu0 0
      %1101 = vmatpush1.bf16.msra.mxu0 0
      %1102 = vmatprep.subr.bf16.mxu0 0
      %1103 = vmatpush1.bf16.msra.mxu0 0
      %1104 = vmatprep.subr.bf16.mxu0 0
      %1105 = vmatpush1.bf16.msra.mxu0 0
      %1106 = vmatprep.subr.bf16.mxu0 0
      %1107 = vmatpush1.bf16.msra.mxu0 %v1090
      %1108 = vmatprep.subr.bf16.mxu0 0
      %1109 = vmatpush2.bf16.msra.mxu0 0
      %1110 = vmatprep.subr.bf16.mxu0 0
      %1111 = vmatpush2.bf16.msra.mxu0 0
      %1112 = vmatprep.subr.bf16.mxu0 0
      %1113 = vmatpush2.bf16.msra.mxu0 0
      %1114 = vmatprep.subr.bf16.mxu0 0
      %1115 = vmatpush2.bf16.msra.mxu0 0
      %1116 = vmatprep.subr.bf16.mxu0 0
      %1117 = vmatpush2.bf16.msra.mxu0 0
      %1118 = vmatprep.subr.bf16.mxu0 0
      %1119 = vmatpush2.bf16.msra.mxu0 0
      %1120 = vmatprep.subr.bf16.mxu0 0
      %1121 = vmatpush2.bf16.msra.mxu0 0
      %1122 = vmatprep.subr.bf16.mxu0 0
      %1123 = vmatpush2.bf16.msra.mxu0 0
      %1124 = vmatprep.mubr.bf16.mxu0 0
      %1125 = vmatmul.mubr.bf16.gmra.mxu0 %v1036
      %v1126 = vpop.f32.mrf.mxu0
      %v1127 = vadd.f32 0.0, %v1126
      %v1128 = vpop.f32.mrf.mxu0
      %v1129 = vpop.f32.mrf.mxu0
      %v1130 = vadd.f32 0.0, %v1129
      %v1131 = vpop.f32.mrf.mxu0
      %1132 = vmatprep.mubr.bf16.mxu0 0
      %1133 = vmatmul.mubr.bf16.gmra.mxu0 %v1039
      %v1134 = vpop.f32.mrf.mxu0
      %v1135 = vadd.f32 0.0, %v1134
      %v1136 = vpop.f32.mrf.mxu0
      %v1137 = vpop.f32.mrf.mxu0
      %v1138 = vadd.f32 0.0, %v1137
      %v1139 = vpop.f32.mrf.mxu0
      %1140 = vmatprep.mubr.bf16.mxu0 0
      %1141 = vmatmul.mubr.bf16.gmra.mxu0 %v1042
      %v1142 = vpop.f32.mrf.mxu0
      %v1143 = vadd.f32 0.0, %v1142
      %v1144 = vpop.f32.mrf.mxu0
      %v1145 = vpop.f32.mrf.mxu0
      %v1146 = vadd.f32 0.0, %v1145
      %v1147 = vpop.f32.mrf.mxu0
      %1148 = vmatprep.mubr.bf16.mxu0 0
      %1149 = vmatmul.mubr.bf16.gmra.mxu0 %v1045
      %v1150 = vpop.f32.mrf.mxu0
      %v1151 = vadd.f32 0.0, %v1150
      %v1152 = vpop.f32.mrf.mxu0
      %v1153 = vpop.f32.mrf.mxu0
      %v1154 = vadd.f32 0.0, %v1153
      %v1155 = vpop.f32.mrf.mxu0
      %1156 = vmatprep.mubr.bf16.mxu0 0
      %1157 = vmatmul.mubr.bf16.gmra.mxu0 %v1048
      %v1158 = vpop.f32.mrf.mxu0
      %v1159 = vadd.f32 0.0, %v1158
      %v1160 = vpop.f32.mrf.mxu0
      %v1161 = vpop.f32.mrf.mxu0
      %v1162 = vadd.f32 0.0, %v1161
      %v1163 = vpop.f32.mrf.mxu0
      %1164 = vmatprep.mubr.bf16.mxu0 0
      %1165 = vmatmul.mubr.bf16.gmra.mxu0 %v1051
      %v1166 = vpop.f32.mrf.mxu0
      %v1167 = vadd.f32 0.0, %v1166
      %v1168 = vpop.f32.mrf.mxu0
      %v1169 = vpop.f32.mrf.mxu0
      %v1170 = vadd.f32 0.0, %v1169
      %v1171 = vpop.f32.mrf.mxu0
      %1172 = vmatprep.mubr.bf16.mxu0 0
      %1173 = vmatmul.mubr.bf16.gmra.mxu0 %v1054
      %v1174 = vpop.f32.mrf.mxu0
      %v1175 = vadd.f32 0.0, %v1174
      %v1176 = vpop.f32.mrf.mxu0
      %v1177 = vpop.f32.mrf.mxu0
      %v1178 = vadd.f32 0.0, %v1177
      %v1179 = vpop.f32.mrf.mxu0
      %1180 = vmatprep.mubr.bf16.mxu0 0
      %1181 = vmatmul.mubr.bf16.gmra.mxu0 %v1057
      %v1182 = vpop.f32.mrf.mxu0
      %v1183 = vadd.f32 0.0, %v1182
      %v1184 = vpop.f32.mrf.mxu0
      %v1185 = vpop.f32.mrf.mxu0
      %v1186 = vadd.f32 0.0, %v1185
      %v1187 = vpop.f32.mrf.mxu0
      %1188 = vmatprep.mubr.bf16.mxu0 0
      %1189 = vmatmul.mubr.bf16.gmra.mxu0 %v1060
      %v1190 = vpop.f32.mrf.mxu0
      %v1191 = vadd.f32 0.0, %v1190
      %v1192 = vpop.f32.mrf.mxu0
      %v1193 = vpop.f32.mrf.mxu0
      %v1194 = vadd.f32 0.0, %v1193
      %v1195 = vpop.f32.mrf.mxu0
      %1196 = vmatprep.mubr.bf16.mxu0 0
      %1197 = vmatmul.mubr.bf16.gmra.mxu0 %v1063
      %v1198 = vpop.f32.mrf.mxu0
      %v1199 = vadd.f32 0.0, %v1198
      %v1200 = vpop.f32.mrf.mxu0
      %v1201 = vpop.f32.mrf.mxu0
      %v1202 = vadd.f32 0.0, %v1201
      %v1203 = vpop.f32.mrf.mxu0
      %1204 = vmatprep.mubr.bf16.mxu0 0
      %1205 = vmatmul.mubr.bf16.gmra.mxu0 %v1066
      %v1206 = vpop.f32.mrf.mxu0
      %v1207 = vadd.f32 0.0, %v1206
      %v1208 = vpop.f32.mrf.mxu0
      %v1209 = vpop.f32.mrf.mxu0
      %v1210 = vadd.f32 0.0, %v1209
      %v1211 = vpop.f32.mrf.mxu0
      %1212 = vmatprep.mubr.bf16.mxu0 0
      %1213 = vmatmul.mubr.bf16.gmra.mxu0 %v1069
      %v1214 = vpop.f32.mrf.mxu0
      %v1215 = vadd.f32 0.0, %v1214
      %v1216 = vpop.f32.mrf.mxu0
      %v1217 = vpop.f32.mrf.mxu0
      %v1218 = vadd.f32 0.0, %v1217
      %v1219 = vpop.f32.mrf.mxu0
      %1220 = vmatprep.mubr.bf16.mxu0 0
      %1221 = vmatmul.mubr.bf16.gmra.mxu0 %v1072
      %v1222 = vpop.f32.mrf.mxu0
      %v1223 = vadd.f32 0.0, %v1222
      %v1224 = vpop.f32.mrf.mxu0
      %v1225 = vpop.f32.mrf.mxu0
      %v1226 = vadd.f32 0.0, %v1225
      %v1227 = vpop.f32.mrf.mxu0
      %1228 = vmatprep.mubr.bf16.mxu0 0
      %1229 = vmatmul.mubr.bf16.gmra.mxu0 %v1075
      %v1230 = vpop.f32.mrf.mxu0
      %v1231 = vadd.f32 0.0, %v1230
      %v1232 = vpop.f32.mrf.mxu0
      %v1233 = vpop.f32.mrf.mxu0
      %v1234 = vadd.f32 0.0, %v1233
      %v1235 = vpop.f32.mrf.mxu0
      %1236 = vmatprep.mubr.bf16.mxu0 0
      %1237 = vmatmul.mubr.bf16.gmra.mxu0 %v1078
      %v1238 = vpop.f32.mrf.mxu0
      %v1239 = vadd.f32 0.0, %v1238
      %v1240 = vpop.f32.mrf.mxu0
      %v1241 = vpop.f32.mrf.mxu0
      %v1242 = vadd.f32 0.0, %v1241
      %v1243 = vpop.f32.mrf.mxu0
      %1244 = vmatprep.mubr.bf16.mxu0 0
      %1245 = vmatmul.mubr.bf16.gmra.mxu0 %v1081
      %v1246 = vpop.f32.mrf.mxu0
      %v1247 = vadd.f32 0.0, %v1246
      %v1248 = vpop.f32.mrf.mxu0
      %v1249 = vpop.f32.mrf.mxu0
      %v1250 = vadd.f32 0.0, %v1249
      %v1251 = vpop.f32.mrf.mxu0
      %1252 = vmatprep.mubr.bf16.mxu0 0
      %1253 = vmatmul.mubr.bf16.gmra.mxu0 %v1084
      %v1254 = vpop.f32.mrf.mxu0
      %v1255 = vadd.f32 0.0, %v1254
      %v1256 = vpop.f32.mrf.mxu0
      %v1257 = vpop.f32.mrf.mxu0
      %v1258 = vadd.f32 0.0, %v1257
      %v1259 = vpop.f32.mrf.mxu0
      %1260 = vmatprep.mubr.bf16.mxu0 0
      %1261 = vmatmul.mubr.bf16.gmra.mxu0 %v1087
      %v1262 = vpop.f32.mrf.mxu0
      %v1263 = vadd.f32 0.0, %v1262
      %v1264 = vpop.f32.mrf.mxu0
      %v1265 = vpop.f32.mrf.mxu0
      %v1266 = vadd.f32 0.0, %v1265
      %v1267 = vpop.f32.mrf.mxu0
      %1268 = vdwg.mxu0
      %v1269 = vadd.f32 %v834, %v1127
      %v1270 = vadd.f32 %v837, %v1130
      %v1271 = vadd.f32 %v842, %v1135
      %v1272 = vadd.f32 %v845, %v1138
      %v1273 = vadd.f32 %v850, %v1143
      %v1274 = vadd.f32 %v853, %v1146
      %v1275 = vadd.f32 %v858, %v1151
      %v1276 = vadd.f32 %v861, %v1154
      %v1277 = vadd.f32 %v866, %v1159
      %v1278 = vadd.f32 %v869, %v1162
      %v1279 = vadd.f32 %v874, %v1167
      %v1280 = vadd.f32 %v877, %v1170
      %v1281 = vadd.f32 %v882, %v1175
      %v1282 = vadd.f32 %v885, %v1178
      %v1283 = vadd.f32 %v890, %v1183
      %v1284 = vadd.f32 %v893, %v1186
      %v1285 = vadd.f32 %v898, %v1191
      %v1286 = vadd.f32 %v901, %v1194
      %v1287 = vadd.f32 %v906, %v1199
      %v1288 = vadd.f32 %v909, %v1202
      %v1289 = vadd.f32 %v914, %v1207
      %v1290 = vadd.f32 %v917, %v1210
      %v1291 = vadd.f32 %v922, %v1215
      %v1292 = vadd.f32 %v925, %v1218
      %v1293 = vadd.f32 %v930, %v1223
      %v1294 = vadd.f32 %v933, %v1226
      %v1295 = vadd.f32 %v938, %v1231
      %v1296 = vadd.f32 %v941, %v1234
      %v1297 = vadd.f32 %v946, %v1239
      %v1298 = vadd.f32 %v949, %v1242
      %v1299 = vadd.f32 %v954, %v1247
      %v1300 = vadd.f32 %v957, %v1250
      %v1301 = vadd.f32 %v962, %v1255
      %v1302 = vadd.f32 %v965, %v1258
      %v1303 = vadd.f32 %v970, %v1263
      %v1304 = vadd.f32 %v973, %v1266
      %v1305 = vpack.c.bf16 %v344, %v343
      %v1306 = vpack.c.bf16 %v345, %v345
      %s1307 = scalar_lea.vmem %s2, 6
      %v1308 = vld [vmem:[%s1307] sm:$0x3]
      %v1311 = vrot.slane %v1305, 1
      %v1312 = vsel %vm997, %v1031, %v1311
      %v1313 = vrot.slane %v1306, 1
      %v1314 = vsel %vm997, %v1311, %v1313
      %v1316 = vsel %vm521, %v1312, 0
      %v1319 = vsel %vm521, %v1314, 0
      %v1322 = vand.u32 %v1308, %v579
      %1324 = vmatprep.subr.bf16.mxu0 0
      %1325 = vmatpush1.bf16.msra.mxu0 0
      %1326 = vmatprep.subr.bf16.mxu0 0
      %1327 = vmatpush1.bf16.msra.mxu0 0
      %1328 = vmatprep.subr.bf16.mxu0 0
      %1329 = vmatpush1.bf16.msra.mxu0 0
      %1330 = vmatprep.subr.bf16.mxu0 0
      %1331 = vmatpush1.bf16.msra.mxu0 0
      %1332 = vmatprep.subr.bf16.mxu0 0
      %1333 = vmatpush1.bf16.msra.mxu0 0
      %1334 = vmatprep.subr.bf16.mxu0 0
      %1335 = vmatpush1.bf16.msra.mxu0 0
      %1336 = vmatprep.subr.bf16.mxu0 0
      %1337 = vmatpush1.bf16.msra.mxu0 0
      %1338 = vmatprep.subr.bf16.mxu0 0
      %1339 = vmatpush1.bf16.msra.mxu0 %v1322
      %1340 = vmatprep.subr.bf16.mxu0 0
      %1341 = vmatpush2.bf16.msra.mxu0 0
      %1342 = vmatprep.subr.bf16.mxu0 0
      %1343 = vmatpush2.bf16.msra.mxu0 0
      %1344 = vmatprep.subr.bf16.mxu0 0
      %1345 = vmatpush2.bf16.msra.mxu0 0
      %1346 = vmatprep.subr.bf16.mxu0 0
      %1347 = vmatpush2.bf16.msra.mxu0 0
      %1348 = vmatprep.subr.bf16.mxu0 0
      %1349 = vmatpush2.bf16.msra.mxu0 0
      %1350 = vmatprep.subr.bf16.mxu0 0
      %1351 = vmatpush2.bf16.msra.mxu0 0
      %1352 = vmatprep.subr.bf16.mxu0 0
      %1353 = vmatpush2.bf16.msra.mxu0 0
      %1354 = vmatprep.subr.bf16.mxu0 0
      %1355 = vmatpush2.bf16.msra.mxu0 0
      %1356 = vmatprep.mubr.bf16.mxu0 0
      %1357 = vmatmul.mubr.bf16.gmra.mxu0 %v1039
      %v1358 = vpop.f32.mrf.mxu0
      %v1359 = vadd.f32 0.0, %v1358
      %v1360 = vpop.f32.mrf.mxu0
      %v1361 = vpop.f32.mrf.mxu0
      %v1362 = vadd.f32 0.0, %v1361
      %v1363 = vpop.f32.mrf.mxu0
      %1364 = vmatprep.mubr.bf16.mxu0 0
      %1365 = vmatmul.mubr.bf16.gmra.mxu0 %v1042
      %v1366 = vpop.f32.mrf.mxu0
      %v1367 = vadd.f32 0.0, %v1366
      %v1368 = vpop.f32.mrf.mxu0
      %v1369 = vpop.f32.mrf.mxu0
      %v1370 = vadd.f32 0.0, %v1369
      %v1371 = vpop.f32.mrf.mxu0
      %1372 = vmatprep.mubr.bf16.mxu0 0
      %1373 = vmatmul.mubr.bf16.gmra.mxu0 %v1045
      %v1374 = vpop.f32.mrf.mxu0
      %v1375 = vadd.f32 0.0, %v1374
      %v1376 = vpop.f32.mrf.mxu0
      %v1377 = vpop.f32.mrf.mxu0
      %v1378 = vadd.f32 0.0, %v1377
      %v1379 = vpop.f32.mrf.mxu0
      %1380 = vmatprep.mubr.bf16.mxu0 0
      %1381 = vmatmul.mubr.bf16.gmra.mxu0 %v1048
      %v1382 = vpop.f32.mrf.mxu0
      %v1383 = vadd.f32 0.0, %v1382
      %v1384 = vpop.f32.mrf.mxu0
      %v1385 = vpop.f32.mrf.mxu0
      %v1386 = vadd.f32 0.0, %v1385
      %v1387 = vpop.f32.mrf.mxu0
      %1388 = vmatprep.mubr.bf16.mxu0 0
      %1389 = vmatmul.mubr.bf16.gmra.mxu0 %v1051
      %v1390 = vpop.f32.mrf.mxu0
      %v1391 = vadd.f32 0.0, %v1390
      %v1392 = vpop.f32.mrf.mxu0
      %v1393 = vpop.f32.mrf.mxu0
      %v1394 = vadd.f32 0.0, %v1393
      %v1395 = vpop.f32.mrf.mxu0
      %1396 = vmatprep.mubr.bf16.mxu0 0
      %1397 = vmatmul.mubr.bf16.gmra.mxu0 %v1054
      %v1398 = vpop.f32.mrf.mxu0
      %v1399 = vadd.f32 0.0, %v1398
      %v1400 = vpop.f32.mrf.mxu0
      %v1401 = vpop.f32.mrf.mxu0
      %v1402 = vadd.f32 0.0, %v1401
      %v1403 = vpop.f32.mrf.mxu0
      %1404 = vmatprep.mubr.bf16.mxu0 0
      %1405 = vmatmul.mubr.bf16.gmra.mxu0 %v1057
      %v1406 = vpop.f32.mrf.mxu0
      %v1407 = vadd.f32 0.0, %v1406
      %v1408 = vpop.f32.mrf.mxu0
      %v1409 = vpop.f32.mrf.mxu0
      %v1410 = vadd.f32 0.0, %v1409
      %v1411 = vpop.f32.mrf.mxu0
      %1412 = vmatprep.mubr.bf16.mxu0 0
      %1413 = vmatmul.mubr.bf16.gmra.mxu0 %v1060
      %v1414 = vpop.f32.mrf.mxu0
      %v1415 = vadd.f32 0.0, %v1414
      %v1416 = vpop.f32.mrf.mxu0
      %v1417 = vpop.f32.mrf.mxu0
      %v1418 = vadd.f32 0.0, %v1417
      %v1419 = vpop.f32.mrf.mxu0
      %1420 = vmatprep.mubr.bf16.mxu0 0
      %1421 = vmatmul.mubr.bf16.gmra.mxu0 %v1063
      %v1422 = vpop.f32.mrf.mxu0
      %v1423 = vadd.f32 0.0, %v1422
      %v1424 = vpop.f32.mrf.mxu0
      %v1425 = vpop.f32.mrf.mxu0
      %v1426 = vadd.f32 0.0, %v1425
      %v1427 = vpop.f32.mrf.mxu0
      %1428 = vmatprep.mubr.bf16.mxu0 0
      %1429 = vmatmul.mubr.bf16.gmra.mxu0 %v1066
      %v1430 = vpop.f32.mrf.mxu0
      %v1431 = vadd.f32 0.0, %v1430
      %v1432 = vpop.f32.mrf.mxu0
      %v1433 = vpop.f32.mrf.mxu0
      %v1434 = vadd.f32 0.0, %v1433
      %v1435 = vpop.f32.mrf.mxu0
      %1436 = vmatprep.mubr.bf16.mxu0 0
      %1437 = vmatmul.mubr.bf16.gmra.mxu0 %v1069
      %v1438 = vpop.f32.mrf.mxu0
      %v1439 = vadd.f32 0.0, %v1438
      %v1440 = vpop.f32.mrf.mxu0
      %v1441 = vpop.f32.mrf.mxu0
      %v1442 = vadd.f32 0.0, %v1441
      %v1443 = vpop.f32.mrf.mxu0
      %1444 = vmatprep.mubr.bf16.mxu0 0
      %1445 = vmatmul.mubr.bf16.gmra.mxu0 %v1072
      %v1446 = vpop.f32.mrf.mxu0
      %v1447 = vadd.f32 0.0, %v1446
      %v1448 = vpop.f32.mrf.mxu0
      %v1449 = vpop.f32.mrf.mxu0
      %v1450 = vadd.f32 0.0, %v1449
      %v1451 = vpop.f32.mrf.mxu0
      %1452 = vmatprep.mubr.bf16.mxu0 0
      %1453 = vmatmul.mubr.bf16.gmra.mxu0 %v1075
      %v1454 = vpop.f32.mrf.mxu0
      %v1455 = vadd.f32 0.0, %v1454
      %v1456 = vpop.f32.mrf.mxu0
      %v1457 = vpop.f32.mrf.mxu0
      %v1458 = vadd.f32 0.0, %v1457
      %v1459 = vpop.f32.mrf.mxu0
      %1460 = vmatprep.mubr.bf16.mxu0 0
      %1461 = vmatmul.mubr.bf16.gmra.mxu0 %v1078
      %v1462 = vpop.f32.mrf.mxu0
      %v1463 = vadd.f32 0.0, %v1462
      %v1464 = vpop.f32.mrf.mxu0
      %v1465 = vpop.f32.mrf.mxu0
      %v1466 = vadd.f32 0.0, %v1465
      %v1467 = vpop.f32.mrf.mxu0
      %1468 = vmatprep.mubr.bf16.mxu0 0
      %1469 = vmatmul.mubr.bf16.gmra.mxu0 %v1081
      %v1470 = vpop.f32.mrf.mxu0
      %v1471 = vadd.f32 0.0, %v1470
      %v1472 = vpop.f32.mrf.mxu0
      %v1473 = vpop.f32.mrf.mxu0
      %v1474 = vadd.f32 0.0, %v1473
      %v1475 = vpop.f32.mrf.mxu0
      %1476 = vmatprep.mubr.bf16.mxu0 0
      %1477 = vmatmul.mubr.bf16.gmra.mxu0 %v1084
      %v1478 = vpop.f32.mrf.mxu0
      %v1479 = vadd.f32 0.0, %v1478
      %v1480 = vpop.f32.mrf.mxu0
      %v1481 = vpop.f32.mrf.mxu0
      %v1482 = vadd.f32 0.0, %v1481
      %v1483 = vpop.f32.mrf.mxu0
      %1484 = vmatprep.mubr.bf16.mxu0 0
      %1485 = vmatmul.mubr.bf16.gmra.mxu0 %v1316
      %v1486 = vpop.f32.mrf.mxu0
      %v1487 = vadd.f32 0.0, %v1486
      %v1488 = vpop.f32.mrf.mxu0
      %v1489 = vpop.f32.mrf.mxu0
      %v1490 = vadd.f32 0.0, %v1489
      %v1491 = vpop.f32.mrf.mxu0
      %1492 = vmatprep.mubr.bf16.mxu0 0
      %1493 = vmatmul.mubr.bf16.gmra.mxu0 %v1319
      %v1494 = vpop.f32.mrf.mxu0
      %v1495 = vadd.f32 0.0, %v1494
      %v1496 = vpop.f32.mrf.mxu0
      %v1497 = vpop.f32.mrf.mxu0
      %v1498 = vadd.f32 0.0, %v1497
      %v1499 = vpop.f32.mrf.mxu0
      %1500 = vdwg.mxu0
      %v1501 = vadd.f32 %v1269, %v1359
      %v1502 = vadd.f32 %v1270, %v1362
      %v1503 = vadd.f32 %v1271, %v1367
      %v1504 = vadd.f32 %v1272, %v1370
      %v1505 = vadd.f32 %v1273, %v1375
      %v1506 = vadd.f32 %v1274, %v1378
      %v1507 = vadd.f32 %v1275, %v1383
      %v1508 = vadd.f32 %v1276, %v1386
      %v1509 = vadd.f32 %v1277, %v1391
      %v1510 = vadd.f32 %v1278, %v1394
      %v1511 = vadd.f32 %v1279, %v1399
      %v1512 = vadd.f32 %v1280, %v1402
      %v1513 = vadd.f32 %v1281, %v1407
      %v1514 = vadd.f32 %v1282, %v1410
      %v1515 = vadd.f32 %v1283, %v1415
      %v1516 = vadd.f32 %v1284, %v1418
      %v1517 = vadd.f32 %v1285, %v1423
      %v1518 = vadd.f32 %v1286, %v1426
      %v1519 = vadd.f32 %v1287, %v1431
      %v1520 = vadd.f32 %v1288, %v1434
      %v1521 = vadd.f32 %v1289, %v1439
      %v1522 = vadd.f32 %v1290, %v1442
      %v1523 = vadd.f32 %v1291, %v1447
      %v1524 = vadd.f32 %v1292, %v1450
      %v1525 = vadd.f32 %v1293, %v1455
      %v1526 = vadd.f32 %v1294, %v1458
      %v1527 = vadd.f32 %v1295, %v1463
      %v1528 = vadd.f32 %v1296, %v1466
      %v1529 = vadd.f32 %v1297, %v1471
      %v1530 = vadd.f32 %v1298, %v1474
      %v1531 = vadd.f32 %v1299, %v1479
      %v1532 = vadd.f32 %v1300, %v1482
      %v1533 = vadd.f32 %v1301, %v1487
      %v1534 = vadd.f32 %v1302, %v1490
      %v1535 = vadd.f32 %v1303, %v1495
      %v1536 = vadd.f32 %v1304, %v1498
      %s1537 = scalar_lea.vmem %s2, 8
      %v1538 = vld [vmem:[%s1537] sm:$0x3]
      %vm1539 = vsmask.f32 6400
      %v1540 = vrot.slane %v385, 1
      %v1541 = vrot.slane %v381, 2
      %v1542 = vor.u32 %v1540, %v1541
      %v1543 = vrot.slane %v393, 1
      %v1544 = vrot.slane %v389, 2
      %v1545 = vor.u32 %v1543, %v1544
      %v1546 = vsel %vm1539, %v1542, %v1545
      %v1547 = vrot.slane %v401, 1
      %v1548 = vrot.slane %v397, 2
      %v1549 = vor.u32 %v1547, %v1548
      %v1550 = vsel %vm1539, %v1545, %v1549
      %v1551 = vrot.slane %v409, 1
      %v1552 = vrot.slane %v405, 2
      %v1553 = vor.u32 %v1551, %v1552
      %v1554 = vsel %vm1539, %v1549, %v1553
      %v1555 = vrot.slane %v417, 1
      %v1556 = vrot.slane %v413, 2
      %v1557 = vor.u32 %v1555, %v1556
      %v1558 = vsel %vm1539, %v1553, %v1557
      %v1559 = vrot.slane %v425, 1
      %v1560 = vrot.slane %v421, 2
      %v1561 = vor.u32 %v1559, %v1560
      %v1562 = vsel %vm1539, %v1557, %v1561
      %v1563 = vrot.slane %v433, 1
      %v1564 = vrot.slane %v429, 2
      %v1565 = vor.u32 %v1563, %v1564
      %v1566 = vsel %vm1539, %v1561, %v1565
      %v1567 = vrot.slane %v441, 1
      %v1568 = vrot.slane %v437, 2
      %v1569 = vor.u32 %v1567, %v1568
      %v1570 = vsel %vm1539, %v1565, %v1569
      %v1571 = vrot.slane %v449, 1
      %v1572 = vrot.slane %v445, 2
      %v1573 = vor.u32 %v1571, %v1572
      %v1574 = vsel %vm1539, %v1569, %v1573
      %v1575 = vrot.slane %v457, 1
      %v1576 = vrot.slane %v453, 2
      %v1577 = vor.u32 %v1575, %v1576
      %v1578 = vsel %vm1539, %v1573, %v1577
      %v1579 = vrot.slane %v465, 1
      %v1580 = vrot.slane %v461, 2
      %v1581 = vor.u32 %v1579, %v1580
      %v1582 = vsel %vm1539, %v1577, %v1581
      %v1583 = vrot.slane %v473, 1
      %v1584 = vrot.slane %v469, 2
      %v1585 = vor.u32 %v1583, %v1584
      %v1586 = vsel %vm1539, %v1581, %v1585
      %v1587 = vrot.slane %v481, 1
      %v1588 = vrot.slane %v477, 2
      %v1589 = vor.u32 %v1587, %v1588
      %v1590 = vsel %vm1539, %v1585, %v1589
      %v1591 = vrot.slane %v489, 1
      %v1592 = vrot.slane %v485, 2
      %v1593 = vor.u32 %v1591, %v1592
      %v1594 = vsel %vm1539, %v1589, %v1593
      %v1595 = vrot.slane %v497, 1
      %v1596 = vrot.slane %v493, 2
      %v1597 = vor.u32 %v1595, %v1596
      %v1598 = vsel %vm1539, %v1593, %v1597
      %v1599 = vrot.slane %v505, 1
      %v1600 = vrot.slane %v501, 2
      %v1601 = vor.u32 %v1599, %v1600
      %v1602 = vsel %vm1539, %v1597, %v1601
      %v1603 = vrot.slane %v513, 1
      %v1604 = vrot.slane %v509, 2
      %v1605 = vor.u32 %v1603, %v1604
      %v1606 = vsel %vm1539, %v1601, %v1605
      %v1608 = vshrl.u32 %v1305, 16
      %v1610 = vrot.slane %v1608, 1
      %v1611 = vshll.u32 %v1305, 16
      %v1613 = vrot.slane %v1611, 2
      %v1614 = vor.u32 %v1610, %v1613
      %v1615 = vsel %vm1539, %v1605, %v1614
      %v1617 = vshrl.u32 %v1306, 16
      %v1619 = vrot.slane %v1617, 1
      %v1620 = vshll.u32 %v1306, 16
      %v1622 = vrot.slane %v1620, 2
      %v1623 = vor.u32 %v1619, %v1622
      %v1624 = vsel %vm1539, %v1614, %v1623
      %v1626 = vsel %vm521, %v1546, 0
      %v1629 = vsel %vm521, %v1550, 0
      %v1632 = vsel %vm521, %v1554, 0
      %v1635 = vsel %vm521, %v1558, 0
      %v1638 = vsel %vm521, %v1562, 0
      %v1641 = vsel %vm521, %v1566, 0
      %v1644 = vsel %vm521, %v1570, 0
      %v1647 = vsel %vm521, %v1574, 0
      %v1650 = vsel %vm521, %v1578, 0
      %v1653 = vsel %vm521, %v1582, 0
      %v1656 = vsel %vm521, %v1586, 0
      %v1659 = vsel %vm521, %v1590, 0
      %v1662 = vsel %vm521, %v1594, 0
      %v1665 = vsel %vm521, %v1598, 0
      %v1668 = vsel %vm521, %v1602, 0
      %v1671 = vsel %vm521, %v1606, 0
      %v1674 = vsel %vm521, %v1615, 0
      %v1677 = vsel %vm521, %v1624, 0
      %v1680 = vand.u32 %v1538, %v579
      %1682 = vmatprep.subr.bf16.mxu0 0
      %1683 = vmatpush1.bf16.msra.mxu0 0
      %1684 = vmatprep.subr.bf16.mxu0 0
      %1685 = vmatpush1.bf16.msra.mxu0 0
      %1686 = vmatprep.subr.bf16.mxu0 0
      %1687 = vmatpush1.bf16.msra.mxu0 0
      %1688 = vmatprep.subr.bf16.mxu0 0
      %1689 = vmatpush1.bf16.msra.mxu0 0
      %1690 = vmatprep.subr.bf16.mxu0 0
      %1691 = vmatpush1.bf16.msra.mxu0 0
      %1692 = vmatprep.subr.bf16.mxu0 0
      %1693 = vmatpush1.bf16.msra.mxu0 0
      %1694 = vmatprep.subr.bf16.mxu0 0
      %1695 = vmatpush1.bf16.msra.mxu0 0
      %1696 = vmatprep.subr.bf16.mxu0 0
      %1697 = vmatpush1.bf16.msra.mxu0 %v1680
      %1698 = vmatprep.subr.bf16.mxu0 0
      %1699 = vmatpush2.bf16.msra.mxu0 0
      %1700 = vmatprep.subr.bf16.mxu0 0
      %1701 = vmatpush2.bf16.msra.mxu0 0
      %1702 = vmatprep.subr.bf16.mxu0 0
      %1703 = vmatpush2.bf16.msra.mxu0 0
      %1704 = vmatprep.subr.bf16.mxu0 0
      %1705 = vmatpush2.bf16.msra.mxu0 0
      %1706 = vmatprep.subr.bf16.mxu0 0
      %1707 = vmatpush2.bf16.msra.mxu0 0
      %1708 = vmatprep.subr.bf16.mxu0 0
      %1709 = vmatpush2.bf16.msra.mxu0 0
      %1710 = vmatprep.subr.bf16.mxu0 0
      %1711 = vmatpush2.bf16.msra.mxu0 0
      %1712 = vmatprep.subr.bf16.mxu0 0
      %1713 = vmatpush2.bf16.msra.mxu0 0
      %1714 = vmatprep.mubr.bf16.mxu0 0
      %1715 = vmatmul.mubr.bf16.gmra.mxu0 %v1626
      %v1716 = vpop.f32.mrf.mxu0
      %v1717 = vadd.f32 0.0, %v1716
      %v1718 = vpop.f32.mrf.mxu0
      %v1719 = vpop.f32.mrf.mxu0
      %v1720 = vadd.f32 0.0, %v1719
      %v1721 = vpop.f32.mrf.mxu0
      %1722 = vmatprep.mubr.bf16.mxu0 0
      %1723 = vmatmul.mubr.bf16.gmra.mxu0 %v1629
      %v1724 = vpop.f32.mrf.mxu0
      %v1725 = vadd.f32 0.0, %v1724
      %v1726 = vpop.f32.mrf.mxu0
      %v1727 = vpop.f32.mrf.mxu0
      %v1728 = vadd.f32 0.0, %v1727
      %v1729 = vpop.f32.mrf.mxu0
      %1730 = vmatprep.mubr.bf16.mxu0 0
      %1731 = vmatmul.mubr.bf16.gmra.mxu0 %v1632
      %v1732 = vpop.f32.mrf.mxu0
      %v1733 = vadd.f32 0.0, %v1732
      %v1734 = vpop.f32.mrf.mxu0
      %v1735 = vpop.f32.mrf.mxu0
      %v1736 = vadd.f32 0.0, %v1735
      %v1737 = vpop.f32.mrf.mxu0
      %1738 = vmatprep.mubr.bf16.mxu0 0
      %1739 = vmatmul.mubr.bf16.gmra.mxu0 %v1635
      %v1740 = vpop.f32.mrf.mxu0
      %v1741 = vadd.f32 0.0, %v1740
      %v1742 = vpop.f32.mrf.mxu0
      %v1743 = vpop.f32.mrf.mxu0
      %v1744 = vadd.f32 0.0, %v1743
      %v1745 = vpop.f32.mrf.mxu0
      %1746 = vmatprep.mubr.bf16.mxu0 0
      %1747 = vmatmul.mubr.bf16.gmra.mxu0 %v1638
      %v1748 = vpop.f32.mrf.mxu0
      %v1749 = vadd.f32 0.0, %v1748
      %v1750 = vpop.f32.mrf.mxu0
      %v1751 = vpop.f32.mrf.mxu0
      %v1752 = vadd.f32 0.0, %v1751
      %v1753 = vpop.f32.mrf.mxu0
      %1754 = vmatprep.mubr.bf16.mxu0 0
      %1755 = vmatmul.mubr.bf16.gmra.mxu0 %v1641
      %v1756 = vpop.f32.mrf.mxu0
      %v1757 = vadd.f32 0.0, %v1756
      %v1758 = vpop.f32.mrf.mxu0
      %v1759 = vpop.f32.mrf.mxu0
      %v1760 = vadd.f32 0.0, %v1759
      %v1761 = vpop.f32.mrf.mxu0
      %1762 = vmatprep.mubr.bf16.mxu0 0
      %1763 = vmatmul.mubr.bf16.gmra.mxu0 %v1644
      %v1764 = vpop.f32.mrf.mxu0
      %v1765 = vadd.f32 0.0, %v1764
      %v1766 = vpop.f32.mrf.mxu0
      %v1767 = vpop.f32.mrf.mxu0
      %v1768 = vadd.f32 0.0, %v1767
      %v1769 = vpop.f32.mrf.mxu0
      %1770 = vmatprep.mubr.bf16.mxu0 0
      %1771 = vmatmul.mubr.bf16.gmra.mxu0 %v1647
      %v1772 = vpop.f32.mrf.mxu0
      %v1773 = vadd.f32 0.0, %v1772
      %v1774 = vpop.f32.mrf.mxu0
      %v1775 = vpop.f32.mrf.mxu0
      %v1776 = vadd.f32 0.0, %v1775
      %v1777 = vpop.f32.mrf.mxu0
      %1778 = vmatprep.mubr.bf16.mxu0 0
      %1779 = vmatmul.mubr.bf16.gmra.mxu0 %v1650
      %v1780 = vpop.f32.mrf.mxu0
      %v1781 = vadd.f32 0.0, %v1780
      %v1782 = vpop.f32.mrf.mxu0
      %v1783 = vpop.f32.mrf.mxu0
      %v1784 = vadd.f32 0.0, %v1783
      %v1785 = vpop.f32.mrf.mxu0
      %1786 = vmatprep.mubr.bf16.mxu0 0
      %1787 = vmatmul.mubr.bf16.gmra.mxu0 %v1653
      %v1788 = vpop.f32.mrf.mxu0
      %v1789 = vadd.f32 0.0, %v1788
      %v1790 = vpop.f32.mrf.mxu0
      %v1791 = vpop.f32.mrf.mxu0
      %v1792 = vadd.f32 0.0, %v1791
      %v1793 = vpop.f32.mrf.mxu0
      %1794 = vmatprep.mubr.bf16.mxu0 0
      %1795 = vmatmul.mubr.bf16.gmra.mxu0 %v1656
      %v1796 = vpop.f32.mrf.mxu0
      %v1797 = vadd.f32 0.0, %v1796
      %v1798 = vpop.f32.mrf.mxu0
      %v1799 = vpop.f32.mrf.mxu0
      %v1800 = vadd.f32 0.0, %v1799
      %v1801 = vpop.f32.mrf.mxu0
      %1802 = vmatprep.mubr.bf16.mxu0 0
      %1803 = vmatmul.mubr.bf16.gmra.mxu0 %v1659
      %v1804 = vpop.f32.mrf.mxu0
      %v1805 = vadd.f32 0.0, %v1804
      %v1806 = vpop.f32.mrf.mxu0
      %v1807 = vpop.f32.mrf.mxu0
      %v1808 = vadd.f32 0.0, %v1807
      %v1809 = vpop.f32.mrf.mxu0
      %1810 = vmatprep.mubr.bf16.mxu0 0
      %1811 = vmatmul.mubr.bf16.gmra.mxu0 %v1662
      %v1812 = vpop.f32.mrf.mxu0
      %v1813 = vadd.f32 0.0, %v1812
      %v1814 = vpop.f32.mrf.mxu0
      %v1815 = vpop.f32.mrf.mxu0
      %v1816 = vadd.f32 0.0, %v1815
      %v1817 = vpop.f32.mrf.mxu0
      %1818 = vmatprep.mubr.bf16.mxu0 0
      %1819 = vmatmul.mubr.bf16.gmra.mxu0 %v1665
      %v1820 = vpop.f32.mrf.mxu0
      %v1821 = vadd.f32 0.0, %v1820
      %v1822 = vpop.f32.mrf.mxu0
      %v1823 = vpop.f32.mrf.mxu0
      %v1824 = vadd.f32 0.0, %v1823
      %v1825 = vpop.f32.mrf.mxu0
      %1826 = vmatprep.mubr.bf16.mxu0 0
      %1827 = vmatmul.mubr.bf16.gmra.mxu0 %v1668
      %v1828 = vpop.f32.mrf.mxu0
      %v1829 = vadd.f32 0.0, %v1828
      %v1830 = vpop.f32.mrf.mxu0
      %v1831 = vpop.f32.mrf.mxu0
      %v1832 = vadd.f32 0.0, %v1831
      %v1833 = vpop.f32.mrf.mxu0
      %1834 = vmatprep.mubr.bf16.mxu0 0
      %1835 = vmatmul.mubr.bf16.gmra.mxu0 %v1671
      %v1836 = vpop.f32.mrf.mxu0
      %v1837 = vadd.f32 0.0, %v1836
      %v1838 = vpop.f32.mrf.mxu0
      %v1839 = vpop.f32.mrf.mxu0
      %v1840 = vadd.f32 0.0, %v1839
      %v1841 = vpop.f32.mrf.mxu0
      %1842 = vmatprep.mubr.bf16.mxu0 0
      %1843 = vmatmul.mubr.bf16.gmra.mxu0 %v1674
      %v1844 = vpop.f32.mrf.mxu0
      %v1845 = vadd.f32 0.0, %v1844
      %v1846 = vpop.f32.mrf.mxu0
      %v1847 = vpop.f32.mrf.mxu0
      %v1848 = vadd.f32 0.0, %v1847
      %v1849 = vpop.f32.mrf.mxu0
      %1850 = vmatprep.mubr.bf16.mxu0 0
      %1851 = vmatmul.mubr.bf16.gmra.mxu0 %v1677
      %v1852 = vpop.f32.mrf.mxu0
      %v1853 = vadd.f32 0.0, %v1852
      %v1854 = vpop.f32.mrf.mxu0
      %v1855 = vpop.f32.mrf.mxu0
      %v1856 = vadd.f32 0.0, %v1855
      %v1857 = vpop.f32.mrf.mxu0
      %1858 = vdwg.mxu0
      %v1859 = vadd.f32 %v1501, %v1717
      %v1860 = vadd.f32 %v1502, %v1720
      %v1861 = vadd.f32 %v1503, %v1725
      %v1862 = vadd.f32 %v1504, %v1728
      %v1863 = vadd.f32 %v1505, %v1733
      %v1864 = vadd.f32 %v1506, %v1736
      %v1865 = vadd.f32 %v1507, %v1741
      %v1866 = vadd.f32 %v1508, %v1744
      %v1867 = vadd.f32 %v1509, %v1749
      %v1868 = vadd.f32 %v1510, %v1752
      %v1869 = vadd.f32 %v1511, %v1757
      %v1870 = vadd.f32 %v1512, %v1760
      %v1871 = vadd.f32 %v1513, %v1765
      %v1872 = vadd.f32 %v1514, %v1768
      %v1873 = vadd.f32 %v1515, %v1773
      %v1874 = vadd.f32 %v1516, %v1776
      %v1875 = vadd.f32 %v1517, %v1781
      %v1876 = vadd.f32 %v1518, %v1784
      %v1877 = vadd.f32 %v1519, %v1789
      %v1878 = vadd.f32 %v1520, %v1792
      %v1879 = vadd.f32 %v1521, %v1797
      %v1880 = vadd.f32 %v1522, %v1800
      %v1881 = vadd.f32 %v1523, %v1805
      %v1882 = vadd.f32 %v1524, %v1808
      %v1883 = vadd.f32 %v1525, %v1813
      %v1884 = vadd.f32 %v1526, %v1816
      %v1885 = vadd.f32 %v1527, %v1821
      %v1886 = vadd.f32 %v1528, %v1824
      %v1887 = vadd.f32 %v1529, %v1829
      %v1888 = vadd.f32 %v1530, %v1832
      %v1889 = vadd.f32 %v1531, %v1837
      %v1890 = vadd.f32 %v1532, %v1840
      %v1891 = vadd.f32 %v1533, %v1845
      %v1892 = vadd.f32 %v1534, %v1848
      %v1893 = vadd.f32 %v1535, %v1853
      %v1894 = vadd.f32 %v1536, %v1856
      %s1895 = scalar_lea.vmem %s2, 10
      %v1896 = vld [vmem:[%s1895] sm:$0x3]
      %vm1897 = vcmask 1045504
      %v1898 = vrot.slane %v351, 2
      %v1899 = vrot.slane %v352, 2
      %v1900 = vsel %vm1897, %v1898, %v1899
      %v1901 = vrot.slane %v353, 2
      %v1902 = vsel %vm1897, %v1899, %v1901
      %v1903 = vrot.slane %v354, 2
      %v1904 = vsel %vm1897, %v1901, %v1903
      %v1905 = vrot.slane %v355, 2
      %v1906 = vsel %vm1897, %v1903, %v1905
      %v1907 = vrot.slane %v356, 2
      %v1908 = vsel %vm1897, %v1905, %v1907
      %v1909 = vrot.slane %v357, 2
      %v1910 = vsel %vm1897, %v1907, %v1909
      %v1911 = vrot.slane %v358, 2
      %v1912 = vsel %vm1897, %v1909, %v1911
      %v1913 = vrot.slane %v359, 2
      %v1914 = vsel %vm1897, %v1911, %v1913
      %v1915 = vrot.slane %v360, 2
      %v1916 = vsel %vm1897, %v1913, %v1915
      %v1917 = vrot.slane %v361, 2
      %v1918 = vsel %vm1897, %v1915, %v1917
      %v1919 = vrot.slane %v362, 2
      %v1920 = vsel %vm1897, %v1917, %v1919
      %v1921 = vrot.slane %v363, 2
      %v1922 = vsel %vm1897, %v1919, %v1921
      %v1923 = vrot.slane %v364, 2
      %v1924 = vsel %vm1897, %v1921, %v1923
      %v1925 = vrot.slane %v365, 2
      %v1926 = vsel %vm1897, %v1923, %v1925
      %v1927 = vrot.slane %v366, 2
      %v1928 = vsel %vm1897, %v1925, %v1927
      %v1929 = vrot.slane %v367, 2
      %v1930 = vsel %vm1897, %v1927, %v1929
      %v1931 = vrot.slane %v1305, 2
      %v1932 = vsel %vm1897, %v1929, %v1931
      %v1933 = vrot.slane %v1306, 2
      %v1934 = vsel %vm1897, %v1931, %v1933
      %v1936 = vsel %vm521, %v1900, 0
      %v1939 = vsel %vm521, %v1902, 0
      %v1942 = vsel %vm521, %v1904, 0
      %v1945 = vsel %vm521, %v1906, 0
      %v1948 = vsel %vm521, %v1908, 0
      %v1951 = vsel %vm521, %v1910, 0
      %v1954 = vsel %vm521, %v1912, 0
      %v1957 = vsel %vm521, %v1914, 0
      %v1960 = vsel %vm521, %v1916, 0
      %v1963 = vsel %vm521, %v1918, 0
      %v1966 = vsel %vm521, %v1920, 0
      %v1969 = vsel %vm521, %v1922, 0
      %v1972 = vsel %vm521, %v1924, 0
      %v1975 = vsel %vm521, %v1926, 0
      %v1978 = vsel %vm521, %v1928, 0
      %v1981 = vsel %vm521, %v1930, 0
      %v1984 = vsel %vm521, %v1932, 0
      %v1987 = vsel %vm521, %v1934, 0
      %v1990 = vand.u32 %v1896, %v579
      %1992 = vmatprep.subr.bf16.mxu0 0
      %1993 = vmatpush1.bf16.msra.mxu0 0
      %1994 = vmatprep.subr.bf16.mxu0 0
      %1995 = vmatpush1.bf16.msra.mxu0 0
      %1996 = vmatprep.subr.bf16.mxu0 0
      %1997 = vmatpush1.bf16.msra.mxu0 0
      %1998 = vmatprep.subr.bf16.mxu0 0
      %1999 = vmatpush1.bf16.msra.mxu0 0
      %2000 = vmatprep.subr.bf16.mxu0 0
      %2001 = vmatpush1.bf16.msra.mxu0 0
      %2002 = vmatprep.subr.bf16.mxu0 0
      %2003 = vmatpush1.bf16.msra.mxu0 0
      %2004 = vmatprep.subr.bf16.mxu0 0
      %2005 = vmatpush1.bf16.msra.mxu0 0
      %2006 = vmatprep.subr.bf16.mxu0 0
      %2007 = vmatpush1.bf16.msra.mxu0 %v1990
      %2008 = vmatprep.subr.bf16.mxu0 0
      %2009 = vmatpush2.bf16.msra.mxu0 0
      %2010 = vmatprep.subr.bf16.mxu0 0
      %2011 = vmatpush2.bf16.msra.mxu0 0
      %2012 = vmatprep.subr.bf16.mxu0 0
      %2013 = vmatpush2.bf16.msra.mxu0 0
      %2014 = vmatprep.subr.bf16.mxu0 0
      %2015 = vmatpush2.bf16.msra.mxu0 0
      %2016 = vmatprep.subr.bf16.mxu0 0
      %2017 = vmatpush2.bf16.msra.mxu0 0
      %2018 = vmatprep.subr.bf16.mxu0 0
      %2019 = vmatpush2.bf16.msra.mxu0 0
      %2020 = vmatprep.subr.bf16.mxu0 0
      %2021 = vmatpush2.bf16.msra.mxu0 0
      %2022 = vmatprep.subr.bf16.mxu0 0
      %2023 = vmatpush2.bf16.msra.mxu0 0
      %2024 = vmatprep.mubr.bf16.mxu0 0
      %2025 = vmatmul.mubr.bf16.gmra.mxu0 %v1936
      %v2026 = vpop.f32.mrf.mxu0
      %v2027 = vadd.f32 0.0, %v2026
      %v2028 = vpop.f32.mrf.mxu0
      %v2029 = vpop.f32.mrf.mxu0
      %v2030 = vadd.f32 0.0, %v2029
      %v2031 = vpop.f32.mrf.mxu0
      %2032 = vmatprep.mubr.bf16.mxu0 0
      %2033 = vmatmul.mubr.bf16.gmra.mxu0 %v1939
      %v2034 = vpop.f32.mrf.mxu0
      %v2035 = vadd.f32 0.0, %v2034
      %v2036 = vpop.f32.mrf.mxu0
      %v2037 = vpop.f32.mrf.mxu0
      %v2038 = vadd.f32 0.0, %v2037
      %v2039 = vpop.f32.mrf.mxu0
      %2040 = vmatprep.mubr.bf16.mxu0 0
      %2041 = vmatmul.mubr.bf16.gmra.mxu0 %v1942
      %v2042 = vpop.f32.mrf.mxu0
      %v2043 = vadd.f32 0.0, %v2042
      %v2044 = vpop.f32.mrf.mxu0
      %v2045 = vpop.f32.mrf.mxu0
      %v2046 = vadd.f32 0.0, %v2045
      %v2047 = vpop.f32.mrf.mxu0
      %2048 = vmatprep.mubr.bf16.mxu0 0
      %2049 = vmatmul.mubr.bf16.gmra.mxu0 %v1945
      %v2050 = vpop.f32.mrf.mxu0
      %v2051 = vadd.f32 0.0, %v2050
      %v2052 = vpop.f32.mrf.mxu0
      %v2053 = vpop.f32.mrf.mxu0
      %v2054 = vadd.f32 0.0, %v2053
      %v2055 = vpop.f32.mrf.mxu0
      %2056 = vmatprep.mubr.bf16.mxu0 0
      %2057 = vmatmul.mubr.bf16.gmra.mxu0 %v1948
      %v2058 = vpop.f32.mrf.mxu0
      %v2059 = vadd.f32 0.0, %v2058
      %v2060 = vpop.f32.mrf.mxu0
      %v2061 = vpop.f32.mrf.mxu0
      %v2062 = vadd.f32 0.0, %v2061
      %v2063 = vpop.f32.mrf.mxu0
      %2064 = vmatprep.mubr.bf16.mxu0 0
      %2065 = vmatmul.mubr.bf16.gmra.mxu0 %v1951
      %v2066 = vpop.f32.mrf.mxu0
      %v2067 = vadd.f32 0.0, %v2066
      %v2068 = vpop.f32.mrf.mxu0
      %v2069 = vpop.f32.mrf.mxu0
      %v2070 = vadd.f32 0.0, %v2069
      %v2071 = vpop.f32.mrf.mxu0
      %2072 = vmatprep.mubr.bf16.mxu0 0
      %2073 = vmatmul.mubr.bf16.gmra.mxu0 %v1954
      %v2074 = vpop.f32.mrf.mxu0
      %v2075 = vadd.f32 0.0, %v2074
      %v2076 = vpop.f32.mrf.mxu0
      %v2077 = vpop.f32.mrf.mxu0
      %v2078 = vadd.f32 0.0, %v2077
      %v2079 = vpop.f32.mrf.mxu0
      %2080 = vmatprep.mubr.bf16.mxu0 0
      %2081 = vmatmul.mubr.bf16.gmra.mxu0 %v1957
      %v2082 = vpop.f32.mrf.mxu0
      %v2083 = vadd.f32 0.0, %v2082
      %v2084 = vpop.f32.mrf.mxu0
      %v2085 = vpop.f32.mrf.mxu0
      %v2086 = vadd.f32 0.0, %v2085
      %v2087 = vpop.f32.mrf.mxu0
      %2088 = vmatprep.mubr.bf16.mxu0 0
      %2089 = vmatmul.mubr.bf16.gmra.mxu0 %v1960
      %v2090 = vpop.f32.mrf.mxu0
      %v2091 = vadd.f32 0.0, %v2090
      %v2092 = vpop.f32.mrf.mxu0
      %v2093 = vpop.f32.mrf.mxu0
      %v2094 = vadd.f32 0.0, %v2093
      %v2095 = vpop.f32.mrf.mxu0
      %2096 = vmatprep.mubr.bf16.mxu0 0
      %2097 = vmatmul.mubr.bf16.gmra.mxu0 %v1963
      %v2098 = vpop.f32.mrf.mxu0
      %v2099 = vadd.f32 0.0, %v2098
      %v2100 = vpop.f32.mrf.mxu0
      %v2101 = vpop.f32.mrf.mxu0
      %v2102 = vadd.f32 0.0, %v2101
      %v2103 = vpop.f32.mrf.mxu0
      %2104 = vmatprep.mubr.bf16.mxu0 0
      %2105 = vmatmul.mubr.bf16.gmra.mxu0 %v1966
      %v2106 = vpop.f32.mrf.mxu0
      %v2107 = vadd.f32 0.0, %v2106
      %v2108 = vpop.f32.mrf.mxu0
      %v2109 = vpop.f32.mrf.mxu0
      %v2110 = vadd.f32 0.0, %v2109
      %v2111 = vpop.f32.mrf.mxu0
      %2112 = vmatprep.mubr.bf16.mxu0 0
      %2113 = vmatmul.mubr.bf16.gmra.mxu0 %v1969
      %v2114 = vpop.f32.mrf.mxu0
      %v2115 = vadd.f32 0.0, %v2114
      %v2116 = vpop.f32.mrf.mxu0
      %v2117 = vpop.f32.mrf.mxu0
      %v2118 = vadd.f32 0.0, %v2117
      %v2119 = vpop.f32.mrf.mxu0
      %2120 = vmatprep.mubr.bf16.mxu0 0
      %2121 = vmatmul.mubr.bf16.gmra.mxu0 %v1972
      %v2122 = vpop.f32.mrf.mxu0
      %v2123 = vadd.f32 0.0, %v2122
      %v2124 = vpop.f32.mrf.mxu0
      %v2125 = vpop.f32.mrf.mxu0
      %v2126 = vadd.f32 0.0, %v2125
      %v2127 = vpop.f32.mrf.mxu0
      %2128 = vmatprep.mubr.bf16.mxu0 0
      %2129 = vmatmul.mubr.bf16.gmra.mxu0 %v1975
      %v2130 = vpop.f32.mrf.mxu0
      %v2131 = vadd.f32 0.0, %v2130
      %v2132 = vpop.f32.mrf.mxu0
      %v2133 = vpop.f32.mrf.mxu0
      %v2134 = vadd.f32 0.0, %v2133
      %v2135 = vpop.f32.mrf.mxu0
      %2136 = vmatprep.mubr.bf16.mxu0 0
      %2137 = vmatmul.mubr.bf16.gmra.mxu0 %v1978
      %v2138 = vpop.f32.mrf.mxu0
      %v2139 = vadd.f32 0.0, %v2138
      %v2140 = vpop.f32.mrf.mxu0
      %v2141 = vpop.f32.mrf.mxu0
      %v2142 = vadd.f32 0.0, %v2141
      %v2143 = vpop.f32.mrf.mxu0
      %2144 = vmatprep.mubr.bf16.mxu0 0
      %2145 = vmatmul.mubr.bf16.gmra.mxu0 %v1981
      %v2146 = vpop.f32.mrf.mxu0
      %v2147 = vadd.f32 0.0, %v2146
      %v2148 = vpop.f32.mrf.mxu0
      %v2149 = vpop.f32.mrf.mxu0
      %v2150 = vadd.f32 0.0, %v2149
      %v2151 = vpop.f32.mrf.mxu0
      %2152 = vmatprep.mubr.bf16.mxu0 0
      %2153 = vmatmul.mubr.bf16.gmra.mxu0 %v1984
      %v2154 = vpop.f32.mrf.mxu0
      %v2155 = vadd.f32 0.0, %v2154
      %v2156 = vpop.f32.mrf.mxu0
      %v2157 = vpop.f32.mrf.mxu0
      %v2158 = vadd.f32 0.0, %v2157
      %v2159 = vpop.f32.mrf.mxu0
      %2160 = vmatprep.mubr.bf16.mxu0 0
      %2161 = vmatmul.mubr.bf16.gmra.mxu0 %v1987
      %v2162 = vpop.f32.mrf.mxu0
      %v2163 = vadd.f32 0.0, %v2162
      %v2164 = vpop.f32.mrf.mxu0
      %v2165 = vpop.f32.mrf.mxu0
      %v2166 = vadd.f32 0.0, %v2165
      %v2167 = vpop.f32.mrf.mxu0
      %2168 = vdwg.mxu0
      %v2169 = vadd.f32 %v1859, %v2027
      %v2170 = vadd.f32 %v1860, %v2030
      %v2171 = vadd.f32 %v1861, %v2035
      %v2172 = vadd.f32 %v1862, %v2038
      %v2173 = vadd.f32 %v1863, %v2043
      %v2174 = vadd.f32 %v1864, %v2046
      %v2175 = vadd.f32 %v1865, %v2051
      %v2176 = vadd.f32 %v1866, %v2054
      %v2177 = vadd.f32 %v1867, %v2059
      %v2178 = vadd.f32 %v1868, %v2062
      %v2179 = vadd.f32 %v1869, %v2067
      %v2180 = vadd.f32 %v1870, %v2070
      %v2181 = vadd.f32 %v1871, %v2075
      %v2182 = vadd.f32 %v1872, %v2078
      %v2183 = vadd.f32 %v1873, %v2083
      %v2184 = vadd.f32 %v1874, %v2086
      %v2185 = vadd.f32 %v1875, %v2091
      %v2186 = vadd.f32 %v1876, %v2094
      %v2187 = vadd.f32 %v1877, %v2099
      %v2188 = vadd.f32 %v1878, %v2102
      %v2189 = vadd.f32 %v1879, %v2107
      %v2190 = vadd.f32 %v1880, %v2110
      %v2191 = vadd.f32 %v1881, %v2115
      %v2192 = vadd.f32 %v1882, %v2118
      %v2193 = vadd.f32 %v1883, %v2123
      %v2194 = vadd.f32 %v1884, %v2126
      %v2195 = vadd.f32 %v1885, %v2131
      %v2196 = vadd.f32 %v1886, %v2134
      %v2197 = vadd.f32 %v1887, %v2139
      %v2198 = vadd.f32 %v1888, %v2142
      %v2199 = vadd.f32 %v1889, %v2147
      %v2200 = vadd.f32 %v1890, %v2150
      %v2201 = vadd.f32 %v1891, %v2155
      %v2202 = vadd.f32 %v1892, %v2158
      %v2203 = vadd.f32 %v1893, %v2163
      %v2204 = vadd.f32 %v1894, %v2166
      %v2205 = vpack.c.bf16 %v346, %v345
      %v2206 = vpack.c.bf16 %v347, %v347
      %s2207 = scalar_lea.vmem %s2, 12
      %v2208 = vld [vmem:[%s2207] sm:$0x3]
      %v2211 = vrot.slane %v2205, 2
      %v2212 = vsel %vm1897, %v1931, %v2211
      %v2213 = vrot.slane %v2206, 2
      %v2214 = vsel %vm1897, %v2211, %v2213
      %v2216 = vsel %vm521, %v2212, 0
      %v2219 = vsel %vm521, %v2214, 0
      %v2222 = vand.u32 %v2208, %v579
      %2224 = vmatprep.subr.bf16.mxu0 0
      %2225 = vmatpush1.bf16.msra.mxu0 0
      %2226 = vmatprep.subr.bf16.mxu0 0
      %2227 = vmatpush1.bf16.msra.mxu0 0
      %2228 = vmatprep.subr.bf16.mxu0 0
      %2229 = vmatpush1.bf16.msra.mxu0 0
      %2230 = vmatprep.subr.bf16.mxu0 0
      %2231 = vmatpush1.bf16.msra.mxu0 0
      %2232 = vmatprep.subr.bf16.mxu0 0
      %2233 = vmatpush1.bf16.msra.mxu0 0
      %2234 = vmatprep.subr.bf16.mxu0 0
      %2235 = vmatpush1.bf16.msra.mxu0 0
      %2236 = vmatprep.subr.bf16.mxu0 0
      %2237 = vmatpush1.bf16.msra.mxu0 0
      %2238 = vmatprep.subr.bf16.mxu0 0
      %2239 = vmatpush1.bf16.msra.mxu0 %v2222
      %2240 = vmatprep.subr.bf16.mxu0 0
      %2241 = vmatpush2.bf16.msra.mxu0 0
      %2242 = vmatprep.subr.bf16.mxu0 0
      %2243 = vmatpush2.bf16.msra.mxu0 0
      %2244 = vmatprep.subr.bf16.mxu0 0
      %2245 = vmatpush2.bf16.msra.mxu0 0
      %2246 = vmatprep.subr.bf16.mxu0 0
      %2247 = vmatpush2.bf16.msra.mxu0 0
      %2248 = vmatprep.subr.bf16.mxu0 0
      %2249 = vmatpush2.bf16.msra.mxu0 0
      %2250 = vmatprep.subr.bf16.mxu0 0
      %2251 = vmatpush2.bf16.msra.mxu0 0
      %2252 = vmatprep.subr.bf16.mxu0 0
      %2253 = vmatpush2.bf16.msra.mxu0 0
      %2254 = vmatprep.subr.bf16.mxu0 0
      %2255 = vmatpush2.bf16.msra.mxu0 0
      %2256 = vmatprep.mubr.bf16.mxu0 0
      %2257 = vmatmul.mubr.bf16.gmra.mxu0 %v1939
      %v2258 = vpop.f32.mrf.mxu0
      %v2259 = vadd.f32 0.0, %v2258
      %v2260 = vpop.f32.mrf.mxu0
      %v2261 = vpop.f32.mrf.mxu0
      %v2262 = vadd.f32 0.0, %v2261
      %v2263 = vpop.f32.mrf.mxu0
      %2264 = vmatprep.mubr.bf16.mxu0 0
      %2265 = vmatmul.mubr.bf16.gmra.mxu0 %v1942
      %v2266 = vpop.f32.mrf.mxu0
      %v2267 = vadd.f32 0.0, %v2266
      %v2268 = vpop.f32.mrf.mxu0
      %v2269 = vpop.f32.mrf.mxu0
      %v2270 = vadd.f32 0.0, %v2269
      %v2271 = vpop.f32.mrf.mxu0
      %2272 = vmatprep.mubr.bf16.mxu0 0
      %2273 = vmatmul.mubr.bf16.gmra.mxu0 %v1945
      %v2274 = vpop.f32.mrf.mxu0
      %v2275 = vadd.f32 0.0, %v2274
      %v2276 = vpop.f32.mrf.mxu0
      %v2277 = vpop.f32.mrf.mxu0
      %v2278 = vadd.f32 0.0, %v2277
      %v2279 = vpop.f32.mrf.mxu0
      %2280 = vmatprep.mubr.bf16.mxu0 0
      %2281 = vmatmul.mubr.bf16.gmra.mxu0 %v1948
      %v2282 = vpop.f32.mrf.mxu0
      %v2283 = vadd.f32 0.0, %v2282
      %v2284 = vpop.f32.mrf.mxu0
      %v2285 = vpop.f32.mrf.mxu0
      %v2286 = vadd.f32 0.0, %v2285
      %v2287 = vpop.f32.mrf.mxu0
      %2288 = vmatprep.mubr.bf16.mxu0 0
      %2289 = vmatmul.mubr.bf16.gmra.mxu0 %v1951
      %v2290 = vpop.f32.mrf.mxu0
      %v2291 = vadd.f32 0.0, %v2290
      %v2292 = vpop.f32.mrf.mxu0
      %v2293 = vpop.f32.mrf.mxu0
      %v2294 = vadd.f32 0.0, %v2293
      %v2295 = vpop.f32.mrf.mxu0
      %2296 = vmatprep.mubr.bf16.mxu0 0
      %2297 = vmatmul.mubr.bf16.gmra.mxu0 %v1954
      %v2298 = vpop.f32.mrf.mxu0
      %v2299 = vadd.f32 0.0, %v2298
      %v2300 = vpop.f32.mrf.mxu0
      %v2301 = vpop.f32.mrf.mxu0
      %v2302 = vadd.f32 0.0, %v2301
      %v2303 = vpop.f32.mrf.mxu0
      %2304 = vmatprep.mubr.bf16.mxu0 0
      %2305 = vmatmul.mubr.bf16.gmra.mxu0 %v1957
      %v2306 = vpop.f32.mrf.mxu0
      %v2307 = vadd.f32 0.0, %v2306
      %v2308 = vpop.f32.mrf.mxu0
      %v2309 = vpop.f32.mrf.mxu0
      %v2310 = vadd.f32 0.0, %v2309
      %v2311 = vpop.f32.mrf.mxu0
      %2312 = vmatprep.mubr.bf16.mxu0 0
      %2313 = vmatmul.mubr.bf16.gmra.mxu0 %v1960
      %v2314 = vpop.f32.mrf.mxu0
      %v2315 = vadd.f32 0.0, %v2314
      %v2316 = vpop.f32.mrf.mxu0
      %v2317 = vpop.f32.mrf.mxu0
      %v2318 = vadd.f32 0.0, %v2317
      %v2319 = vpop.f32.mrf.mxu0
      %2320 = vmatprep.mubr.bf16.mxu0 0
      %2321 = vmatmul.mubr.bf16.gmra.mxu0 %v1963
      %v2322 = vpop.f32.mrf.mxu0
      %v2323 = vadd.f32 0.0, %v2322
      %v2324 = vpop.f32.mrf.mxu0
      %v2325 = vpop.f32.mrf.mxu0
      %v2326 = vadd.f32 0.0, %v2325
      %v2327 = vpop.f32.mrf.mxu0
      %2328 = vmatprep.mubr.bf16.mxu0 0
      %2329 = vmatmul.mubr.bf16.gmra.mxu0 %v1966
      %v2330 = vpop.f32.mrf.mxu0
      %v2331 = vadd.f32 0.0, %v2330
      %v2332 = vpop.f32.mrf.mxu0
      %v2333 = vpop.f32.mrf.mxu0
      %v2334 = vadd.f32 0.0, %v2333
      %v2335 = vpop.f32.mrf.mxu0
      %2336 = vmatprep.mubr.bf16.mxu0 0
      %2337 = vmatmul.mubr.bf16.gmra.mxu0 %v1969
      %v2338 = vpop.f32.mrf.mxu0
      %v2339 = vadd.f32 0.0, %v2338
      %v2340 = vpop.f32.mrf.mxu0
      %v2341 = vpop.f32.mrf.mxu0
      %v2342 = vadd.f32 0.0, %v2341
      %v2343 = vpop.f32.mrf.mxu0
      %2344 = vmatprep.mubr.bf16.mxu0 0
      %2345 = vmatmul.mubr.bf16.gmra.mxu0 %v1972
      %v2346 = vpop.f32.mrf.mxu0
      %v2347 = vadd.f32 0.0, %v2346
      %v2348 = vpop.f32.mrf.mxu0
      %v2349 = vpop.f32.mrf.mxu0
      %v2350 = vadd.f32 0.0, %v2349
      %v2351 = vpop.f32.mrf.mxu0
      %2352 = vmatprep.mubr.bf16.mxu0 0
      %2353 = vmatmul.mubr.bf16.gmra.mxu0 %v1975
      %v2354 = vpop.f32.mrf.mxu0
      %v2355 = vadd.f32 0.0, %v2354
      %v2356 = vpop.f32.mrf.mxu0
      %v2357 = vpop.f32.mrf.mxu0
      %v2358 = vadd.f32 0.0, %v2357
      %v2359 = vpop.f32.mrf.mxu0
      %2360 = vmatprep.mubr.bf16.mxu0 0
      %2361 = vmatmul.mubr.bf16.gmra.mxu0 %v1978
      %v2362 = vpop.f32.mrf.mxu0
      %v2363 = vadd.f32 0.0, %v2362
      %v2364 = vpop.f32.mrf.mxu0
      %v2365 = vpop.f32.mrf.mxu0
      %v2366 = vadd.f32 0.0, %v2365
      %v2367 = vpop.f32.mrf.mxu0
      %2368 = vmatprep.mubr.bf16.mxu0 0
      %2369 = vmatmul.mubr.bf16.gmra.mxu0 %v1981
      %v2370 = vpop.f32.mrf.mxu0
      %v2371 = vadd.f32 0.0, %v2370
      %v2372 = vpop.f32.mrf.mxu0
      %v2373 = vpop.f32.mrf.mxu0
      %v2374 = vadd.f32 0.0, %v2373
      %v2375 = vpop.f32.mrf.mxu0
      %2376 = vmatprep.mubr.bf16.mxu0 0
      %2377 = vmatmul.mubr.bf16.gmra.mxu0 %v1984
      %v2378 = vpop.f32.mrf.mxu0
      %v2379 = vadd.f32 0.0, %v2378
      %v2380 = vpop.f32.mrf.mxu0
      %v2381 = vpop.f32.mrf.mxu0
      %v2382 = vadd.f32 0.0, %v2381
      %v2383 = vpop.f32.mrf.mxu0
      %2384 = vmatprep.mubr.bf16.mxu0 0
      %2385 = vmatmul.mubr.bf16.gmra.mxu0 %v2216
      %v2386 = vpop.f32.mrf.mxu0
      %v2387 = vadd.f32 0.0, %v2386
      %v2388 = vpop.f32.mrf.mxu0
      %v2389 = vpop.f32.mrf.mxu0
      %v2390 = vadd.f32 0.0, %v2389
      %v2391 = vpop.f32.mrf.mxu0
      %2392 = vmatprep.mubr.bf16.mxu0 0
      %2393 = vmatmul.mubr.bf16.gmra.mxu0 %v2219
      %v2394 = vpop.f32.mrf.mxu0
      %v2395 = vadd.f32 0.0, %v2394
      %v2396 = vpop.f32.mrf.mxu0
      %v2397 = vpop.f32.mrf.mxu0
      %v2398 = vadd.f32 0.0, %v2397
      %v2399 = vpop.f32.mrf.mxu0
      %2400 = vdwg.mxu0
      %v2401 = vadd.f32 %v2169, %v2259
      %v2402 = vadd.f32 %v2170, %v2262
      %v2403 = vadd.f32 %v2171, %v2267
      %v2404 = vadd.f32 %v2172, %v2270
      %v2405 = vadd.f32 %v2173, %v2275
      %v2406 = vadd.f32 %v2174, %v2278
      %v2407 = vadd.f32 %v2175, %v2283
      %v2408 = vadd.f32 %v2176, %v2286
      %v2409 = vadd.f32 %v2177, %v2291
      %v2410 = vadd.f32 %v2178, %v2294
      %v2411 = vadd.f32 %v2179, %v2299
      %v2412 = vadd.f32 %v2180, %v2302
      %v2413 = vadd.f32 %v2181, %v2307
      %v2414 = vadd.f32 %v2182, %v2310
      %v2415 = vadd.f32 %v2183, %v2315
      %v2416 = vadd.f32 %v2184, %v2318
      %v2417 = vadd.f32 %v2185, %v2323
      %v2418 = vadd.f32 %v2186, %v2326
      %v2419 = vadd.f32 %v2187, %v2331
      %v2420 = vadd.f32 %v2188, %v2334
      %v2421 = vadd.f32 %v2189, %v2339
      %v2422 = vadd.f32 %v2190, %v2342
      %v2423 = vadd.f32 %v2191, %v2347
      %v2424 = vadd.f32 %v2192, %v2350
      %v2425 = vadd.f32 %v2193, %v2355
      %v2426 = vadd.f32 %v2194, %v2358
      %v2427 = vadd.f32 %v2195, %v2363
      %v2428 = vadd.f32 %v2196, %v2366
      %v2429 = vadd.f32 %v2197, %v2371
      %v2430 = vadd.f32 %v2198, %v2374
      %v2431 = vadd.f32 %v2199, %v2379
      %v2432 = vadd.f32 %v2200, %v2382
      %v2433 = vadd.f32 %v2201, %v2387
      %v2434 = vadd.f32 %v2202, %v2390
      %v2435 = vadd.f32 %v2203, %v2395
      %v2436 = vadd.f32 %v2204, %v2398
      %s2437 = scalar_lea.vmem %s2, 14
      %v2438 = vld [vmem:[%s2437] sm:$0x3]
      %vm2439 = vsmask.f32 5376
      %v2440 = vrot.slane %v393, 2
      %v2441 = vrot.slane %v389, 3
      %v2442 = vor.u32 %v2440, %v2441
      %v2443 = vrot.slane %v401, 2
      %v2444 = vrot.slane %v397, 3
      %v2445 = vor.u32 %v2443, %v2444
      %v2446 = vsel %vm2439, %v2442, %v2445
      %v2447 = vrot.slane %v409, 2
      %v2448 = vrot.slane %v405, 3
      %v2449 = vor.u32 %v2447, %v2448
      %v2450 = vsel %vm2439, %v2445, %v2449
      %v2451 = vrot.slane %v417, 2
      %v2452 = vrot.slane %v413, 3
      %v2453 = vor.u32 %v2451, %v2452
      %v2454 = vsel %vm2439, %v2449, %v2453
      %v2455 = vrot.slane %v425, 2
      %v2456 = vrot.slane %v421, 3
      %v2457 = vor.u32 %v2455, %v2456
      %v2458 = vsel %vm2439, %v2453, %v2457
      %v2459 = vrot.slane %v433, 2
      %v2460 = vrot.slane %v429, 3
      %v2461 = vor.u32 %v2459, %v2460
      %v2462 = vsel %vm2439, %v2457, %v2461
      %v2463 = vrot.slane %v441, 2
      %v2464 = vrot.slane %v437, 3
      %v2465 = vor.u32 %v2463, %v2464
      %v2466 = vsel %vm2439, %v2461, %v2465
      %v2467 = vrot.slane %v449, 2
      %v2468 = vrot.slane %v445, 3
      %v2469 = vor.u32 %v2467, %v2468
      %v2470 = vsel %vm2439, %v2465, %v2469
      %v2471 = vrot.slane %v457, 2
      %v2472 = vrot.slane %v453, 3
      %v2473 = vor.u32 %v2471, %v2472
      %v2474 = vsel %vm2439, %v2469, %v2473
      %v2475 = vrot.slane %v465, 2
      %v2476 = vrot.slane %v461, 3
      %v2477 = vor.u32 %v2475, %v2476
      %v2478 = vsel %vm2439, %v2473, %v2477
      %v2479 = vrot.slane %v473, 2
      %v2480 = vrot.slane %v469, 3
      %v2481 = vor.u32 %v2479, %v2480
      %v2482 = vsel %vm2439, %v2477, %v2481
      %v2483 = vrot.slane %v481, 2
      %v2484 = vrot.slane %v477, 3
      %v2485 = vor.u32 %v2483, %v2484
      %v2486 = vsel %vm2439, %v2481, %v2485
      %v2487 = vrot.slane %v489, 2
      %v2488 = vrot.slane %v485, 3
      %v2489 = vor.u32 %v2487, %v2488
      %v2490 = vsel %vm2439, %v2485, %v2489
      %v2491 = vrot.slane %v497, 2
      %v2492 = vrot.slane %v493, 3
      %v2493 = vor.u32 %v2491, %v2492
      %v2494 = vsel %vm2439, %v2489, %v2493
      %v2495 = vrot.slane %v505, 2
      %v2496 = vrot.slane %v501, 3
      %v2497 = vor.u32 %v2495, %v2496
      %v2498 = vsel %vm2439, %v2493, %v2497
      %v2499 = vrot.slane %v513, 2
      %v2500 = vrot.slane %v509, 3
      %v2501 = vor.u32 %v2499, %v2500
      %v2502 = vsel %vm2439, %v2497, %v2501
      %v2503 = vrot.slane %v1608, 2
      %v2504 = vrot.slane %v1611, 3
      %v2505 = vor.u32 %v2503, %v2504
      %v2506 = vsel %vm2439, %v2501, %v2505
      %v2508 = vshrl.u32 %v2205, 16
      %v2510 = vrot.slane %v2508, 2
      %v2511 = vshll.u32 %v2205, 16
      %v2513 = vrot.slane %v2511, 3
      %v2514 = vor.u32 %v2510, %v2513
      %v2515 = vsel %vm2439, %v2505, %v2514
      %v2517 = vshrl.u32 %v2206, 16
      %v2519 = vrot.slane %v2517, 2
      %v2520 = vshll.u32 %v2206, 16
      %v2522 = vrot.slane %v2520, 3
      %v2523 = vor.u32 %v2519, %v2522
      %v2524 = vsel %vm2439, %v2514, %v2523
      %v2526 = vsel %vm521, %v2446, 0
      %v2529 = vsel %vm521, %v2450, 0
      %v2532 = vsel %vm521, %v2454, 0
      %v2535 = vsel %vm521, %v2458, 0
      %v2538 = vsel %vm521, %v2462, 0
      %v2541 = vsel %vm521, %v2466, 0
      %v2544 = vsel %vm521, %v2470, 0
      %v2547 = vsel %vm521, %v2474, 0
      %v2550 = vsel %vm521, %v2478, 0
      %v2553 = vsel %vm521, %v2482, 0
      %v2556 = vsel %vm521, %v2486, 0
      %v2559 = vsel %vm521, %v2490, 0
      %v2562 = vsel %vm521, %v2494, 0
      %v2565 = vsel %vm521, %v2498, 0
      %v2568 = vsel %vm521, %v2502, 0
      %v2571 = vsel %vm521, %v2506, 0
      %v2574 = vsel %vm521, %v2515, 0
      %v2577 = vsel %vm521, %v2524, 0
      %v2580 = vand.u32 %v2438, %v579
      %2582 = vmatprep.subr.bf16.mxu0 0
      %2583 = vmatpush1.bf16.msra.mxu0 0
      %2584 = vmatprep.subr.bf16.mxu0 0
      %2585 = vmatpush1.bf16.msra.mxu0 0
      %2586 = vmatprep.subr.bf16.mxu0 0
      %2587 = vmatpush1.bf16.msra.mxu0 0
      %2588 = vmatprep.subr.bf16.mxu0 0
      %2589 = vmatpush1.bf16.msra.mxu0 0
      %2590 = vmatprep.subr.bf16.mxu0 0
      %2591 = vmatpush1.bf16.msra.mxu0 0
      %2592 = vmatprep.subr.bf16.mxu0 0
      %2593 = vmatpush1.bf16.msra.mxu0 0
      %2594 = vmatprep.subr.bf16.mxu0 0
      %2595 = vmatpush1.bf16.msra.mxu0 0
      %2596 = vmatprep.subr.bf16.mxu0 0
      %2597 = vmatpush1.bf16.msra.mxu0 %v2580
      %2598 = vmatprep.subr.bf16.mxu0 0
      %2599 = vmatpush2.bf16.msra.mxu0 0
      %2600 = vmatprep.subr.bf16.mxu0 0
      %2601 = vmatpush2.bf16.msra.mxu0 0
      %2602 = vmatprep.subr.bf16.mxu0 0
      %2603 = vmatpush2.bf16.msra.mxu0 0
      %2604 = vmatprep.subr.bf16.mxu0 0
      %2605 = vmatpush2.bf16.msra.mxu0 0
      %2606 = vmatprep.subr.bf16.mxu0 0
      %2607 = vmatpush2.bf16.msra.mxu0 0
      %2608 = vmatprep.subr.bf16.mxu0 0
      %2609 = vmatpush2.bf16.msra.mxu0 0
      %2610 = vmatprep.subr.bf16.mxu0 0
      %2611 = vmatpush2.bf16.msra.mxu0 0
      %2612 = vmatprep.subr.bf16.mxu0 0
      %2613 = vmatpush2.bf16.msra.mxu0 0
      %2614 = vmatprep.mubr.bf16.mxu0 0
      %2615 = vmatmul.mubr.bf16.gmra.mxu0 %v2526
      %v2616 = vpop.f32.mrf.mxu0
      %v2617 = vadd.f32 0.0, %v2616
      %v2618 = vpop.f32.mrf.mxu0
      %v2619 = vpop.f32.mrf.mxu0
      %v2620 = vadd.f32 0.0, %v2619
      %v2621 = vpop.f32.mrf.mxu0
      %2622 = vmatprep.mubr.bf16.mxu0 0
      %2623 = vmatmul.mubr.bf16.gmra.mxu0 %v2529
      %v2624 = vpop.f32.mrf.mxu0
      %v2625 = vadd.f32 0.0, %v2624
      %v2626 = vpop.f32.mrf.mxu0
      %v2627 = vpop.f32.mrf.mxu0
      %v2628 = vadd.f32 0.0, %v2627
      %v2629 = vpop.f32.mrf.mxu0
      %2630 = vmatprep.mubr.bf16.mxu0 0
      %2631 = vmatmul.mubr.bf16.gmra.mxu0 %v2532
      %v2632 = vpop.f32.mrf.mxu0
      %v2633 = vadd.f32 0.0, %v2632
      %v2634 = vpop.f32.mrf.mxu0
      %v2635 = vpop.f32.mrf.mxu0
      %v2636 = vadd.f32 0.0, %v2635
      %v2637 = vpop.f32.mrf.mxu0
      %2638 = vmatprep.mubr.bf16.mxu0 0
      %2639 = vmatmul.mubr.bf16.gmra.mxu0 %v2535
      %v2640 = vpop.f32.mrf.mxu0
      %v2641 = vadd.f32 0.0, %v2640
      %v2642 = vpop.f32.mrf.mxu0
      %v2643 = vpop.f32.mrf.mxu0
      %v2644 = vadd.f32 0.0, %v2643
      %v2645 = vpop.f32.mrf.mxu0
      %2646 = vmatprep.mubr.bf16.mxu0 0
      %2647 = vmatmul.mubr.bf16.gmra.mxu0 %v2538
      %v2648 = vpop.f32.mrf.mxu0
      %v2649 = vadd.f32 0.0, %v2648
      %v2650 = vpop.f32.mrf.mxu0
      %v2651 = vpop.f32.mrf.mxu0
      %v2652 = vadd.f32 0.0, %v2651
      %v2653 = vpop.f32.mrf.mxu0
      %2654 = vmatprep.mubr.bf16.mxu0 0
      %2655 = vmatmul.mubr.bf16.gmra.mxu0 %v2541
      %v2656 = vpop.f32.mrf.mxu0
      %v2657 = vadd.f32 0.0, %v2656
      %v2658 = vpop.f32.mrf.mxu0
      %v2659 = vpop.f32.mrf.mxu0
      %v2660 = vadd.f32 0.0, %v2659
      %v2661 = vpop.f32.mrf.mxu0
      %2662 = vmatprep.mubr.bf16.mxu0 0
      %2663 = vmatmul.mubr.bf16.gmra.mxu0 %v2544
      %v2664 = vpop.f32.mrf.mxu0
      %v2665 = vadd.f32 0.0, %v2664
      %v2666 = vpop.f32.mrf.mxu0
      %v2667 = vpop.f32.mrf.mxu0
      %v2668 = vadd.f32 0.0, %v2667
      %v2669 = vpop.f32.mrf.mxu0
      %2670 = vmatprep.mubr.bf16.mxu0 0
      %2671 = vmatmul.mubr.bf16.gmra.mxu0 %v2547
      %v2672 = vpop.f32.mrf.mxu0
      %v2673 = vadd.f32 0.0, %v2672
      %v2674 = vpop.f32.mrf.mxu0
      %v2675 = vpop.f32.mrf.mxu0
      %v2676 = vadd.f32 0.0, %v2675
      %v2677 = vpop.f32.mrf.mxu0
      %2678 = vmatprep.mubr.bf16.mxu0 0
      %2679 = vmatmul.mubr.bf16.gmra.mxu0 %v2550
      %v2680 = vpop.f32.mrf.mxu0
      %v2681 = vadd.f32 0.0, %v2680
      %v2682 = vpop.f32.mrf.mxu0
      %v2683 = vpop.f32.mrf.mxu0
      %v2684 = vadd.f32 0.0, %v2683
      %v2685 = vpop.f32.mrf.mxu0
      %2686 = vmatprep.mubr.bf16.mxu0 0
      %2687 = vmatmul.mubr.bf16.gmra.mxu0 %v2553
      %v2688 = vpop.f32.mrf.mxu0
      %v2689 = vadd.f32 0.0, %v2688
      %v2690 = vpop.f32.mrf.mxu0
      %v2691 = vpop.f32.mrf.mxu0
      %v2692 = vadd.f32 0.0, %v2691
      %v2693 = vpop.f32.mrf.mxu0
      %2694 = vmatprep.mubr.bf16.mxu0 0
      %2695 = vmatmul.mubr.bf16.gmra.mxu0 %v2556
      %v2696 = vpop.f32.mrf.mxu0
      %v2697 = vadd.f32 0.0, %v2696
      %v2698 = vpop.f32.mrf.mxu0
      %v2699 = vpop.f32.mrf.mxu0
      %v2700 = vadd.f32 0.0, %v2699
      %v2701 = vpop.f32.mrf.mxu0
      %2702 = vmatprep.mubr.bf16.mxu0 0
      %2703 = vmatmul.mubr.bf16.gmra.mxu0 %v2559
      %v2704 = vpop.f32.mrf.mxu0
      %v2705 = vadd.f32 0.0, %v2704
      %v2706 = vpop.f32.mrf.mxu0
      %v2707 = vpop.f32.mrf.mxu0
      %v2708 = vadd.f32 0.0, %v2707
      %v2709 = vpop.f32.mrf.mxu0
      %2710 = vmatprep.mubr.bf16.mxu0 0
      %2711 = vmatmul.mubr.bf16.gmra.mxu0 %v2562
      %v2712 = vpop.f32.mrf.mxu0
      %v2713 = vadd.f32 0.0, %v2712
      %v2714 = vpop.f32.mrf.mxu0
      %v2715 = vpop.f32.mrf.mxu0
      %v2716 = vadd.f32 0.0, %v2715
      %v2717 = vpop.f32.mrf.mxu0
      %2718 = vmatprep.mubr.bf16.mxu0 0
      %2719 = vmatmul.mubr.bf16.gmra.mxu0 %v2565
      %v2720 = vpop.f32.mrf.mxu0
      %v2721 = vadd.f32 0.0, %v2720
      %v2722 = vpop.f32.mrf.mxu0
      %v2723 = vpop.f32.mrf.mxu0
      %v2724 = vadd.f32 0.0, %v2723
      %v2725 = vpop.f32.mrf.mxu0
      %2726 = vmatprep.mubr.bf16.mxu0 0
      %2727 = vmatmul.mubr.bf16.gmra.mxu0 %v2568
      %v2728 = vpop.f32.mrf.mxu0
      %v2729 = vadd.f32 0.0, %v2728
      %v2730 = vpop.f32.mrf.mxu0
      %v2731 = vpop.f32.mrf.mxu0
      %v2732 = vadd.f32 0.0, %v2731
      %v2733 = vpop.f32.mrf.mxu0
      %2734 = vmatprep.mubr.bf16.mxu0 0
      %2735 = vmatmul.mubr.bf16.gmra.mxu0 %v2571
      %v2736 = vpop.f32.mrf.mxu0
      %v2737 = vadd.f32 0.0, %v2736
      %v2738 = vpop.f32.mrf.mxu0
      %v2739 = vpop.f32.mrf.mxu0
      %v2740 = vadd.f32 0.0, %v2739
      %v2741 = vpop.f32.mrf.mxu0
      %2742 = vmatprep.mubr.bf16.mxu0 0
      %2743 = vmatmul.mubr.bf16.gmra.mxu0 %v2574
      %v2744 = vpop.f32.mrf.mxu0
      %v2745 = vadd.f32 0.0, %v2744
      %v2746 = vpop.f32.mrf.mxu0
      %v2747 = vpop.f32.mrf.mxu0
      %v2748 = vadd.f32 0.0, %v2747
      %v2749 = vpop.f32.mrf.mxu0
      %2750 = vmatprep.mubr.bf16.mxu0 0
      %2751 = vmatmul.mubr.bf16.gmra.mxu0 %v2577
      %v2752 = vpop.f32.mrf.mxu0
      %v2753 = vadd.f32 0.0, %v2752
      %v2754 = vpop.f32.mrf.mxu0
      %v2755 = vpop.f32.mrf.mxu0
      %v2756 = vadd.f32 0.0, %v2755
      %v2757 = vpop.f32.mrf.mxu0
      %2758 = vdwg.mxu0
      %v2759 = vadd.f32 %v2401, %v2617
      %v2760 = vadd.f32 %v2402, %v2620
      %v2761 = vadd.f32 %v2403, %v2625
      %v2762 = vadd.f32 %v2404, %v2628
      %v2763 = vadd.f32 %v2405, %v2633
      %v2764 = vadd.f32 %v2406, %v2636
      %v2765 = vadd.f32 %v2407, %v2641
      %v2766 = vadd.f32 %v2408, %v2644
      %v2767 = vadd.f32 %v2409, %v2649
      %v2768 = vadd.f32 %v2410, %v2652
      %v2769 = vadd.f32 %v2411, %v2657
      %v2770 = vadd.f32 %v2412, %v2660
      %v2771 = vadd.f32 %v2413, %v2665
      %v2772 = vadd.f32 %v2414, %v2668
      %v2773 = vadd.f32 %v2415, %v2673
      %v2774 = vadd.f32 %v2416, %v2676
      %v2775 = vadd.f32 %v2417, %v2681
      %v2776 = vadd.f32 %v2418, %v2684
      %v2777 = vadd.f32 %v2419, %v2689
      %v2778 = vadd.f32 %v2420, %v2692
      %v2779 = vadd.f32 %v2421, %v2697
      %v2780 = vadd.f32 %v2422, %v2700
      %v2781 = vadd.f32 %v2423, %v2705
      %v2782 = vadd.f32 %v2424, %v2708
      %v2783 = vadd.f32 %v2425, %v2713
      %v2784 = vadd.f32 %v2426, %v2716
      %v2785 = vadd.f32 %v2427, %v2721
      %v2786 = vadd.f32 %v2428, %v2724
      %v2787 = vadd.f32 %v2429, %v2729
      %v2788 = vadd.f32 %v2430, %v2732
      %v2789 = vadd.f32 %v2431, %v2737
      %v2790 = vadd.f32 %v2432, %v2740
      %v2791 = vadd.f32 %v2433, %v2745
      %v2792 = vadd.f32 %v2434, %v2748
      %v2793 = vadd.f32 %v2435, %v2753
      %v2794 = vadd.f32 %v2436, %v2756
      %s2795 = scalar_lea.vmem %s2, 16
      %v2796 = vld [vmem:[%s2795] sm:$0x3]
      %vm2797 = vcmask 1044480
      %v2798 = vrot.slane %v352, 3
      %v2799 = vrot.slane %v353, 3
      %v2800 = vsel %vm2797, %v2798, %v2799
      %v2801 = vrot.slane %v354, 3
      %v2802 = vsel %vm2797, %v2799, %v2801
      %v2803 = vrot.slane %v355, 3
      %v2804 = vsel %vm2797, %v2801, %v2803
      %v2805 = vrot.slane %v356, 3
      %v2806 = vsel %vm2797, %v2803, %v2805
      %v2807 = vrot.slane %v357, 3
      %v2808 = vsel %vm2797, %v2805, %v2807
      %v2809 = vrot.slane %v358, 3
      %v2810 = vsel %vm2797, %v2807, %v2809
      %v2811 = vrot.slane %v359, 3
      %v2812 = vsel %vm2797, %v2809, %v2811
      %v2813 = vrot.slane %v360, 3
      %v2814 = vsel %vm2797, %v2811, %v2813
      %v2815 = vrot.slane %v361, 3
      %v2816 = vsel %vm2797, %v2813, %v2815
      %v2817 = vrot.slane %v362, 3
      %v2818 = vsel %vm2797, %v2815, %v2817
      %v2819 = vrot.slane %v363, 3
      %v2820 = vsel %vm2797, %v2817, %v2819
      %v2821 = vrot.slane %v364, 3
      %v2822 = vsel %vm2797, %v2819, %v2821
      %v2823 = vrot.slane %v365, 3
      %v2824 = vsel %vm2797, %v2821, %v2823
      %v2825 = vrot.slane %v366, 3
      %v2826 = vsel %vm2797, %v2823, %v2825
      %v2827 = vrot.slane %v367, 3
      %v2828 = vsel %vm2797, %v2825, %v2827
      %v2829 = vrot.slane %v1305, 3
      %v2830 = vsel %vm2797, %v2827, %v2829
      %v2831 = vrot.slane %v2205, 3
      %v2832 = vsel %vm2797, %v2829, %v2831
      %v2833 = vrot.slane %v2206, 3
      %v2834 = vsel %vm2797, %v2831, %v2833
      %v2836 = vsel %vm521, %v2800, 0
      %v2839 = vsel %vm521, %v2802, 0
      %v2842 = vsel %vm521, %v2804, 0
      %v2845 = vsel %vm521, %v2806, 0
      %v2848 = vsel %vm521, %v2808, 0
      %v2851 = vsel %vm521, %v2810, 0
      %v2854 = vsel %vm521, %v2812, 0
      %v2857 = vsel %vm521, %v2814, 0
      %v2860 = vsel %vm521, %v2816, 0
      %v2863 = vsel %vm521, %v2818, 0
      %v2866 = vsel %vm521, %v2820, 0
      %v2869 = vsel %vm521, %v2822, 0
      %v2872 = vsel %vm521, %v2824, 0
      %v2875 = vsel %vm521, %v2826, 0
      %v2878 = vsel %vm521, %v2828, 0
      %v2881 = vsel %vm521, %v2830, 0
      %v2884 = vsel %vm521, %v2832, 0
      %v2887 = vsel %vm521, %v2834, 0
      %v2890 = vand.u32 %v2796, %v579
      %2892 = vmatprep.subr.bf16.mxu0 0
      %2893 = vmatpush1.bf16.msra.mxu0 0
      %2894 = vmatprep.subr.bf16.mxu0 0
      %2895 = vmatpush1.bf16.msra.mxu0 0
      %2896 = vmatprep.subr.bf16.mxu0 0
      %2897 = vmatpush1.bf16.msra.mxu0 0
      %2898 = vmatprep.subr.bf16.mxu0 0
      %2899 = vmatpush1.bf16.msra.mxu0 0
      %2900 = vmatprep.subr.bf16.mxu0 0
      %2901 = vmatpush1.bf16.msra.mxu0 0
      %2902 = vmatprep.subr.bf16.mxu0 0
      %2903 = vmatpush1.bf16.msra.mxu0 0
      %2904 = vmatprep.subr.bf16.mxu0 0
      %2905 = vmatpush1.bf16.msra.mxu0 0
      %2906 = vmatprep.subr.bf16.mxu0 0
      %2907 = vmatpush1.bf16.msra.mxu0 %v2890
      %2908 = vmatprep.subr.bf16.mxu0 0
      %2909 = vmatpush2.bf16.msra.mxu0 0
      %2910 = vmatprep.subr.bf16.mxu0 0
      %2911 = vmatpush2.bf16.msra.mxu0 0
      %2912 = vmatprep.subr.bf16.mxu0 0
      %2913 = vmatpush2.bf16.msra.mxu0 0
      %2914 = vmatprep.subr.bf16.mxu0 0
      %2915 = vmatpush2.bf16.msra.mxu0 0
      %2916 = vmatprep.subr.bf16.mxu0 0
      %2917 = vmatpush2.bf16.msra.mxu0 0
      %2918 = vmatprep.subr.bf16.mxu0 0
      %2919 = vmatpush2.bf16.msra.mxu0 0
      %2920 = vmatprep.subr.bf16.mxu0 0
      %2921 = vmatpush2.bf16.msra.mxu0 0
      %2922 = vmatprep.subr.bf16.mxu0 0
      %2923 = vmatpush2.bf16.msra.mxu0 0
      %2924 = vmatprep.mubr.bf16.mxu0 0
      %2925 = vmatmul.mubr.bf16.gmra.mxu0 %v2836
      %v2926 = vpop.f32.mrf.mxu0
      %v2927 = vadd.f32 0.0, %v2926
      %v2928 = vpop.f32.mrf.mxu0
      %v2929 = vpop.f32.mrf.mxu0
      %v2930 = vadd.f32 0.0, %v2929
      %v2931 = vpop.f32.mrf.mxu0
      %2932 = vmatprep.mubr.bf16.mxu0 0
      %2933 = vmatmul.mubr.bf16.gmra.mxu0 %v2839
      %v2934 = vpop.f32.mrf.mxu0
      %v2935 = vadd.f32 0.0, %v2934
      %v2936 = vpop.f32.mrf.mxu0
      %v2937 = vpop.f32.mrf.mxu0
      %v2938 = vadd.f32 0.0, %v2937
      %v2939 = vpop.f32.mrf.mxu0
      %2940 = vmatprep.mubr.bf16.mxu0 0
      %2941 = vmatmul.mubr.bf16.gmra.mxu0 %v2842
      %v2942 = vpop.f32.mrf.mxu0
      %v2943 = vadd.f32 0.0, %v2942
      %v2944 = vpop.f32.mrf.mxu0
      %v2945 = vpop.f32.mrf.mxu0
      %v2946 = vadd.f32 0.0, %v2945
      %v2947 = vpop.f32.mrf.mxu0
      %2948 = vmatprep.mubr.bf16.mxu0 0
      %2949 = vmatmul.mubr.bf16.gmra.mxu0 %v2845
      %v2950 = vpop.f32.mrf.mxu0
      %v2951 = vadd.f32 0.0, %v2950
      %v2952 = vpop.f32.mrf.mxu0
      %v2953 = vpop.f32.mrf.mxu0
      %v2954 = vadd.f32 0.0, %v2953
      %v2955 = vpop.f32.mrf.mxu0
      %2956 = vmatprep.mubr.bf16.mxu0 0
      %2957 = vmatmul.mubr.bf16.gmra.mxu0 %v2848
      %v2958 = vpop.f32.mrf.mxu0
      %v2959 = vadd.f32 0.0, %v2958
      %v2960 = vpop.f32.mrf.mxu0
      %v2961 = vpop.f32.mrf.mxu0
      %v2962 = vadd.f32 0.0, %v2961
      %v2963 = vpop.f32.mrf.mxu0
      %2964 = vmatprep.mubr.bf16.mxu0 0
      %2965 = vmatmul.mubr.bf16.gmra.mxu0 %v2851
      %v2966 = vpop.f32.mrf.mxu0
      %v2967 = vadd.f32 0.0, %v2966
      %v2968 = vpop.f32.mrf.mxu0
      %v2969 = vpop.f32.mrf.mxu0
      %v2970 = vadd.f32 0.0, %v2969
      %v2971 = vpop.f32.mrf.mxu0
      %2972 = vmatprep.mubr.bf16.mxu0 0
      %2973 = vmatmul.mubr.bf16.gmra.mxu0 %v2854
      %v2974 = vpop.f32.mrf.mxu0
      %v2975 = vadd.f32 0.0, %v2974
      %v2976 = vpop.f32.mrf.mxu0
      %v2977 = vpop.f32.mrf.mxu0
      %v2978 = vadd.f32 0.0, %v2977
      %v2979 = vpop.f32.mrf.mxu0
      %2980 = vmatprep.mubr.bf16.mxu0 0
      %2981 = vmatmul.mubr.bf16.gmra.mxu0 %v2857
      %v2982 = vpop.f32.mrf.mxu0
      %v2983 = vadd.f32 0.0, %v2982
      %v2984 = vpop.f32.mrf.mxu0
      %v2985 = vpop.f32.mrf.mxu0
      %v2986 = vadd.f32 0.0, %v2985
      %v2987 = vpop.f32.mrf.mxu0
      %2988 = vmatprep.mubr.bf16.mxu0 0
      %2989 = vmatmul.mubr.bf16.gmra.mxu0 %v2860
      %v2990 = vpop.f32.mrf.mxu0
      %v2991 = vadd.f32 0.0, %v2990
      %v2992 = vpop.f32.mrf.mxu0
      %v2993 = vpop.f32.mrf.mxu0
      %v2994 = vadd.f32 0.0, %v2993
      %v2995 = vpop.f32.mrf.mxu0
      %2996 = vmatprep.mubr.bf16.mxu0 0
      %2997 = vmatmul.mubr.bf16.gmra.mxu0 %v2863
      %v2998 = vpop.f32.mrf.mxu0
      %v2999 = vadd.f32 0.0, %v2998
      %v3000 = vpop.f32.mrf.mxu0
      %v3001 = vpop.f32.mrf.mxu0
      %v3002 = vadd.f32 0.0, %v3001
      %v3003 = vpop.f32.mrf.mxu0
      %3004 = vmatprep.mubr.bf16.mxu0 0
      %3005 = vmatmul.mubr.bf16.gmra.mxu0 %v2866
      %v3006 = vpop.f32.mrf.mxu0
      %v3007 = vadd.f32 0.0, %v3006
      %v3008 = vpop.f32.mrf.mxu0
      %v3009 = vpop.f32.mrf.mxu0
      %v3010 = vadd.f32 0.0, %v3009
      %v3011 = vpop.f32.mrf.mxu0
      %3012 = vmatprep.mubr.bf16.mxu0 0
      %3013 = vmatmul.mubr.bf16.gmra.mxu0 %v2869
      %v3014 = vpop.f32.mrf.mxu0
      %v3015 = vadd.f32 0.0, %v3014
      %v3016 = vpop.f32.mrf.mxu0
      %v3017 = vpop.f32.mrf.mxu0
      %v3018 = vadd.f32 0.0, %v3017
      %v3019 = vpop.f32.mrf.mxu0
      %3020 = vmatprep.mubr.bf16.mxu0 0
      %3021 = vmatmul.mubr.bf16.gmra.mxu0 %v2872
      %v3022 = vpop.f32.mrf.mxu0
      %v3023 = vadd.f32 0.0, %v3022
      %v3024 = vpop.f32.mrf.mxu0
      %v3025 = vpop.f32.mrf.mxu0
      %v3026 = vadd.f32 0.0, %v3025
      %v3027 = vpop.f32.mrf.mxu0
      %3028 = vmatprep.mubr.bf16.mxu0 0
      %3029 = vmatmul.mubr.bf16.gmra.mxu0 %v2875
      %v3030 = vpop.f32.mrf.mxu0
      %v3031 = vadd.f32 0.0, %v3030
      %v3032 = vpop.f32.mrf.mxu0
      %v3033 = vpop.f32.mrf.mxu0
      %v3034 = vadd.f32 0.0, %v3033
      %v3035 = vpop.f32.mrf.mxu0
      %3036 = vmatprep.mubr.bf16.mxu0 0
      %3037 = vmatmul.mubr.bf16.gmra.mxu0 %v2878
      %v3038 = vpop.f32.mrf.mxu0
      %v3039 = vadd.f32 0.0, %v3038
      %v3040 = vpop.f32.mrf.mxu0
      %v3041 = vpop.f32.mrf.mxu0
      %v3042 = vadd.f32 0.0, %v3041
      %v3043 = vpop.f32.mrf.mxu0
      %3044 = vmatprep.mubr.bf16.mxu0 0
      %3045 = vmatmul.mubr.bf16.gmra.mxu0 %v2881
      %v3046 = vpop.f32.mrf.mxu0
      %v3047 = vadd.f32 0.0, %v3046
      %v3048 = vpop.f32.mrf.mxu0
      %v3049 = vpop.f32.mrf.mxu0
      %v3050 = vadd.f32 0.0, %v3049
      %v3051 = vpop.f32.mrf.mxu0
      %3052 = vmatprep.mubr.bf16.mxu0 0
      %3053 = vmatmul.mubr.bf16.gmra.mxu0 %v2884
      %v3054 = vpop.f32.mrf.mxu0
      %v3055 = vadd.f32 0.0, %v3054
      %v3056 = vpop.f32.mrf.mxu0
      %v3057 = vpop.f32.mrf.mxu0
      %v3058 = vadd.f32 0.0, %v3057
      %v3059 = vpop.f32.mrf.mxu0
      %3060 = vmatprep.mubr.bf16.mxu0 0
      %3061 = vmatmul.mubr.bf16.gmra.mxu0 %v2887
      %v3062 = vpop.f32.mrf.mxu0
      %v3063 = vadd.f32 0.0, %v3062
      %v3064 = vpop.f32.mrf.mxu0
      %v3065 = vpop.f32.mrf.mxu0
      %v3066 = vadd.f32 0.0, %v3065
      %v3067 = vpop.f32.mrf.mxu0
      %3068 = vdwg.mxu0
      %v3069 = vadd.f32 %v2759, %v2927
      %v3070 = vadd.f32 %v2760, %v2930
      %v3071 = vadd.f32 %v2761, %v2935
      %v3072 = vadd.f32 %v2762, %v2938
      %v3073 = vadd.f32 %v2763, %v2943
      %v3074 = vadd.f32 %v2764, %v2946
      %v3075 = vadd.f32 %v2765, %v2951
      %v3076 = vadd.f32 %v2766, %v2954
      %v3077 = vadd.f32 %v2767, %v2959
      %v3078 = vadd.f32 %v2768, %v2962
      %v3079 = vadd.f32 %v2769, %v2967
      %v3080 = vadd.f32 %v2770, %v2970
      %v3081 = vadd.f32 %v2771, %v2975
      %v3082 = vadd.f32 %v2772, %v2978
      %v3083 = vadd.f32 %v2773, %v2983
      %v3084 = vadd.f32 %v2774, %v2986
      %v3085 = vadd.f32 %v2775, %v2991
      %v3086 = vadd.f32 %v2776, %v2994
      %v3087 = vadd.f32 %v2777, %v2999
      %v3088 = vadd.f32 %v2778, %v3002
      %v3089 = vadd.f32 %v2779, %v3007
      %v3090 = vadd.f32 %v2780, %v3010
      %v3091 = vadd.f32 %v2781, %v3015
      %v3092 = vadd.f32 %v2782, %v3018
      %v3093 = vadd.f32 %v2783, %v3023
      %v3094 = vadd.f32 %v2784, %v3026
      %v3095 = vadd.f32 %v2785, %v3031
      %v3096 = vadd.f32 %v2786, %v3034
      %v3097 = vadd.f32 %v2787, %v3039
      %v3098 = vadd.f32 %v2788, %v3042
      %v3099 = vadd.f32 %v2789, %v3047
      %v3100 = vadd.f32 %v2790, %v3050
      %v3101 = vadd.f32 %v2791, %v3055
      %v3102 = vadd.f32 %v2792, %v3058
      %v3103 = vadd.f32 %v2793, %v3063
      %v3104 = vadd.f32 %v2794, %v3066
      %v3106 = vlaneseq
      %v3107 = vshrl.u32 %v3106, 7
      %v3108 = vsub.s32 0, %v3107
      %v3109 = vrot.slane %v348, %v3108
      %v3111 = vmul.f32 %v3069, %v3109
      %v3112 = vmul.f32 %v3070, %v3109
      %v3113 = vmul.f32 %v3071, %v3109
      %v3114 = vmul.f32 %v3072, %v3109
      %v3115 = vmul.f32 %v3073, %v3109
      %v3116 = vmul.f32 %v3074, %v3109
      %v3117 = vmul.f32 %v3075, %v3109
      %v3118 = vmul.f32 %v3076, %v3109
      %v3119 = vmul.f32 %v3077, %v3109
      %v3120 = vmul.f32 %v3078, %v3109
      %v3121 = vmul.f32 %v3079, %v3109
      %v3122 = vmul.f32 %v3080, %v3109
      %v3123 = vmul.f32 %v3081, %v3109
      %v3124 = vmul.f32 %v3082, %v3109
      %v3125 = vmul.f32 %v3083, %v3109
      %v3126 = vmul.f32 %v3084, %v3109
      %v3127 = vmul.f32 %v3085, %v3109
      %v3128 = vmul.f32 %v3086, %v3109
      %v3129 = vmul.f32 %v3087, %v3109
      %v3130 = vmul.f32 %v3088, %v3109
      %v3131 = vmul.f32 %v3089, %v3109
      %v3132 = vmul.f32 %v3090, %v3109
      %v3133 = vmul.f32 %v3091, %v3109
      %v3134 = vmul.f32 %v3092, %v3109
      %v3135 = vmul.f32 %v3093, %v3109
      %v3136 = vmul.f32 %v3094, %v3109
      %v3137 = vmul.f32 %v3095, %v3109
      %v3138 = vmul.f32 %v3096, %v3109
      %v3139 = vmul.f32 %v3097, %v3109
      %v3140 = vmul.f32 %v3098, %v3109
      %v3141 = vmul.f32 %v3099, %v3109
      %v3142 = vmul.f32 %v3100, %v3109
      %v3143 = vmul.f32 %v3101, %v3109
      %v3144 = vmul.f32 %v3102, %v3109
      %v3145 = vmul.f32 %v3103, %v3109
      %v3146 = vmul.f32 %v3104, %v3109
      %v3148 = vlaneseq
      %v3149 = vshrl.u32 %v3148, 7
      %v3150 = vsub.s32 0, %v3149
      %v3151 = vrot.slane %v349, %v3150
      %v3153 = vadd.f32 %v3111, %v3151
      %v3154 = vadd.f32 %v3112, %v3151
      %v3155 = vadd.f32 %v3113, %v3151
      %v3156 = vadd.f32 %v3114, %v3151
      %v3157 = vadd.f32 %v3115, %v3151
      %v3158 = vadd.f32 %v3116, %v3151
      %v3159 = vadd.f32 %v3117, %v3151
      %v3160 = vadd.f32 %v3118, %v3151
      %v3161 = vadd.f32 %v3119, %v3151
      %v3162 = vadd.f32 %v3120, %v3151
      %v3163 = vadd.f32 %v3121, %v3151
      %v3164 = vadd.f32 %v3122, %v3151
      %v3165 = vadd.f32 %v3123, %v3151
      %v3166 = vadd.f32 %v3124, %v3151
      %v3167 = vadd.f32 %v3125, %v3151
      %v3168 = vadd.f32 %v3126, %v3151
      %v3169 = vadd.f32 %v3127, %v3151
      %v3170 = vadd.f32 %v3128, %v3151
      %v3171 = vadd.f32 %v3129, %v3151
      %v3172 = vadd.f32 %v3130, %v3151
      %v3173 = vadd.f32 %v3131, %v3151
      %v3174 = vadd.f32 %v3132, %v3151
      %v3175 = vadd.f32 %v3133, %v3151
      %v3176 = vadd.f32 %v3134, %v3151
      %v3177 = vadd.f32 %v3135, %v3151
      %v3178 = vadd.f32 %v3136, %v3151
      %v3179 = vadd.f32 %v3137, %v3151
      %v3180 = vadd.f32 %v3138, %v3151
      %v3181 = vadd.f32 %v3139, %v3151
      %v3182 = vadd.f32 %v3140, %v3151
      %v3183 = vadd.f32 %v3141, %v3151
      %v3184 = vadd.f32 %v3142, %v3151
      %v3185 = vadd.f32 %v3143, %v3151
      %v3186 = vadd.f32 %v3144, %v3151
      %v3187 = vadd.f32 %v3145, %v3151
      %v3188 = vadd.f32 %v3146, %v3151
      %v3189 = vmul.f32 %v3153, 0.5
      %v3190 = vmul.f32 %v3154, 0.5
      %v3191 = vmul.f32 %v3155, 0.5
      %v3192 = vmul.f32 %v3156, 0.5
      %v3193 = vmul.f32 %v3157, 0.5
      %v3194 = vmul.f32 %v3158, 0.5
      %v3195 = vmul.f32 %v3159, 0.5
      %v3196 = vmul.f32 %v3160, 0.5
      %v3197 = vmul.f32 %v3161, 0.5
      %v3198 = vmul.f32 %v3162, 0.5
      %v3199 = vmul.f32 %v3163, 0.5
      %v3200 = vmul.f32 %v3164, 0.5
      %v3201 = vmul.f32 %v3165, 0.5
      %v3202 = vmul.f32 %v3166, 0.5
      %v3203 = vmul.f32 %v3167, 0.5
      %v3204 = vmul.f32 %v3168, 0.5
      %v3205 = vmul.f32 %v3169, 0.5
      %v3206 = vmul.f32 %v3170, 0.5
      %v3207 = vmul.f32 %v3171, 0.5
      %v3208 = vmul.f32 %v3172, 0.5
      %v3209 = vmul.f32 %v3173, 0.5
      %v3210 = vmul.f32 %v3174, 0.5
      %v3211 = vmul.f32 %v3175, 0.5
      %v3212 = vmul.f32 %v3176, 0.5
      %v3213 = vmul.f32 %v3177, 0.5
      %v3214 = vmul.f32 %v3178, 0.5
      %v3215 = vmul.f32 %v3179, 0.5
      %v3216 = vmul.f32 %v3180, 0.5
      %v3217 = vmul.f32 %v3181, 0.5
      %v3218 = vmul.f32 %v3182, 0.5
      %v3219 = vmul.f32 %v3183, 0.5
      %v3220 = vmul.f32 %v3184, 0.5
      %v3221 = vmul.f32 %v3185, 0.5
      %v3222 = vmul.f32 %v3186, 0.5
      %v3223 = vmul.f32 %v3187, 0.5
      %v3224 = vmul.f32 %v3188, 0.5
      %v3225 = vmul.f32 %v3153, 0.70710677
      %v3226 = vmul.f32 %v3154, 0.70710677
      %v3227 = vmul.f32 %v3155, 0.70710677
      %v3228 = vmul.f32 %v3156, 0.70710677
      %v3229 = vmul.f32 %v3157, 0.70710677
      %v3230 = vmul.f32 %v3158, 0.70710677
      %v3231 = vmul.f32 %v3159, 0.70710677
      %v3232 = vmul.f32 %v3160, 0.70710677
      %v3233 = vmul.f32 %v3161, 0.70710677
      %v3234 = vmul.f32 %v3162, 0.70710677
      %v3235 = vmul.f32 %v3163, 0.70710677
      %v3236 = vmul.f32 %v3164, 0.70710677
      %v3237 = vmul.f32 %v3165, 0.70710677
      %v3238 = vmul.f32 %v3166, 0.70710677
      %v3239 = vmul.f32 %v3167, 0.70710677
      %v3240 = vmul.f32 %v3168, 0.70710677
      %v3241 = vmul.f32 %v3169, 0.70710677
      %v3242 = vmul.f32 %v3170, 0.70710677
      %v3243 = vmul.f32 %v3171, 0.70710677
      %v3244 = vmul.f32 %v3172, 0.70710677
      %v3245 = vmul.f32 %v3173, 0.70710677
      %v3246 = vmul.f32 %v3174, 0.70710677
      %v3247 = vmul.f32 %v3175, 0.70710677
      %v3248 = vmul.f32 %v3176, 0.70710677
      %v3249 = vmul.f32 %v3177, 0.70710677
      %v3250 = vmul.f32 %v3178, 0.70710677
      %v3251 = vmul.f32 %v3179, 0.70710677
      %v3252 = vmul.f32 %v3180, 0.70710677
      %v3253 = vmul.f32 %v3181, 0.70710677
      %v3254 = vmul.f32 %v3182, 0.70710677
      %v3255 = vmul.f32 %v3183, 0.70710677
      %v3256 = vmul.f32 %v3184, 0.70710677
      %v3257 = vmul.f32 %v3185, 0.70710677
      %v3258 = vmul.f32 %v3186, 0.70710677
      %v3259 = vmul.f32 %v3187, 0.70710677
      %v3260 = vmul.f32 %v3188, 0.70710677
      %v3261 = verf.f32.pop %v3225
      %v3262 = verf.f32.pop %v3226
      %v3263 = verf.f32.pop %v3227
      %v3264 = verf.f32.pop %v3228
      %v3265 = verf.f32.pop %v3229
      %v3266 = verf.f32.pop %v3230
      %v3267 = verf.f32.pop %v3231
      %v3268 = verf.f32.pop %v3232
      %v3269 = verf.f32.pop %v3233
      %v3270 = verf.f32.pop %v3234
      %v3271 = verf.f32.pop %v3235
      %v3272 = verf.f32.pop %v3236
      %v3273 = verf.f32.pop %v3237
      %v3274 = verf.f32.pop %v3238
      %v3275 = verf.f32.pop %v3239
      %v3276 = verf.f32.pop %v3240
      %v3277 = verf.f32.pop %v3241
      %v3278 = verf.f32.pop %v3242
      %v3279 = verf.f32.pop %v3243
      %v3280 = verf.f32.pop %v3244
      %v3281 = verf.f32.pop %v3245
      %v3282 = verf.f32.pop %v3246
      %v3283 = verf.f32.pop %v3247
      %v3284 = verf.f32.pop %v3248
      %v3285 = verf.f32.pop %v3249
      %v3286 = verf.f32.pop %v3250
      %v3287 = verf.f32.pop %v3251
      %v3288 = verf.f32.pop %v3252
      %v3289 = verf.f32.pop %v3253
      %v3290 = verf.f32.pop %v3254
      %v3291 = verf.f32.pop %v3255
      %v3292 = verf.f32.pop %v3256
      %v3293 = verf.f32.pop %v3257
      %v3294 = verf.f32.pop %v3258
      %v3295 = verf.f32.pop %v3259
      %v3296 = verf.f32.pop %v3260
      %v3297 = vadd.f32 %v3261, 1.0
      %v3298 = vadd.f32 %v3262, 1.0
      %v3299 = vadd.f32 %v3263, 1.0
      %v3300 = vadd.f32 %v3264, 1.0
      %v3301 = vadd.f32 %v3265, 1.0
      %v3302 = vadd.f32 %v3266, 1.0
      %v3303 = vadd.f32 %v3267, 1.0
      %v3304 = vadd.f32 %v3268, 1.0
      %v3305 = vadd.f32 %v3269, 1.0
      %v3306 = vadd.f32 %v3270, 1.0
      %v3307 = vadd.f32 %v3271, 1.0
      %v3308 = vadd.f32 %v3272, 1.0
      %v3309 = vadd.f32 %v3273, 1.0
      %v3310 = vadd.f32 %v3274, 1.0
      %v3311 = vadd.f32 %v3275, 1.0
      %v3312 = vadd.f32 %v3276, 1.0
      %v3313 = vadd.f32 %v3277, 1.0
      %v3314 = vadd.f32 %v3278, 1.0
      %v3315 = vadd.f32 %v3279, 1.0
      %v3316 = vadd.f32 %v3280, 1.0
      %v3317 = vadd.f32 %v3281, 1.0
      %v3318 = vadd.f32 %v3282, 1.0
      %v3319 = vadd.f32 %v3283, 1.0
      %v3320 = vadd.f32 %v3284, 1.0
      %v3321 = vadd.f32 %v3285, 1.0
      %v3322 = vadd.f32 %v3286, 1.0
      %v3323 = vadd.f32 %v3287, 1.0
      %v3324 = vadd.f32 %v3288, 1.0
      %v3325 = vadd.f32 %v3289, 1.0
      %v3326 = vadd.f32 %v3290, 1.0
      %v3327 = vadd.f32 %v3291, 1.0
      %v3328 = vadd.f32 %v3292, 1.0
      %v3329 = vadd.f32 %v3293, 1.0
      %v3330 = vadd.f32 %v3294, 1.0
      %v3331 = vadd.f32 %v3295, 1.0
      %v3332 = vadd.f32 %v3296, 1.0
      %v3333 = vmul.f32 %v3189, %v3297
      %v3334 = vmul.f32 %v3190, %v3298
      %v3335 = vmul.f32 %v3191, %v3299
      %v3336 = vmul.f32 %v3192, %v3300
      %v3337 = vmul.f32 %v3193, %v3301
      %v3338 = vmul.f32 %v3194, %v3302
      %v3339 = vmul.f32 %v3195, %v3303
      %v3340 = vmul.f32 %v3196, %v3304
      %v3341 = vmul.f32 %v3197, %v3305
      %v3342 = vmul.f32 %v3198, %v3306
      %v3343 = vmul.f32 %v3199, %v3307
      %v3344 = vmul.f32 %v3200, %v3308
      %v3345 = vmul.f32 %v3201, %v3309
      %v3346 = vmul.f32 %v3202, %v3310
      %v3347 = vmul.f32 %v3203, %v3311
      %v3348 = vmul.f32 %v3204, %v3312
      %v3349 = vmul.f32 %v3205, %v3313
      %v3350 = vmul.f32 %v3206, %v3314
      %v3351 = vmul.f32 %v3207, %v3315
      %v3352 = vmul.f32 %v3208, %v3316
      %v3353 = vmul.f32 %v3209, %v3317
      %v3354 = vmul.f32 %v3210, %v3318
      %v3355 = vmul.f32 %v3211, %v3319
      %v3356 = vmul.f32 %v3212, %v3320
      %v3357 = vmul.f32 %v3213, %v3321
      %v3358 = vmul.f32 %v3214, %v3322
      %v3359 = vmul.f32 %v3215, %v3323
      %v3360 = vmul.f32 %v3216, %v3324
      %v3361 = vmul.f32 %v3217, %v3325
      %v3362 = vmul.f32 %v3218, %v3326
      %v3363 = vmul.f32 %v3219, %v3327
      %v3364 = vmul.f32 %v3220, %v3328
      %v3365 = vmul.f32 %v3221, %v3329
      %v3366 = vmul.f32 %v3222, %v3330
      %v3367 = vmul.f32 %v3223, %v3331
      %v3368 = vmul.f32 %v3224, %v3332
      %vm3369 = vcmask 523264
      %3370 = vst.msk [vmem:[#allocation2] sm:$0xff] %vm3369, 0.0
      %3371 = vst.msk [vmem:[#allocation2 + $0x8] sm:$0xff] %vm3369, 0.0
      %3372 = vst.msk [vmem:[#allocation2 + $0x10] sm:$0xff] %vm3369, 0.0
      %3373 = vst.msk [vmem:[#allocation2 + $0x18] sm:$0xff] %vm3369, 0.0
      %3374 = vst.msk [vmem:[#allocation2 + $0x20] sm:$0xff] %vm3369, 0.0
      %3375 = vst.msk [vmem:[#allocation2 + $0x28] sm:$0xff] %vm3369, 0.0
      %3376 = vst.msk [vmem:[#allocation2 + $0x30] sm:$0xff] %vm3369, 0.0
      %3377 = vst.msk [vmem:[#allocation2 + $0x38] sm:$0xff] %vm3369, 0.0
      %3378 = vst.msk [vmem:[#allocation2 + $0x40] sm:$0xff] %vm3369, 0.0
      %3379 = vst.msk [vmem:[#allocation2 + $0x48] sm:$0xff] %vm3369, 0.0
      %3380 = vst.msk [vmem:[#allocation2 + $0x50] sm:$0xff] %vm3369, 0.0
      %3381 = vst.msk [vmem:[#allocation2 + $0x58] sm:$0xff] %vm3369, 0.0
      %3382 = vst.msk [vmem:[#allocation2 + $0x60] sm:$0xff] %vm3369, 0.0
      %3383 = vst.msk [vmem:[#allocation2 + $0x68] sm:$0xff] %vm3369, 0.0
      %3384 = vst.msk [vmem:[#allocation2 + $0x70] sm:$0xff] %vm3369, 0.0
      %3385 = vst.msk [vmem:[#allocation2 + $0x78] sm:$0xff] %vm3369, 0.0
      %3386 = vst.msk [vmem:[#allocation2 + $0x80] sm:$0xff] %vm3369, 0.0
      %3387 = vst.msk [vmem:[#allocation2 + $0x88] sm:$0xff] %vm3369, 0.0
      %3388 = vst.msk [vmem:[#allocation2 + $0x90] sm:$0xff] %vm3369, 0.0
      %3389 = vst.msk [vmem:[#allocation2 + $0x98] sm:$0xff] %vm3369, 0.0
      %3390 = vst.msk [vmem:[#allocation2 + $0xa0] sm:$0xff] %vm3369, 0.0
      %3391 = vst.msk [vmem:[#allocation2 + $0xa8] sm:$0xff] %vm3369, 0.0
      %3392 = vst.msk [vmem:[#allocation2 + $0xb0] sm:$0xff] %vm3369, 0.0
      %3393 = vst.msk [vmem:[#allocation2 + $0xb8] sm:$0xff] %vm3369, 0.0
      %3394 = vst.msk [vmem:[#allocation2 + $0xc0] sm:$0xff] %vm3369, 0.0
      %3395 = vst.msk [vmem:[#allocation2 + $0xc8] sm:$0xff] %vm3369, 0.0
      %3396 = vst.msk [vmem:[#allocation2 + $0xd0] sm:$0xff] %vm3369, 0.0
      %3397 = vst.msk [vmem:[#allocation2 + $0xd8] sm:$0xff] %vm3369, 0.0
      %3398 = vst.msk [vmem:[#allocation2 + $0xe0] sm:$0xff] %vm3369, 0.0
      %3399 = vst.msk [vmem:[#allocation2 + $0xe8] sm:$0xff] %vm3369, 0.0
      %3400 = vst.msk [vmem:[#allocation2 + $0xf0] sm:$0xff] %vm3369, 0.0
      %3401 = vst.msk [vmem:[#allocation2 + $0xf8] sm:$0xff] %vm3369, 0.0
      %3402 = vst.msk [vmem:[#allocation2 + $0x100] sm:$0xff] %vm3369, 0.0
      %3403 = vst.msk [vmem:[#allocation2 + $0x108] sm:$0xff] %vm3369, 0.0
      %3404 = vst.msk [vmem:[#allocation2 + $0x110] sm:$0xff] %vm3369, 0.0
      %3405 = vst.msk [vmem:[#allocation2 + $0x118] sm:$0xff] %vm3369, 0.0
      %3406 = vst.msk [vmem:[#allocation2 + $0x120] sm:$0xff] %vm3369, 0.0
      %3407 = vst.msk [vmem:[#allocation2 + $0x128] sm:$0xff] %vm3369, 0.0
      %3408 = vst.msk [vmem:[#allocation2 + $0x130] sm:$0xff] %vm3369, 0.0
      %3409 = vst.msk [vmem:[#allocation2 + $0x138] sm:$0xff] %vm3369, 0.0
      %3410 = vst.msk [vmem:[#allocation2 + $0x140] sm:$0xff] %vm3369, 0.0
      %3411 = vst.msk [vmem:[#allocation2 + $0x148] sm:$0xff] %vm3369, 0.0
      %vm3412 = vcmask 521216
      %3413 = vst.msk [vmem:[#allocation2 + $0x150] sm:$0x3f] %vm3412, 0.0
      %v3414 = vld [vmem:[%s1] sm:$0xff]
      %v3415 = vld [vmem:[%s1 + $0x8] sm:$0xff]
      %v3416 = vld [vmem:[%s1 + $0x10] sm:$0xff]
      %v3417 = vld [vmem:[%s1 + $0x18] sm:$0xff]
      %v3418 = vld [vmem:[%s1 + $0x20] sm:$0xff]
      %v3419 = vld [vmem:[%s1 + $0x28] sm:$0xff]
      %v3420 = vld [vmem:[%s1 + $0x30] sm:$0xff]
      %v3421 = vld [vmem:[%s1 + $0x38] sm:$0xff]
      %v3422 = vld [vmem:[%s1 + $0x40] sm:$0xff]
      %v3423 = vld [vmem:[%s1 + $0x48] sm:$0xff]
      %v3424 = vld [vmem:[%s1 + $0x50] sm:$0xff]
      %v3425 = vld [vmem:[%s1 + $0x58] sm:$0xff]
      %v3426 = vld [vmem:[%s1 + $0x60] sm:$0xff]
      %v3427 = vld [vmem:[%s1 + $0x68] sm:$0xff]
      %v3428 = vld [vmem:[%s1 + $0x70] sm:$0xff]
      %v3429 = vld [vmem:[%s1 + $0x78] sm:$0xff]
      %v3430 = vld [vmem:[%s1 + $0x80] sm:$0xff]
      %v3431 = vld [vmem:[%s1 + $0x88] sm:$0xff]
      %v3432 = vld [vmem:[%s1 + $0x90] sm:$0xff]
      %v3433 = vld [vmem:[%s1 + $0x98] sm:$0xff]
      %v3434 = vld [vmem:[%s1 + $0xa0] sm:$0xff]
      %v3435 = vld [vmem:[%s1 + $0xa8] sm:$0xff]
      %v3436 = vld [vmem:[%s1 + $0xb0] sm:$0xff]
      %v3437 = vld [vmem:[%s1 + $0xb8] sm:$0xff]
      %v3438 = vld [vmem:[%s1 + $0xc0] sm:$0xff]
      %v3439 = vld [vmem:[%s1 + $0xc8] sm:$0xff]
      %v3440 = vld [vmem:[%s1 + $0xd0] sm:$0xff]
      %v3441 = vld [vmem:[%s1 + $0xd8] sm:$0xff]
      %v3442 = vld [vmem:[%s1 + $0xe0] sm:$0xff]
      %v3443 = vld [vmem:[%s1 + $0xe8] sm:$0xff]
      %v3444 = vld [vmem:[%s1 + $0xf0] sm:$0xff]
      %v3445 = vld [vmem:[%s1 + $0xf8] sm:$0xff]
      %v3446 = vld [vmem:[%s1 + $0x100] sm:$0xff]
      %v3447 = vld [vmem:[%s1 + $0x108] sm:$0xff]
      %v3448 = vld [vmem:[%s1 + $0x110] sm:$0xff]
      %v3449 = vld [vmem:[%s1 + $0x118] sm:$0xff]
      %3451 = vset.pattern.permute.xlu0 0
      %3452 = vperm.xlu0 %3451, %v3414
      %v3453 = vpop.permute.xlu0 %3452
      %3456 = vset.pattern.permute.xlu0 0
      %3457 = vperm.xlu0 %3456, %v3415
      %v3458 = vpop.permute.xlu0 %3457
      %3461 = vset.pattern.permute.xlu0 0
      %3462 = vperm.xlu0 %3461, %v3416
      %v3463 = vpop.permute.xlu0 %3462
      %3466 = vset.pattern.permute.xlu0 0
      %3467 = vperm.xlu0 %3466, %v3417
      %v3468 = vpop.permute.xlu0 %3467
      %3471 = vset.pattern.permute.xlu0 0
      %3472 = vperm.xlu0 %3471, %v3418
      %v3473 = vpop.permute.xlu0 %3472
      %3476 = vset.pattern.permute.xlu0 0
      %3477 = vperm.xlu0 %3476, %v3419
      %v3478 = vpop.permute.xlu0 %3477
      %3481 = vset.pattern.permute.xlu0 0
      %3482 = vperm.xlu0 %3481, %v3420
      %v3483 = vpop.permute.xlu0 %3482
      %3486 = vset.pattern.permute.xlu0 0
      %3487 = vperm.xlu0 %3486, %v3421
      %v3488 = vpop.permute.xlu0 %3487
      %3491 = vset.pattern.permute.xlu0 0
      %3492 = vperm.xlu0 %3491, %v3422
      %v3493 = vpop.permute.xlu0 %3492
      %3496 = vset.pattern.permute.xlu0 0
      %3497 = vperm.xlu0 %3496, %v3423
      %v3498 = vpop.permute.xlu0 %3497
      %3501 = vset.pattern.permute.xlu0 0
      %3502 = vperm.xlu0 %3501, %v3424
      %v3503 = vpop.permute.xlu0 %3502
      %3506 = vset.pattern.permute.xlu0 0
      %3507 = vperm.xlu0 %3506, %v3425
      %v3508 = vpop.permute.xlu0 %3507
      %3511 = vset.pattern.permute.xlu0 0
      %3512 = vperm.xlu0 %3511, %v3426
      %v3513 = vpop.permute.xlu0 %3512
      %3516 = vset.pattern.permute.xlu0 0
      %3517 = vperm.xlu0 %3516, %v3427
      %v3518 = vpop.permute.xlu0 %3517
      %3521 = vset.pattern.permute.xlu0 0
      %3522 = vperm.xlu0 %3521, %v3428
      %v3523 = vpop.permute.xlu0 %3522
      %3526 = vset.pattern.permute.xlu0 0
      %3527 = vperm.xlu0 %3526, %v3429
      %v3528 = vpop.permute.xlu0 %3527
      %3531 = vset.pattern.permute.xlu0 0
      %3532 = vperm.xlu0 %3531, %v3430
      %v3533 = vpop.permute.xlu0 %3532
      %3536 = vset.pattern.permute.xlu0 0
      %3537 = vperm.xlu0 %3536, %v3431
      %v3538 = vpop.permute.xlu0 %3537
      %3541 = vset.pattern.permute.xlu0 0
      %3542 = vperm.xlu0 %3541, %v3432
      %v3543 = vpop.permute.xlu0 %3542
      %3546 = vset.pattern.permute.xlu0 0
      %3547 = vperm.xlu0 %3546, %v3433
      %v3548 = vpop.permute.xlu0 %3547
      %3551 = vset.pattern.permute.xlu0 0
      %3552 = vperm.xlu0 %3551, %v3434
      %v3553 = vpop.permute.xlu0 %3552
      %3556 = vset.pattern.permute.xlu0 0
      %3557 = vperm.xlu0 %3556, %v3435
      %v3558 = vpop.permute.xlu0 %3557
      %3561 = vset.pattern.permute.xlu0 0
      %3562 = vperm.xlu0 %3561, %v3436
      %v3563 = vpop.permute.xlu0 %3562
      %3566 = vset.pattern.permute.xlu0 0
      %3567 = vperm.xlu0 %3566, %v3437
      %v3568 = vpop.permute.xlu0 %3567
      %3571 = vset.pattern.permute.xlu0 0
      %3572 = vperm.xlu0 %3571, %v3438
      %v3573 = vpop.permute.xlu0 %3572
      %3576 = vset.pattern.permute.xlu0 0
      %3577 = vperm.xlu0 %3576, %v3439
      %v3578 = vpop.permute.xlu0 %3577
      %3581 = vset.pattern.permute.xlu0 0
      %3582 = vperm.xlu0 %3581, %v3440
      %v3583 = vpop.permute.xlu0 %3582
      %3586 = vset.pattern.permute.xlu0 0
      %3587 = vperm.xlu0 %3586, %v3441
      %v3588 = vpop.permute.xlu0 %3587
      %3591 = vset.pattern.permute.xlu0 0
      %3592 = vperm.xlu0 %3591, %v3442
      %v3593 = vpop.permute.xlu0 %3592
      %3596 = vset.pattern.permute.xlu0 0
      %3597 = vperm.xlu0 %3596, %v3443
      %v3598 = vpop.permute.xlu0 %3597
      %3601 = vset.pattern.permute.xlu0 0
      %3602 = vperm.xlu0 %3601, %v3444
      %v3603 = vpop.permute.xlu0 %3602
      %3606 = vset.pattern.permute.xlu0 0
      %3607 = vperm.xlu0 %3606, %v3445
      %v3608 = vpop.permute.xlu0 %3607
      %3611 = vset.pattern.permute.xlu0 0
      %3612 = vperm.xlu0 %3611, %v3446
      %v3613 = vpop.permute.xlu0 %3612
      %3616 = vset.pattern.permute.xlu0 0
      %3617 = vperm.xlu0 %3616, %v3447
      %v3618 = vpop.permute.xlu0 %3617
      %3621 = vset.pattern.permute.xlu0 0
      %3622 = vperm.xlu0 %3621, %v3448
      %v3623 = vpop.permute.xlu0 %3622
      %3626 = vset.pattern.permute.xlu0 0
      %3627 = vperm.xlu0 %3626, %v3449
      %v3628 = vpop.permute.xlu0 %3627
      %v3630 = vmul.f32 %v3333, %v3453
      %v3631 = vmul.f32 %v3334, %v3458
      %v3632 = vmul.f32 %v3335, %v3463
      %v3633 = vmul.f32 %v3336, %v3468
      %v3634 = vmul.f32 %v3337, %v3473
      %v3635 = vmul.f32 %v3338, %v3478
      %v3636 = vmul.f32 %v3339, %v3483
      %v3637 = vmul.f32 %v3340, %v3488
      %v3638 = vmul.f32 %v3341, %v3493
      %v3639 = vmul.f32 %v3342, %v3498
      %v3640 = vmul.f32 %v3343, %v3503
      %v3641 = vmul.f32 %v3344, %v3508
      %v3642 = vmul.f32 %v3345, %v3513
      %v3643 = vmul.f32 %v3346, %v3518
      %v3644 = vmul.f32 %v3347, %v3523
      %v3645 = vmul.f32 %v3348, %v3528
      %v3646 = vmul.f32 %v3349, %v3533
      %v3647 = vmul.f32 %v3350, %v3538
      %v3648 = vmul.f32 %v3351, %v3543
      %v3649 = vmul.f32 %v3352, %v3548
      %v3650 = vmul.f32 %v3353, %v3553
      %v3651 = vmul.f32 %v3354, %v3558
      %v3652 = vmul.f32 %v3355, %v3563
      %v3653 = vmul.f32 %v3356, %v3568
      %v3654 = vmul.f32 %v3357, %v3573
      %v3655 = vmul.f32 %v3358, %v3578
      %v3656 = vmul.f32 %v3359, %v3583
      %v3657 = vmul.f32 %v3360, %v3588
      %v3658 = vmul.f32 %v3361, %v3593
      %v3659 = vmul.f32 %v3362, %v3598
      %v3660 = vmul.f32 %v3363, %v3603
      %v3661 = vmul.f32 %v3364, %v3608
      %v3662 = vmul.f32 %v3365, %v3613
      %v3663 = vmul.f32 %v3366, %v3618
      %v3664 = vmul.f32 %v3367, %v3623
      %v3665 = vmul.f32 %v3368, %v3628
      %3666 = vst.msk [vmem:[#allocation2 + $0x13] sm:$0xff] %vm3369, %v3630
      %3667 = vst.msk [vmem:[#allocation2 + $0x1b] sm:$0xff] %vm3369, %v3631
      %3668 = vst.msk [vmem:[#allocation2 + $0x23] sm:$0xff] %vm3369, %v3632
      %3669 = vst.msk [vmem:[#allocation2 + $0x2b] sm:$0xff] %vm3369, %v3633
      %3670 = vst.msk [vmem:[#allocation2 + $0x33] sm:$0xff] %vm3369, %v3634
      %3671 = vst.msk [vmem:[#allocation2 + $0x3b] sm:$0xff] %vm3369, %v3635
      %3672 = vst.msk [vmem:[#allocation2 + $0x43] sm:$0xff] %vm3369, %v3636
      %3673 = vst.msk [vmem:[#allocation2 + $0x4b] sm:$0xff] %vm3369, %v3637
      %3674 = vst.msk [vmem:[#allocation2 + $0x53] sm:$0xff] %vm3369, %v3638
      %3675 = vst.msk [vmem:[#allocation2 + $0x5b] sm:$0xff] %vm3369, %v3639
      %3676 = vst.msk [vmem:[#allocation2 + $0x63] sm:$0xff] %vm3369, %v3640
      %3677 = vst.msk [vmem:[#allocation2 + $0x6b] sm:$0xff] %vm3369, %v3641
      %3678 = vst.msk [vmem:[#allocation2 + $0x73] sm:$0xff] %vm3369, %v3642
      %3679 = vst.msk [vmem:[#allocation2 + $0x7b] sm:$0xff] %vm3369, %v3643
      %3680 = vst.msk [vmem:[#allocation2 + $0x83] sm:$0xff] %vm3369, %v3644
      %3681 = vst.msk [vmem:[#allocation2 + $0x8b] sm:$0xff] %vm3369, %v3645
      %3682 = vst.msk [vmem:[#allocation2 + $0x93] sm:$0xff] %vm3369, %v3646
      %3683 = vst.msk [vmem:[#allocation2 + $0x9b] sm:$0xff] %vm3369, %v3647
      %3684 = vst.msk [vmem:[#allocation2 + $0xa3] sm:$0xff] %vm3369, %v3648
      %3685 = vst.msk [vmem:[#allocation2 + $0xab] sm:$0xff] %vm3369, %v3649
      %3686 = vst.msk [vmem:[#allocation2 + $0xb3] sm:$0xff] %vm3369, %v3650
      %3687 = vst.msk [vmem:[#allocation2 + $0xbb] sm:$0xff] %vm3369, %v3651
      %3688 = vst.msk [vmem:[#allocation2 + $0xc3] sm:$0xff] %vm3369, %v3652
      %3689 = vst.msk [vmem:[#allocation2 + $0xcb] sm:$0xff] %vm3369, %v3653
      %3690 = vst.msk [vmem:[#allocation2 + $0xd3] sm:$0xff] %vm3369, %v3654
      %3691 = vst.msk [vmem:[#allocation2 + $0xdb] sm:$0xff] %vm3369, %v3655
      %3692 = vst.msk [vmem:[#allocation2 + $0xe3] sm:$0xff] %vm3369, %v3656
      %3693 = vst.msk [vmem:[#allocation2 + $0xeb] sm:$0xff] %vm3369, %v3657
      %3694 = vst.msk [vmem:[#allocation2 + $0xf3] sm:$0xff] %vm3369, %v3658
      %3695 = vst.msk [vmem:[#allocation2 + $0xfb] sm:$0xff] %vm3369, %v3659
      %3696 = vst.msk [vmem:[#allocation2 + $0x103] sm:$0xff] %vm3369, %v3660
      %3697 = vst.msk [vmem:[#allocation2 + $0x10b] sm:$0xff] %vm3369, %v3661
      %3698 = vst.msk [vmem:[#allocation2 + $0x113] sm:$0xff] %vm3369, %v3662
      %3699 = vst.msk [vmem:[#allocation2 + $0x11b] sm:$0xff] %vm3369, %v3663
      %3700 = vst.msk [vmem:[#allocation2 + $0x123] sm:$0xff] %vm3369, %v3664
      %3701 = vst.msk [vmem:[#allocation2 + $0x12b] sm:$0xff] %vm3369, %v3665
      %v3702 = vld [vmem:[#allocation2] sm:$0xff]
      %v3703 = vld [vmem:[#allocation2 + $0x8] sm:$0xff]
      %v3704 = vld [vmem:[#allocation2 + $0x10] sm:$0xff]
      %v3705 = vld [vmem:[#allocation2 + $0x18] sm:$0xff]
      %v3706 = vld [vmem:[#allocation2 + $0x20] sm:$0xff]
      %v3707 = vld [vmem:[#allocation2 + $0x28] sm:$0xff]
      %v3708 = vld [vmem:[#allocation2 + $0x30] sm:$0xff]
      %v3709 = vld [vmem:[#allocation2 + $0x38] sm:$0xff]
      %v3710 = vld [vmem:[#allocation2 + $0x40] sm:$0xff]
      %v3711 = vld [vmem:[#allocation2 + $0x48] sm:$0xff]
      %v3712 = vld [vmem:[#allocation2 + $0x50] sm:$0xff]
      %v3713 = vld [vmem:[#allocation2 + $0x58] sm:$0xff]
      %v3714 = vld [vmem:[#allocation2 + $0x60] sm:$0xff]
      %v3715 = vld [vmem:[#allocation2 + $0x68] sm:$0xff]
      %v3716 = vld [vmem:[#allocation2 + $0x70] sm:$0xff]
      %v3717 = vld [vmem:[#allocation2 + $0x78] sm:$0xff]
      %v3718 = vld [vmem:[#allocation2 + $0x80] sm:$0xff]
      %v3719 = vld [vmem:[#allocation2 + $0x88] sm:$0xff]
      %v3720 = vld [vmem:[#allocation2 + $0x90] sm:$0xff]
      %v3721 = vld [vmem:[#allocation2 + $0x98] sm:$0xff]
      %v3722 = vld [vmem:[#allocation2 + $0xa0] sm:$0xff]
      %v3723 = vld [vmem:[#allocation2 + $0xa8] sm:$0xff]
      %v3724 = vld [vmem:[#allocation2 + $0xb0] sm:$0xff]
      %v3725 = vld [vmem:[#allocation2 + $0xb8] sm:$0xff]
      %v3726 = vld [vmem:[#allocation2 + $0xc0] sm:$0xff]
      %v3727 = vld [vmem:[#allocation2 + $0xc8] sm:$0xff]
      %v3728 = vld [vmem:[#allocation2 + $0xd0] sm:$0xff]
      %v3729 = vld [vmem:[#allocation2 + $0xd8] sm:$0xff]
      %v3730 = vld [vmem:[#allocation2 + $0xe0] sm:$0xff]
      %v3731 = vld [vmem:[#allocation2 + $0xe8] sm:$0xff]
      %v3732 = vld [vmem:[#allocation2 + $0xf0] sm:$0xff]
      %v3733 = vld [vmem:[#allocation2 + $0xf8] sm:$0xff]
      %v3734 = vld [vmem:[#allocation2 + $0x100] sm:$0xff]
      %v3735 = vld [vmem:[#allocation2 + $0x108] sm:$0xff]
      %v3736 = vld [vmem:[#allocation2 + $0x110] sm:$0xff]
      %v3737 = vld [vmem:[#allocation2 + $0x118] sm:$0xff]
      %v3738 = vld [vmem:[#allocation2 + $0x120] sm:$0xff]
      %v3739 = vld [vmem:[#allocation2 + $0x128] sm:$0xff]
      %v3740 = vld [vmem:[#allocation2 + $0x130] sm:$0xff]
      %v3741 = vld [vmem:[#allocation2 + $0x138] sm:$0xff]
      %v3742 = vld [vmem:[#allocation2 + $0x140] sm:$0xff]
      %v3743 = vld [vmem:[%s6] sm:$0x1]
      %v3744 = vld [vmem:[%s7] sm:$0x1]
      %v3745 = vpack.c.bf16 %v3703, %v3702
      %v3746 = vpack.c.bf16 %v3705, %v3704
      %v3747 = vpack.c.bf16 %v3707, %v3706
      %v3748 = vpack.c.bf16 %v3709, %v3708
      %v3749 = vpack.c.bf16 %v3711, %v3710
      %v3750 = vpack.c.bf16 %v3713, %v3712
      %v3751 = vpack.c.bf16 %v3715, %v3714
      %v3752 = vpack.c.bf16 %v3717, %v3716
      %v3753 = vpack.c.bf16 %v3719, %v3718
      %v3754 = vpack.c.bf16 %v3721, %v3720
      %v3755 = vpack.c.bf16 %v3723, %v3722
      %v3756 = vpack.c.bf16 %v3725, %v3724
      %v3757 = vpack.c.bf16 %v3727, %v3726
      %v3758 = vpack.c.bf16 %v3729, %v3728
      %v3759 = vpack.c.bf16 %v3731, %v3730
      %v3760 = vpack.c.bf16 %v3733, %v3732
      %v3761 = vpack.c.bf16 %v3735, %v3734
      %v3762 = vpack.c.bf16 %v3737, %v3736
      %v3763 = vld [vmem:[%s5] sm:$0xf]
      %v3764 = vld [vmem:[%s5 + $0x4] sm:$0xf]
      %v3765 = vld [vmem:[%s5 + $0x8] sm:$0xf]
      %v3766 = vld [vmem:[%s5 + $0xc] sm:$0xf]
      %v3767 = vld [vmem:[%s5 + $0x10] sm:$0xf]
      %v3768 = vld [vmem:[%s5 + $0x14] sm:$0xf]
      %v3769 = vld [vmem:[%s5 + $0x18] sm:$0xf]
      %v3770 = vld [vmem:[%s5 + $0x1c] sm:$0xf]
      %v3771 = vpack.c.bf16 %v3738, %v3738
      %s3772 = scalar_lea.vmem %s5, 32
      %v3773 = vld [vmem:[%s3772] sm:$0xf]
      %v3774 = vld [vmem:[%s3772 + $0x4] sm:$0xf]
      %v3775 = vld [vmem:[%s3772 + $0x8] sm:$0xf]
      %v3776 = vld [vmem:[%s3772 + $0xc] sm:$0xf]
      %v3777 = vld [vmem:[%s3772 + $0x10] sm:$0xf]
      %v3778 = vld [vmem:[%s3772 + $0x14] sm:$0xf]
      %v3779 = vld [vmem:[%s3772 + $0x18] sm:$0xf]
      %v3780 = vld [vmem:[%s3772 + $0x1c] sm:$0xf]
      %v3782 = vshrl.u32 %v3745, 16
      %v3784 = vshll.u32 %v3745, 16
      %v3786 = vrot.slane %v3784, 1
      %v3787 = vor.u32 %v3782, %v3786
      %v3789 = vshll.u32 %v3746, 16
      %v3791 = vrot.slane %v3789, 1
      %v3792 = vsel %vm372, %v3787, %v3791
      %v3793 = vshrl.u32 %v3746, 16
      %v3795 = vor.u32 %v3793, %v3791
      %v3797 = vshll.u32 %v3747, 16
      %v3799 = vrot.slane %v3797, 1
      %v3800 = vsel %vm372, %v3795, %v3799
      %v3801 = vshrl.u32 %v3747, 16
      %v3803 = vor.u32 %v3801, %v3799
      %v3805 = vshll.u32 %v3748, 16
      %v3807 = vrot.slane %v3805, 1
      %v3808 = vsel %vm372, %v3803, %v3807
      %v3809 = vshrl.u32 %v3748, 16
      %v3811 = vor.u32 %v3809, %v3807
      %v3813 = vshll.u32 %v3749, 16
      %v3815 = vrot.slane %v3813, 1
      %v3816 = vsel %vm372, %v3811, %v3815
      %v3817 = vshrl.u32 %v3749, 16
      %v3819 = vor.u32 %v3817, %v3815
      %v3821 = vshll.u32 %v3750, 16
      %v3823 = vrot.slane %v3821, 1
      %v3824 = vsel %vm372, %v3819, %v3823
      %v3825 = vshrl.u32 %v3750, 16
      %v3827 = vor.u32 %v3825, %v3823
      %v3829 = vshll.u32 %v3751, 16
      %v3831 = vrot.slane %v3829, 1
      %v3832 = vsel %vm372, %v3827, %v3831
      %v3833 = vshrl.u32 %v3751, 16
      %v3835 = vor.u32 %v3833, %v3831
      %v3837 = vshll.u32 %v3752, 16
      %v3839 = vrot.slane %v3837, 1
      %v3840 = vsel %vm372, %v3835, %v3839
      %v3841 = vshrl.u32 %v3752, 16
      %v3843 = vor.u32 %v3841, %v3839
      %v3845 = vshll.u32 %v3753, 16
      %v3847 = vrot.slane %v3845, 1
      %v3848 = vsel %vm372, %v3843, %v3847
      %v3849 = vshrl.u32 %v3753, 16
      %v3851 = vor.u32 %v3849, %v3847
      %v3853 = vshll.u32 %v3754, 16
      %v3855 = vrot.slane %v3853, 1
      %v3856 = vsel %vm372, %v3851, %v3855
      %v3857 = vshrl.u32 %v3754, 16
      %v3859 = vor.u32 %v3857, %v3855
      %v3861 = vshll.u32 %v3755, 16
      %v3863 = vrot.slane %v3861, 1
      %v3864 = vsel %vm372, %v3859, %v3863
      %v3865 = vshrl.u32 %v3755, 16
      %v3867 = vor.u32 %v3865, %v3863
      %v3869 = vshll.u32 %v3756, 16
      %v3871 = vrot.slane %v3869, 1
      %v3872 = vsel %vm372, %v3867, %v3871
      %v3873 = vshrl.u32 %v3756, 16
      %v3875 = vor.u32 %v3873, %v3871
      %v3877 = vshll.u32 %v3757, 16
      %v3879 = vrot.slane %v3877, 1
      %v3880 = vsel %vm372, %v3875, %v3879
      %v3881 = vshrl.u32 %v3757, 16
      %v3883 = vor.u32 %v3881, %v3879
      %v3885 = vshll.u32 %v3758, 16
      %v3887 = vrot.slane %v3885, 1
      %v3888 = vsel %vm372, %v3883, %v3887
      %v3889 = vshrl.u32 %v3758, 16
      %v3891 = vor.u32 %v3889, %v3887
      %v3893 = vshll.u32 %v3759, 16
      %v3895 = vrot.slane %v3893, 1
      %v3896 = vsel %vm372, %v3891, %v3895
      %v3897 = vshrl.u32 %v3759, 16
      %v3899 = vor.u32 %v3897, %v3895
      %v3901 = vshll.u32 %v3760, 16
      %v3903 = vrot.slane %v3901, 1
      %v3904 = vsel %vm372, %v3899, %v3903
      %v3905 = vshrl.u32 %v3760, 16
      %v3907 = vor.u32 %v3905, %v3903
      %v3909 = vshll.u32 %v3761, 16
      %v3911 = vrot.slane %v3909, 1
      %v3912 = vsel %vm372, %v3907, %v3911
      %v3913 = vshrl.u32 %v3761, 16
      %v3915 = vor.u32 %v3913, %v3911
      %v3917 = vshll.u32 %v3762, 16
      %v3919 = vrot.slane %v3917, 1
      %v3920 = vsel %vm372, %v3915, %v3919
      %v3921 = vshrl.u32 %v3762, 16
      %v3923 = vor.u32 %v3921, %v3919
      %v3925 = vshll.u32 %v3771, 16
      %v3927 = vrot.slane %v3925, 1
      %v3928 = vsel %vm372, %v3923, %v3927
      %v3937 = vunpack.c.l.b16 %v3773
      %v3938 = vunpack.c.l.b16 %v3774
      %v3939 = vunpack.c.l.b16 %v3775
      %v3940 = vunpack.c.l.b16 %v3776
      %v3941 = vunpack.c.l.b16 %v3777
      %v3942 = vunpack.c.l.b16 %v3778
      %v3943 = vunpack.c.l.b16 %v3779
      %v3944 = vunpack.c.l.b16 %v3780
      %v3945 = vpack.c.b16 %v3938, %v3937
      %v3946 = vpack.c.b16 %v3940, %v3939
      %v3947 = vpack.c.b16 %v3942, %v3941
      %v3948 = vpack.c.b16 %v3944, %v3943
      %v3954 = vsel %vm3369, %v3792, 0
      %v3957 = vsel %vm3369, %v3800, 0
      %v3960 = vsel %vm3369, %v3808, 0
      %v3963 = vsel %vm3369, %v3816, 0
      %v3966 = vsel %vm3369, %v3824, 0
      %v3969 = vsel %vm3369, %v3832, 0
      %v3972 = vsel %vm3369, %v3840, 0
      %v3975 = vsel %vm3369, %v3848, 0
      %v3978 = vsel %vm3369, %v3856, 0
      %v3981 = vsel %vm3369, %v3864, 0
      %v3984 = vsel %vm3369, %v3872, 0
      %v3987 = vsel %vm3369, %v3880, 0
      %v3990 = vsel %vm3369, %v3888, 0
      %v3993 = vsel %vm3369, %v3896, 0
      %v3996 = vsel %vm3369, %v3904, 0
      %v3999 = vsel %vm3369, %v3912, 0
      %v4002 = vsel %vm3369, %v3920, 0
      %v4005 = vsel %vm3369, %v3928, 0
      %4007 = vmatprep.subr.bf16.mxu0 0
      %4008 = vmatpush1.bf16.msra.mxu0 0
      %4009 = vmatprep.subr.bf16.mxu0 0
      %4010 = vmatpush1.bf16.msra.mxu0 0
      %4011 = vmatprep.subr.bf16.mxu0 0
      %4012 = vmatpush1.bf16.msra.mxu0 0
      %4013 = vmatprep.subr.bf16.mxu0 0
      %4014 = vmatpush1.bf16.msra.mxu0 0
      %4015 = vmatprep.subr.bf16.mxu0 0
      %4016 = vmatpush1.bf16.msra.mxu0 %v3948
      %4017 = vmatprep.subr.bf16.mxu0 0
      %4018 = vmatpush1.bf16.msra.mxu0 %v3947
      %4019 = vmatprep.subr.bf16.mxu0 0
      %4020 = vmatpush1.bf16.msra.mxu0 %v3946
      %4021 = vmatprep.subr.bf16.mxu0 0
      %4022 = vmatpush1.bf16.msra.mxu0 %v3945
      %4023 = vmatprep.subr.bf16.mxu0 0
      %4024 = vmatpush2.bf16.msra.mxu0 0
      %4025 = vmatprep.subr.bf16.mxu0 0
      %4026 = vmatpush2.bf16.msra.mxu0 0
      %4027 = vmatprep.subr.bf16.mxu0 0
      %4028 = vmatpush2.bf16.msra.mxu0 0
      %4029 = vmatprep.subr.bf16.mxu0 0
      %4030 = vmatpush2.bf16.msra.mxu0 0
      %4031 = vmatprep.subr.bf16.mxu0 0
      %4032 = vmatpush2.bf16.msra.mxu0 0
      %4033 = vmatprep.subr.bf16.mxu0 0
      %4034 = vmatpush2.bf16.msra.mxu0 0
      %4035 = vmatprep.subr.bf16.mxu0 0
      %4036 = vmatpush2.bf16.msra.mxu0 0
      %4037 = vmatprep.subr.bf16.mxu0 0
      %4038 = vmatpush2.bf16.msra.mxu0 0
      %4039 = vmatprep.mubr.bf16.mxu0 0
      %4040 = vmatmul.mubr.bf16.gmra.mxu0 %v3954
      %v4041 = vpop.f32.mrf.mxu0
      %v4042 = vadd.f32 0.0, %v4041
      %v4043 = vpop.f32.mrf.mxu0
      %v4044 = vpop.f32.mrf.mxu0
      %v4045 = vadd.f32 0.0, %v4044
      %v4046 = vpop.f32.mrf.mxu0
      %4047 = vmatprep.mubr.bf16.mxu0 0
      %4048 = vmatmul.mubr.bf16.gmra.mxu0 %v3957
      %v4049 = vpop.f32.mrf.mxu0
      %v4050 = vadd.f32 0.0, %v4049
      %v4051 = vpop.f32.mrf.mxu0
      %v4052 = vpop.f32.mrf.mxu0
      %v4053 = vadd.f32 0.0, %v4052
      %v4054 = vpop.f32.mrf.mxu0
      %4055 = vmatprep.mubr.bf16.mxu0 0
      %4056 = vmatmul.mubr.bf16.gmra.mxu0 %v3960
      %v4057 = vpop.f32.mrf.mxu0
      %v4058 = vadd.f32 0.0, %v4057
      %v4059 = vpop.f32.mrf.mxu0
      %v4060 = vpop.f32.mrf.mxu0
      %v4061 = vadd.f32 0.0, %v4060
      %v4062 = vpop.f32.mrf.mxu0
      %4063 = vmatprep.mubr.bf16.mxu0 0
      %4064 = vmatmul.mubr.bf16.gmra.mxu0 %v3963
      %v4065 = vpop.f32.mrf.mxu0
      %v4066 = vadd.f32 0.0, %v4065
      %v4067 = vpop.f32.mrf.mxu0
      %v4068 = vpop.f32.mrf.mxu0
      %v4069 = vadd.f32 0.0, %v4068
      %v4070 = vpop.f32.mrf.mxu0
      %4071 = vmatprep.mubr.bf16.mxu0 0
      %4072 = vmatmul.mubr.bf16.gmra.mxu0 %v3966
      %v4073 = vpop.f32.mrf.mxu0
      %v4074 = vadd.f32 0.0, %v4073
      %v4075 = vpop.f32.mrf.mxu0
      %v4076 = vpop.f32.mrf.mxu0
      %v4077 = vadd.f32 0.0, %v4076
      %v4078 = vpop.f32.mrf.mxu0
      %4079 = vmatprep.mubr.bf16.mxu0 0
      %4080 = vmatmul.mubr.bf16.gmra.mxu0 %v3969
      %v4081 = vpop.f32.mrf.mxu0
      %v4082 = vadd.f32 0.0, %v4081
      %v4083 = vpop.f32.mrf.mxu0
      %v4084 = vpop.f32.mrf.mxu0
      %v4085 = vadd.f32 0.0, %v4084
      %v4086 = vpop.f32.mrf.mxu0
      %4087 = vmatprep.mubr.bf16.mxu0 0
      %4088 = vmatmul.mubr.bf16.gmra.mxu0 %v3972
      %v4089 = vpop.f32.mrf.mxu0
      %v4090 = vadd.f32 0.0, %v4089
      %v4091 = vpop.f32.mrf.mxu0
      %v4092 = vpop.f32.mrf.mxu0
      %v4093 = vadd.f32 0.0, %v4092
      %v4094 = vpop.f32.mrf.mxu0
      %4095 = vmatprep.mubr.bf16.mxu0 0
      %4096 = vmatmul.mubr.bf16.gmra.mxu0 %v3975
      %v4097 = vpop.f32.mrf.mxu0
      %v4098 = vadd.f32 0.0, %v4097
      %v4099 = vpop.f32.mrf.mxu0
      %v4100 = vpop.f32.mrf.mxu0
      %v4101 = vadd.f32 0.0, %v4100
      %v4102 = vpop.f32.mrf.mxu0
      %4103 = vmatprep.mubr.bf16.mxu0 0
      %4104 = vmatmul.mubr.bf16.gmra.mxu0 %v3978
      %v4105 = vpop.f32.mrf.mxu0
      %v4106 = vadd.f32 0.0, %v4105
      %v4107 = vpop.f32.mrf.mxu0
      %v4108 = vpop.f32.mrf.mxu0
      %v4109 = vadd.f32 0.0, %v4108
      %v4110 = vpop.f32.mrf.mxu0
      %4111 = vmatprep.mubr.bf16.mxu0 0
      %4112 = vmatmul.mubr.bf16.gmra.mxu0 %v3981
      %v4113 = vpop.f32.mrf.mxu0
      %v4114 = vadd.f32 0.0, %v4113
      %v4115 = vpop.f32.mrf.mxu0
      %v4116 = vpop.f32.mrf.mxu0
      %v4117 = vadd.f32 0.0, %v4116
      %v4118 = vpop.f32.mrf.mxu0
      %4119 = vmatprep.mubr.bf16.mxu0 0
      %4120 = vmatmul.mubr.bf16.gmra.mxu0 %v3984
      %v4121 = vpop.f32.mrf.mxu0
      %v4122 = vadd.f32 0.0, %v4121
      %v4123 = vpop.f32.mrf.mxu0
      %v4124 = vpop.f32.mrf.mxu0
      %v4125 = vadd.f32 0.0, %v4124
      %v4126 = vpop.f32.mrf.mxu0
      %4127 = vmatprep.mubr.bf16.mxu0 0
      %4128 = vmatmul.mubr.bf16.gmra.mxu0 %v3987
      %v4129 = vpop.f32.mrf.mxu0
      %v4130 = vadd.f32 0.0, %v4129
      %v4131 = vpop.f32.mrf.mxu0
      %v4132 = vpop.f32.mrf.mxu0
      %v4133 = vadd.f32 0.0, %v4132
      %v4134 = vpop.f32.mrf.mxu0
      %4135 = vmatprep.mubr.bf16.mxu0 0
      %4136 = vmatmul.mubr.bf16.gmra.mxu0 %v3990
      %v4137 = vpop.f32.mrf.mxu0
      %v4138 = vadd.f32 0.0, %v4137
      %v4139 = vpop.f32.mrf.mxu0
      %v4140 = vpop.f32.mrf.mxu0
      %v4141 = vadd.f32 0.0, %v4140
      %v4142 = vpop.f32.mrf.mxu0
      %4143 = vmatprep.mubr.bf16.mxu0 0
      %4144 = vmatmul.mubr.bf16.gmra.mxu0 %v3993
      %v4145 = vpop.f32.mrf.mxu0
      %v4146 = vadd.f32 0.0, %v4145
      %v4147 = vpop.f32.mrf.mxu0
      %v4148 = vpop.f32.mrf.mxu0
      %v4149 = vadd.f32 0.0, %v4148
      %v4150 = vpop.f32.mrf.mxu0
      %4151 = vmatprep.mubr.bf16.mxu0 0
      %4152 = vmatmul.mubr.bf16.gmra.mxu0 %v3996
      %v4153 = vpop.f32.mrf.mxu0
      %v4154 = vadd.f32 0.0, %v4153
      %v4155 = vpop.f32.mrf.mxu0
      %v4156 = vpop.f32.mrf.mxu0
      %v4157 = vadd.f32 0.0, %v4156
      %v4158 = vpop.f32.mrf.mxu0
      %4159 = vmatprep.mubr.bf16.mxu0 0
      %4160 = vmatmul.mubr.bf16.gmra.mxu0 %v3999
      %v4161 = vpop.f32.mrf.mxu0
      %v4162 = vadd.f32 0.0, %v4161
      %v4163 = vpop.f32.mrf.mxu0
      %v4164 = vpop.f32.mrf.mxu0
      %v4165 = vadd.f32 0.0, %v4164
      %v4166 = vpop.f32.mrf.mxu0
      %4167 = vmatprep.mubr.bf16.mxu0 0
      %4168 = vmatmul.mubr.bf16.gmra.mxu0 %v4002
      %v4169 = vpop.f32.mrf.mxu0
      %v4170 = vadd.f32 0.0, %v4169
      %v4171 = vpop.f32.mrf.mxu0
      %v4172 = vpop.f32.mrf.mxu0
      %v4173 = vadd.f32 0.0, %v4172
      %v4174 = vpop.f32.mrf.mxu0
      %4175 = vmatprep.mubr.bf16.mxu0 0
      %4176 = vmatmul.mubr.bf16.gmra.mxu0 %v4005
      %v4177 = vpop.f32.mrf.mxu0
      %v4178 = vadd.f32 0.0, %v4177
      %v4179 = vpop.f32.mrf.mxu0
      %v4180 = vpop.f32.mrf.mxu0
      %v4181 = vadd.f32 0.0, %v4180
      %v4182 = vpop.f32.mrf.mxu0
      %4183 = vdwg.mxu0
      %v4192 = vunpack.c.l.b16 %v3763
      %v4193 = vunpack.c.l.b16 %v3764
      %v4194 = vunpack.c.l.b16 %v3765
      %v4195 = vunpack.c.l.b16 %v3766
      %v4196 = vunpack.c.l.b16 %v3767
      %v4197 = vunpack.c.l.b16 %v3768
      %v4198 = vunpack.c.l.b16 %v3769
      %v4199 = vunpack.c.l.b16 %v3770
      %v4200 = vpack.c.b16 %v4193, %v4192
      %v4201 = vpack.c.b16 %v4195, %v4194
      %v4202 = vpack.c.b16 %v4197, %v4196
      %v4203 = vpack.c.b16 %v4199, %v4198
      %v4208 = vsel %vm3369, %v3745, 0
      %v4210 = vsel %vm3369, %v3746, 0
      %v4212 = vsel %vm3369, %v3747, 0
      %v4214 = vsel %vm3369, %v3748, 0
      %v4216 = vsel %vm3369, %v3749, 0
      %v4218 = vsel %vm3369, %v3750, 0
      %v4220 = vsel %vm3369, %v3751, 0
      %v4222 = vsel %vm3369, %v3752, 0
      %v4224 = vsel %vm3369, %v3753, 0
      %v4226 = vsel %vm3369, %v3754, 0
      %v4228 = vsel %vm3369, %v3755, 0
      %v4230 = vsel %vm3369, %v3756, 0
      %v4232 = vsel %vm3369, %v3757, 0
      %v4234 = vsel %vm3369, %v3758, 0
      %v4236 = vsel %vm3369, %v3759, 0
      %v4238 = vsel %vm3369, %v3760, 0
      %v4240 = vsel %vm3369, %v3761, 0
      %v4242 = vsel %vm3369, %v3762, 0
      %4244 = vmatprep.subr.bf16.mxu0 0
      %4245 = vmatpush1.bf16.msra.mxu0 0
      %4246 = vmatprep.subr.bf16.mxu0 0
      %4247 = vmatpush1.bf16.msra.mxu0 0
      %4248 = vmatprep.subr.bf16.mxu0 0
      %4249 = vmatpush1.bf16.msra.mxu0 0
      %4250 = vmatprep.subr.bf16.mxu0 0
      %4251 = vmatpush1.bf16.msra.mxu0 0
      %4252 = vmatprep.subr.bf16.mxu0 0
      %4253 = vmatpush1.bf16.msra.mxu0 %v4203
      %4254 = vmatprep.subr.bf16.mxu0 0
      %4255 = vmatpush1.bf16.msra.mxu0 %v4202
      %4256 = vmatprep.subr.bf16.mxu0 0
      %4257 = vmatpush1.bf16.msra.mxu0 %v4201
      %4258 = vmatprep.subr.bf16.mxu0 0
      %4259 = vmatpush1.bf16.msra.mxu0 %v4200
      %4260 = vmatprep.subr.bf16.mxu0 0
      %4261 = vmatpush2.bf16.msra.mxu0 0
      %4262 = vmatprep.subr.bf16.mxu0 0
      %4263 = vmatpush2.bf16.msra.mxu0 0
      %4264 = vmatprep.subr.bf16.mxu0 0
      %4265 = vmatpush2.bf16.msra.mxu0 0
      %4266 = vmatprep.subr.bf16.mxu0 0
      %4267 = vmatpush2.bf16.msra.mxu0 0
      %4268 = vmatprep.subr.bf16.mxu0 0
      %4269 = vmatpush2.bf16.msra.mxu0 0
      %4270 = vmatprep.subr.bf16.mxu0 0
      %4271 = vmatpush2.bf16.msra.mxu0 0
      %4272 = vmatprep.subr.bf16.mxu0 0
      %4273 = vmatpush2.bf16.msra.mxu0 0
      %4274 = vmatprep.subr.bf16.mxu0 0
      %4275 = vmatpush2.bf16.msra.mxu0 0
      %4276 = vmatprep.mubr.bf16.mxu0 0
      %4277 = vmatmul.mubr.bf16.gmra.mxu0 %v4208
      %v4278 = vpop.f32.mrf.mxu0
      %v4279 = vadd.f32 %v4042, %v4278
      %v4280 = vpop.f32.mrf.mxu0
      %v4281 = vpop.f32.mrf.mxu0
      %v4282 = vadd.f32 %v4045, %v4281
      %v4283 = vpop.f32.mrf.mxu0
      %4284 = vmatprep.mubr.bf16.mxu0 0
      %4285 = vmatmul.mubr.bf16.gmra.mxu0 %v4210
      %v4286 = vpop.f32.mrf.mxu0
      %v4287 = vadd.f32 %v4050, %v4286
      %v4288 = vpop.f32.mrf.mxu0
      %v4289 = vpop.f32.mrf.mxu0
      %v4290 = vadd.f32 %v4053, %v4289
      %v4291 = vpop.f32.mrf.mxu0
      %4292 = vmatprep.mubr.bf16.mxu0 0
      %4293 = vmatmul.mubr.bf16.gmra.mxu0 %v4212
      %v4294 = vpop.f32.mrf.mxu0
      %v4295 = vadd.f32 %v4058, %v4294
      %v4296 = vpop.f32.mrf.mxu0
      %v4297 = vpop.f32.mrf.mxu0
      %v4298 = vadd.f32 %v4061, %v4297
      %v4299 = vpop.f32.mrf.mxu0
      %4300 = vmatprep.mubr.bf16.mxu0 0
      %4301 = vmatmul.mubr.bf16.gmra.mxu0 %v4214
      %v4302 = vpop.f32.mrf.mxu0
      %v4303 = vadd.f32 %v4066, %v4302
      %v4304 = vpop.f32.mrf.mxu0
      %v4305 = vpop.f32.mrf.mxu0
      %v4306 = vadd.f32 %v4069, %v4305
      %v4307 = vpop.f32.mrf.mxu0
      %4308 = vmatprep.mubr.bf16.mxu0 0
      %4309 = vmatmul.mubr.bf16.gmra.mxu0 %v4216
      %v4310 = vpop.f32.mrf.mxu0
      %v4311 = vadd.f32 %v4074, %v4310
      %v4312 = vpop.f32.mrf.mxu0
      %v4313 = vpop.f32.mrf.mxu0
      %v4314 = vadd.f32 %v4077, %v4313
      %v4315 = vpop.f32.mrf.mxu0
      %4316 = vmatprep.mubr.bf16.mxu0 0
      %4317 = vmatmul.mubr.bf16.gmra.mxu0 %v4218
      %v4318 = vpop.f32.mrf.mxu0
      %v4319 = vadd.f32 %v4082, %v4318
      %v4320 = vpop.f32.mrf.mxu0
      %v4321 = vpop.f32.mrf.mxu0
      %v4322 = vadd.f32 %v4085, %v4321
      %v4323 = vpop.f32.mrf.mxu0
      %4324 = vmatprep.mubr.bf16.mxu0 0
      %4325 = vmatmul.mubr.bf16.gmra.mxu0 %v4220
      %v4326 = vpop.f32.mrf.mxu0
      %v4327 = vadd.f32 %v4090, %v4326
      %v4328 = vpop.f32.mrf.mxu0
      %v4329 = vpop.f32.mrf.mxu0
      %v4330 = vadd.f32 %v4093, %v4329
      %v4331 = vpop.f32.mrf.mxu0
      %4332 = vmatprep.mubr.bf16.mxu0 0
      %4333 = vmatmul.mubr.bf16.gmra.mxu0 %v4222
      %v4334 = vpop.f32.mrf.mxu0
      %v4335 = vadd.f32 %v4098, %v4334
      %v4336 = vpop.f32.mrf.mxu0
      %v4337 = vpop.f32.mrf.mxu0
      %v4338 = vadd.f32 %v4101, %v4337
      %v4339 = vpop.f32.mrf.mxu0
      %4340 = vmatprep.mubr.bf16.mxu0 0
      %4341 = vmatmul.mubr.bf16.gmra.mxu0 %v4224
      %v4342 = vpop.f32.mrf.mxu0
      %v4343 = vadd.f32 %v4106, %v4342
      %v4344 = vpop.f32.mrf.mxu0
      %v4345 = vpop.f32.mrf.mxu0
      %v4346 = vadd.f32 %v4109, %v4345
      %v4347 = vpop.f32.mrf.mxu0
      %4348 = vmatprep.mubr.bf16.mxu0 0
      %4349 = vmatmul.mubr.bf16.gmra.mxu0 %v4226
      %v4350 = vpop.f32.mrf.mxu0
      %v4351 = vadd.f32 %v4114, %v4350
      %v4352 = vpop.f32.mrf.mxu0
      %v4353 = vpop.f32.mrf.mxu0
      %v4354 = vadd.f32 %v4117, %v4353
      %v4355 = vpop.f32.mrf.mxu0
      %4356 = vmatprep.mubr.bf16.mxu0 0
      %4357 = vmatmul.mubr.bf16.gmra.mxu0 %v4228
      %v4358 = vpop.f32.mrf.mxu0
      %v4359 = vadd.f32 %v4122, %v4358
      %v4360 = vpop.f32.mrf.mxu0
      %v4361 = vpop.f32.mrf.mxu0
      %v4362 = vadd.f32 %v4125, %v4361
      %v4363 = vpop.f32.mrf.mxu0
      %4364 = vmatprep.mubr.bf16.mxu0 0
      %4365 = vmatmul.mubr.bf16.gmra.mxu0 %v4230
      %v4366 = vpop.f32.mrf.mxu0
      %v4367 = vadd.f32 %v4130, %v4366
      %v4368 = vpop.f32.mrf.mxu0
      %v4369 = vpop.f32.mrf.mxu0
      %v4370 = vadd.f32 %v4133, %v4369
      %v4371 = vpop.f32.mrf.mxu0
      %4372 = vmatprep.mubr.bf16.mxu0 0
      %4373 = vmatmul.mubr.bf16.gmra.mxu0 %v4232
      %v4374 = vpop.f32.mrf.mxu0
      %v4375 = vadd.f32 %v4138, %v4374
      %v4376 = vpop.f32.mrf.mxu0
      %v4377 = vpop.f32.mrf.mxu0
      %v4378 = vadd.f32 %v4141, %v4377
      %v4379 = vpop.f32.mrf.mxu0
      %4380 = vmatprep.mubr.bf16.mxu0 0
      %4381 = vmatmul.mubr.bf16.gmra.mxu0 %v4234
      %v4382 = vpop.f32.mrf.mxu0
      %v4383 = vadd.f32 %v4146, %v4382
      %v4384 = vpop.f32.mrf.mxu0
      %v4385 = vpop.f32.mrf.mxu0
      %v4386 = vadd.f32 %v4149, %v4385
      %v4387 = vpop.f32.mrf.mxu0
      %4388 = vmatprep.mubr.bf16.mxu0 0
      %4389 = vmatmul.mubr.bf16.gmra.mxu0 %v4236
      %v4390 = vpop.f32.mrf.mxu0
      %v4391 = vadd.f32 %v4154, %v4390
      %v4392 = vpop.f32.mrf.mxu0
      %v4393 = vpop.f32.mrf.mxu0
      %v4394 = vadd.f32 %v4157, %v4393
      %v4395 = vpop.f32.mrf.mxu0
      %4396 = vmatprep.mubr.bf16.mxu0 0
      %4397 = vmatmul.mubr.bf16.gmra.mxu0 %v4238
      %v4398 = vpop.f32.mrf.mxu0
      %v4399 = vadd.f32 %v4162, %v4398
      %v4400 = vpop.f32.mrf.mxu0
      %v4401 = vpop.f32.mrf.mxu0
      %v4402 = vadd.f32 %v4165, %v4401
      %v4403 = vpop.f32.mrf.mxu0
      %4404 = vmatprep.mubr.bf16.mxu0 0
      %4405 = vmatmul.mubr.bf16.gmra.mxu0 %v4240
      %v4406 = vpop.f32.mrf.mxu0
      %v4407 = vadd.f32 %v4170, %v4406
      %v4408 = vpop.f32.mrf.mxu0
      %v4409 = vpop.f32.mrf.mxu0
      %v4410 = vadd.f32 %v4173, %v4409
      %v4411 = vpop.f32.mrf.mxu0
      %4412 = vmatprep.mubr.bf16.mxu0 0
      %4413 = vmatmul.mubr.bf16.gmra.mxu0 %v4242
      %v4414 = vpop.f32.mrf.mxu0
      %v4415 = vadd.f32 %v4178, %v4414
      %v4416 = vpop.f32.mrf.mxu0
      %v4417 = vpop.f32.mrf.mxu0
      %v4418 = vadd.f32 %v4181, %v4417
      %v4419 = vpop.f32.mrf.mxu0
      %4420 = vdwg.mxu0
      %s4421 = scalar_lea.vmem %s5, 64
      %v4422 = vld [vmem:[%s4421] sm:$0xf]
      %v4423 = vld [vmem:[%s4421 + $0x4] sm:$0xf]
      %v4424 = vld [vmem:[%s4421 + $0x8] sm:$0xf]
      %v4425 = vld [vmem:[%s4421 + $0xc] sm:$0xf]
      %v4426 = vld [vmem:[%s4421 + $0x10] sm:$0xf]
      %v4427 = vld [vmem:[%s4421 + $0x14] sm:$0xf]
      %v4428 = vld [vmem:[%s4421 + $0x18] sm:$0xf]
      %v4429 = vld [vmem:[%s4421 + $0x1c] sm:$0xf]
      %v4449 = vrot.slane %v3745, 1
      %v4450 = vrot.slane %v3746, 1
      %v4451 = vsel %vm997, %v4449, %v4450
      %v4452 = vrot.slane %v3747, 1
      %v4453 = vsel %vm997, %v4450, %v4452
      %v4454 = vrot.slane %v3748, 1
      %v4455 = vsel %vm997, %v4452, %v4454
      %v4456 = vrot.slane %v3749, 1
      %v4457 = vsel %vm997, %v4454, %v4456
      %v4458 = vrot.slane %v3750, 1
      %v4459 = vsel %vm997, %v4456, %v4458
      %v4460 = vrot.slane %v3751, 1
      %v4461 = vsel %vm997, %v4458, %v4460
      %v4462 = vrot.slane %v3752, 1
      %v4463 = vsel %vm997, %v4460, %v4462
      %v4464 = vrot.slane %v3753, 1
      %v4465 = vsel %vm997, %v4462, %v4464
      %v4466 = vrot.slane %v3754, 1
      %v4467 = vsel %vm997, %v4464, %v4466
      %v4468 = vrot.slane %v3755, 1
      %v4469 = vsel %vm997, %v4466, %v4468
      %v4470 = vrot.slane %v3756, 1
      %v4471 = vsel %vm997, %v4468, %v4470
      %v4472 = vrot.slane %v3757, 1
      %v4473 = vsel %vm997, %v4470, %v4472
      %v4474 = vrot.slane %v3758, 1
      %v4475 = vsel %vm997, %v4472, %v4474
      %v4476 = vrot.slane %v3759, 1
      %v4477 = vsel %vm997, %v4474, %v4476
      %v4478 = vrot.slane %v3760, 1
      %v4479 = vsel %vm997, %v4476, %v4478
      %v4480 = vrot.slane %v3761, 1
      %v4481 = vsel %vm997, %v4478, %v4480
      %v4482 = vrot.slane %v3762, 1
      %v4483 = vsel %vm997, %v4480, %v4482
      %v4484 = vrot.slane %v3771, 1
      %v4485 = vsel %vm997, %v4482, %v4484
      %v4494 = vunpack.c.l.b16 %v4422
      %v4495 = vunpack.c.l.b16 %v4423
      %v4496 = vunpack.c.l.b16 %v4424
      %v4497 = vunpack.c.l.b16 %v4425
      %v4498 = vunpack.c.l.b16 %v4426
      %v4499 = vunpack.c.l.b16 %v4427
      %v4500 = vunpack.c.l.b16 %v4428
      %v4501 = vunpack.c.l.b16 %v4429
      %v4502 = vpack.c.b16 %v4495, %v4494
      %v4503 = vpack.c.b16 %v4497, %v4496
      %v4504 = vpack.c.b16 %v4499, %v4498
      %v4505 = vpack.c.b16 %v4501, %v4500
      %v4511 = vsel %vm3369, %v4451, 0
      %v4514 = vsel %vm3369, %v4453, 0
      %v4517 = vsel %vm3369, %v4455, 0
      %v4520 = vsel %vm3369, %v4457, 0
      %v4523 = vsel %vm3369, %v4459, 0
      %v4526 = vsel %vm3369, %v4461, 0
      %v4529 = vsel %vm3369, %v4463, 0
      %v4532 = vsel %vm3369, %v4465, 0
      %v4535 = vsel %vm3369, %v4467, 0
      %v4538 = vsel %vm3369, %v4469, 0
      %v4541 = vsel %vm3369, %v4471, 0
      %v4544 = vsel %vm3369, %v4473, 0
      %v4547 = vsel %vm3369, %v4475, 0
      %v4550 = vsel %vm3369, %v4477, 0
      %v4553 = vsel %vm3369, %v4479, 0
      %v4556 = vsel %vm3369, %v4481, 0
      %v4559 = vsel %vm3369, %v4483, 0
      %v4562 = vsel %vm3369, %v4485, 0
      %4564 = vmatprep.subr.bf16.mxu0 0
      %4565 = vmatpush1.bf16.msra.mxu0 0
      %4566 = vmatprep.subr.bf16.mxu0 0
      %4567 = vmatpush1.bf16.msra.mxu0 0
      %4568 = vmatprep.subr.bf16.mxu0 0
      %4569 = vmatpush1.bf16.msra.mxu0 0
      %4570 = vmatprep.subr.bf16.mxu0 0
      %4571 = vmatpush1.bf16.msra.mxu0 0
      %4572 = vmatprep.subr.bf16.mxu0 0
      %4573 = vmatpush1.bf16.msra.mxu0 %v4505
      %4574 = vmatprep.subr.bf16.mxu0 0
      %4575 = vmatpush1.bf16.msra.mxu0 %v4504
      %4576 = vmatprep.subr.bf16.mxu0 0
      %4577 = vmatpush1.bf16.msra.mxu0 %v4503
      %4578 = vmatprep.subr.bf16.mxu0 0
      %4579 = vmatpush1.bf16.msra.mxu0 %v4502
      %4580 = vmatprep.subr.bf16.mxu0 0
      %4581 = vmatpush2.bf16.msra.mxu0 0
      %4582 = vmatprep.subr.bf16.mxu0 0
      %4583 = vmatpush2.bf16.msra.mxu0 0
      %4584 = vmatprep.subr.bf16.mxu0 0
      %4585 = vmatpush2.bf16.msra.mxu0 0
      %4586 = vmatprep.subr.bf16.mxu0 0
      %4587 = vmatpush2.bf16.msra.mxu0 0
      %4588 = vmatprep.subr.bf16.mxu0 0
      %4589 = vmatpush2.bf16.msra.mxu0 0
      %4590 = vmatprep.subr.bf16.mxu0 0
      %4591 = vmatpush2.bf16.msra.mxu0 0
      %4592 = vmatprep.subr.bf16.mxu0 0
      %4593 = vmatpush2.bf16.msra.mxu0 0
      %4594 = vmatprep.subr.bf16.mxu0 0
      %4595 = vmatpush2.bf16.msra.mxu0 0
      %4596 = vmatprep.mubr.bf16.mxu0 0
      %4597 = vmatmul.mubr.bf16.gmra.mxu0 %v4511
      %v4598 = vpop.f32.mrf.mxu0
      %v4599 = vadd.f32 0.0, %v4598
      %v4600 = vpop.f32.mrf.mxu0
      %v4601 = vpop.f32.mrf.mxu0
      %v4602 = vadd.f32 0.0, %v4601
      %v4603 = vpop.f32.mrf.mxu0
      %4604 = vmatprep.mubr.bf16.mxu0 0
      %4605 = vmatmul.mubr.bf16.gmra.mxu0 %v4514
      %v4606 = vpop.f32.mrf.mxu0
      %v4607 = vadd.f32 0.0, %v4606
      %v4608 = vpop.f32.mrf.mxu0
      %v4609 = vpop.f32.mrf.mxu0
      %v4610 = vadd.f32 0.0, %v4609
      %v4611 = vpop.f32.mrf.mxu0
      %4612 = vmatprep.mubr.bf16.mxu0 0
      %4613 = vmatmul.mubr.bf16.gmra.mxu0 %v4517
      %v4614 = vpop.f32.mrf.mxu0
      %v4615 = vadd.f32 0.0, %v4614
      %v4616 = vpop.f32.mrf.mxu0
      %v4617 = vpop.f32.mrf.mxu0
      %v4618 = vadd.f32 0.0, %v4617
      %v4619 = vpop.f32.mrf.mxu0
      %4620 = vmatprep.mubr.bf16.mxu0 0
      %4621 = vmatmul.mubr.bf16.gmra.mxu0 %v4520
      %v4622 = vpop.f32.mrf.mxu0
      %v4623 = vadd.f32 0.0, %v4622
      %v4624 = vpop.f32.mrf.mxu0
      %v4625 = vpop.f32.mrf.mxu0
      %v4626 = vadd.f32 0.0, %v4625
      %v4627 = vpop.f32.mrf.mxu0
      %4628 = vmatprep.mubr.bf16.mxu0 0
      %4629 = vmatmul.mubr.bf16.gmra.mxu0 %v4523
      %v4630 = vpop.f32.mrf.mxu0
      %v4631 = vadd.f32 0.0, %v4630
      %v4632 = vpop.f32.mrf.mxu0
      %v4633 = vpop.f32.mrf.mxu0
      %v4634 = vadd.f32 0.0, %v4633
      %v4635 = vpop.f32.mrf.mxu0
      %4636 = vmatprep.mubr.bf16.mxu0 0
      %4637 = vmatmul.mubr.bf16.gmra.mxu0 %v4526
      %v4638 = vpop.f32.mrf.mxu0
      %v4639 = vadd.f32 0.0, %v4638
      %v4640 = vpop.f32.mrf.mxu0
      %v4641 = vpop.f32.mrf.mxu0
      %v4642 = vadd.f32 0.0, %v4641
      %v4643 = vpop.f32.mrf.mxu0
      %4644 = vmatprep.mubr.bf16.mxu0 0
      %4645 = vmatmul.mubr.bf16.gmra.mxu0 %v4529
      %v4646 = vpop.f32.mrf.mxu0
      %v4647 = vadd.f32 0.0, %v4646
      %v4648 = vpop.f32.mrf.mxu0
      %v4649 = vpop.f32.mrf.mxu0
      %v4650 = vadd.f32 0.0, %v4649
      %v4651 = vpop.f32.mrf.mxu0
      %4652 = vmatprep.mubr.bf16.mxu0 0
      %4653 = vmatmul.mubr.bf16.gmra.mxu0 %v4532
      %v4654 = vpop.f32.mrf.mxu0
      %v4655 = vadd.f32 0.0, %v4654
      %v4656 = vpop.f32.mrf.mxu0
      %v4657 = vpop.f32.mrf.mxu0
      %v4658 = vadd.f32 0.0, %v4657
      %v4659 = vpop.f32.mrf.mxu0
      %4660 = vmatprep.mubr.bf16.mxu0 0
      %4661 = vmatmul.mubr.bf16.gmra.mxu0 %v4535
      %v4662 = vpop.f32.mrf.mxu0
      %v4663 = vadd.f32 0.0, %v4662
      %v4664 = vpop.f32.mrf.mxu0
      %v4665 = vpop.f32.mrf.mxu0
      %v4666 = vadd.f32 0.0, %v4665
      %v4667 = vpop.f32.mrf.mxu0
      %4668 = vmatprep.mubr.bf16.mxu0 0
      %4669 = vmatmul.mubr.bf16.gmra.mxu0 %v4538
      %v4670 = vpop.f32.mrf.mxu0
      %v4671 = vadd.f32 0.0, %v4670
      %v4672 = vpop.f32.mrf.mxu0
      %v4673 = vpop.f32.mrf.mxu0
      %v4674 = vadd.f32 0.0, %v4673
      %v4675 = vpop.f32.mrf.mxu0
      %4676 = vmatprep.mubr.bf16.mxu0 0
      %4677 = vmatmul.mubr.bf16.gmra.mxu0 %v4541
      %v4678 = vpop.f32.mrf.mxu0
      %v4679 = vadd.f32 0.0, %v4678
      %v4680 = vpop.f32.mrf.mxu0
      %v4681 = vpop.f32.mrf.mxu0
      %v4682 = vadd.f32 0.0, %v4681
      %v4683 = vpop.f32.mrf.mxu0
      %4684 = vmatprep.mubr.bf16.mxu0 0
      %4685 = vmatmul.mubr.bf16.gmra.mxu0 %v4544
      %v4686 = vpop.f32.mrf.mxu0
      %v4687 = vadd.f32 0.0, %v4686
      %v4688 = vpop.f32.mrf.mxu0
      %v4689 = vpop.f32.mrf.mxu0
      %v4690 = vadd.f32 0.0, %v4689
      %v4691 = vpop.f32.mrf.mxu0
      %4692 = vmatprep.mubr.bf16.mxu0 0
      %4693 = vmatmul.mubr.bf16.gmra.mxu0 %v4547
      %v4694 = vpop.f32.mrf.mxu0
      %v4695 = vadd.f32 0.0, %v4694
      %v4696 = vpop.f32.mrf.mxu0
      %v4697 = vpop.f32.mrf.mxu0
      %v4698 = vadd.f32 0.0, %v4697
      %v4699 = vpop.f32.mrf.mxu0
      %4700 = vmatprep.mubr.bf16.mxu0 0
      %4701 = vmatmul.mubr.bf16.gmra.mxu0 %v4550
      %v4702 = vpop.f32.mrf.mxu0
      %v4703 = vadd.f32 0.0, %v4702
      %v4704 = vpop.f32.mrf.mxu0
      %v4705 = vpop.f32.mrf.mxu0
      %v4706 = vadd.f32 0.0, %v4705
      %v4707 = vpop.f32.mrf.mxu0
      %4708 = vmatprep.mubr.bf16.mxu0 0
      %4709 = vmatmul.mubr.bf16.gmra.mxu0 %v4553
      %v4710 = vpop.f32.mrf.mxu0
      %v4711 = vadd.f32 0.0, %v4710
      %v4712 = vpop.f32.mrf.mxu0
      %v4713 = vpop.f32.mrf.mxu0
      %v4714 = vadd.f32 0.0, %v4713
      %v4715 = vpop.f32.mrf.mxu0
      %4716 = vmatprep.mubr.bf16.mxu0 0
      %4717 = vmatmul.mubr.bf16.gmra.mxu0 %v4556
      %v4718 = vpop.f32.mrf.mxu0
      %v4719 = vadd.f32 0.0, %v4718
      %v4720 = vpop.f32.mrf.mxu0
      %v4721 = vpop.f32.mrf.mxu0
      %v4722 = vadd.f32 0.0, %v4721
      %v4723 = vpop.f32.mrf.mxu0
      %4724 = vmatprep.mubr.bf16.mxu0 0
      %4725 = vmatmul.mubr.bf16.gmra.mxu0 %v4559
      %v4726 = vpop.f32.mrf.mxu0
      %v4727 = vadd.f32 0.0, %v4726
      %v4728 = vpop.f32.mrf.mxu0
      %v4729 = vpop.f32.mrf.mxu0
      %v4730 = vadd.f32 0.0, %v4729
      %v4731 = vpop.f32.mrf.mxu0
      %4732 = vmatprep.mubr.bf16.mxu0 0
      %4733 = vmatmul.mubr.bf16.gmra.mxu0 %v4562
      %v4734 = vpop.f32.mrf.mxu0
      %v4735 = vadd.f32 0.0, %v4734
      %v4736 = vpop.f32.mrf.mxu0
      %v4737 = vpop.f32.mrf.mxu0
      %v4738 = vadd.f32 0.0, %v4737
      %v4739 = vpop.f32.mrf.mxu0
      %4740 = vdwg.mxu0
      %v4741 = vadd.f32 %v4279, %v4599
      %v4742 = vadd.f32 %v4282, %v4602
      %v4743 = vadd.f32 %v4287, %v4607
      %v4744 = vadd.f32 %v4290, %v4610
      %v4745 = vadd.f32 %v4295, %v4615
      %v4746 = vadd.f32 %v4298, %v4618
      %v4747 = vadd.f32 %v4303, %v4623
      %v4748 = vadd.f32 %v4306, %v4626
      %v4749 = vadd.f32 %v4311, %v4631
      %v4750 = vadd.f32 %v4314, %v4634
      %v4751 = vadd.f32 %v4319, %v4639
      %v4752 = vadd.f32 %v4322, %v4642
      %v4753 = vadd.f32 %v4327, %v4647
      %v4754 = vadd.f32 %v4330, %v4650
      %v4755 = vadd.f32 %v4335, %v4655
      %v4756 = vadd.f32 %v4338, %v4658
      %v4757 = vadd.f32 %v4343, %v4663
      %v4758 = vadd.f32 %v4346, %v4666
      %v4759 = vadd.f32 %v4351, %v4671
      %v4760 = vadd.f32 %v4354, %v4674
      %v4761 = vadd.f32 %v4359, %v4679
      %v4762 = vadd.f32 %v4362, %v4682
      %v4763 = vadd.f32 %v4367, %v4687
      %v4764 = vadd.f32 %v4370, %v4690
      %v4765 = vadd.f32 %v4375, %v4695
      %v4766 = vadd.f32 %v4378, %v4698
      %v4767 = vadd.f32 %v4383, %v4703
      %v4768 = vadd.f32 %v4386, %v4706
      %v4769 = vadd.f32 %v4391, %v4711
      %v4770 = vadd.f32 %v4394, %v4714
      %v4771 = vadd.f32 %v4399, %v4719
      %v4772 = vadd.f32 %v4402, %v4722
      %v4773 = vadd.f32 %v4407, %v4727
      %v4774 = vadd.f32 %v4410, %v4730
      %v4775 = vadd.f32 %v4415, %v4735
      %v4776 = vadd.f32 %v4418, %v4738
      %v4777 = vpack.c.bf16 %v3739, %v3738
      %v4778 = vpack.c.bf16 %v3740, %v3740
      %s4779 = scalar_lea.vmem %s5, 96
      %v4780 = vld [vmem:[%s4779] sm:$0xf]
      %v4781 = vld [vmem:[%s4779 + $0x4] sm:$0xf]
      %v4782 = vld [vmem:[%s4779 + $0x8] sm:$0xf]
      %v4783 = vld [vmem:[%s4779 + $0xc] sm:$0xf]
      %v4784 = vld [vmem:[%s4779 + $0x10] sm:$0xf]
      %v4785 = vld [vmem:[%s4779 + $0x14] sm:$0xf]
      %v4786 = vld [vmem:[%s4779 + $0x18] sm:$0xf]
      %v4787 = vld [vmem:[%s4779 + $0x1c] sm:$0xf]
      %v4790 = vrot.slane %v4777, 1
      %v4791 = vsel %vm997, %v4482, %v4790
      %v4792 = vrot.slane %v4778, 1
      %v4793 = vsel %vm997, %v4790, %v4792
      %v4802 = vunpack.c.l.b16 %v4780
      %v4803 = vunpack.c.l.b16 %v4781
      %v4804 = vunpack.c.l.b16 %v4782
      %v4805 = vunpack.c.l.b16 %v4783
      %v4806 = vunpack.c.l.b16 %v4784
      %v4807 = vunpack.c.l.b16 %v4785
      %v4808 = vunpack.c.l.b16 %v4786
      %v4809 = vunpack.c.l.b16 %v4787
      %v4810 = vpack.c.b16 %v4803, %v4802
      %v4811 = vpack.c.b16 %v4805, %v4804
      %v4812 = vpack.c.b16 %v4807, %v4806
      %v4813 = vpack.c.b16 %v4809, %v4808
      %v4819 = vsel %vm3369, %v4791, 0
      %v4822 = vsel %vm3369, %v4793, 0
      %4824 = vmatprep.subr.bf16.mxu0 0
      %4825 = vmatpush1.bf16.msra.mxu0 0
      %4826 = vmatprep.subr.bf16.mxu0 0
      %4827 = vmatpush1.bf16.msra.mxu0 0
      %4828 = vmatprep.subr.bf16.mxu0 0
      %4829 = vmatpush1.bf16.msra.mxu0 0
      %4830 = vmatprep.subr.bf16.mxu0 0
      %4831 = vmatpush1.bf16.msra.mxu0 0
      %4832 = vmatprep.subr.bf16.mxu0 0
      %4833 = vmatpush1.bf16.msra.mxu0 %v4813
      %4834 = vmatprep.subr.bf16.mxu0 0
      %4835 = vmatpush1.bf16.msra.mxu0 %v4812
      %4836 = vmatprep.subr.bf16.mxu0 0
      %4837 = vmatpush1.bf16.msra.mxu0 %v4811
      %4838 = vmatprep.subr.bf16.mxu0 0
      %4839 = vmatpush1.bf16.msra.mxu0 %v4810
      %4840 = vmatprep.subr.bf16.mxu0 0
      %4841 = vmatpush2.bf16.msra.mxu0 0
      %4842 = vmatprep.subr.bf16.mxu0 0
      %4843 = vmatpush2.bf16.msra.mxu0 0
      %4844 = vmatprep.subr.bf16.mxu0 0
      %4845 = vmatpush2.bf16.msra.mxu0 0
      %4846 = vmatprep.subr.bf16.mxu0 0
      %4847 = vmatpush2.bf16.msra.mxu0 0
      %4848 = vmatprep.subr.bf16.mxu0 0
      %4849 = vmatpush2.bf16.msra.mxu0 0
      %4850 = vmatprep.subr.bf16.mxu0 0
      %4851 = vmatpush2.bf16.msra.mxu0 0
      %4852 = vmatprep.subr.bf16.mxu0 0
      %4853 = vmatpush2.bf16.msra.mxu0 0
      %4854 = vmatprep.subr.bf16.mxu0 0
      %4855 = vmatpush2.bf16.msra.mxu0 0
      %4856 = vmatprep.mubr.bf16.mxu0 0
      %4857 = vmatmul.mubr.bf16.gmra.mxu0 %v4514
      %v4858 = vpop.f32.mrf.mxu0
      %v4859 = vadd.f32 0.0, %v4858
      %v4860 = vpop.f32.mrf.mxu0
      %v4861 = vpop.f32.mrf.mxu0
      %v4862 = vadd.f32 0.0, %v4861
      %v4863 = vpop.f32.mrf.mxu0
      %4864 = vmatprep.mubr.bf16.mxu0 0
      %4865 = vmatmul.mubr.bf16.gmra.mxu0 %v4517
      %v4866 = vpop.f32.mrf.mxu0
      %v4867 = vadd.f32 0.0, %v4866
      %v4868 = vpop.f32.mrf.mxu0
      %v4869 = vpop.f32.mrf.mxu0
      %v4870 = vadd.f32 0.0, %v4869
      %v4871 = vpop.f32.mrf.mxu0
      %4872 = vmatprep.mubr.bf16.mxu0 0
      %4873 = vmatmul.mubr.bf16.gmra.mxu0 %v4520
      %v4874 = vpop.f32.mrf.mxu0
      %v4875 = vadd.f32 0.0, %v4874
      %v4876 = vpop.f32.mrf.mxu0
      %v4877 = vpop.f32.mrf.mxu0
      %v4878 = vadd.f32 0.0, %v4877
      %v4879 = vpop.f32.mrf.mxu0
      %4880 = vmatprep.mubr.bf16.mxu0 0
      %4881 = vmatmul.mubr.bf16.gmra.mxu0 %v4523
      %v4882 = vpop.f32.mrf.mxu0
      %v4883 = vadd.f32 0.0, %v4882
      %v4884 = vpop.f32.mrf.mxu0
      %v4885 = vpop.f32.mrf.mxu0
      %v4886 = vadd.f32 0.0, %v4885
      %v4887 = vpop.f32.mrf.mxu0
      %4888 = vmatprep.mubr.bf16.mxu0 0
      %4889 = vmatmul.mubr.bf16.gmra.mxu0 %v4526
      %v4890 = vpop.f32.mrf.mxu0
      %v4891 = vadd.f32 0.0, %v4890
      %v4892 = vpop.f32.mrf.mxu0
      %v4893 = vpop.f32.mrf.mxu0
      %v4894 = vadd.f32 0.0, %v4893
      %v4895 = vpop.f32.mrf.mxu0
      %4896 = vmatprep.mubr.bf16.mxu0 0
      %4897 = vmatmul.mubr.bf16.gmra.mxu0 %v4529
      %v4898 = vpop.f32.mrf.mxu0
      %v4899 = vadd.f32 0.0, %v4898
      %v4900 = vpop.f32.mrf.mxu0
      %v4901 = vpop.f32.mrf.mxu0
      %v4902 = vadd.f32 0.0, %v4901
      %v4903 = vpop.f32.mrf.mxu0
      %4904 = vmatprep.mubr.bf16.mxu0 0
      %4905 = vmatmul.mubr.bf16.gmra.mxu0 %v4532
      %v4906 = vpop.f32.mrf.mxu0
      %v4907 = vadd.f32 0.0, %v4906
      %v4908 = vpop.f32.mrf.mxu0
      %v4909 = vpop.f32.mrf.mxu0
      %v4910 = vadd.f32 0.0, %v4909
      %v4911 = vpop.f32.mrf.mxu0
      %4912 = vmatprep.mubr.bf16.mxu0 0
      %4913 = vmatmul.mubr.bf16.gmra.mxu0 %v4535
      %v4914 = vpop.f32.mrf.mxu0
      %v4915 = vadd.f32 0.0, %v4914
      %v4916 = vpop.f32.mrf.mxu0
      %v4917 = vpop.f32.mrf.mxu0
      %v4918 = vadd.f32 0.0, %v4917
      %v4919 = vpop.f32.mrf.mxu0
      %4920 = vmatprep.mubr.bf16.mxu0 0
      %4921 = vmatmul.mubr.bf16.gmra.mxu0 %v4538
      %v4922 = vpop.f32.mrf.mxu0
      %v4923 = vadd.f32 0.0, %v4922
      %v4924 = vpop.f32.mrf.mxu0
      %v4925 = vpop.f32.mrf.mxu0
      %v4926 = vadd.f32 0.0, %v4925
      %v4927 = vpop.f32.mrf.mxu0
      %4928 = vmatprep.mubr.bf16.mxu0 0
      %4929 = vmatmul.mubr.bf16.gmra.mxu0 %v4541
      %v4930 = vpop.f32.mrf.mxu0
      %v4931 = vadd.f32 0.0, %v4930
      %v4932 = vpop.f32.mrf.mxu0
      %v4933 = vpop.f32.mrf.mxu0
      %v4934 = vadd.f32 0.0, %v4933
      %v4935 = vpop.f32.mrf.mxu0
      %4936 = vmatprep.mubr.bf16.mxu0 0
      %4937 = vmatmul.mubr.bf16.gmra.mxu0 %v4544
      %v4938 = vpop.f32.mrf.mxu0
      %v4939 = vadd.f32 0.0, %v4938
      %v4940 = vpop.f32.mrf.mxu0
      %v4941 = vpop.f32.mrf.mxu0
      %v4942 = vadd.f32 0.0, %v4941
      %v4943 = vpop.f32.mrf.mxu0
      %4944 = vmatprep.mubr.bf16.mxu0 0
      %4945 = vmatmul.mubr.bf16.gmra.mxu0 %v4547
      %v4946 = vpop.f32.mrf.mxu0
      %v4947 = vadd.f32 0.0, %v4946
      %v4948 = vpop.f32.mrf.mxu0
      %v4949 = vpop.f32.mrf.mxu0
      %v4950 = vadd.f32 0.0, %v4949
      %v4951 = vpop.f32.mrf.mxu0
      %4952 = vmatprep.mubr.bf16.mxu0 0
      %4953 = vmatmul.mubr.bf16.gmra.mxu0 %v4550
      %v4954 = vpop.f32.mrf.mxu0
      %v4955 = vadd.f32 0.0, %v4954
      %v4956 = vpop.f32.mrf.mxu0
      %v4957 = vpop.f32.mrf.mxu0
      %v4958 = vadd.f32 0.0, %v4957
      %v4959 = vpop.f32.mrf.mxu0
      %4960 = vmatprep.mubr.bf16.mxu0 0
      %4961 = vmatmul.mubr.bf16.gmra.mxu0 %v4553
      %v4962 = vpop.f32.mrf.mxu0
      %v4963 = vadd.f32 0.0, %v4962
      %v4964 = vpop.f32.mrf.mxu0
      %v4965 = vpop.f32.mrf.mxu0
      %v4966 = vadd.f32 0.0, %v4965
      %v4967 = vpop.f32.mrf.mxu0
      %4968 = vmatprep.mubr.bf16.mxu0 0
      %4969 = vmatmul.mubr.bf16.gmra.mxu0 %v4556
      %v4970 = vpop.f32.mrf.mxu0
      %v4971 = vadd.f32 0.0, %v4970
      %v4972 = vpop.f32.mrf.mxu0
      %v4973 = vpop.f32.mrf.mxu0
      %v4974 = vadd.f32 0.0, %v4973
      %v4975 = vpop.f32.mrf.mxu0
      %4976 = vmatprep.mubr.bf16.mxu0 0
      %4977 = vmatmul.mubr.bf16.gmra.mxu0 %v4559
      %v4978 = vpop.f32.mrf.mxu0
      %v4979 = vadd.f32 0.0, %v4978
      %v4980 = vpop.f32.mrf.mxu0
      %v4981 = vpop.f32.mrf.mxu0
      %v4982 = vadd.f32 0.0, %v4981
      %v4983 = vpop.f32.mrf.mxu0
      %4984 = vmatprep.mubr.bf16.mxu0 0
      %4985 = vmatmul.mubr.bf16.gmra.mxu0 %v4819
      %v4986 = vpop.f32.mrf.mxu0
      %v4987 = vadd.f32 0.0, %v4986
      %v4988 = vpop.f32.mrf.mxu0
      %v4989 = vpop.f32.mrf.mxu0
      %v4990 = vadd.f32 0.0, %v4989
      %v4991 = vpop.f32.mrf.mxu0
      %4992 = vmatprep.mubr.bf16.mxu0 0
      %4993 = vmatmul.mubr.bf16.gmra.mxu0 %v4822
      %v4994 = vpop.f32.mrf.mxu0
      %v4995 = vadd.f32 0.0, %v4994
      %v4996 = vpop.f32.mrf.mxu0
      %v4997 = vpop.f32.mrf.mxu0
      %v4998 = vadd.f32 0.0, %v4997
      %v4999 = vpop.f32.mrf.mxu0
      %5000 = vdwg.mxu0
      %v5001 = vadd.f32 %v4741, %v4859
      %v5002 = vadd.f32 %v4742, %v4862
      %v5003 = vadd.f32 %v4743, %v4867
      %v5004 = vadd.f32 %v4744, %v4870
      %v5005 = vadd.f32 %v4745, %v4875
      %v5006 = vadd.f32 %v4746, %v4878
      %v5007 = vadd.f32 %v4747, %v4883
      %v5008 = vadd.f32 %v4748, %v4886
      %v5009 = vadd.f32 %v4749, %v4891
      %v5010 = vadd.f32 %v4750, %v4894
      %v5011 = vadd.f32 %v4751, %v4899
      %v5012 = vadd.f32 %v4752, %v4902
      %v5013 = vadd.f32 %v4753, %v4907
      %v5014 = vadd.f32 %v4754, %v4910
      %v5015 = vadd.f32 %v4755, %v4915
      %v5016 = vadd.f32 %v4756, %v4918
      %v5017 = vadd.f32 %v4757, %v4923
      %v5018 = vadd.f32 %v4758, %v4926
      %v5019 = vadd.f32 %v4759, %v4931
      %v5020 = vadd.f32 %v4760, %v4934
      %v5021 = vadd.f32 %v4761, %v4939
      %v5022 = vadd.f32 %v4762, %v4942
      %v5023 = vadd.f32 %v4763, %v4947
      %v5024 = vadd.f32 %v4764, %v4950
      %v5025 = vadd.f32 %v4765, %v4955
      %v5026 = vadd.f32 %v4766, %v4958
      %v5027 = vadd.f32 %v4767, %v4963
      %v5028 = vadd.f32 %v4768, %v4966
      %v5029 = vadd.f32 %v4769, %v4971
      %v5030 = vadd.f32 %v4770, %v4974
      %v5031 = vadd.f32 %v4771, %v4979
      %v5032 = vadd.f32 %v4772, %v4982
      %v5033 = vadd.f32 %v4773, %v4987
      %v5034 = vadd.f32 %v4774, %v4990
      %v5035 = vadd.f32 %v4775, %v4995
      %v5036 = vadd.f32 %v4776, %v4998
      %s5037 = scalar_lea.vmem %s5, 128
      %v5038 = vld [vmem:[%s5037] sm:$0xf]
      %v5039 = vld [vmem:[%s5037 + $0x4] sm:$0xf]
      %v5040 = vld [vmem:[%s5037 + $0x8] sm:$0xf]
      %v5041 = vld [vmem:[%s5037 + $0xc] sm:$0xf]
      %v5042 = vld [vmem:[%s5037 + $0x10] sm:$0xf]
      %v5043 = vld [vmem:[%s5037 + $0x14] sm:$0xf]
      %v5044 = vld [vmem:[%s5037 + $0x18] sm:$0xf]
      %v5045 = vld [vmem:[%s5037 + $0x1c] sm:$0xf]
      %v5046 = vrot.slane %v3793, 1
      %v5047 = vrot.slane %v3789, 2
      %v5048 = vor.u32 %v5046, %v5047
      %v5049 = vrot.slane %v3801, 1
      %v5050 = vrot.slane %v3797, 2
      %v5051 = vor.u32 %v5049, %v5050
      %v5052 = vsel %vm1539, %v5048, %v5051
      %v5053 = vrot.slane %v3809, 1
      %v5054 = vrot.slane %v3805, 2
      %v5055 = vor.u32 %v5053, %v5054
      %v5056 = vsel %vm1539, %v5051, %v5055
      %v5057 = vrot.slane %v3817, 1
      %v5058 = vrot.slane %v3813, 2
      %v5059 = vor.u32 %v5057, %v5058
      %v5060 = vsel %vm1539, %v5055, %v5059
      %v5061 = vrot.slane %v3825, 1
      %v5062 = vrot.slane %v3821, 2
      %v5063 = vor.u32 %v5061, %v5062
      %v5064 = vsel %vm1539, %v5059, %v5063
      %v5065 = vrot.slane %v3833, 1
      %v5066 = vrot.slane %v3829, 2
      %v5067 = vor.u32 %v5065, %v5066
      %v5068 = vsel %vm1539, %v5063, %v5067
      %v5069 = vrot.slane %v3841, 1
      %v5070 = vrot.slane %v3837, 2
      %v5071 = vor.u32 %v5069, %v5070
      %v5072 = vsel %vm1539, %v5067, %v5071
      %v5073 = vrot.slane %v3849, 1
      %v5074 = vrot.slane %v3845, 2
      %v5075 = vor.u32 %v5073, %v5074
      %v5076 = vsel %vm1539, %v5071, %v5075
      %v5077 = vrot.slane %v3857, 1
      %v5078 = vrot.slane %v3853, 2
      %v5079 = vor.u32 %v5077, %v5078
      %v5080 = vsel %vm1539, %v5075, %v5079
      %v5081 = vrot.slane %v3865, 1
      %v5082 = vrot.slane %v3861, 2
      %v5083 = vor.u32 %v5081, %v5082
      %v5084 = vsel %vm1539, %v5079, %v5083
      %v5085 = vrot.slane %v3873, 1
      %v5086 = vrot.slane %v3869, 2
      %v5087 = vor.u32 %v5085, %v5086
      %v5088 = vsel %vm1539, %v5083, %v5087
      %v5089 = vrot.slane %v3881, 1
      %v5090 = vrot.slane %v3877, 2
      %v5091 = vor.u32 %v5089, %v5090
      %v5092 = vsel %vm1539, %v5087, %v5091
      %v5093 = vrot.slane %v3889, 1
      %v5094 = vrot.slane %v3885, 2
      %v5095 = vor.u32 %v5093, %v5094
      %v5096 = vsel %vm1539, %v5091, %v5095
      %v5097 = vrot.slane %v3897, 1
      %v5098 = vrot.slane %v3893, 2
      %v5099 = vor.u32 %v5097, %v5098
      %v5100 = vsel %vm1539, %v5095, %v5099
      %v5101 = vrot.slane %v3905, 1
      %v5102 = vrot.slane %v3901, 2
      %v5103 = vor.u32 %v5101, %v5102
      %v5104 = vsel %vm1539, %v5099, %v5103
      %v5105 = vrot.slane %v3913, 1
      %v5106 = vrot.slane %v3909, 2
      %v5107 = vor.u32 %v5105, %v5106
      %v5108 = vsel %vm1539, %v5103, %v5107
      %v5109 = vrot.slane %v3921, 1
      %v5110 = vrot.slane %v3917, 2
      %v5111 = vor.u32 %v5109, %v5110
      %v5112 = vsel %vm1539, %v5107, %v5111
      %v5114 = vshrl.u32 %v4777, 16
      %v5116 = vrot.slane %v5114, 1
      %v5117 = vshll.u32 %v4777, 16
      %v5119 = vrot.slane %v5117, 2
      %v5120 = vor.u32 %v5116, %v5119
      %v5121 = vsel %vm1539, %v5111, %v5120
      %v5123 = vshrl.u32 %v4778, 16
      %v5125 = vrot.slane %v5123, 1
      %v5126 = vshll.u32 %v4778, 16
      %v5128 = vrot.slane %v5126, 2
      %v5129 = vor.u32 %v5125, %v5128
      %v5130 = vsel %vm1539, %v5120, %v5129
      %v5139 = vunpack.c.l.b16 %v5038
      %v5140 = vunpack.c.l.b16 %v5039
      %v5141 = vunpack.c.l.b16 %v5040
      %v5142 = vunpack.c.l.b16 %v5041
      %v5143 = vunpack.c.l.b16 %v5042
      %v5144 = vunpack.c.l.b16 %v5043
      %v5145 = vunpack.c.l.b16 %v5044
      %v5146 = vunpack.c.l.b16 %v5045
      %v5147 = vpack.c.b16 %v5140, %v5139
      %v5148 = vpack.c.b16 %v5142, %v5141
      %v5149 = vpack.c.b16 %v5144, %v5143
      %v5150 = vpack.c.b16 %v5146, %v5145
      %v5156 = vsel %vm3369, %v5052, 0
      %v5159 = vsel %vm3369, %v5056, 0
      %v5162 = vsel %vm3369, %v5060, 0
      %v5165 = vsel %vm3369, %v5064, 0
      %v5168 = vsel %vm3369, %v5068, 0
      %v5171 = vsel %vm3369, %v5072, 0
      %v5174 = vsel %vm3369, %v5076, 0
      %v5177 = vsel %vm3369, %v5080, 0
      %v5180 = vsel %vm3369, %v5084, 0
      %v5183 = vsel %vm3369, %v5088, 0
      %v5186 = vsel %vm3369, %v5092, 0
      %v5189 = vsel %vm3369, %v5096, 0
      %v5192 = vsel %vm3369, %v5100, 0
      %v5195 = vsel %vm3369, %v5104, 0
      %v5198 = vsel %vm3369, %v5108, 0
      %v5201 = vsel %vm3369, %v5112, 0
      %v5204 = vsel %vm3369, %v5121, 0
      %v5207 = vsel %vm3369, %v5130, 0
      %5209 = vmatprep.subr.bf16.mxu0 0
      %5210 = vmatpush1.bf16.msra.mxu0 0
      %5211 = vmatprep.subr.bf16.mxu0 0
      %5212 = vmatpush1.bf16.msra.mxu0 0
      %5213 = vmatprep.subr.bf16.mxu0 0
      %5214 = vmatpush1.bf16.msra.mxu0 0
      %5215 = vmatprep.subr.bf16.mxu0 0
      %5216 = vmatpush1.bf16.msra.mxu0 0
      %5217 = vmatprep.subr.bf16.mxu0 0
      %5218 = vmatpush1.bf16.msra.mxu0 %v5150
      %5219 = vmatprep.subr.bf16.mxu0 0
      %5220 = vmatpush1.bf16.msra.mxu0 %v5149
      %5221 = vmatprep.subr.bf16.mxu0 0
      %5222 = vmatpush1.bf16.msra.mxu0 %v5148
      %5223 = vmatprep.subr.bf16.mxu0 0
      %5224 = vmatpush1.bf16.msra.mxu0 %v5147
      %5225 = vmatprep.subr.bf16.mxu0 0
      %5226 = vmatpush2.bf16.msra.mxu0 0
      %5227 = vmatprep.subr.bf16.mxu0 0
      %5228 = vmatpush2.bf16.msra.mxu0 0
      %5229 = vmatprep.subr.bf16.mxu0 0
      %5230 = vmatpush2.bf16.msra.mxu0 0
      %5231 = vmatprep.subr.bf16.mxu0 0
      %5232 = vmatpush2.bf16.msra.mxu0 0
      %5233 = vmatprep.subr.bf16.mxu0 0
      %5234 = vmatpush2.bf16.msra.mxu0 0
      %5235 = vmatprep.subr.bf16.mxu0 0
      %5236 = vmatpush2.bf16.msra.mxu0 0
      %5237 = vmatprep.subr.bf16.mxu0 0
      %5238 = vmatpush2.bf16.msra.mxu0 0
      %5239 = vmatprep.subr.bf16.mxu0 0
      %5240 = vmatpush2.bf16.msra.mxu0 0
      %5241 = vmatprep.mubr.bf16.mxu0 0
      %5242 = vmatmul.mubr.bf16.gmra.mxu0 %v5156
      %v5243 = vpop.f32.mrf.mxu0
      %v5244 = vadd.f32 0.0, %v5243
      %v5245 = vpop.f32.mrf.mxu0
      %v5246 = vpop.f32.mrf.mxu0
      %v5247 = vadd.f32 0.0, %v5246
      %v5248 = vpop.f32.mrf.mxu0
      %5249 = vmatprep.mubr.bf16.mxu0 0
      %5250 = vmatmul.mubr.bf16.gmra.mxu0 %v5159
      %v5251 = vpop.f32.mrf.mxu0
      %v5252 = vadd.f32 0.0, %v5251
      %v5253 = vpop.f32.mrf.mxu0
      %v5254 = vpop.f32.mrf.mxu0
      %v5255 = vadd.f32 0.0, %v5254
      %v5256 = vpop.f32.mrf.mxu0
      %5257 = vmatprep.mubr.bf16.mxu0 0
      %5258 = vmatmul.mubr.bf16.gmra.mxu0 %v5162
      %v5259 = vpop.f32.mrf.mxu0
      %v5260 = vadd.f32 0.0, %v5259
      %v5261 = vpop.f32.mrf.mxu0
      %v5262 = vpop.f32.mrf.mxu0
      %v5263 = vadd.f32 0.0, %v5262
      %v5264 = vpop.f32.mrf.mxu0
      %5265 = vmatprep.mubr.bf16.mxu0 0
      %5266 = vmatmul.mubr.bf16.gmra.mxu0 %v5165
      %v5267 = vpop.f32.mrf.mxu0
      %v5268 = vadd.f32 0.0, %v5267
      %v5269 = vpop.f32.mrf.mxu0
      %v5270 = vpop.f32.mrf.mxu0
      %v5271 = vadd.f32 0.0, %v5270
      %v5272 = vpop.f32.mrf.mxu0
      %5273 = vmatprep.mubr.bf16.mxu0 0
      %5274 = vmatmul.mubr.bf16.gmra.mxu0 %v5168
      %v5275 = vpop.f32.mrf.mxu0
      %v5276 = vadd.f32 0.0, %v5275
      %v5277 = vpop.f32.mrf.mxu0
      %v5278 = vpop.f32.mrf.mxu0
      %v5279 = vadd.f32 0.0, %v5278
      %v5280 = vpop.f32.mrf.mxu0
      %5281 = vmatprep.mubr.bf16.mxu0 0
      %5282 = vmatmul.mubr.bf16.gmra.mxu0 %v5171
      %v5283 = vpop.f32.mrf.mxu0
      %v5284 = vadd.f32 0.0, %v5283
      %v5285 = vpop.f32.mrf.mxu0
      %v5286 = vpop.f32.mrf.mxu0
      %v5287 = vadd.f32 0.0, %v5286
      %v5288 = vpop.f32.mrf.mxu0
      %5289 = vmatprep.mubr.bf16.mxu0 0
      %5290 = vmatmul.mubr.bf16.gmra.mxu0 %v5174
      %v5291 = vpop.f32.mrf.mxu0
      %v5292 = vadd.f32 0.0, %v5291
      %v5293 = vpop.f32.mrf.mxu0
      %v5294 = vpop.f32.mrf.mxu0
      %v5295 = vadd.f32 0.0, %v5294
      %v5296 = vpop.f32.mrf.mxu0
      %5297 = vmatprep.mubr.bf16.mxu0 0
      %5298 = vmatmul.mubr.bf16.gmra.mxu0 %v5177
      %v5299 = vpop.f32.mrf.mxu0
      %v5300 = vadd.f32 0.0, %v5299
      %v5301 = vpop.f32.mrf.mxu0
      %v5302 = vpop.f32.mrf.mxu0
      %v5303 = vadd.f32 0.0, %v5302
      %v5304 = vpop.f32.mrf.mxu0
      %5305 = vmatprep.mubr.bf16.mxu0 0
      %5306 = vmatmul.mubr.bf16.gmra.mxu0 %v5180
      %v5307 = vpop.f32.mrf.mxu0
      %v5308 = vadd.f32 0.0, %v5307
      %v5309 = vpop.f32.mrf.mxu0
      %v5310 = vpop.f32.mrf.mxu0
      %v5311 = vadd.f32 0.0, %v5310
      %v5312 = vpop.f32.mrf.mxu0
      %5313 = vmatprep.mubr.bf16.mxu0 0
      %5314 = vmatmul.mubr.bf16.gmra.mxu0 %v5183
      %v5315 = vpop.f32.mrf.mxu0
      %v5316 = vadd.f32 0.0, %v5315
      %v5317 = vpop.f32.mrf.mxu0
      %v5318 = vpop.f32.mrf.mxu0
      %v5319 = vadd.f32 0.0, %v5318
      %v5320 = vpop.f32.mrf.mxu0
      %5321 = vmatprep.mubr.bf16.mxu0 0
      %5322 = vmatmul.mubr.bf16.gmra.mxu0 %v5186
      %v5323 = vpop.f32.mrf.mxu0
      %v5324 = vadd.f32 0.0, %v5323
      %v5325 = vpop.f32.mrf.mxu0
      %v5326 = vpop.f32.mrf.mxu0
      %v5327 = vadd.f32 0.0, %v5326
      %v5328 = vpop.f32.mrf.mxu0
      %5329 = vmatprep.mubr.bf16.mxu0 0
      %5330 = vmatmul.mubr.bf16.gmra.mxu0 %v5189
      %v5331 = vpop.f32.mrf.mxu0
      %v5332 = vadd.f32 0.0, %v5331
      %v5333 = vpop.f32.mrf.mxu0
      %v5334 = vpop.f32.mrf.mxu0
      %v5335 = vadd.f32 0.0, %v5334
      %v5336 = vpop.f32.mrf.mxu0
      %5337 = vmatprep.mubr.bf16.mxu0 0
      %5338 = vmatmul.mubr.bf16.gmra.mxu0 %v5192
      %v5339 = vpop.f32.mrf.mxu0
      %v5340 = vadd.f32 0.0, %v5339
      %v5341 = vpop.f32.mrf.mxu0
      %v5342 = vpop.f32.mrf.mxu0
      %v5343 = vadd.f32 0.0, %v5342
      %v5344 = vpop.f32.mrf.mxu0
      %5345 = vmatprep.mubr.bf16.mxu0 0
      %5346 = vmatmul.mubr.bf16.gmra.mxu0 %v5195
      %v5347 = vpop.f32.mrf.mxu0
      %v5348 = vadd.f32 0.0, %v5347
      %v5349 = vpop.f32.mrf.mxu0
      %v5350 = vpop.f32.mrf.mxu0
      %v5351 = vadd.f32 0.0, %v5350
      %v5352 = vpop.f32.mrf.mxu0
      %5353 = vmatprep.mubr.bf16.mxu0 0
      %5354 = vmatmul.mubr.bf16.gmra.mxu0 %v5198
      %v5355 = vpop.f32.mrf.mxu0
      %v5356 = vadd.f32 0.0, %v5355
      %v5357 = vpop.f32.mrf.mxu0
      %v5358 = vpop.f32.mrf.mxu0
      %v5359 = vadd.f32 0.0, %v5358
      %v5360 = vpop.f32.mrf.mxu0
      %5361 = vmatprep.mubr.bf16.mxu0 0
      %5362 = vmatmul.mubr.bf16.gmra.mxu0 %v5201
      %v5363 = vpop.f32.mrf.mxu0
      %v5364 = vadd.f32 0.0, %v5363
      %v5365 = vpop.f32.mrf.mxu0
      %v5366 = vpop.f32.mrf.mxu0
      %v5367 = vadd.f32 0.0, %v5366
      %v5368 = vpop.f32.mrf.mxu0
      %5369 = vmatprep.mubr.bf16.mxu0 0
      %5370 = vmatmul.mubr.bf16.gmra.mxu0 %v5204
      %v5371 = vpop.f32.mrf.mxu0
      %v5372 = vadd.f32 0.0, %v5371
      %v5373 = vpop.f32.mrf.mxu0
      %v5374 = vpop.f32.mrf.mxu0
      %v5375 = vadd.f32 0.0, %v5374
      %v5376 = vpop.f32.mrf.mxu0
      %5377 = vmatprep.mubr.bf16.mxu0 0
      %5378 = vmatmul.mubr.bf16.gmra.mxu0 %v5207
      %v5379 = vpop.f32.mrf.mxu0
      %v5380 = vadd.f32 0.0, %v5379
      %v5381 = vpop.f32.mrf.mxu0
      %v5382 = vpop.f32.mrf.mxu0
      %v5383 = vadd.f32 0.0, %v5382
      %v5384 = vpop.f32.mrf.mxu0
      %5385 = vdwg.mxu0
      %v5386 = vadd.f32 %v5001, %v5244
      %v5387 = vadd.f32 %v5002, %v5247
      %v5388 = vadd.f32 %v5003, %v5252
      %v5389 = vadd.f32 %v5004, %v5255
      %v5390 = vadd.f32 %v5005, %v5260
      %v5391 = vadd.f32 %v5006, %v5263
      %v5392 = vadd.f32 %v5007, %v5268
      %v5393 = vadd.f32 %v5008, %v5271
      %v5394 = vadd.f32 %v5009, %v5276
      %v5395 = vadd.f32 %v5010, %v5279
      %v5396 = vadd.f32 %v5011, %v5284
      %v5397 = vadd.f32 %v5012, %v5287
      %v5398 = vadd.f32 %v5013, %v5292
      %v5399 = vadd.f32 %v5014, %v5295
      %v5400 = vadd.f32 %v5015, %v5300
      %v5401 = vadd.f32 %v5016, %v5303
      %v5402 = vadd.f32 %v5017, %v5308
      %v5403 = vadd.f32 %v5018, %v5311
      %v5404 = vadd.f32 %v5019, %v5316
      %v5405 = vadd.f32 %v5020, %v5319
      %v5406 = vadd.f32 %v5021, %v5324
      %v5407 = vadd.f32 %v5022, %v5327
      %v5408 = vadd.f32 %v5023, %v5332
      %v5409 = vadd.f32 %v5024, %v5335
      %v5410 = vadd.f32 %v5025, %v5340
      %v5411 = vadd.f32 %v5026, %v5343
      %v5412 = vadd.f32 %v5027, %v5348
      %v5413 = vadd.f32 %v5028, %v5351
      %v5414 = vadd.f32 %v5029, %v5356
      %v5415 = vadd.f32 %v5030, %v5359
      %v5416 = vadd.f32 %v5031, %v5364
      %v5417 = vadd.f32 %v5032, %v5367
      %v5418 = vadd.f32 %v5033, %v5372
      %v5419 = vadd.f32 %v5034, %v5375
      %v5420 = vadd.f32 %v5035, %v5380
      %v5421 = vadd.f32 %v5036, %v5383
      %s5422 = scalar_lea.vmem %s5, 160
      %v5423 = vld [vmem:[%s5422] sm:$0xf]
      %v5424 = vld [vmem:[%s5422 + $0x4] sm:$0xf]
      %v5425 = vld [vmem:[%s5422 + $0x8] sm:$0xf]
      %v5426 = vld [vmem:[%s5422 + $0xc] sm:$0xf]
      %v5427 = vld [vmem:[%s5422 + $0x10] sm:$0xf]
      %v5428 = vld [vmem:[%s5422 + $0x14] sm:$0xf]
      %v5429 = vld [vmem:[%s5422 + $0x18] sm:$0xf]
      %v5430 = vld [vmem:[%s5422 + $0x1c] sm:$0xf]
      %v5431 = vrot.slane %v3746, 2
      %v5432 = vrot.slane %v3747, 2
      %v5433 = vsel %vm1897, %v5431, %v5432
      %v5434 = vrot.slane %v3748, 2
      %v5435 = vsel %vm1897, %v5432, %v5434
      %v5436 = vrot.slane %v3749, 2
      %v5437 = vsel %vm1897, %v5434, %v5436
      %v5438 = vrot.slane %v3750, 2
      %v5439 = vsel %vm1897, %v5436, %v5438
      %v5440 = vrot.slane %v3751, 2
      %v5441 = vsel %vm1897, %v5438, %v5440
      %v5442 = vrot.slane %v3752, 2
      %v5443 = vsel %vm1897, %v5440, %v5442
      %v5444 = vrot.slane %v3753, 2
      %v5445 = vsel %vm1897, %v5442, %v5444
      %v5446 = vrot.slane %v3754, 2
      %v5447 = vsel %vm1897, %v5444, %v5446
      %v5448 = vrot.slane %v3755, 2
      %v5449 = vsel %vm1897, %v5446, %v5448
      %v5450 = vrot.slane %v3756, 2
      %v5451 = vsel %vm1897, %v5448, %v5450
      %v5452 = vrot.slane %v3757, 2
      %v5453 = vsel %vm1897, %v5450, %v5452
      %v5454 = vrot.slane %v3758, 2
      %v5455 = vsel %vm1897, %v5452, %v5454
      %v5456 = vrot.slane %v3759, 2
      %v5457 = vsel %vm1897, %v5454, %v5456
      %v5458 = vrot.slane %v3760, 2
      %v5459 = vsel %vm1897, %v5456, %v5458
      %v5460 = vrot.slane %v3761, 2
      %v5461 = vsel %vm1897, %v5458, %v5460
      %v5462 = vrot.slane %v3762, 2
      %v5463 = vsel %vm1897, %v5460, %v5462
      %v5464 = vrot.slane %v4777, 2
      %v5465 = vsel %vm1897, %v5462, %v5464
      %v5466 = vrot.slane %v4778, 2
      %v5467 = vsel %vm1897, %v5464, %v5466
      %v5476 = vunpack.c.l.b16 %v5423
      %v5477 = vunpack.c.l.b16 %v5424
      %v5478 = vunpack.c.l.b16 %v5425
      %v5479 = vunpack.c.l.b16 %v5426
      %v5480 = vunpack.c.l.b16 %v5427
      %v5481 = vunpack.c.l.b16 %v5428
      %v5482 = vunpack.c.l.b16 %v5429
      %v5483 = vunpack.c.l.b16 %v5430
      %v5484 = vpack.c.b16 %v5477, %v5476
      %v5485 = vpack.c.b16 %v5479, %v5478
      %v5486 = vpack.c.b16 %v5481, %v5480
      %v5487 = vpack.c.b16 %v5483, %v5482
      %v5493 = vsel %vm3369, %v5433, 0
      %v5496 = vsel %vm3369, %v5435, 0
      %v5499 = vsel %vm3369, %v5437, 0
      %v5502 = vsel %vm3369, %v5439, 0
      %v5505 = vsel %vm3369, %v5441, 0
      %v5508 = vsel %vm3369, %v5443, 0
      %v5511 = vsel %vm3369, %v5445, 0
      %v5514 = vsel %vm3369, %v5447, 0
      %v5517 = vsel %vm3369, %v5449, 0
      %v5520 = vsel %vm3369, %v5451, 0
      %v5523 = vsel %vm3369, %v5453, 0
      %v5526 = vsel %vm3369, %v5455, 0
      %v5529 = vsel %vm3369, %v5457, 0
      %v5532 = vsel %vm3369, %v5459, 0
      %v5535 = vsel %vm3369, %v5461, 0
      %v5538 = vsel %vm3369, %v5463, 0
      %v5541 = vsel %vm3369, %v5465, 0
      %v5544 = vsel %vm3369, %v5467, 0
      %5546 = vmatprep.subr.bf16.mxu0 0
      %5547 = vmatpush1.bf16.msra.mxu0 0
      %5548 = vmatprep.subr.bf16.mxu0 0
      %5549 = vmatpush1.bf16.msra.mxu0 0
      %5550 = vmatprep.subr.bf16.mxu0 0
      %5551 = vmatpush1.bf16.msra.mxu0 0
      %5552 = vmatprep.subr.bf16.mxu0 0
      %5553 = vmatpush1.bf16.msra.mxu0 0
      %5554 = vmatprep.subr.bf16.mxu0 0
      %5555 = vmatpush1.bf16.msra.mxu0 %v5487
      %5556 = vmatprep.subr.bf16.mxu0 0
      %5557 = vmatpush1.bf16.msra.mxu0 %v5486
      %5558 = vmatprep.subr.bf16.mxu0 0
      %5559 = vmatpush1.bf16.msra.mxu0 %v5485
      %5560 = vmatprep.subr.bf16.mxu0 0
      %5561 = vmatpush1.bf16.msra.mxu0 %v5484
      %5562 = vmatprep.subr.bf16.mxu0 0
      %5563 = vmatpush2.bf16.msra.mxu0 0
      %5564 = vmatprep.subr.bf16.mxu0 0
      %5565 = vmatpush2.bf16.msra.mxu0 0
      %5566 = vmatprep.subr.bf16.mxu0 0
      %5567 = vmatpush2.bf16.msra.mxu0 0
      %5568 = vmatprep.subr.bf16.mxu0 0
      %5569 = vmatpush2.bf16.msra.mxu0 0
      %5570 = vmatprep.subr.bf16.mxu0 0
      %5571 = vmatpush2.bf16.msra.mxu0 0
      %5572 = vmatprep.subr.bf16.mxu0 0
      %5573 = vmatpush2.bf16.msra.mxu0 0
      %5574 = vmatprep.subr.bf16.mxu0 0
      %5575 = vmatpush2.bf16.msra.mxu0 0
      %5576 = vmatprep.subr.bf16.mxu0 0
      %5577 = vmatpush2.bf16.msra.mxu0 0
      %5578 = vmatprep.mubr.bf16.mxu0 0
      %5579 = vmatmul.mubr.bf16.gmra.mxu0 %v5493
      %v5580 = vpop.f32.mrf.mxu0
      %v5581 = vadd.f32 0.0, %v5580
      %v5582 = vpop.f32.mrf.mxu0
      %v5583 = vpop.f32.mrf.mxu0
      %v5584 = vadd.f32 0.0, %v5583
      %v5585 = vpop.f32.mrf.mxu0
      %5586 = vmatprep.mubr.bf16.mxu0 0
      %5587 = vmatmul.mubr.bf16.gmra.mxu0 %v5496
      %v5588 = vpop.f32.mrf.mxu0
      %v5589 = vadd.f32 0.0, %v5588
      %v5590 = vpop.f32.mrf.mxu0
      %v5591 = vpop.f32.mrf.mxu0
      %v5592 = vadd.f32 0.0, %v5591
      %v5593 = vpop.f32.mrf.mxu0
      %5594 = vmatprep.mubr.bf16.mxu0 0
      %5595 = vmatmul.mubr.bf16.gmra.mxu0 %v5499
      %v5596 = vpop.f32.mrf.mxu0
      %v5597 = vadd.f32 0.0, %v5596
      %v5598 = vpop.f32.mrf.mxu0
      %v5599 = vpop.f32.mrf.mxu0
      %v5600 = vadd.f32 0.0, %v5599
      %v5601 = vpop.f32.mrf.mxu0
      %5602 = vmatprep.mubr.bf16.mxu0 0
      %5603 = vmatmul.mubr.bf16.gmra.mxu0 %v5502
      %v5604 = vpop.f32.mrf.mxu0
      %v5605 = vadd.f32 0.0, %v5604
      %v5606 = vpop.f32.mrf.mxu0
      %v5607 = vpop.f32.mrf.mxu0
      %v5608 = vadd.f32 0.0, %v5607
      %v5609 = vpop.f32.mrf.mxu0
      %5610 = vmatprep.mubr.bf16.mxu0 0
      %5611 = vmatmul.mubr.bf16.gmra.mxu0 %v5505
      %v5612 = vpop.f32.mrf.mxu0
      %v5613 = vadd.f32 0.0, %v5612
      %v5614 = vpop.f32.mrf.mxu0
      %v5615 = vpop.f32.mrf.mxu0
      %v5616 = vadd.f32 0.0, %v5615
      %v5617 = vpop.f32.mrf.mxu0
      %5618 = vmatprep.mubr.bf16.mxu0 0
      %5619 = vmatmul.mubr.bf16.gmra.mxu0 %v5508
      %v5620 = vpop.f32.mrf.mxu0
      %v5621 = vadd.f32 0.0, %v5620
      %v5622 = vpop.f32.mrf.mxu0
      %v5623 = vpop.f32.mrf.mxu0
      %v5624 = vadd.f32 0.0, %v5623
      %v5625 = vpop.f32.mrf.mxu0
      %5626 = vmatprep.mubr.bf16.mxu0 0
      %5627 = vmatmul.mubr.bf16.gmra.mxu0 %v5511
      %v5628 = vpop.f32.mrf.mxu0
      %v5629 = vadd.f32 0.0, %v5628
      %v5630 = vpop.f32.mrf.mxu0
      %v5631 = vpop.f32.mrf.mxu0
      %v5632 = vadd.f32 0.0, %v5631
      %v5633 = vpop.f32.mrf.mxu0
      %5634 = vmatprep.mubr.bf16.mxu0 0
      %5635 = vmatmul.mubr.bf16.gmra.mxu0 %v5514
      %v5636 = vpop.f32.mrf.mxu0
      %v5637 = vadd.f32 0.0, %v5636
      %v5638 = vpop.f32.mrf.mxu0
      %v5639 = vpop.f32.mrf.mxu0
      %v5640 = vadd.f32 0.0, %v5639
      %v5641 = vpop.f32.mrf.mxu0
      %5642 = vmatprep.mubr.bf16.mxu0 0
      %5643 = vmatmul.mubr.bf16.gmra.mxu0 %v5517
      %v5644 = vpop.f32.mrf.mxu0
      %v5645 = vadd.f32 0.0, %v5644
      %v5646 = vpop.f32.mrf.mxu0
      %v5647 = vpop.f32.mrf.mxu0
      %v5648 = vadd.f32 0.0, %v5647
      %v5649 = vpop.f32.mrf.mxu0
      %5650 = vmatprep.mubr.bf16.mxu0 0
      %5651 = vmatmul.mubr.bf16.gmra.mxu0 %v5520
      %v5652 = vpop.f32.mrf.mxu0
      %v5653 = vadd.f32 0.0, %v5652
      %v5654 = vpop.f32.mrf.mxu0
      %v5655 = vpop.f32.mrf.mxu0
      %v5656 = vadd.f32 0.0, %v5655
      %v5657 = vpop.f32.mrf.mxu0
      %5658 = vmatprep.mubr.bf16.mxu0 0
      %5659 = vmatmul.mubr.bf16.gmra.mxu0 %v5523
      %v5660 = vpop.f32.mrf.mxu0
      %v5661 = vadd.f32 0.0, %v5660
      %v5662 = vpop.f32.mrf.mxu0
      %v5663 = vpop.f32.mrf.mxu0
      %v5664 = vadd.f32 0.0, %v5663
      %v5665 = vpop.f32.mrf.mxu0
      %5666 = vmatprep.mubr.bf16.mxu0 0
      %5667 = vmatmul.mubr.bf16.gmra.mxu0 %v5526
      %v5668 = vpop.f32.mrf.mxu0
      %v5669 = vadd.f32 0.0, %v5668
      %v5670 = vpop.f32.mrf.mxu0
      %v5671 = vpop.f32.mrf.mxu0
      %v5672 = vadd.f32 0.0, %v5671
      %v5673 = vpop.f32.mrf.mxu0
      %5674 = vmatprep.mubr.bf16.mxu0 0
      %5675 = vmatmul.mubr.bf16.gmra.mxu0 %v5529
      %v5676 = vpop.f32.mrf.mxu0
      %v5677 = vadd.f32 0.0, %v5676
      %v5678 = vpop.f32.mrf.mxu0
      %v5679 = vpop.f32.mrf.mxu0
      %v5680 = vadd.f32 0.0, %v5679
      %v5681 = vpop.f32.mrf.mxu0
      %5682 = vmatprep.mubr.bf16.mxu0 0
      %5683 = vmatmul.mubr.bf16.gmra.mxu0 %v5532
      %v5684 = vpop.f32.mrf.mxu0
      %v5685 = vadd.f32 0.0, %v5684
      %v5686 = vpop.f32.mrf.mxu0
      %v5687 = vpop.f32.mrf.mxu0
      %v5688 = vadd.f32 0.0, %v5687
      %v5689 = vpop.f32.mrf.mxu0
      %5690 = vmatprep.mubr.bf16.mxu0 0
      %5691 = vmatmul.mubr.bf16.gmra.mxu0 %v5535
      %v5692 = vpop.f32.mrf.mxu0
      %v5693 = vadd.f32 0.0, %v5692
      %v5694 = vpop.f32.mrf.mxu0
      %v5695 = vpop.f32.mrf.mxu0
      %v5696 = vadd.f32 0.0, %v5695
      %v5697 = vpop.f32.mrf.mxu0
      %5698 = vmatprep.mubr.bf16.mxu0 0
      %5699 = vmatmul.mubr.bf16.gmra.mxu0 %v5538
      %v5700 = vpop.f32.mrf.mxu0
      %v5701 = vadd.f32 0.0, %v5700
      %v5702 = vpop.f32.mrf.mxu0
      %v5703 = vpop.f32.mrf.mxu0
      %v5704 = vadd.f32 0.0, %v5703
      %v5705 = vpop.f32.mrf.mxu0
      %5706 = vmatprep.mubr.bf16.mxu0 0
      %5707 = vmatmul.mubr.bf16.gmra.mxu0 %v5541
      %v5708 = vpop.f32.mrf.mxu0
      %v5709 = vadd.f32 0.0, %v5708
      %v5710 = vpop.f32.mrf.mxu0
      %v5711 = vpop.f32.mrf.mxu0
      %v5712 = vadd.f32 0.0, %v5711
      %v5713 = vpop.f32.mrf.mxu0
      %5714 = vmatprep.mubr.bf16.mxu0 0
      %5715 = vmatmul.mubr.bf16.gmra.mxu0 %v5544
      %v5716 = vpop.f32.mrf.mxu0
      %v5717 = vadd.f32 0.0, %v5716
      %v5718 = vpop.f32.mrf.mxu0
      %v5719 = vpop.f32.mrf.mxu0
      %v5720 = vadd.f32 0.0, %v5719
      %v5721 = vpop.f32.mrf.mxu0
      %5722 = vdwg.mxu0
      %v5723 = vadd.f32 %v5386, %v5581
      %v5724 = vadd.f32 %v5387, %v5584
      %v5725 = vadd.f32 %v5388, %v5589
      %v5726 = vadd.f32 %v5389, %v5592
      %v5727 = vadd.f32 %v5390, %v5597
      %v5728 = vadd.f32 %v5391, %v5600
      %v5729 = vadd.f32 %v5392, %v5605
      %v5730 = vadd.f32 %v5393, %v5608
      %v5731 = vadd.f32 %v5394, %v5613
      %v5732 = vadd.f32 %v5395, %v5616
      %v5733 = vadd.f32 %v5396, %v5621
      %v5734 = vadd.f32 %v5397, %v5624
      %v5735 = vadd.f32 %v5398, %v5629
      %v5736 = vadd.f32 %v5399, %v5632
      %v5737 = vadd.f32 %v5400, %v5637
      %v5738 = vadd.f32 %v5401, %v5640
      %v5739 = vadd.f32 %v5402, %v5645
      %v5740 = vadd.f32 %v5403, %v5648
      %v5741 = vadd.f32 %v5404, %v5653
      %v5742 = vadd.f32 %v5405, %v5656
      %v5743 = vadd.f32 %v5406, %v5661
      %v5744 = vadd.f32 %v5407, %v5664
      %v5745 = vadd.f32 %v5408, %v5669
      %v5746 = vadd.f32 %v5409, %v5672
      %v5747 = vadd.f32 %v5410, %v5677
      %v5748 = vadd.f32 %v5411, %v5680
      %v5749 = vadd.f32 %v5412, %v5685
      %v5750 = vadd.f32 %v5413, %v5688
      %v5751 = vadd.f32 %v5414, %v5693
      %v5752 = vadd.f32 %v5415, %v5696
      %v5753 = vadd.f32 %v5416, %v5701
      %v5754 = vadd.f32 %v5417, %v5704
      %v5755 = vadd.f32 %v5418, %v5709
      %v5756 = vadd.f32 %v5419, %v5712
      %v5757 = vadd.f32 %v5420, %v5717
      %v5758 = vadd.f32 %v5421, %v5720
      %v5759 = vpack.c.bf16 %v3741, %v3740
      %v5760 = vpack.c.bf16 %v3742, %v3742
      %s5761 = scalar_lea.vmem %s5, 192
      %v5762 = vld [vmem:[%s5761] sm:$0xf]
      %v5763 = vld [vmem:[%s5761 + $0x4] sm:$0xf]
      %v5764 = vld [vmem:[%s5761 + $0x8] sm:$0xf]
      %v5765 = vld [vmem:[%s5761 + $0xc] sm:$0xf]
      %v5766 = vld [vmem:[%s5761 + $0x10] sm:$0xf]
      %v5767 = vld [vmem:[%s5761 + $0x14] sm:$0xf]
      %v5768 = vld [vmem:[%s5761 + $0x18] sm:$0xf]
      %v5769 = vld [vmem:[%s5761 + $0x1c] sm:$0xf]
      %v5772 = vrot.slane %v5759, 2
      %v5773 = vsel %vm1897, %v5464, %v5772
      %v5774 = vrot.slane %v5760, 2
      %v5775 = vsel %vm1897, %v5772, %v5774
      %v5784 = vunpack.c.l.b16 %v5762
      %v5785 = vunpack.c.l.b16 %v5763
      %v5786 = vunpack.c.l.b16 %v5764
      %v5787 = vunpack.c.l.b16 %v5765
      %v5788 = vunpack.c.l.b16 %v5766
      %v5789 = vunpack.c.l.b16 %v5767
      %v5790 = vunpack.c.l.b16 %v5768
      %v5791 = vunpack.c.l.b16 %v5769
      %v5792 = vpack.c.b16 %v5785, %v5784
      %v5793 = vpack.c.b16 %v5787, %v5786
      %v5794 = vpack.c.b16 %v5789, %v5788
      %v5795 = vpack.c.b16 %v5791, %v5790
      %v5801 = vsel %vm3369, %v5773, 0
      %v5804 = vsel %vm3369, %v5775, 0
      %5806 = vmatprep.subr.bf16.mxu0 0
      %5807 = vmatpush1.bf16.msra.mxu0 0
      %5808 = vmatprep.subr.bf16.mxu0 0
      %5809 = vmatpush1.bf16.msra.mxu0 0
      %5810 = vmatprep.subr.bf16.mxu0 0
      %5811 = vmatpush1.bf16.msra.mxu0 0
      %5812 = vmatprep.subr.bf16.mxu0 0
      %5813 = vmatpush1.bf16.msra.mxu0 0
      %5814 = vmatprep.subr.bf16.mxu0 0
      %5815 = vmatpush1.bf16.msra.mxu0 %v5795
      %5816 = vmatprep.subr.bf16.mxu0 0
      %5817 = vmatpush1.bf16.msra.mxu0 %v5794
      %5818 = vmatprep.subr.bf16.mxu0 0
      %5819 = vmatpush1.bf16.msra.mxu0 %v5793
      %5820 = vmatprep.subr.bf16.mxu0 0
      %5821 = vmatpush1.bf16.msra.mxu0 %v5792
      %5822 = vmatprep.subr.bf16.mxu0 0
      %5823 = vmatpush2.bf16.msra.mxu0 0
      %5824 = vmatprep.subr.bf16.mxu0 0
      %5825 = vmatpush2.bf16.msra.mxu0 0
      %5826 = vmatprep.subr.bf16.mxu0 0
      %5827 = vmatpush2.bf16.msra.mxu0 0
      %5828 = vmatprep.subr.bf16.mxu0 0
      %5829 = vmatpush2.bf16.msra.mxu0 0
      %5830 = vmatprep.subr.bf16.mxu0 0
      %5831 = vmatpush2.bf16.msra.mxu0 0
      %5832 = vmatprep.subr.bf16.mxu0 0
      %5833 = vmatpush2.bf16.msra.mxu0 0
      %5834 = vmatprep.subr.bf16.mxu0 0
      %5835 = vmatpush2.bf16.msra.mxu0 0
      %5836 = vmatprep.subr.bf16.mxu0 0
      %5837 = vmatpush2.bf16.msra.mxu0 0
      %5838 = vmatprep.mubr.bf16.mxu0 0
      %5839 = vmatmul.mubr.bf16.gmra.mxu0 %v5496
      %v5840 = vpop.f32.mrf.mxu0
      %v5841 = vadd.f32 0.0, %v5840
      %v5842 = vpop.f32.mrf.mxu0
      %v5843 = vpop.f32.mrf.mxu0
      %v5844 = vadd.f32 0.0, %v5843
      %v5845 = vpop.f32.mrf.mxu0
      %5846 = vmatprep.mubr.bf16.mxu0 0
      %5847 = vmatmul.mubr.bf16.gmra.mxu0 %v5499
      %v5848 = vpop.f32.mrf.mxu0
      %v5849 = vadd.f32 0.0, %v5848
      %v5850 = vpop.f32.mrf.mxu0
      %v5851 = vpop.f32.mrf.mxu0
      %v5852 = vadd.f32 0.0, %v5851
      %v5853 = vpop.f32.mrf.mxu0
      %5854 = vmatprep.mubr.bf16.mxu0 0
      %5855 = vmatmul.mubr.bf16.gmra.mxu0 %v5502
      %v5856 = vpop.f32.mrf.mxu0
      %v5857 = vadd.f32 0.0, %v5856
      %v5858 = vpop.f32.mrf.mxu0
      %v5859 = vpop.f32.mrf.mxu0
      %v5860 = vadd.f32 0.0, %v5859
      %v5861 = vpop.f32.mrf.mxu0
      %5862 = vmatprep.mubr.bf16.mxu0 0
      %5863 = vmatmul.mubr.bf16.gmra.mxu0 %v5505
      %v5864 = vpop.f32.mrf.mxu0
      %v5865 = vadd.f32 0.0, %v5864
      %v5866 = vpop.f32.mrf.mxu0
      %v5867 = vpop.f32.mrf.mxu0
      %v5868 = vadd.f32 0.0, %v5867
      %v5869 = vpop.f32.mrf.mxu0
      %5870 = vmatprep.mubr.bf16.mxu0 0
      %5871 = vmatmul.mubr.bf16.gmra.mxu0 %v5508
      %v5872 = vpop.f32.mrf.mxu0
      %v5873 = vadd.f32 0.0, %v5872
      %v5874 = vpop.f32.mrf.mxu0
      %v5875 = vpop.f32.mrf.mxu0
      %v5876 = vadd.f32 0.0, %v5875
      %v5877 = vpop.f32.mrf.mxu0
      %5878 = vmatprep.mubr.bf16.mxu0 0
      %5879 = vmatmul.mubr.bf16.gmra.mxu0 %v5511
      %v5880 = vpop.f32.mrf.mxu0
      %v5881 = vadd.f32 0.0, %v5880
      %v5882 = vpop.f32.mrf.mxu0
      %v5883 = vpop.f32.mrf.mxu0
      %v5884 = vadd.f32 0.0, %v5883
      %v5885 = vpop.f32.mrf.mxu0
      %5886 = vmatprep.mubr.bf16.mxu0 0
      %5887 = vmatmul.mubr.bf16.gmra.mxu0 %v5514
      %v5888 = vpop.f32.mrf.mxu0
      %v5889 = vadd.f32 0.0, %v5888
      %v5890 = vpop.f32.mrf.mxu0
      %v5891 = vpop.f32.mrf.mxu0
      %v5892 = vadd.f32 0.0, %v5891
      %v5893 = vpop.f32.mrf.mxu0
      %5894 = vmatprep.mubr.bf16.mxu0 0
      %5895 = vmatmul.mubr.bf16.gmra.mxu0 %v5517
      %v5896 = vpop.f32.mrf.mxu0
      %v5897 = vadd.f32 0.0, %v5896
      %v5898 = vpop.f32.mrf.mxu0
      %v5899 = vpop.f32.mrf.mxu0
      %v5900 = vadd.f32 0.0, %v5899
      %v5901 = vpop.f32.mrf.mxu0
      %5902 = vmatprep.mubr.bf16.mxu0 0
      %5903 = vmatmul.mubr.bf16.gmra.mxu0 %v5520
      %v5904 = vpop.f32.mrf.mxu0
      %v5905 = vadd.f32 0.0, %v5904
      %v5906 = vpop.f32.mrf.mxu0
      %v5907 = vpop.f32.mrf.mxu0
      %v5908 = vadd.f32 0.0, %v5907
      %v5909 = vpop.f32.mrf.mxu0
      %5910 = vmatprep.mubr.bf16.mxu0 0
      %5911 = vmatmul.mubr.bf16.gmra.mxu0 %v5523
      %v5912 = vpop.f32.mrf.mxu0
      %v5913 = vadd.f32 0.0, %v5912
      %v5914 = vpop.f32.mrf.mxu0
      %v5915 = vpop.f32.mrf.mxu0
      %v5916 = vadd.f32 0.0, %v5915
      %v5917 = vpop.f32.mrf.mxu0
      %5918 = vmatprep.mubr.bf16.mxu0 0
      %5919 = vmatmul.mubr.bf16.gmra.mxu0 %v5526
      %v5920 = vpop.f32.mrf.mxu0
      %v5921 = vadd.f32 0.0, %v5920
      %v5922 = vpop.f32.mrf.mxu0
      %v5923 = vpop.f32.mrf.mxu0
      %v5924 = vadd.f32 0.0, %v5923
      %v5925 = vpop.f32.mrf.mxu0
      %5926 = vmatprep.mubr.bf16.mxu0 0
      %5927 = vmatmul.mubr.bf16.gmra.mxu0 %v5529
      %v5928 = vpop.f32.mrf.mxu0
      %v5929 = vadd.f32 0.0, %v5928
      %v5930 = vpop.f32.mrf.mxu0
      %v5931 = vpop.f32.mrf.mxu0
      %v5932 = vadd.f32 0.0, %v5931
      %v5933 = vpop.f32.mrf.mxu0
      %5934 = vmatprep.mubr.bf16.mxu0 0
      %5935 = vmatmul.mubr.bf16.gmra.mxu0 %v5532
      %v5936 = vpop.f32.mrf.mxu0
      %v5937 = vadd.f32 0.0, %v5936
      %v5938 = vpop.f32.mrf.mxu0
      %v5939 = vpop.f32.mrf.mxu0
      %v5940 = vadd.f32 0.0, %v5939
      %v5941 = vpop.f32.mrf.mxu0
      %5942 = vmatprep.mubr.bf16.mxu0 0
      %5943 = vmatmul.mubr.bf16.gmra.mxu0 %v5535
      %v5944 = vpop.f32.mrf.mxu0
      %v5945 = vadd.f32 0.0, %v5944
      %v5946 = vpop.f32.mrf.mxu0
      %v5947 = vpop.f32.mrf.mxu0
      %v5948 = vadd.f32 0.0, %v5947
      %v5949 = vpop.f32.mrf.mxu0
      %5950 = vmatprep.mubr.bf16.mxu0 0
      %5951 = vmatmul.mubr.bf16.gmra.mxu0 %v5538
      %v5952 = vpop.f32.mrf.mxu0
      %v5953 = vadd.f32 0.0, %v5952
      %v5954 = vpop.f32.mrf.mxu0
      %v5955 = vpop.f32.mrf.mxu0
      %v5956 = vadd.f32 0.0, %v5955
      %v5957 = vpop.f32.mrf.mxu0
      %5958 = vmatprep.mubr.bf16.mxu0 0
      %5959 = vmatmul.mubr.bf16.gmra.mxu0 %v5541
      %v5960 = vpop.f32.mrf.mxu0
      %v5961 = vadd.f32 0.0, %v5960
      %v5962 = vpop.f32.mrf.mxu0
      %v5963 = vpop.f32.mrf.mxu0
      %v5964 = vadd.f32 0.0, %v5963
      %v5965 = vpop.f32.mrf.mxu0
      %5966 = vmatprep.mubr.bf16.mxu0 0
      %5967 = vmatmul.mubr.bf16.gmra.mxu0 %v5801
      %v5968 = vpop.f32.mrf.mxu0
      %v5969 = vadd.f32 0.0, %v5968
      %v5970 = vpop.f32.mrf.mxu0
      %v5971 = vpop.f32.mrf.mxu0
      %v5972 = vadd.f32 0.0, %v5971
      %v5973 = vpop.f32.mrf.mxu0
      %5974 = vmatprep.mubr.bf16.mxu0 0
      %5975 = vmatmul.mubr.bf16.gmra.mxu0 %v5804
      %v5976 = vpop.f32.mrf.mxu0
      %v5977 = vadd.f32 0.0, %v5976
      %v5978 = vpop.f32.mrf.mxu0
      %v5979 = vpop.f32.mrf.mxu0
      %v5980 = vadd.f32 0.0, %v5979
      %v5981 = vpop.f32.mrf.mxu0
      %5982 = vdwg.mxu0
      %v5983 = vadd.f32 %v5723, %v5841
      %v5984 = vadd.f32 %v5724, %v5844
      %v5985 = vadd.f32 %v5725, %v5849
      %v5986 = vadd.f32 %v5726, %v5852
      %v5987 = vadd.f32 %v5727, %v5857
      %v5988 = vadd.f32 %v5728, %v5860
      %v5989 = vadd.f32 %v5729, %v5865
      %v5990 = vadd.f32 %v5730, %v5868
      %v5991 = vadd.f32 %v5731, %v5873
      %v5992 = vadd.f32 %v5732, %v5876
      %v5993 = vadd.f32 %v5733, %v5881
      %v5994 = vadd.f32 %v5734, %v5884
      %v5995 = vadd.f32 %v5735, %v5889
      %v5996 = vadd.f32 %v5736, %v5892
      %v5997 = vadd.f32 %v5737, %v5897
      %v5998 = vadd.f32 %v5738, %v5900
      %v5999 = vadd.f32 %v5739, %v5905
      %v6000 = vadd.f32 %v5740, %v5908
      %v6001 = vadd.f32 %v5741, %v5913
      %v6002 = vadd.f32 %v5742, %v5916
      %v6003 = vadd.f32 %v5743, %v5921
      %v6004 = vadd.f32 %v5744, %v5924
      %v6005 = vadd.f32 %v5745, %v5929
      %v6006 = vadd.f32 %v5746, %v5932
      %v6007 = vadd.f32 %v5747, %v5937
      %v6008 = vadd.f32 %v5748, %v5940
      %v6009 = vadd.f32 %v5749, %v5945
      %v6010 = vadd.f32 %v5750, %v5948
      %v6011 = vadd.f32 %v5751, %v5953
      %v6012 = vadd.f32 %v5752, %v5956
      %v6013 = vadd.f32 %v5753, %v5961
      %v6014 = vadd.f32 %v5754, %v5964
      %v6015 = vadd.f32 %v5755, %v5969
      %v6016 = vadd.f32 %v5756, %v5972
      %v6017 = vadd.f32 %v5757, %v5977
      %v6018 = vadd.f32 %v5758, %v5980
      %s6019 = scalar_lea.vmem %s5, 224
      %v6020 = vld [vmem:[%s6019] sm:$0xf]
      %v6021 = vld [vmem:[%s6019 + $0x4] sm:$0xf]
      %v6022 = vld [vmem:[%s6019 + $0x8] sm:$0xf]
      %v6023 = vld [vmem:[%s6019 + $0xc] sm:$0xf]
      %v6024 = vld [vmem:[%s6019 + $0x10] sm:$0xf]
      %v6025 = vld [vmem:[%s6019 + $0x14] sm:$0xf]
      %v6026 = vld [vmem:[%s6019 + $0x18] sm:$0xf]
      %v6027 = vld [vmem:[%s6019 + $0x1c] sm:$0xf]
      %v6028 = vrot.slane %v3801, 2
      %v6029 = vrot.slane %v3797, 3
      %v6030 = vor.u32 %v6028, %v6029
      %v6031 = vrot.slane %v3809, 2
      %v6032 = vrot.slane %v3805, 3
      %v6033 = vor.u32 %v6031, %v6032
      %v6034 = vsel %vm2439, %v6030, %v6033
      %v6035 = vrot.slane %v3817, 2
      %v6036 = vrot.slane %v3813, 3
      %v6037 = vor.u32 %v6035, %v6036
      %v6038 = vsel %vm2439, %v6033, %v6037
      %v6039 = vrot.slane %v3825, 2
      %v6040 = vrot.slane %v3821, 3
      %v6041 = vor.u32 %v6039, %v6040
      %v6042 = vsel %vm2439, %v6037, %v6041
      %v6043 = vrot.slane %v3833, 2
      %v6044 = vrot.slane %v3829, 3
      %v6045 = vor.u32 %v6043, %v6044
      %v6046 = vsel %vm2439, %v6041, %v6045
      %v6047 = vrot.slane %v3841, 2
      %v6048 = vrot.slane %v3837, 3
      %v6049 = vor.u32 %v6047, %v6048
      %v6050 = vsel %vm2439, %v6045, %v6049
      %v6051 = vrot.slane %v3849, 2
      %v6052 = vrot.slane %v3845, 3
      %v6053 = vor.u32 %v6051, %v6052
      %v6054 = vsel %vm2439, %v6049, %v6053
      %v6055 = vrot.slane %v3857, 2
      %v6056 = vrot.slane %v3853, 3
      %v6057 = vor.u32 %v6055, %v6056
      %v6058 = vsel %vm2439, %v6053, %v6057
      %v6059 = vrot.slane %v3865, 2
      %v6060 = vrot.slane %v3861, 3
      %v6061 = vor.u32 %v6059, %v6060
      %v6062 = vsel %vm2439, %v6057, %v6061
      %v6063 = vrot.slane %v3873, 2
      %v6064 = vrot.slane %v3869, 3
      %v6065 = vor.u32 %v6063, %v6064
      %v6066 = vsel %vm2439, %v6061, %v6065
      %v6067 = vrot.slane %v3881, 2
      %v6068 = vrot.slane %v3877, 3
      %v6069 = vor.u32 %v6067, %v6068
      %v6070 = vsel %vm2439, %v6065, %v6069
      %v6071 = vrot.slane %v3889, 2
      %v6072 = vrot.slane %v3885, 3
      %v6073 = vor.u32 %v6071, %v6072
      %v6074 = vsel %vm2439, %v6069, %v6073
      %v6075 = vrot.slane %v3897, 2
      %v6076 = vrot.slane %v3893, 3
      %v6077 = vor.u32 %v6075, %v6076
      %v6078 = vsel %vm2439, %v6073, %v6077
      %v6079 = vrot.slane %v3905, 2
      %v6080 = vrot.slane %v3901, 3
      %v6081 = vor.u32 %v6079, %v6080
      %v6082 = vsel %vm2439, %v6077, %v6081
      %v6083 = vrot.slane %v3913, 2
      %v6084 = vrot.slane %v3909, 3
      %v6085 = vor.u32 %v6083, %v6084
      %v6086 = vsel %vm2439, %v6081, %v6085
      %v6087 = vrot.slane %v3921, 2
      %v6088 = vrot.slane %v3917, 3
      %v6089 = vor.u32 %v6087, %v6088
      %v6090 = vsel %vm2439, %v6085, %v6089
      %v6091 = vrot.slane %v5114, 2
      %v6092 = vrot.slane %v5117, 3
      %v6093 = vor.u32 %v6091, %v6092
      %v6094 = vsel %vm2439, %v6089, %v6093
      %v6096 = vshrl.u32 %v5759, 16
      %v6098 = vrot.slane %v6096, 2
      %v6099 = vshll.u32 %v5759, 16
      %v6101 = vrot.slane %v6099, 3
      %v6102 = vor.u32 %v6098, %v6101
      %v6103 = vsel %vm2439, %v6093, %v6102
      %v6105 = vshrl.u32 %v5760, 16
      %v6107 = vrot.slane %v6105, 2
      %v6108 = vshll.u32 %v5760, 16
      %v6110 = vrot.slane %v6108, 3
      %v6111 = vor.u32 %v6107, %v6110
      %v6112 = vsel %vm2439, %v6102, %v6111
      %v6121 = vunpack.c.l.b16 %v6020
      %v6122 = vunpack.c.l.b16 %v6021
      %v6123 = vunpack.c.l.b16 %v6022
      %v6124 = vunpack.c.l.b16 %v6023
      %v6125 = vunpack.c.l.b16 %v6024
      %v6126 = vunpack.c.l.b16 %v6025
      %v6127 = vunpack.c.l.b16 %v6026
      %v6128 = vunpack.c.l.b16 %v6027
      %v6129 = vpack.c.b16 %v6122, %v6121
      %v6130 = vpack.c.b16 %v6124, %v6123
      %v6131 = vpack.c.b16 %v6126, %v6125
      %v6132 = vpack.c.b16 %v6128, %v6127
      %v6138 = vsel %vm3369, %v6034, 0
      %v6141 = vsel %vm3369, %v6038, 0
      %v6144 = vsel %vm3369, %v6042, 0
      %v6147 = vsel %vm3369, %v6046, 0
      %v6150 = vsel %vm3369, %v6050, 0
      %v6153 = vsel %vm3369, %v6054, 0
      %v6156 = vsel %vm3369, %v6058, 0
      %v6159 = vsel %vm3369, %v6062, 0
      %v6162 = vsel %vm3369, %v6066, 0
      %v6165 = vsel %vm3369, %v6070, 0
      %v6168 = vsel %vm3369, %v6074, 0
      %v6171 = vsel %vm3369, %v6078, 0
      %v6174 = vsel %vm3369, %v6082, 0
      %v6177 = vsel %vm3369, %v6086, 0
      %v6180 = vsel %vm3369, %v6090, 0
      %v6183 = vsel %vm3369, %v6094, 0
      %v6186 = vsel %vm3369, %v6103, 0
      %v6189 = vsel %vm3369, %v6112, 0
      %6191 = vmatprep.subr.bf16.mxu0 0
      %6192 = vmatpush1.bf16.msra.mxu0 0
      %6193 = vmatprep.subr.bf16.mxu0 0
      %6194 = vmatpush1.bf16.msra.mxu0 0
      %6195 = vmatprep.subr.bf16.mxu0 0
      %6196 = vmatpush1.bf16.msra.mxu0 0
      %6197 = vmatprep.subr.bf16.mxu0 0
      %6198 = vmatpush1.bf16.msra.mxu0 0
      %6199 = vmatprep.subr.bf16.mxu0 0
      %6200 = vmatpush1.bf16.msra.mxu0 %v6132
      %6201 = vmatprep.subr.bf16.mxu0 0
      %6202 = vmatpush1.bf16.msra.mxu0 %v6131
      %6203 = vmatprep.subr.bf16.mxu0 0
      %6204 = vmatpush1.bf16.msra.mxu0 %v6130
      %6205 = vmatprep.subr.bf16.mxu0 0
      %6206 = vmatpush1.bf16.msra.mxu0 %v6129
      %6207 = vmatprep.subr.bf16.mxu0 0
      %6208 = vmatpush2.bf16.msra.mxu0 0
      %6209 = vmatprep.subr.bf16.mxu0 0
      %6210 = vmatpush2.bf16.msra.mxu0 0
      %6211 = vmatprep.subr.bf16.mxu0 0
      %6212 = vmatpush2.bf16.msra.mxu0 0
      %6213 = vmatprep.subr.bf16.mxu0 0
      %6214 = vmatpush2.bf16.msra.mxu0 0
      %6215 = vmatprep.subr.bf16.mxu0 0
      %6216 = vmatpush2.bf16.msra.mxu0 0
      %6217 = vmatprep.subr.bf16.mxu0 0
      %6218 = vmatpush2.bf16.msra.mxu0 0
      %6219 = vmatprep.subr.bf16.mxu0 0
      %6220 = vmatpush2.bf16.msra.mxu0 0
      %6221 = vmatprep.subr.bf16.mxu0 0
      %6222 = vmatpush2.bf16.msra.mxu0 0
      %6223 = vmatprep.mubr.bf16.mxu0 0
      %6224 = vmatmul.mubr.bf16.gmra.mxu0 %v6138
      %v6225 = vpop.f32.mrf.mxu0
      %v6226 = vadd.f32 0.0, %v6225
      %v6227 = vpop.f32.mrf.mxu0
      %v6228 = vpop.f32.mrf.mxu0
      %v6229 = vadd.f32 0.0, %v6228
      %v6230 = vpop.f32.mrf.mxu0
      %6231 = vmatprep.mubr.bf16.mxu0 0
      %6232 = vmatmul.mubr.bf16.gmra.mxu0 %v6141
      %v6233 = vpop.f32.mrf.mxu0
      %v6234 = vadd.f32 0.0, %v6233
      %v6235 = vpop.f32.mrf.mxu0
      %v6236 = vpop.f32.mrf.mxu0
      %v6237 = vadd.f32 0.0, %v6236
      %v6238 = vpop.f32.mrf.mxu0
      %6239 = vmatprep.mubr.bf16.mxu0 0
      %6240 = vmatmul.mubr.bf16.gmra.mxu0 %v6144
      %v6241 = vpop.f32.mrf.mxu0
      %v6242 = vadd.f32 0.0, %v6241
      %v6243 = vpop.f32.mrf.mxu0
      %v6244 = vpop.f32.mrf.mxu0
      %v6245 = vadd.f32 0.0, %v6244
      %v6246 = vpop.f32.mrf.mxu0
      %6247 = vmatprep.mubr.bf16.mxu0 0
      %6248 = vmatmul.mubr.bf16.gmra.mxu0 %v6147
      %v6249 = vpop.f32.mrf.mxu0
      %v6250 = vadd.f32 0.0, %v6249
      %v6251 = vpop.f32.mrf.mxu0
      %v6252 = vpop.f32.mrf.mxu0
      %v6253 = vadd.f32 0.0, %v6252
      %v6254 = vpop.f32.mrf.mxu0
      %6255 = vmatprep.mubr.bf16.mxu0 0
      %6256 = vmatmul.mubr.bf16.gmra.mxu0 %v6150
      %v6257 = vpop.f32.mrf.mxu0
      %v6258 = vadd.f32 0.0, %v6257
      %v6259 = vpop.f32.mrf.mxu0
      %v6260 = vpop.f32.mrf.mxu0
      %v6261 = vadd.f32 0.0, %v6260
      %v6262 = vpop.f32.mrf.mxu0
      %6263 = vmatprep.mubr.bf16.mxu0 0
      %6264 = vmatmul.mubr.bf16.gmra.mxu0 %v6153
      %v6265 = vpop.f32.mrf.mxu0
      %v6266 = vadd.f32 0.0, %v6265
      %v6267 = vpop.f32.mrf.mxu0
      %v6268 = vpop.f32.mrf.mxu0
      %v6269 = vadd.f32 0.0, %v6268
      %v6270 = vpop.f32.mrf.mxu0
      %6271 = vmatprep.mubr.bf16.mxu0 0
      %6272 = vmatmul.mubr.bf16.gmra.mxu0 %v6156
      %v6273 = vpop.f32.mrf.mxu0
      %v6274 = vadd.f32 0.0, %v6273
      %v6275 = vpop.f32.mrf.mxu0
      %v6276 = vpop.f32.mrf.mxu0
      %v6277 = vadd.f32 0.0, %v6276
      %v6278 = vpop.f32.mrf.mxu0
      %6279 = vmatprep.mubr.bf16.mxu0 0
      %6280 = vmatmul.mubr.bf16.gmra.mxu0 %v6159
      %v6281 = vpop.f32.mrf.mxu0
      %v6282 = vadd.f32 0.0, %v6281
      %v6283 = vpop.f32.mrf.mxu0
      %v6284 = vpop.f32.mrf.mxu0
      %v6285 = vadd.f32 0.0, %v6284
      %v6286 = vpop.f32.mrf.mxu0
      %6287 = vmatprep.mubr.bf16.mxu0 0
      %6288 = vmatmul.mubr.bf16.gmra.mxu0 %v6162
      %v6289 = vpop.f32.mrf.mxu0
      %v6290 = vadd.f32 0.0, %v6289
      %v6291 = vpop.f32.mrf.mxu0
      %v6292 = vpop.f32.mrf.mxu0
      %v6293 = vadd.f32 0.0, %v6292
      %v6294 = vpop.f32.mrf.mxu0
      %6295 = vmatprep.mubr.bf16.mxu0 0
      %6296 = vmatmul.mubr.bf16.gmra.mxu0 %v6165
      %v6297 = vpop.f32.mrf.mxu0
      %v6298 = vadd.f32 0.0, %v6297
      %v6299 = vpop.f32.mrf.mxu0
      %v6300 = vpop.f32.mrf.mxu0
      %v6301 = vadd.f32 0.0, %v6300
      %v6302 = vpop.f32.mrf.mxu0
      %6303 = vmatprep.mubr.bf16.mxu0 0
      %6304 = vmatmul.mubr.bf16.gmra.mxu0 %v6168
      %v6305 = vpop.f32.mrf.mxu0
      %v6306 = vadd.f32 0.0, %v6305
      %v6307 = vpop.f32.mrf.mxu0
      %v6308 = vpop.f32.mrf.mxu0
      %v6309 = vadd.f32 0.0, %v6308
      %v6310 = vpop.f32.mrf.mxu0
      %6311 = vmatprep.mubr.bf16.mxu0 0
      %6312 = vmatmul.mubr.bf16.gmra.mxu0 %v6171
      %v6313 = vpop.f32.mrf.mxu0
      %v6314 = vadd.f32 0.0, %v6313
      %v6315 = vpop.f32.mrf.mxu0
      %v6316 = vpop.f32.mrf.mxu0
      %v6317 = vadd.f32 0.0, %v6316
      %v6318 = vpop.f32.mrf.mxu0
      %6319 = vmatprep.mubr.bf16.mxu0 0
      %6320 = vmatmul.mubr.bf16.gmra.mxu0 %v6174
      %v6321 = vpop.f32.mrf.mxu0
      %v6322 = vadd.f32 0.0, %v6321
      %v6323 = vpop.f32.mrf.mxu0
      %v6324 = vpop.f32.mrf.mxu0
      %v6325 = vadd.f32 0.0, %v6324
      %v6326 = vpop.f32.mrf.mxu0
      %6327 = vmatprep.mubr.bf16.mxu0 0
      %6328 = vmatmul.mubr.bf16.gmra.mxu0 %v6177
      %v6329 = vpop.f32.mrf.mxu0
      %v6330 = vadd.f32 0.0, %v6329
      %v6331 = vpop.f32.mrf.mxu0
      %v6332 = vpop.f32.mrf.mxu0
      %v6333 = vadd.f32 0.0, %v6332
      %v6334 = vpop.f32.mrf.mxu0
      %6335 = vmatprep.mubr.bf16.mxu0 0
      %6336 = vmatmul.mubr.bf16.gmra.mxu0 %v6180
      %v6337 = vpop.f32.mrf.mxu0
      %v6338 = vadd.f32 0.0, %v6337
      %v6339 = vpop.f32.mrf.mxu0
      %v6340 = vpop.f32.mrf.mxu0
      %v6341 = vadd.f32 0.0, %v6340
      %v6342 = vpop.f32.mrf.mxu0
      %6343 = vmatprep.mubr.bf16.mxu0 0
      %6344 = vmatmul.mubr.bf16.gmra.mxu0 %v6183
      %v6345 = vpop.f32.mrf.mxu0
      %v6346 = vadd.f32 0.0, %v6345
      %v6347 = vpop.f32.mrf.mxu0
      %v6348 = vpop.f32.mrf.mxu0
      %v6349 = vadd.f32 0.0, %v6348
      %v6350 = vpop.f32.mrf.mxu0
      %6351 = vmatprep.mubr.bf16.mxu0 0
      %6352 = vmatmul.mubr.bf16.gmra.mxu0 %v6186
      %v6353 = vpop.f32.mrf.mxu0
      %v6354 = vadd.f32 0.0, %v6353
      %v6355 = vpop.f32.mrf.mxu0
      %v6356 = vpop.f32.mrf.mxu0
      %v6357 = vadd.f32 0.0, %v6356
      %v6358 = vpop.f32.mrf.mxu0
      %6359 = vmatprep.mubr.bf16.mxu0 0
      %6360 = vmatmul.mubr.bf16.gmra.mxu0 %v6189
      %v6361 = vpop.f32.mrf.mxu0
      %v6362 = vadd.f32 0.0, %v6361
      %v6363 = vpop.f32.mrf.mxu0
      %v6364 = vpop.f32.mrf.mxu0
      %v6365 = vadd.f32 0.0, %v6364
      %v6366 = vpop.f32.mrf.mxu0
      %6367 = vdwg.mxu0
      %v6368 = vadd.f32 %v5983, %v6226
      %v6369 = vadd.f32 %v5984, %v6229
      %v6370 = vadd.f32 %v5985, %v6234
      %v6371 = vadd.f32 %v5986, %v6237
      %v6372 = vadd.f32 %v5987, %v6242
      %v6373 = vadd.f32 %v5988, %v6245
      %v6374 = vadd.f32 %v5989, %v6250
      %v6375 = vadd.f32 %v5990, %v6253
      %v6376 = vadd.f32 %v5991, %v6258
      %v6377 = vadd.f32 %v5992, %v6261
      %v6378 = vadd.f32 %v5993, %v6266
      %v6379 = vadd.f32 %v5994, %v6269
      %v6380 = vadd.f32 %v5995, %v6274
      %v6381 = vadd.f32 %v5996, %v6277
      %v6382 = vadd.f32 %v5997, %v6282
      %v6383 = vadd.f32 %v5998, %v6285
      %v6384 = vadd.f32 %v5999, %v6290
      %v6385 = vadd.f32 %v6000, %v6293
      %v6386 = vadd.f32 %v6001, %v6298
      %v6387 = vadd.f32 %v6002, %v6301
      %v6388 = vadd.f32 %v6003, %v6306
      %v6389 = vadd.f32 %v6004, %v6309
      %v6390 = vadd.f32 %v6005, %v6314
      %v6391 = vadd.f32 %v6006, %v6317
      %v6392 = vadd.f32 %v6007, %v6322
      %v6393 = vadd.f32 %v6008, %v6325
      %v6394 = vadd.f32 %v6009, %v6330
      %v6395 = vadd.f32 %v6010, %v6333
      %v6396 = vadd.f32 %v6011, %v6338
      %v6397 = vadd.f32 %v6012, %v6341
      %v6398 = vadd.f32 %v6013, %v6346
      %v6399 = vadd.f32 %v6014, %v6349
      %v6400 = vadd.f32 %v6015, %v6354
      %v6401 = vadd.f32 %v6016, %v6357
      %v6402 = vadd.f32 %v6017, %v6362
      %v6403 = vadd.f32 %v6018, %v6365
      %s6404 = scalar_lea.vmem %s5, 256
      %v6405 = vld [vmem:[%s6404] sm:$0xf]
      %v6406 = vld [vmem:[%s6404 + $0x4] sm:$0xf]
      %v6407 = vld [vmem:[%s6404 + $0x8] sm:$0xf]
      %v6408 = vld [vmem:[%s6404 + $0xc] sm:$0xf]
      %v6409 = vld [vmem:[%s6404 + $0x10] sm:$0xf]
      %v6410 = vld [vmem:[%s6404 + $0x14] sm:$0xf]
      %v6411 = vld [vmem:[%s6404 + $0x18] sm:$0xf]
      %v6412 = vld [vmem:[%s6404 + $0x1c] sm:$0xf]
      %v6413 = vrot.slane %v3747, 3
      %v6414 = vrot.slane %v3748, 3
      %v6415 = vsel %vm2797, %v6413, %v6414
      %v6416 = vrot.slane %v3749, 3
      %v6417 = vsel %vm2797, %v6414, %v6416
      %v6418 = vrot.slane %v3750, 3
      %v6419 = vsel %vm2797, %v6416, %v6418
      %v6420 = vrot.slane %v3751, 3
      %v6421 = vsel %vm2797, %v6418, %v6420
      %v6422 = vrot.slane %v3752, 3
      %v6423 = vsel %vm2797, %v6420, %v6422
      %v6424 = vrot.slane %v3753, 3
      %v6425 = vsel %vm2797, %v6422, %v6424
      %v6426 = vrot.slane %v3754, 3
      %v6427 = vsel %vm2797, %v6424, %v6426
      %v6428 = vrot.slane %v3755, 3
      %v6429 = vsel %vm2797, %v6426, %v6428
      %v6430 = vrot.slane %v3756, 3
      %v6431 = vsel %vm2797, %v6428, %v6430
      %v6432 = vrot.slane %v3757, 3
      %v6433 = vsel %vm2797, %v6430, %v6432
      %v6434 = vrot.slane %v3758, 3
      %v6435 = vsel %vm2797, %v6432, %v6434
      %v6436 = vrot.slane %v3759, 3
      %v6437 = vsel %vm2797, %v6434, %v6436
      %v6438 = vrot.slane %v3760, 3
      %v6439 = vsel %vm2797, %v6436, %v6438
      %v6440 = vrot.slane %v3761, 3
      %v6441 = vsel %vm2797, %v6438, %v6440
      %v6442 = vrot.slane %v3762, 3
      %v6443 = vsel %vm2797, %v6440, %v6442
      %v6444 = vrot.slane %v4777, 3
      %v6445 = vsel %vm2797, %v6442, %v6444
      %v6446 = vrot.slane %v5759, 3
      %v6447 = vsel %vm2797, %v6444, %v6446
      %v6448 = vrot.slane %v5760, 3
      %v6449 = vsel %vm2797, %v6446, %v6448
      %v6458 = vunpack.c.l.b16 %v6405
      %v6459 = vunpack.c.l.b16 %v6406
      %v6460 = vunpack.c.l.b16 %v6407
      %v6461 = vunpack.c.l.b16 %v6408
      %v6462 = vunpack.c.l.b16 %v6409
      %v6463 = vunpack.c.l.b16 %v6410
      %v6464 = vunpack.c.l.b16 %v6411
      %v6465 = vunpack.c.l.b16 %v6412
      %v6466 = vpack.c.b16 %v6459, %v6458
      %v6467 = vpack.c.b16 %v6461, %v6460
      %v6468 = vpack.c.b16 %v6463, %v6462
      %v6469 = vpack.c.b16 %v6465, %v6464
      %v6475 = vsel %vm3369, %v6415, 0
      %v6478 = vsel %vm3369, %v6417, 0
      %v6481 = vsel %vm3369, %v6419, 0
      %v6484 = vsel %vm3369, %v6421, 0
      %v6487 = vsel %vm3369, %v6423, 0
      %v6490 = vsel %vm3369, %v6425, 0
      %v6493 = vsel %vm3369, %v6427, 0
      %v6496 = vsel %vm3369, %v6429, 0
      %v6499 = vsel %vm3369, %v6431, 0
      %v6502 = vsel %vm3369, %v6433, 0
      %v6505 = vsel %vm3369, %v6435, 0
      %v6508 = vsel %vm3369, %v6437, 0
      %v6511 = vsel %vm3369, %v6439, 0
      %v6514 = vsel %vm3369, %v6441, 0
      %v6517 = vsel %vm3369, %v6443, 0
      %v6520 = vsel %vm3369, %v6445, 0
      %v6523 = vsel %vm3369, %v6447, 0
      %v6526 = vsel %vm3369, %v6449, 0
      %6528 = vmatprep.subr.bf16.mxu0 0
      %6529 = vmatpush1.bf16.msra.mxu0 0
      %6530 = vmatprep.subr.bf16.mxu0 0
      %6531 = vmatpush1.bf16.msra.mxu0 0
      %6532 = vmatprep.subr.bf16.mxu0 0
      %6533 = vmatpush1.bf16.msra.mxu0 0
      %6534 = vmatprep.subr.bf16.mxu0 0
      %6535 = vmatpush1.bf16.msra.mxu0 0
      %6536 = vmatprep.subr.bf16.mxu0 0
      %6537 = vmatpush1.bf16.msra.mxu0 %v6469
      %6538 = vmatprep.subr.bf16.mxu0 0
      %6539 = vmatpush1.bf16.msra.mxu0 %v6468
      %6540 = vmatprep.subr.bf16.mxu0 0
      %6541 = vmatpush1.bf16.msra.mxu0 %v6467
      %6542 = vmatprep.subr.bf16.mxu0 0
      %6543 = vmatpush1.bf16.msra.mxu0 %v6466
      %6544 = vmatprep.subr.bf16.mxu0 0
      %6545 = vmatpush2.bf16.msra.mxu0 0
      %6546 = vmatprep.subr.bf16.mxu0 0
      %6547 = vmatpush2.bf16.msra.mxu0 0
      %6548 = vmatprep.subr.bf16.mxu0 0
      %6549 = vmatpush2.bf16.msra.mxu0 0
      %6550 = vmatprep.subr.bf16.mxu0 0
      %6551 = vmatpush2.bf16.msra.mxu0 0
      %6552 = vmatprep.subr.bf16.mxu0 0
      %6553 = vmatpush2.bf16.msra.mxu0 0
      %6554 = vmatprep.subr.bf16.mxu0 0
      %6555 = vmatpush2.bf16.msra.mxu0 0
      %6556 = vmatprep.subr.bf16.mxu0 0
      %6557 = vmatpush2.bf16.msra.mxu0 0
      %6558 = vmatprep.subr.bf16.mxu0 0
      %6559 = vmatpush2.bf16.msra.mxu0 0
      %6560 = vmatprep.mubr.bf16.mxu0 0
      %6561 = vmatmul.mubr.bf16.gmra.mxu0 %v6475
      %v6562 = vpop.f32.mrf.mxu0
      %v6563 = vadd.f32 0.0, %v6562
      %v6564 = vpop.f32.mrf.mxu0
      %v6565 = vpop.f32.mrf.mxu0
      %v6566 = vadd.f32 0.0, %v6565
      %v6567 = vpop.f32.mrf.mxu0
      %6568 = vmatprep.mubr.bf16.mxu0 0
      %6569 = vmatmul.mubr.bf16.gmra.mxu0 %v6478
      %v6570 = vpop.f32.mrf.mxu0
      %v6571 = vadd.f32 0.0, %v6570
      %v6572 = vpop.f32.mrf.mxu0
      %v6573 = vpop.f32.mrf.mxu0
      %v6574 = vadd.f32 0.0, %v6573
      %v6575 = vpop.f32.mrf.mxu0
      %6576 = vmatprep.mubr.bf16.mxu0 0
      %6577 = vmatmul.mubr.bf16.gmra.mxu0 %v6481
      %v6578 = vpop.f32.mrf.mxu0
      %v6579 = vadd.f32 0.0, %v6578
      %v6580 = vpop.f32.mrf.mxu0
      %v6581 = vpop.f32.mrf.mxu0
      %v6582 = vadd.f32 0.0, %v6581
      %v6583 = vpop.f32.mrf.mxu0
      %6584 = vmatprep.mubr.bf16.mxu0 0
      %6585 = vmatmul.mubr.bf16.gmra.mxu0 %v6484
      %v6586 = vpop.f32.mrf.mxu0
      %v6587 = vadd.f32 0.0, %v6586
      %v6588 = vpop.f32.mrf.mxu0
      %v6589 = vpop.f32.mrf.mxu0
      %v6590 = vadd.f32 0.0, %v6589
      %v6591 = vpop.f32.mrf.mxu0
      %6592 = vmatprep.mubr.bf16.mxu0 0
      %6593 = vmatmul.mubr.bf16.gmra.mxu0 %v6487
      %v6594 = vpop.f32.mrf.mxu0
      %v6595 = vadd.f32 0.0, %v6594
      %v6596 = vpop.f32.mrf.mxu0
      %v6597 = vpop.f32.mrf.mxu0
      %v6598 = vadd.f32 0.0, %v6597
      %v6599 = vpop.f32.mrf.mxu0
      %6600 = vmatprep.mubr.bf16.mxu0 0
      %6601 = vmatmul.mubr.bf16.gmra.mxu0 %v6490
      %v6602 = vpop.f32.mrf.mxu0
      %v6603 = vadd.f32 0.0, %v6602
      %v6604 = vpop.f32.mrf.mxu0
      %v6605 = vpop.f32.mrf.mxu0
      %v6606 = vadd.f32 0.0, %v6605
      %v6607 = vpop.f32.mrf.mxu0
      %6608 = vmatprep.mubr.bf16.mxu0 0
      %6609 = vmatmul.mubr.bf16.gmra.mxu0 %v6493
      %v6610 = vpop.f32.mrf.mxu0
      %v6611 = vadd.f32 0.0, %v6610
      %v6612 = vpop.f32.mrf.mxu0
      %v6613 = vpop.f32.mrf.mxu0
      %v6614 = vadd.f32 0.0, %v6613
      %v6615 = vpop.f32.mrf.mxu0
      %6616 = vmatprep.mubr.bf16.mxu0 0
      %6617 = vmatmul.mubr.bf16.gmra.mxu0 %v6496
      %v6618 = vpop.f32.mrf.mxu0
      %v6619 = vadd.f32 0.0, %v6618
      %v6620 = vpop.f32.mrf.mxu0
      %v6621 = vpop.f32.mrf.mxu0
      %v6622 = vadd.f32 0.0, %v6621
      %v6623 = vpop.f32.mrf.mxu0
      %6624 = vmatprep.mubr.bf16.mxu0 0
      %6625 = vmatmul.mubr.bf16.gmra.mxu0 %v6499
      %v6626 = vpop.f32.mrf.mxu0
      %v6627 = vadd.f32 0.0, %v6626
      %v6628 = vpop.f32.mrf.mxu0
      %v6629 = vpop.f32.mrf.mxu0
      %v6630 = vadd.f32 0.0, %v6629
      %v6631 = vpop.f32.mrf.mxu0
      %6632 = vmatprep.mubr.bf16.mxu0 0
      %6633 = vmatmul.mubr.bf16.gmra.mxu0 %v6502
      %v6634 = vpop.f32.mrf.mxu0
      %v6635 = vadd.f32 0.0, %v6634
      %v6636 = vpop.f32.mrf.mxu0
      %v6637 = vpop.f32.mrf.mxu0
      %v6638 = vadd.f32 0.0, %v6637
      %v6639 = vpop.f32.mrf.mxu0
      %6640 = vmatprep.mubr.bf16.mxu0 0
      %6641 = vmatmul.mubr.bf16.gmra.mxu0 %v6505
      %v6642 = vpop.f32.mrf.mxu0
      %v6643 = vadd.f32 0.0, %v6642
      %v6644 = vpop.f32.mrf.mxu0
      %v6645 = vpop.f32.mrf.mxu0
      %v6646 = vadd.f32 0.0, %v6645
      %v6647 = vpop.f32.mrf.mxu0
      %6648 = vmatprep.mubr.bf16.mxu0 0
      %6649 = vmatmul.mubr.bf16.gmra.mxu0 %v6508
      %v6650 = vpop.f32.mrf.mxu0
      %v6651 = vadd.f32 0.0, %v6650
      %v6652 = vpop.f32.mrf.mxu0
      %v6653 = vpop.f32.mrf.mxu0
      %v6654 = vadd.f32 0.0, %v6653
      %v6655 = vpop.f32.mrf.mxu0
      %6656 = vmatprep.mubr.bf16.mxu0 0
      %6657 = vmatmul.mubr.bf16.gmra.mxu0 %v6511
      %v6658 = vpop.f32.mrf.mxu0
      %v6659 = vadd.f32 0.0, %v6658
      %v6660 = vpop.f32.mrf.mxu0
      %v6661 = vpop.f32.mrf.mxu0
      %v6662 = vadd.f32 0.0, %v6661
      %v6663 = vpop.f32.mrf.mxu0
      %6664 = vmatprep.mubr.bf16.mxu0 0
      %6665 = vmatmul.mubr.bf16.gmra.mxu0 %v6514
      %v6666 = vpop.f32.mrf.mxu0
      %v6667 = vadd.f32 0.0, %v6666
      %v6668 = vpop.f32.mrf.mxu0
      %v6669 = vpop.f32.mrf.mxu0
      %v6670 = vadd.f32 0.0, %v6669
      %v6671 = vpop.f32.mrf.mxu0
      %6672 = vmatprep.mubr.bf16.mxu0 0
      %6673 = vmatmul.mubr.bf16.gmra.mxu0 %v6517
      %v6674 = vpop.f32.mrf.mxu0
      %v6675 = vadd.f32 0.0, %v6674
      %v6676 = vpop.f32.mrf.mxu0
      %v6677 = vpop.f32.mrf.mxu0
      %v6678 = vadd.f32 0.0, %v6677
      %v6679 = vpop.f32.mrf.mxu0
      %6680 = vmatprep.mubr.bf16.mxu0 0
      %6681 = vmatmul.mubr.bf16.gmra.mxu0 %v6520
      %v6682 = vpop.f32.mrf.mxu0
      %v6683 = vadd.f32 0.0, %v6682
      %v6684 = vpop.f32.mrf.mxu0
      %v6685 = vpop.f32.mrf.mxu0
      %v6686 = vadd.f32 0.0, %v6685
      %v6687 = vpop.f32.mrf.mxu0
      %6688 = vmatprep.mubr.bf16.mxu0 0
      %6689 = vmatmul.mubr.bf16.gmra.mxu0 %v6523
      %v6690 = vpop.f32.mrf.mxu0
      %v6691 = vadd.f32 0.0, %v6690
      %v6692 = vpop.f32.mrf.mxu0
      %v6693 = vpop.f32.mrf.mxu0
      %v6694 = vadd.f32 0.0, %v6693
      %v6695 = vpop.f32.mrf.mxu0
      %6696 = vmatprep.mubr.bf16.mxu0 0
      %6697 = vmatmul.mubr.bf16.gmra.mxu0 %v6526
      %v6698 = vpop.f32.mrf.mxu0
      %v6699 = vadd.f32 0.0, %v6698
      %v6700 = vpop.f32.mrf.mxu0
      %v6701 = vpop.f32.mrf.mxu0
      %v6702 = vadd.f32 0.0, %v6701
      %v6703 = vpop.f32.mrf.mxu0
      %6704 = vdwg.mxu0
      %v6705 = vadd.f32 %v6368, %v6563
      %v6706 = vadd.f32 %v6369, %v6566
      %v6707 = vadd.f32 %v6370, %v6571
      %v6708 = vadd.f32 %v6371, %v6574
      %v6709 = vadd.f32 %v6372, %v6579
      %v6710 = vadd.f32 %v6373, %v6582
      %v6711 = vadd.f32 %v6374, %v6587
      %v6712 = vadd.f32 %v6375, %v6590
      %v6713 = vadd.f32 %v6376, %v6595
      %v6714 = vadd.f32 %v6377, %v6598
      %v6715 = vadd.f32 %v6378, %v6603
      %v6716 = vadd.f32 %v6379, %v6606
      %v6717 = vadd.f32 %v6380, %v6611
      %v6718 = vadd.f32 %v6381, %v6614
      %v6719 = vadd.f32 %v6382, %v6619
      %v6720 = vadd.f32 %v6383, %v6622
      %v6721 = vadd.f32 %v6384, %v6627
      %v6722 = vadd.f32 %v6385, %v6630
      %v6723 = vadd.f32 %v6386, %v6635
      %v6724 = vadd.f32 %v6387, %v6638
      %v6725 = vadd.f32 %v6388, %v6643
      %v6726 = vadd.f32 %v6389, %v6646
      %v6727 = vadd.f32 %v6390, %v6651
      %v6728 = vadd.f32 %v6391, %v6654
      %v6729 = vadd.f32 %v6392, %v6659
      %v6730 = vadd.f32 %v6393, %v6662
      %v6731 = vadd.f32 %v6394, %v6667
      %v6732 = vadd.f32 %v6395, %v6670
      %v6733 = vadd.f32 %v6396, %v6675
      %v6734 = vadd.f32 %v6397, %v6678
      %v6735 = vadd.f32 %v6398, %v6683
      %v6736 = vadd.f32 %v6399, %v6686
      %v6737 = vadd.f32 %v6400, %v6691
      %v6738 = vadd.f32 %v6401, %v6694
      %v6739 = vadd.f32 %v6402, %v6699
      %v6740 = vadd.f32 %v6403, %v6702
      %v6742 = vlaneseq
      %v6743 = vshrl.u32 %v6742, 7
      %v6744 = vsub.s32 0, %v6743
      %v6745 = vrot.slane %v3743, %v6744
      %v6747 = vmul.f32 %v6705, %v6745
      %v6748 = vmul.f32 %v6706, %v6745
      %v6749 = vmul.f32 %v6707, %v6745
      %v6750 = vmul.f32 %v6708, %v6745
      %v6751 = vmul.f32 %v6709, %v6745
      %v6752 = vmul.f32 %v6710, %v6745
      %v6753 = vmul.f32 %v6711, %v6745
      %v6754 = vmul.f32 %v6712, %v6745
      %v6755 = vmul.f32 %v6713, %v6745
      %v6756 = vmul.f32 %v6714, %v6745
      %v6757 = vmul.f32 %v6715, %v6745
      %v6758 = vmul.f32 %v6716, %v6745
      %v6759 = vmul.f32 %v6717, %v6745
      %v6760 = vmul.f32 %v6718, %v6745
      %v6761 = vmul.f32 %v6719, %v6745
      %v6762 = vmul.f32 %v6720, %v6745
      %v6763 = vmul.f32 %v6721, %v6745
      %v6764 = vmul.f32 %v6722, %v6745
      %v6765 = vmul.f32 %v6723, %v6745
      %v6766 = vmul.f32 %v6724, %v6745
      %v6767 = vmul.f32 %v6725, %v6745
      %v6768 = vmul.f32 %v6726, %v6745
      %v6769 = vmul.f32 %v6727, %v6745
      %v6770 = vmul.f32 %v6728, %v6745
      %v6771 = vmul.f32 %v6729, %v6745
      %v6772 = vmul.f32 %v6730, %v6745
      %v6773 = vmul.f32 %v6731, %v6745
      %v6774 = vmul.f32 %v6732, %v6745
      %v6775 = vmul.f32 %v6733, %v6745
      %v6776 = vmul.f32 %v6734, %v6745
      %v6777 = vmul.f32 %v6735, %v6745
      %v6778 = vmul.f32 %v6736, %v6745
      %v6779 = vmul.f32 %v6737, %v6745
      %v6780 = vmul.f32 %v6738, %v6745
      %v6781 = vmul.f32 %v6739, %v6745
      %v6782 = vmul.f32 %v6740, %v6745
      %v6784 = vlaneseq
      %v6785 = vshrl.u32 %v6784, 7
      %v6786 = vsub.s32 0, %v6785
      %v6787 = vrot.slane %v3744, %v6786
      %v6789 = vadd.f32 %v6747, %v6787
      %v6790 = vadd.f32 %v6748, %v6787
      %v6791 = vadd.f32 %v6749, %v6787
      %v6792 = vadd.f32 %v6750, %v6787
      %v6793 = vadd.f32 %v6751, %v6787
      %v6794 = vadd.f32 %v6752, %v6787
      %v6795 = vadd.f32 %v6753, %v6787
      %v6796 = vadd.f32 %v6754, %v6787
      %v6797 = vadd.f32 %v6755, %v6787
      %v6798 = vadd.f32 %v6756, %v6787
      %v6799 = vadd.f32 %v6757, %v6787
      %v6800 = vadd.f32 %v6758, %v6787
      %v6801 = vadd.f32 %v6759, %v6787
      %v6802 = vadd.f32 %v6760, %v6787
      %v6803 = vadd.f32 %v6761, %v6787
      %v6804 = vadd.f32 %v6762, %v6787
      %v6805 = vadd.f32 %v6763, %v6787
      %v6806 = vadd.f32 %v6764, %v6787
      %v6807 = vadd.f32 %v6765, %v6787
      %v6808 = vadd.f32 %v6766, %v6787
      %v6809 = vadd.f32 %v6767, %v6787
      %v6810 = vadd.f32 %v6768, %v6787
      %v6811 = vadd.f32 %v6769, %v6787
      %v6812 = vadd.f32 %v6770, %v6787
      %v6813 = vadd.f32 %v6771, %v6787
      %v6814 = vadd.f32 %v6772, %v6787
      %v6815 = vadd.f32 %v6773, %v6787
      %v6816 = vadd.f32 %v6774, %v6787
      %v6817 = vadd.f32 %v6775, %v6787
      %v6818 = vadd.f32 %v6776, %v6787
      %v6819 = vadd.f32 %v6777, %v6787
      %v6820 = vadd.f32 %v6778, %v6787
      %v6821 = vadd.f32 %v6779, %v6787
      %v6822 = vadd.f32 %v6780, %v6787
      %v6823 = vadd.f32 %v6781, %v6787
      %v6824 = vadd.f32 %v6782, %v6787
      %v6825 = vmul.f32 %v6789, 0.5
      %v6826 = vmul.f32 %v6790, 0.5
      %v6827 = vmul.f32 %v6791, 0.5
      %v6828 = vmul.f32 %v6792, 0.5
      %v6829 = vmul.f32 %v6793, 0.5
      %v6830 = vmul.f32 %v6794, 0.5
      %v6831 = vmul.f32 %v6795, 0.5
      %v6832 = vmul.f32 %v6796, 0.5
      %v6833 = vmul.f32 %v6797, 0.5
      %v6834 = vmul.f32 %v6798, 0.5
      %v6835 = vmul.f32 %v6799, 0.5
      %v6836 = vmul.f32 %v6800, 0.5
      %v6837 = vmul.f32 %v6801, 0.5
      %v6838 = vmul.f32 %v6802, 0.5
      %v6839 = vmul.f32 %v6803, 0.5
      %v6840 = vmul.f32 %v6804, 0.5
      %v6841 = vmul.f32 %v6805, 0.5
      %v6842 = vmul.f32 %v6806, 0.5
      %v6843 = vmul.f32 %v6807, 0.5
      %v6844 = vmul.f32 %v6808, 0.5
      %v6845 = vmul.f32 %v6809, 0.5
      %v6846 = vmul.f32 %v6810, 0.5
      %v6847 = vmul.f32 %v6811, 0.5
      %v6848 = vmul.f32 %v6812, 0.5
      %v6849 = vmul.f32 %v6813, 0.5
      %v6850 = vmul.f32 %v6814, 0.5
      %v6851 = vmul.f32 %v6815, 0.5
      %v6852 = vmul.f32 %v6816, 0.5
      %v6853 = vmul.f32 %v6817, 0.5
      %v6854 = vmul.f32 %v6818, 0.5
      %v6855 = vmul.f32 %v6819, 0.5
      %v6856 = vmul.f32 %v6820, 0.5
      %v6857 = vmul.f32 %v6821, 0.5
      %v6858 = vmul.f32 %v6822, 0.5
      %v6859 = vmul.f32 %v6823, 0.5
      %v6860 = vmul.f32 %v6824, 0.5
      %v6861 = vmul.f32 %v6789, 0.70710677
      %v6862 = vmul.f32 %v6790, 0.70710677
      %v6863 = vmul.f32 %v6791, 0.70710677
      %v6864 = vmul.f32 %v6792, 0.70710677
      %v6865 = vmul.f32 %v6793, 0.70710677
      %v6866 = vmul.f32 %v6794, 0.70710677
      %v6867 = vmul.f32 %v6795, 0.70710677
      %v6868 = vmul.f32 %v6796, 0.70710677
      %v6869 = vmul.f32 %v6797, 0.70710677
      %v6870 = vmul.f32 %v6798, 0.70710677
      %v6871 = vmul.f32 %v6799, 0.70710677
      %v6872 = vmul.f32 %v6800, 0.70710677
      %v6873 = vmul.f32 %v6801, 0.70710677
      %v6874 = vmul.f32 %v6802, 0.70710677
      %v6875 = vmul.f32 %v6803, 0.70710677
      %v6876 = vmul.f32 %v6804, 0.70710677
      %v6877 = vmul.f32 %v6805, 0.70710677
      %v6878 = vmul.f32 %v6806, 0.70710677
      %v6879 = vmul.f32 %v6807, 0.70710677
      %v6880 = vmul.f32 %v6808, 0.70710677
      %v6881 = vmul.f32 %v6809, 0.70710677
      %v6882 = vmul.f32 %v6810, 0.70710677
      %v6883 = vmul.f32 %v6811, 0.70710677
      %v6884 = vmul.f32 %v6812, 0.70710677
      %v6885 = vmul.f32 %v6813, 0.70710677
      %v6886 = vmul.f32 %v6814, 0.70710677
      %v6887 = vmul.f32 %v6815, 0.70710677
      %v6888 = vmul.f32 %v6816, 0.70710677
      %v6889 = vmul.f32 %v6817, 0.70710677
      %v6890 = vmul.f32 %v6818, 0.70710677
      %v6891 = vmul.f32 %v6819, 0.70710677
      %v6892 = vmul.f32 %v6820, 0.70710677
      %v6893 = vmul.f32 %v6821, 0.70710677
      %v6894 = vmul.f32 %v6822, 0.70710677
      %v6895 = vmul.f32 %v6823, 0.70710677
      %v6896 = vmul.f32 %v6824, 0.70710677
      %v6897 = verf.f32.pop %v6861
      %v6898 = verf.f32.pop %v6862
      %v6899 = verf.f32.pop %v6863
      %v6900 = verf.f32.pop %v6864
      %v6901 = verf.f32.pop %v6865
      %v6902 = verf.f32.pop %v6866
      %v6903 = verf.f32.pop %v6867
      %v6904 = verf.f32.pop %v6868
      %v6905 = verf.f32.pop %v6869
      %v6906 = verf.f32.pop %v6870
      %v6907 = verf.f32.pop %v6871
      %v6908 = verf.f32.pop %v6872
      %v6909 = verf.f32.pop %v6873
      %v6910 = verf.f32.pop %v6874
      %v6911 = verf.f32.pop %v6875
      %v6912 = verf.f32.pop %v6876
      %v6913 = verf.f32.pop %v6877
      %v6914 = verf.f32.pop %v6878
      %v6915 = verf.f32.pop %v6879
      %v6916 = verf.f32.pop %v6880
      %v6917 = verf.f32.pop %v6881
      %v6918 = verf.f32.pop %v6882
      %v6919 = verf.f32.pop %v6883
      %v6920 = verf.f32.pop %v6884
      %v6921 = verf.f32.pop %v6885
      %v6922 = verf.f32.pop %v6886
      %v6923 = verf.f32.pop %v6887
      %v6924 = verf.f32.pop %v6888
      %v6925 = verf.f32.pop %v6889
      %v6926 = verf.f32.pop %v6890
      %v6927 = verf.f32.pop %v6891
      %v6928 = verf.f32.pop %v6892
      %v6929 = verf.f32.pop %v6893
      %v6930 = verf.f32.pop %v6894
      %v6931 = verf.f32.pop %v6895
      %v6932 = verf.f32.pop %v6896
      %v6933 = vadd.f32 %v6897, 1.0
      %v6934 = vadd.f32 %v6898, 1.0
      %v6935 = vadd.f32 %v6899, 1.0
      %v6936 = vadd.f32 %v6900, 1.0
      %v6937 = vadd.f32 %v6901, 1.0
      %v6938 = vadd.f32 %v6902, 1.0
      %v6939 = vadd.f32 %v6903, 1.0
      %v6940 = vadd.f32 %v6904, 1.0
      %v6941 = vadd.f32 %v6905, 1.0
      %v6942 = vadd.f32 %v6906, 1.0
      %v6943 = vadd.f32 %v6907, 1.0
      %v6944 = vadd.f32 %v6908, 1.0
      %v6945 = vadd.f32 %v6909, 1.0
      %v6946 = vadd.f32 %v6910, 1.0
      %v6947 = vadd.f32 %v6911, 1.0
      %v6948 = vadd.f32 %v6912, 1.0
      %v6949 = vadd.f32 %v6913, 1.0
      %v6950 = vadd.f32 %v6914, 1.0
      %v6951 = vadd.f32 %v6915, 1.0
      %v6952 = vadd.f32 %v6916, 1.0
      %v6953 = vadd.f32 %v6917, 1.0
      %v6954 = vadd.f32 %v6918, 1.0
      %v6955 = vadd.f32 %v6919, 1.0
      %v6956 = vadd.f32 %v6920, 1.0
      %v6957 = vadd.f32 %v6921, 1.0
      %v6958 = vadd.f32 %v6922, 1.0
      %v6959 = vadd.f32 %v6923, 1.0
      %v6960 = vadd.f32 %v6924, 1.0
      %v6961 = vadd.f32 %v6925, 1.0
      %v6962 = vadd.f32 %v6926, 1.0
      %v6963 = vadd.f32 %v6927, 1.0
      %v6964 = vadd.f32 %v6928, 1.0
      %v6965 = vadd.f32 %v6929, 1.0
      %v6966 = vadd.f32 %v6930, 1.0
      %v6967 = vadd.f32 %v6931, 1.0
      %v6968 = vadd.f32 %v6932, 1.0
      %v6969 = vmul.f32 %v6825, %v6933
      %v6970 = vmul.f32 %v6826, %v6934
      %v6971 = vmul.f32 %v6827, %v6935
      %v6972 = vmul.f32 %v6828, %v6936
      %v6973 = vmul.f32 %v6829, %v6937
      %v6974 = vmul.f32 %v6830, %v6938
      %v6975 = vmul.f32 %v6831, %v6939
      %v6976 = vmul.f32 %v6832, %v6940
      %v6977 = vmul.f32 %v6833, %v6941
      %v6978 = vmul.f32 %v6834, %v6942
      %v6979 = vmul.f32 %v6835, %v6943
      %v6980 = vmul.f32 %v6836, %v6944
      %v6981 = vmul.f32 %v6837, %v6945
      %v6982 = vmul.f32 %v6838, %v6946
      %v6983 = vmul.f32 %v6839, %v6947
      %v6984 = vmul.f32 %v6840, %v6948
      %v6985 = vmul.f32 %v6841, %v6949
      %v6986 = vmul.f32 %v6842, %v6950
      %v6987 = vmul.f32 %v6843, %v6951
      %v6988 = vmul.f32 %v6844, %v6952
      %v6989 = vmul.f32 %v6845, %v6953
      %v6990 = vmul.f32 %v6846, %v6954
      %v6991 = vmul.f32 %v6847, %v6955
      %v6992 = vmul.f32 %v6848, %v6956
      %v6993 = vmul.f32 %v6849, %v6957
      %v6994 = vmul.f32 %v6850, %v6958
      %v6995 = vmul.f32 %v6851, %v6959
      %v6996 = vmul.f32 %v6852, %v6960
      %v6997 = vmul.f32 %v6853, %v6961
      %v6998 = vmul.f32 %v6854, %v6962
      %v6999 = vmul.f32 %v6855, %v6963
      %v7000 = vmul.f32 %v6856, %v6964
      %v7001 = vmul.f32 %v6857, %v6965
      %v7002 = vmul.f32 %v6858, %v6966
      %v7003 = vmul.f32 %v6859, %v6967
      %v7004 = vmul.f32 %v6860, %v6968
      %v7005 = vpack.c.bf16 %v6970, %v6969
      %v7007 = vunpack.c.l.b16 %v7005
      %v7008 = vunpack.c.h.b16 %v7005
      %v7009 = vpack.c.b16 %v7007, %v7007
      %v7010 = vpack.c.b16 %v7008, %v7008
      %vm7013 = vcmask 519168
      %7014 = vst.msk [vmem:[%s305] sm:$0xf] %vm7013, %v7009
      %7015 = vst.msk [vmem:[%s305 + $0x4] sm:$0xf] %vm7013, %v7010
      %v7016 = vpack.c.bf16 %v6972, %v6971
      %v7017 = vpack.c.bf16 %v6973, %v6973
      %v7020 = vunpack.c.l.b16 %v7016
      %v7021 = vunpack.c.h.b16 %v7016
      %v7022 = vunpack.c.l.b16 %v7017
      %v7023 = vpack.c.b16 %v7020, %v7020
      %v7024 = vpack.c.b16 %v7021, %v7021
      %v7025 = vpack.c.b16 %v7022, %v7022
      %vm7026 = vcmask 1042432
      %vm7027 = vcmask 1046532
      %vm7028 = vmor %vm7026, %vm7027
      %v7029 = vrot.slane %v7023, 5
      %v7030 = vrot.slane %v7029, 4
      %v7031 = vrot.slane %v7024, 5
      %v7032 = vsel %vm7028, %v7030, %v7031
      %v7033 = vrot.slane %v7031, 4
      %v7034 = vrot.slane %v7025, 5
      %v7035 = vsel %vm7028, %v7033, %v7034
      %7038 = vst.msk [vmem:[%s305 + $0x8] sm:$0xf] %vm7013, %v7032
      %7039 = vst.msk [vmem:[%s305 + $0xc] sm:$0xf] %vm7013, %v7035
      %v7040 = vpack.c.bf16 %v6974, %v6973
      %v7041 = vpack.c.bf16 %v6975, %v6975
      %v7044 = vunpack.c.l.b16 %v7040
      %v7045 = vunpack.c.h.b16 %v7040
      %v7046 = vunpack.c.l.b16 %v7041
      %v7047 = vpack.c.b16 %v7044, %v7044
      %v7048 = vpack.c.b16 %v7045, %v7045
      %v7049 = vpack.c.b16 %v7046, %v7046
      %vm7050 = vcmask 1041408
      %vm7051 = vcmask 1045508
      %vm7052 = vmor %vm7050, %vm7051
      %v7053 = vrot.slane %v7047, 6
      %v7054 = vrot.slane %v7053, 4
      %v7055 = vrot.slane %v7048, 6
      %v7056 = vsel %vm7052, %v7054, %v7055
      %v7057 = vrot.slane %v7055, 4
      %v7058 = vrot.slane %v7049, 6
      %v7059 = vsel %vm7052, %v7057, %v7058
      %7062 = vst.msk [vmem:[%s305 + $0x10] sm:$0xf] %vm7013, %v7056
      %7063 = vst.msk [vmem:[%s305 + $0x14] sm:$0xf] %vm7013, %v7059
      %v7064 = vpack.c.bf16 %v6976, %v6975
      %v7065 = vpack.c.bf16 %v6977, %v6977
      %v7068 = vunpack.c.l.b16 %v7064
      %v7069 = vunpack.c.h.b16 %v7064
      %v7070 = vunpack.c.l.b16 %v7065
      %v7071 = vpack.c.b16 %v7068, %v7068
      %v7072 = vpack.c.b16 %v7069, %v7069
      %v7073 = vpack.c.b16 %v7070, %v7070
      %vm7074 = vcmask 1040384
      %vm7075 = vcmask 1044484
      %vm7076 = vmor %vm7074, %vm7075
      %v7077 = vrot.slane %v7071, 7
      %v7078 = vrot.slane %v7077, 4
      %v7079 = vrot.slane %v7072, 7
      %v7080 = vsel %vm7076, %v7078, %v7079
      %v7081 = vrot.slane %v7079, 4
      %v7082 = vrot.slane %v7073, 7
      %v7083 = vsel %vm7076, %v7081, %v7082
      %7086 = vst.msk [vmem:[%s305 + $0x18] sm:$0xf] %vm7013, %v7080
      %7087 = vst.msk [vmem:[%s305 + $0x1c] sm:$0xf] %vm7013, %v7083
      %v7088 = vpack.c.bf16 %v6979, %v6978
      %v7090 = vunpack.c.l.b16 %v7088
      %v7091 = vunpack.c.h.b16 %v7088
      %v7092 = vpack.c.b16 %v7090, %v7090
      %v7093 = vpack.c.b16 %v7091, %v7091
      %7096 = vst.msk [vmem:[%s305 + $0x20] sm:$0xf] %vm7013, %v7092
      %7097 = vst.msk [vmem:[%s305 + $0x24] sm:$0xf] %vm7013, %v7093
      %v7098 = vpack.c.bf16 %v6981, %v6980
      %v7099 = vpack.c.bf16 %v6982, %v6982
      %v7102 = vunpack.c.l.b16 %v7098
      %v7103 = vunpack.c.h.b16 %v7098
      %v7104 = vunpack.c.l.b16 %v7099
      %v7105 = vpack.c.b16 %v7102, %v7102
      %v7106 = vpack.c.b16 %v7103, %v7103
      %v7107 = vpack.c.b16 %v7104, %v7104
      %v7108 = vrot.slane %v7105, 5
      %v7109 = vrot.slane %v7108, 4
      %v7110 = vrot.slane %v7106, 5
      %v7111 = vsel %vm7028, %v7109, %v7110
      %v7112 = vrot.slane %v7110, 4
      %v7113 = vrot.slane %v7107, 5
      %v7114 = vsel %vm7028, %v7112, %v7113
      %7117 = vst.msk [vmem:[%s305 + $0x28] sm:$0xf] %vm7013, %v7111
      %7118 = vst.msk [vmem:[%s305 + $0x2c] sm:$0xf] %vm7013, %v7114
      %v7119 = vpack.c.bf16 %v6983, %v6982
      %v7120 = vpack.c.bf16 %v6984, %v6984
      %v7123 = vunpack.c.l.b16 %v7119
      %v7124 = vunpack.c.h.b16 %v7119
      %v7125 = vunpack.c.l.b16 %v7120
      %v7126 = vpack.c.b16 %v7123, %v7123
      %v7127 = vpack.c.b16 %v7124, %v7124
      %v7128 = vpack.c.b16 %v7125, %v7125
      %v7129 = vrot.slane %v7126, 6
      %v7130 = vrot.slane %v7129, 4
      %v7131 = vrot.slane %v7127, 6
      %v7132 = vsel %vm7052, %v7130, %v7131
      %v7133 = vrot.slane %v7131, 4
      %v7134 = vrot.slane %v7128, 6
      %v7135 = vsel %vm7052, %v7133, %v7134
      %7138 = vst.msk [vmem:[%s305 + $0x30] sm:$0xf] %vm7013, %v7132
      %7139 = vst.msk [vmem:[%s305 + $0x34] sm:$0xf] %vm7013, %v7135
      %v7140 = vpack.c.bf16 %v6985, %v6984
      %v7141 = vpack.c.bf16 %v6986, %v6986
      %v7144 = vunpack.c.l.b16 %v7140
      %v7145 = vunpack.c.h.b16 %v7140
      %v7146 = vunpack.c.l.b16 %v7141
      %v7147 = vpack.c.b16 %v7144, %v7144
      %v7148 = vpack.c.b16 %v7145, %v7145
      %v7149 = vpack.c.b16 %v7146, %v7146
      %v7150 = vrot.slane %v7147, 7
      %v7151 = vrot.slane %v7150, 4
      %v7152 = vrot.slane %v7148, 7
      %v7153 = vsel %vm7076, %v7151, %v7152
      %v7154 = vrot.slane %v7152, 4
      %v7155 = vrot.slane %v7149, 7
      %v7156 = vsel %vm7076, %v7154, %v7155
      %7159 = vst.msk [vmem:[%s305 + $0x38] sm:$0xf] %vm7013, %v7153
      %7160 = vst.msk [vmem:[%s305 + $0x3c] sm:$0xf] %vm7013, %v7156
      %v7161 = vpack.c.bf16 %v6988, %v6987
      %v7163 = vunpack.c.l.b16 %v7161
      %v7164 = vunpack.c.h.b16 %v7161
      %v7165 = vpack.c.b16 %v7163, %v7163
      %v7166 = vpack.c.b16 %v7164, %v7164
      %7169 = vst.msk [vmem:[%s305 + $0x40] sm:$0xf] %vm7013, %v7165
      %7170 = vst.msk [vmem:[%s305 + $0x44] sm:$0xf] %vm7013, %v7166
      %v7171 = vpack.c.bf16 %v6990, %v6989
      %v7172 = vpack.c.bf16 %v6991, %v6991
      %v7175 = vunpack.c.l.b16 %v7171
      %v7176 = vunpack.c.h.b16 %v7171
      %v7177 = vunpack.c.l.b16 %v7172
      %v7178 = vpack.c.b16 %v7175, %v7175
      %v7179 = vpack.c.b16 %v7176, %v7176
      %v7180 = vpack.c.b16 %v7177, %v7177
      %v7181 = vrot.slane %v7178, 5
      %v7182 = vrot.slane %v7181, 4
      %v7183 = vrot.slane %v7179, 5
      %v7184 = vsel %vm7028, %v7182, %v7183
      %v7185 = vrot.slane %v7183, 4
      %v7186 = vrot.slane %v7180, 5
      %v7187 = vsel %vm7028, %v7185, %v7186
      %7190 = vst.msk [vmem:[%s305 + $0x48] sm:$0xf] %vm7013, %v7184
      %7191 = vst.msk [vmem:[%s305 + $0x4c] sm:$0xf] %vm7013, %v7187
      %v7192 = vpack.c.bf16 %v6992, %v6991
      %v7193 = vpack.c.bf16 %v6993, %v6993
      %v7196 = vunpack.c.l.b16 %v7192
      %v7197 = vunpack.c.h.b16 %v7192
      %v7198 = vunpack.c.l.b16 %v7193
      %v7199 = vpack.c.b16 %v7196, %v7196
      %v7200 = vpack.c.b16 %v7197, %v7197
      %v7201 = vpack.c.b16 %v7198, %v7198
      %v7202 = vrot.slane %v7199, 6
      %v7203 = vrot.slane %v7202, 4
      %v7204 = vrot.slane %v7200, 6
      %v7205 = vsel %vm7052, %v7203, %v7204
      %v7206 = vrot.slane %v7204, 4
      %v7207 = vrot.slane %v7201, 6
      %v7208 = vsel %vm7052, %v7206, %v7207
      %7211 = vst.msk [vmem:[%s305 + $0x50] sm:$0xf] %vm7013, %v7205
      %7212 = vst.msk [vmem:[%s305 + $0x54] sm:$0xf] %vm7013, %v7208
      %v7213 = vpack.c.bf16 %v6994, %v6993
      %v7214 = vpack.c.bf16 %v6995, %v6995
      %v7217 = vunpack.c.l.b16 %v7213
      %v7218 = vunpack.c.h.b16 %v7213
      %v7219 = vunpack.c.l.b16 %v7214
      %v7220 = vpack.c.b16 %v7217, %v7217
      %v7221 = vpack.c.b16 %v7218, %v7218
      %v7222 = vpack.c.b16 %v7219, %v7219
      %v7223 = vrot.slane %v7220, 7
      %v7224 = vrot.slane %v7223, 4
      %v7225 = vrot.slane %v7221, 7
      %v7226 = vsel %vm7076, %v7224, %v7225
      %v7227 = vrot.slane %v7225, 4
      %v7228 = vrot.slane %v7222, 7
      %v7229 = vsel %vm7076, %v7227, %v7228
      %7232 = vst.msk [vmem:[%s305 + $0x58] sm:$0xf] %vm7013, %v7226
      %7233 = vst.msk [vmem:[%s305 + $0x5c] sm:$0xf] %vm7013, %v7229
      %v7234 = vpack.c.bf16 %v6997, %v6996
      %v7236 = vunpack.c.l.b16 %v7234
      %v7237 = vunpack.c.h.b16 %v7234
      %v7238 = vpack.c.b16 %v7236, %v7236
      %v7239 = vpack.c.b16 %v7237, %v7237
      %7242 = vst.msk [vmem:[%s305 + $0x60] sm:$0xf] %vm7013, %v7238
      %7243 = vst.msk [vmem:[%s305 + $0x64] sm:$0xf] %vm7013, %v7239
      %v7244 = vpack.c.bf16 %v6999, %v6998
      %v7245 = vpack.c.bf16 %v7000, %v7000
      %v7248 = vunpack.c.l.b16 %v7244
      %v7249 = vunpack.c.h.b16 %v7244
      %v7250 = vunpack.c.l.b16 %v7245
      %v7251 = vpack.c.b16 %v7248, %v7248
      %v7252 = vpack.c.b16 %v7249, %v7249
      %v7253 = vpack.c.b16 %v7250, %v7250
      %v7254 = vrot.slane %v7251, 5
      %v7255 = vrot.slane %v7254, 4
      %v7256 = vrot.slane %v7252, 5
      %v7257 = vsel %vm7028, %v7255, %v7256
      %v7258 = vrot.slane %v7256, 4
      %v7259 = vrot.slane %v7253, 5
      %v7260 = vsel %vm7028, %v7258, %v7259
      %7263 = vst.msk [vmem:[%s305 + $0x68] sm:$0xf] %vm7013, %v7257
      %7264 = vst.msk [vmem:[%s305 + $0x6c] sm:$0xf] %vm7013, %v7260
      %v7265 = vpack.c.bf16 %v7001, %v7000
      %v7266 = vpack.c.bf16 %v7002, %v7002
      %v7269 = vunpack.c.l.b16 %v7265
      %v7270 = vunpack.c.h.b16 %v7265
      %v7271 = vunpack.c.l.b16 %v7266
      %v7272 = vpack.c.b16 %v7269, %v7269
      %v7273 = vpack.c.b16 %v7270, %v7270
      %v7274 = vpack.c.b16 %v7271, %v7271
      %v7275 = vrot.slane %v7272, 6
      %v7276 = vrot.slane %v7275, 4
      %v7277 = vrot.slane %v7273, 6
      %v7278 = vsel %vm7052, %v7276, %v7277
      %v7279 = vrot.slane %v7277, 4
      %v7280 = vrot.slane %v7274, 6
      %v7281 = vsel %vm7052, %v7279, %v7280
      %7284 = vst.msk [vmem:[%s305 + $0x70] sm:$0xf] %vm7013, %v7278
      %7285 = vst.msk [vmem:[%s305 + $0x74] sm:$0xf] %vm7013, %v7281
      %v7286 = vpack.c.bf16 %v7003, %v7002
      %v7287 = vpack.c.bf16 %v7004, %v7004
      %v7290 = vunpack.c.l.b16 %v7286
      %v7291 = vunpack.c.h.b16 %v7286
      %v7292 = vunpack.c.l.b16 %v7287
      %v7293 = vpack.c.b16 %v7290, %v7290
      %v7294 = vpack.c.b16 %v7291, %v7291
      %v7295 = vpack.c.b16 %v7292, %v7292
      %v7296 = vrot.slane %v7293, 7
      %v7297 = vrot.slane %v7296, 4
      %v7298 = vrot.slane %v7294, 7
      %v7299 = vsel %vm7076, %v7297, %v7298
      %v7300 = vrot.slane %v7298, 4
      %v7301 = vrot.slane %v7295, 7
      %v7302 = vsel %vm7076, %v7300, %v7301
      %7305 = vst.msk [vmem:[%s305 + $0x78] sm:$0xf] %vm7013, %v7299
      %7306 = vst.msk [vmem:[%s305 + $0x7c] sm:$0xf] %vm7013, %v7302
      %p7307 = scmp.lt.s32.totalorder %s19, 1
      %s7308 = scalar_select %p7307, %s19, 1
      %s7309 = smul.addr %s7308, 32
      %s7310 = smul.addr %s7309, 4
      %s7311 = scalar_lea.vmem %s8, %s7310
      // Predicated region
      $region53: #{conv_resmlp2_forward.3} parent=51 // pred_check
        %p7312 = pneg %p210
      $region54: #{conv_resmlp2_forward.3} parent=51 // pred_check_branch
        %7314 = sbr.rel (%p7312) target = $region56
      $region55: #{conv_resmlp2_forward.3} parent=51 // pred_region
        _
      $region56: #{conv_resmlp2_forward.3} parent=51 // pred_fallthru
        _
    $region52: #{conv_resmlp2_forward.3} parent=5 // pred_fallthru
      _
    %p7315 = scmp.le.s32.totalorder 2, %s14
    // Predicated region
    $region57: #{conv_resmlp2_forward.3} parent=5 // pred_check
      %p7316 = pneg %p7315
    $region58: #{conv_resmlp2_forward.3} parent=5 // pred_check_branch
      %7318 = sbr.rel (%p7316) target = $region60
    $region59: #{conv_resmlp2_forward.3} parent=5 // pred_region
      %s7319 = ssub.s32 %s14, 2
      // Predicated region
      $region61: #{conv_resmlp2_forward.3} parent=59 // pred_check
        %p7320 = pneg %p216
      $region62: #{conv_resmlp2_forward.3} parent=59 // pred_check_branch
        %7322 = sbr.rel (%p7320) target = $region64
      $region63: #{conv_resmlp2_forward.3} parent=59 // pred_region
        %p7323 = scmp.lt.s32.totalorder %s20, 1
        %s7324 = scalar_select %p7323, %s20, 1
        %s7325 = smul.addr %s7324, 32
        %s7326 = smul.addr %s7325, 4
        %s7327 = scalar_lea.vmem %s8, %s7326
      $region64: #{conv_resmlp2_forward.3} parent=59 // pred_fallthru
        _
    $region60: #{conv_resmlp2_forward.3} parent=5 // pred_fallthru
      _
  $region6: #{conv_resmlp2_forward.3} parent=0 // loop_footer
    %s18 = sadd.s32 1, %s14
  $region7: #{conv_resmlp2_forward.3} parent=0 // loop_footer_branch
    %13 = sbr.rel target = $region3
  $region8: #{conv_resmlp2_forward.3} parent=0 // loop_exit
    _

</llo_original>
